<compile_context>
chip_gen: v5e
topology: v5e:2x2
jax: 0.10.0
libtpu: 0.0.40
codegen_flags: <defaults>
</compile_context>

<pallas_src>
import functools

import jax
import jax.numpy as jnp
from jax.experimental import pallas as pl
from jax.experimental.pallas import tpu as pltpu

EPS_LN = 1e-5
EPS_WN = 1e-12


# --------------------------------------------------------------------------
# Shared math helpers (used inside the kernel AND in the pure-JAX reference)
# --------------------------------------------------------------------------
def _layernorm(v, g, b):
    mu = jnp.mean(v, axis=-1, keepdims=True)
    var = jnp.mean(jnp.square(v - mu), axis=-1, keepdims=True)
    return (v - mu) * jax.lax.rsqrt(var + EPS_LN) * g + b


def _swish(h):
    return h * jax.nn.sigmoid(h)


# --------------------------------------------------------------------------
# Fused kernel: patch-embed + depth x MixerBlock + head, one pallas_call
# --------------------------------------------------------------------------
def fused_mixer_kernel(
    patches_ref,   # (Bt, P, K)       bf16   per-batch-block input patches
    conv_w_ref,    # (K, D)           bf16   patch-embed weight            (constant)
    head_w_ref,    # (D, NCP)         bf16   classifier weight, zero-pad   (constant)
    misc_ref,      # (8, MW)          f32    rows: conv_b, head ln_g, head ln_b, head_b
    vecs_ref,      # (depth, 8, VW)   f32    rows: ln1_g, ln1_b, ln2_g, ln2_b, cb1, cb2
    tbias_ref,     # (depth, TPmax, 2) f32   col 0: token b1 (Tm), col 1: token b2 (P)
    tw1t_ref,      # (depth, Tm, P)   bf16   token W1 (applied from the left)
    tw2t_ref,      # (depth, P, Tm)   bf16   token W2 (applied from the left)
    cw1_ref,       # (depth, D, Cm)   bf16   channel W1
    cw2_ref,       # (depth, Cm, D)   bf16   channel W2
    o_ref,         # (1, Bt, NCP)     f32    logits for this batch block
    x_scr,         # (Bt, P, D)       f32    carried activation (VMEM resident over depth)
    skip_scr,      # (Bt, P, D)       f32    embedding / skip connection
):
    d = pl.program_id(1)
    n_depth = pl.num_programs(1)
    Bt, P, D = x_scr.shape
    Tm = tw1t_ref.shape[1]
    Cm = cw1_ref.shape[2]
    NCP = head_w_ref.shape[1]
    bf16 = jnp.bfloat16

    misc = misc_ref[...]                                   # (8, MW) f32

    # ---------------- patch embedding: once per batch block ----------------
    @pl.when(d == 0)
    def _():
        K = patches_ref.shape[2]
        emb = (
            jnp.dot(patches_ref[...].reshape(Bt * P, K), conv_w_ref[...],
                    preferred_element_type=jnp.float32)
            + misc[0, :D]
        ).reshape(Bt, P, D)
        skip_scr[...] = emb
        x_scr[...] = emb

    # ---------------- MixerBlock d (weights indexed from resident stacks) ----------------
    vecs = vecs_ref[d]                                     # (8, VW)   f32
    tb = tbias_ref[d]                                      # (TPmax,2) f32
    w1 = tw1t_ref[d]                                       # (Tm, P)   bf16
    w2 = tw2t_ref[d]                                       # (P, Tm)   bf16
    cw1 = cw1_ref[d]                                       # (D, Cm)   bf16
    cw2 = cw2_ref[d]                                       # (Cm, D)   bf16
    tb1 = tb[:Tm, 0:1]                                     # (Tm, 1) column bias
    tb2 = tb[:P, 1:2]                                      # (P, 1)  column bias

    x = x_scr[...]                                         # (Bt, P, D) f32

    # token mixing: transpose-free per-image 2-D dots (Bt statically unrolled)
    y = _layernorm(x, vecs[0, :D], vecs[1, :D]).astype(bf16)
    mixed = []
    for b in range(Bt):
        h = jnp.dot(w1, y[b], preferred_element_type=jnp.float32) + tb1       # (Tm, D)
        h = _swish(h).astype(bf16)
        mixed.append(jnp.dot(w2, h, preferred_element_type=jnp.float32) + tb2)  # (P, D)
    x = x + jnp.stack(mixed, axis=0)

    # channel mixing: flatten (Bt, P) so the MXU sees one (Bt*P, D) @ (D, Cm) dot
    y = _layernorm(x, vecs[2, :D], vecs[3, :D]).reshape(Bt * P, D).astype(bf16)
    h = jnp.dot(y, cw1, preferred_element_type=jnp.float32) + vecs[4, :Cm]     # (Bt*P, Cm)
    h = _swish(h).astype(bf16)
    x = x + (jnp.dot(h, cw2, preferred_element_type=jnp.float32)
             + vecs[5, :D]).reshape(Bt, P, D)

    x_scr[...] = x                                         # carried to next depth step

    # ---------------- head: once per batch block, one batched matmul ----------------
    @pl.when(d == n_depth - 1)
    def _():
        xn = _layernorm(x + skip_scr[...], misc[1, :D], misc[2, :D])           # (Bt, P, D)
        pooled = jnp.mean(xn, axis=1)                                          # (Bt, D)
        o_ref[0] = (
            jnp.dot(pooled.astype(bf16), head_w_ref[...],
                    preferred_element_type=jnp.float32)
            + misc[3, :NCP]
        )


# --------------------------------------------------------------------------
# pallas_call wrapper
# --------------------------------------------------------------------------
def _pick_bt(B, max_bt=16):
    divisors = [bt for bt in range(1, min(B, max_bt) + 1) if B % bt == 0]
    # prefer the largest Bt that still leaves >=2 batch grid steps (v7x megacore)
    pref = [bt for bt in divisors if B // bt >= 2]
    return max(pref) if pref else max(divisors)


def _vmem_budget(Bt, P, D, K, Tm, Cm, NCP, depth):
    f32, bf = 4, 2
    act = Bt * P * D * f32
    scratch = 2 * act                                           # carried x + skip
    io = 2 * Bt * P * K * bf + 2 * Bt * NCP * f32               # double-buffered in/out blocks
    wstack = depth * (2 * Tm * P * bf + 2 * D * Cm * bf
                      + 8 * max(D, Cm, Tm, P) * f32 + 2 * max(Tm, P) * f32)
    wconst = (K * D + D * NCP) * bf + 8 * max(D, NCP) * f32
    temps = 8 * act + 2 * Bt * P * Cm * f32                     # LN / matmul intermediates
    budget = scratch + 2 * (wstack + wconst) + io + temps + (4 << 20)
    # 48 MiB cap keeps headroom on v7x (64 MiB physical VMEM); v5e/v6e have 128 MiB.
    return int(min(max(budget, 16 << 20), 48 << 20))


def mlp_mixer_fused(patches_bf16, params):
    B, P, K = patches_bf16.shape
    D = params["conv_w"].shape[1]
    depth, Tm, _ = params["tw1_t"].shape
    Cm = params["cw1"].shape[2]
    NCP = params["head_w"].shape[1]
    MW = params["misc"].shape[1]
    VW = params["vecs"].shape[2]
    TPmax = params["tbias"].shape[1]

    Bt = _pick_bt(B)
    nb = B // Bt

    const2 = lambda b, d: (0, 0)
    const3 = lambda b, d: (0, 0, 0)

    out = pl.pallas_call(
        fused_mixer_kernel,
        out_shape=jax.ShapeDtypeStruct((nb, Bt, NCP), jnp.float32),
        grid=(nb, depth),
        in_specs=[
            pl.BlockSpec((Bt, P, K), lambda b, d: (b, 0, 0)),   # patches: one DMA per batch block
            pl.BlockSpec((K, D), const2),                        # conv_w      (resident)
            pl.BlockSpec((D, NCP), const2),                      # head_w      (resident)
            pl.BlockSpec((8, MW), const2),                       # misc vectors(resident)
            pl.BlockSpec((depth, 8, VW), const3),                # per-depth vectors (resident)
            pl.BlockSpec((depth, TPmax, 2), const3),             # token biases      (resident)
            pl.BlockSpec((depth, Tm, P), const3),                # token W1          (resident)
            pl.BlockSpec((depth, P, Tm), const3),                # token W2          (resident)
            pl.BlockSpec((depth, D, Cm), const3),                # channel W1        (resident)
            pl.BlockSpec((depth, Cm, D), const3),                # channel W2        (resident)
        ],
        out_specs=pl.BlockSpec((1, Bt, NCP), lambda b, d: (b, 0, 0)),
        scratch_shapes=[
            pltpu.VMEM((Bt, P, D), jnp.float32),                 # carried activation
            pltpu.VMEM((Bt, P, D), jnp.float32),                 # embedding / skip
        ],
        compiler_params=pltpu.CompilerParams(
            dimension_semantics=("parallel", "arbitrary"),
            vmem_limit_bytes=_vmem_budget(Bt, P, D, K, Tm, Cm, NCP, depth),
        ),
    )(
        patches_bf16, params["conv_w"], params["head_w"], params["misc"],
        params["vecs"], params["tbias"],
        params["tw1_t"], params["tw2_t"], params["cw1"], params["cw2"],
    )
    return out.reshape(B, NCP)


# --------------------------------------------------------------------------
# Parameter construction (matches the PyTorch module's parameter shapes/math)
# --------------------------------------------------------------------------
def weight_norm_effective(key, in_f, out_f):
    """Effective WeightNorm weight: normalize(v, dim=1) * g  -> (out_f, in_f)."""
    kv, kg = jax.random.split(key)
    v = jax.random.normal(kv, (out_f, in_f), jnp.float32)
    g = 1.0 + 0.1 * jax.random.normal(kg, (out_f, 1), jnp.float32)
    vn = v / jnp.maximum(jnp.linalg.norm(v, axis=1, keepdims=True), EPS_WN)
    return vn * g


def make_params(key, image_size, patch_size, dim, depth, num_classes,
                token_mlp_dim, channel_mlp_dim):
    P = (image_size // patch_size) ** 2
    D, Tm, Cm = dim, token_mlp_dim, channel_mlp_dim
    K = 3 * patch_size * patch_size
    NCP = ((num_classes + 127) // 128) * 128        # lane-dense head output
    MW = max(D, NCP)
    VW = max(D, Cm, Tm, P)
    TPmax = max(Tm, P)
    bf16 = jnp.bfloat16

    keys = iter(jax.random.split(key, 16 + 12 * depth))

    # (Parameters are randomized — incl. LN gamma/beta and biases, which PyTorch would
    #  initialize to 1/0 — so the correctness check exercises every term of the forward.)
    conv_w = 0.1 * jax.random.normal(next(keys), (D, 3, patch_size, patch_size), jnp.float32)
    conv_b = 0.05 * jax.random.normal(next(keys), (D,), jnp.float32)

    vecs = jnp.zeros((depth, 8, VW), jnp.float32)
    tbias = jnp.zeros((depth, TPmax, 2), jnp.float32)
    tw1_t, tw2_t, cw1, cw2 = [], [], [], []
    for dd in range(depth):
        ln1_g = 1.0 + 0.1 * jax.random.normal(next(keys), (D,), jnp.float32)
        ln1_b = 0.05 * jax.random.normal(next(keys), (D,), jnp.float32)
        ln2_g = 1.0 + 0.1 * jax.random.normal(next(keys), (D,), jnp.float32)
        ln2_b = 0.05 * jax.random.normal(next(keys), (D,), jnp.float32)
        tb1 = 0.05 * jax.random.normal(next(keys), (Tm,), jnp.float32)
        tb2 = 0.05 * jax.random.normal(next(keys), (P,), jnp.float32)
        cb1 = 0.05 * jax.random.normal(next(keys), (Cm,), jnp.float32)
        cb2 = 0.05 * jax.random.normal(next(keys), (D,), jnp.float32)
        vecs = vecs.at[dd, 0, :D].set(ln1_g).at[dd, 1, :D].set(ln1_b)
        vecs = vecs.at[dd, 2, :D].set(ln2_g).at[dd, 3, :D].set(ln2_b)
        vecs = vecs.at[dd, 4, :Cm].set(cb1).at[dd, 5, :D].set(cb2)
        tbias = tbias.at[dd, :Tm, 0].set(tb1).at[dd, :P, 1].set(tb2)

        W1 = weight_norm_effective(next(keys), P, Tm)        # (Tm, P)  applied from the left
        W2 = weight_norm_effective(next(keys), Tm, P)        # (P, Tm)  applied from the left
        Wc1 = weight_norm_effective(next(keys), D, Cm)       # (Cm, D)
        Wc2 = weight_norm_effective(next(keys), Cm, D)       # (D, Cm)
        tw1_t.append(W1.astype(bf16))
        tw2_t.append(W2.astype(bf16))
        cw1.append(Wc1.T.astype(bf16))                       # (D, Cm)
        cw2.append(Wc2.T.astype(bf16))                       # (Cm, D)

    hln_g = 1.0 + 0.1 * jax.random.normal(next(keys), (D,), jnp.float32)
    hln_b = 0.05 * jax.random.normal(next(keys), (D,), jnp.float32)
    head_b = 0.05 * jax.random.normal(next(keys), (num_classes,), jnp.float32)
    Wh = weight_norm_effective(next(keys), D, num_classes)   # (NC, D)

    misc = jnp.zeros((8, MW), jnp.float32)
    misc = misc.at[0, :D].set(conv_b).at[1, :D].set(hln_g).at[2, :D].set(hln_b)
    misc = misc.at[3, :num_classes].set(head_b)
    head_w = jnp.zeros((D, NCP), jnp.float32).at[:, :num_classes].set(Wh.T)

    return {
        "conv_w": conv_w.reshape(D, -1).T.astype(bf16),      # (K, D)
        "head_w": head_w.astype(bf16),                       # (D, NCP)
        "misc": misc,                                        # (8, MW)
        "vecs": vecs,                                        # (depth, 8, VW)
        "tbias": tbias,                                      # (depth, TPmax, 2)
        "tw1_t": jnp.stack(tw1_t), "tw2_t": jnp.stack(tw2_t),
        "cw1": jnp.stack(cw1), "cw2": jnp.stack(cw2),
    }


# --------------------------------------------------------------------------
# Forward (Pallas) and pure-JAX reference
# --------------------------------------------------------------------------
def extract_patches(x_nchw, patch_size):
    # (B, 3, H, W) -> (B, P, 3*p*p); patch order row-major over (H/p, W/p),
    # inner order (c, i, j) to match conv_w.reshape(D, -1).
    B, C, H, W = x_nchw.shape
    p = patch_size
    hp, wp = H // p, W // p
    x = x_nchw.reshape(B, C, hp, p, wp, p)
    x = x.transpose(0, 2, 4, 1, 3, 5)
    return x.reshape(B, hp * wp, C * p * p)


@functools.partial(jax.jit, static_argnums=(2, 3))
def mlp_mixer_forward(x_nchw, params, patch_size, num_classes):
    patches = extract_patches(x_nchw, patch_size).astype(jnp.bfloat16)   # (B, P, K)
    logits = mlp_mixer_fused(patches, params)                            # (B, NCP)
    return logits[:, :num_classes]


def mlp_mixer_reference(x_nchw, params, patch_size, num_classes):
    bf16 = jnp.bfloat16
    D = params["conv_w"].shape[1]
    depth, Tm, P = params["tw1_t"].shape
    Cm = params["cw1"].shape[2]
    NCP = params["head_w"].shape[1]
    misc = params["misc"]

    patches = extract_patches(x_nchw, patch_size).astype(bf16)
    x = jnp.einsum("bpk,kd->bpd", patches, params["conv_w"],
                   preferred_element_type=jnp.float32) + misc[0, :D]
    skip = x
    for dd in range(depth):
        v = params["vecs"][dd]
        tb1 = params["tbias"][dd, :Tm, 0]
        tb2 = params["tbias"][dd, :P, 1]
        y = _layernorm(x, v[0, :D], v[1, :D]).astype(bf16)
        h = jnp.einsum("tp,bpd->btd", params["tw1_t"][dd], y,
                       preferred_element_type=jnp.float32) + tb1[None, :, None]
        h = _swish(h).astype(bf16)
        y2 = jnp.einsum("pt,btd->bpd", params["tw2_t"][dd], h,
                        preferred_element_type=jnp.float32) + tb2[None, :, None]
        x = x + y2
        y = _layernorm(x, v[2, :D], v[3, :D]).astype(bf16)
        h = jnp.einsum("bpd,dc->bpc", y, params["cw1"][dd],
                       preferred_element_type=jnp.float32) + v[4, :Cm]
        h = _swish(h).astype(bf16)
        x = x + jnp.einsum("bpc,cd->bpd", h, params["cw2"][dd],
                           preferred_element_type=jnp.float32) + v[5, :D]
    x = x + skip
    x = _layernorm(x, misc[1, :D], misc[2, :D])
    pooled = x.mean(axis=1)
    logits = jnp.dot(pooled.astype(bf16), params["head_w"],
                     preferred_element_type=jnp.float32) + misc[3, :NCP]
    return logits[:, :num_classes]


# --------------------------------------------------------------------------
if __name__ == "__main__":
    # Small TPU-friendly shapes: 32x32 images, patch 4 -> 64 patches, dim 128.
    image_size, patch_size = 32, 4
    dim, depth, num_classes = 128, 2, 10
    token_mlp_dim, channel_mlp_dim = 128, 256
    batch = 8

    key = jax.random.PRNGKey(0)
    kx, kp = jax.random.split(key)
    x = jax.random.normal(kx, (batch, 3, image_size, image_size), dtype=jnp.float32)
    params = make_params(kp, image_size, patch_size, dim, depth, num_classes,
                         token_mlp_dim, channel_mlp_dim)

    out = mlp_mixer_forward(x, params, patch_size, num_classes)
    out = jax.block_until_ready(out)
    assert out.shape == (batch, num_classes), out.shape

    ref = mlp_mixer_reference(x, params, patch_size, num_classes)
    assert jnp.allclose(out, ref, atol=2e-2, rtol=2e-2), (out, ref)

    print("KERNEL_OK")
</pallas_src>

<mosaic_0001>
module attributes {stable_mosaic.version = 11 : i64} {
  func.func @fused_mixer_kernel(%arg0: i32, %arg1: i32, %arg2: memref<4x64x48xbf16, #tpu.memory_space<vmem>>, %arg3: memref<48x128xbf16, #tpu.memory_space<vmem>>, %arg4: memref<128x128xbf16, #tpu.memory_space<vmem>>, %arg5: memref<8x128xf32, #tpu.memory_space<vmem>>, %arg6: memref<2x8x256xf32, #tpu.memory_space<vmem>>, %arg7: memref<2x128x2xf32, #tpu.memory_space<vmem>>, %arg8: memref<2x128x64xbf16, #tpu.memory_space<vmem>>, %arg9: memref<2x64x128xbf16, #tpu.memory_space<vmem>>, %arg10: memref<2x128x256xbf16, #tpu.memory_space<vmem>>, %arg11: memref<2x256x128xbf16, #tpu.memory_space<vmem>>, %arg12: memref<1x4x128xf32, #tpu.memory_space<vmem>>, %arg13: memref<4x64x128xf32, #tpu.memory_space<vmem>>, %arg14: memref<4x64x128xf32, #tpu.memory_space<vmem>>) attributes {dimension_semantics = [#tpu.dimension_semantics<parallel>, #tpu.dimension_semantics<arbitrary>], iteration_bounds = array<i64: 2, 2>, scalar_prefetch = 0 : i64, scratch_operands = 2 : i64, tpu.core_type = #tpu.core_type<tc>, window_params = [{transform_indices = @transform_0, window_bounds = array<i64: 4, 64, 48>}, {pipeline_mode = #tpu.pipeline_mode<synchronous>, transform_indices = @transform_1, window_bounds = array<i64: 48, 128>}, {pipeline_mode = #tpu.pipeline_mode<synchronous>, transform_indices = @transform_2, window_bounds = array<i64: 128, 128>}, {pipeline_mode = #tpu.pipeline_mode<synchronous>, transform_indices = @transform_3, window_bounds = array<i64: 8, 128>}, {pipeline_mode = #tpu.pipeline_mode<synchronous>, transform_indices = @transform_4, window_bounds = array<i64: 2, 8, 256>}, {pipeline_mode = #tpu.pipeline_mode<synchronous>, transform_indices = @transform_5, window_bounds = array<i64: 2, 128, 2>}, {pipeline_mode = #tpu.pipeline_mode<synchronous>, transform_indices = @transform_6, window_bounds = array<i64: 2, 128, 64>}, {pipeline_mode = #tpu.pipeline_mode<synchronous>, transform_indices = @transform_7, window_bounds = array<i64: 2, 64, 128>}, {pipeline_mode = #tpu.pipeline_mode<synchronous>, transform_indices = @transform_8, window_bounds = array<i64: 2, 128, 256>}, {pipeline_mode = #tpu.pipeline_mode<synchronous>, transform_indices = @transform_9, window_bounds = array<i64: 2, 256, 128>}, {transform_indices = @transform_10, window_bounds = array<i64: 1, 4, 128>}]} {
    %c0 = arith.constant 0 : index
    %c0_0 = arith.constant 0 : index
    %0 = vector.load %arg5[%c0, %c0_0] : memref<8x128xf32, #tpu.memory_space<vmem>>, vector<8x128xf32>
    %c0_i32 = arith.constant 0 : i32
    %1 = arith.cmpi eq, %arg1, %c0_i32 : i32
    %2 = arith.extui %1 : i1 to i32
    %c0_i32_1 = arith.constant 0 : i32
    %3 = arith.cmpi ne, %2, %c0_i32_1 : i32
    scf.if %3 {
      %c0_45 = arith.constant 0 : index
      %c0_46 = arith.constant 0 : index
      %c0_47 = arith.constant 0 : index
      %175 = vector.load %arg2[%c0_45, %c0_46, %c0_47] : memref<4x64x48xbf16, #tpu.memory_space<vmem>>, vector<4x64x48xbf16>
      %176 = vector.shape_cast %175 : vector<4x64x48xbf16> to vector<256x48xbf16>
      %c0_48 = arith.constant 0 : index
      %c0_49 = arith.constant 0 : index
      %177 = vector.load %arg3[%c0_48, %c0_49] : memref<48x128xbf16, #tpu.memory_space<vmem>>, vector<48x128xbf16>
      %cst_50 = arith.constant dense<0.000000e+00> : vector<256x128xf32>
      %178 = tpu.matmul %176, %177, %cst_50 {dimension_numbers = #tpu.dot_dimension_numbers<[1], [0], [0], [1], [0, 0, 1, 1], [], []>} : vector<256x48xbf16>, vector<48x128xbf16>, vector<256x128xf32> -> vector<256x128xf32>
      %179 = vector.extract_strided_slice %0 {offsets = [0, 0], sizes = [1, 128], strides = [1, 1]} : vector<8x128xf32> to vector<1x128xf32>
      %180 = vector.shape_cast %179 : vector<1x128xf32> to vector<128xf32>
      %181 = vector.shape_cast %180 : vector<128xf32> to vector<1x128xf32>
      %182 = vector.broadcast %181 : vector<1x128xf32> to vector<256x128xf32>
      %183 = arith.addf %178, %182 : vector<256x128xf32>
      %184 = vector.shape_cast %183 : vector<256x128xf32> to vector<4x64x128xf32>
      %c0_51 = arith.constant 0 : index
      %c0_52 = arith.constant 0 : index
      %c0_53 = arith.constant 0 : index
      %185 = vector.load %arg14[%c0_51, %c0_52, %c0_53] : memref<4x64x128xf32, #tpu.memory_space<vmem>>, vector<4x64x128xf32>
      tpu.vector_store %arg14[%c0_51, %c0_52, %c0_53], %184 {strides = array<i32>} : memref<4x64x128xf32, #tpu.memory_space<vmem>>, vector<4x64x128xf32>,
      %c0_54 = arith.constant 0 : index
      %c0_55 = arith.constant 0 : index
      %c0_56 = arith.constant 0 : index
      %186 = vector.load %arg13[%c0_54, %c0_55, %c0_56] : memref<4x64x128xf32, #tpu.memory_space<vmem>>, vector<4x64x128xf32>
      tpu.vector_store %arg13[%c0_54, %c0_55, %c0_56], %184 {strides = array<i32>} : memref<4x64x128xf32, #tpu.memory_space<vmem>>, vector<4x64x128xf32>,
    } else {
    }
    %4 = arith.index_cast %arg1 : i32 to index
    %c0_2 = arith.constant 0 : index
    %c0_3 = arith.constant 0 : index
    %5 = vector.load %arg6[%4, %c0_2, %c0_3] : memref<2x8x256xf32, #tpu.memory_space<vmem>>, vector<1x8x256xf32>
    %6 = vector.shape_cast %5 : vector<1x8x256xf32> to vector<8x256xf32>
    %7 = arith.index_cast %arg1 : i32 to index
    %c0_4 = arith.constant 0 : index
    %c0_5 = arith.constant 0 : index
    %8 = vector.load %arg7[%7, %c0_4, %c0_5] : memref<2x128x2xf32, #tpu.memory_space<vmem>>, vector<1x128x2xf32>
    %9 = vector.shape_cast %8 : vector<1x128x2xf32> to vector<128x2xf32>
    %10 = arith.index_cast %arg1 : i32 to index
    %c0_6 = arith.constant 0 : index
    %c0_7 = arith.constant 0 : index
    %11 = vector.load %arg8[%10, %c0_6, %c0_7] : memref<2x128x64xbf16, #tpu.memory_space<vmem>>, vector<1x128x64xbf16>
    %12 = vector.shape_cast %11 : vector<1x128x64xbf16> to vector<128x64xbf16>
    %13 = arith.index_cast %arg1 : i32 to index
    %c0_8 = arith.constant 0 : index
    %c0_9 = arith.constant 0 : index
    %14 = vector.load %arg9[%13, %c0_8, %c0_9] : memref<2x64x128xbf16, #tpu.memory_space<vmem>>, vector<1x64x128xbf16>
    %15 = vector.shape_cast %14 : vector<1x64x128xbf16> to vector<64x128xbf16>
    %16 = arith.index_cast %arg1 : i32 to index
    %c0_10 = arith.constant 0 : index
    %c0_11 = arith.constant 0 : index
    %17 = vector.load %arg10[%16, %c0_10, %c0_11] : memref<2x128x256xbf16, #tpu.memory_space<vmem>>, vector<1x128x256xbf16>
    %18 = vector.shape_cast %17 : vector<1x128x256xbf16> to vector<128x256xbf16>
    %19 = arith.index_cast %arg1 : i32 to index
    %c0_12 = arith.constant 0 : index
    %c0_13 = arith.constant 0 : index
    %20 = vector.load %arg11[%19, %c0_12, %c0_13] : memref<2x256x128xbf16, #tpu.memory_space<vmem>>, vector<1x256x128xbf16>
    %21 = vector.shape_cast %20 : vector<1x256x128xbf16> to vector<256x128xbf16>
    %22 = vector.extract_strided_slice %9 {offsets = [0, 0], sizes = [128, 1], strides = [1, 1]} : vector<128x2xf32> to vector<128x1xf32>
    %23 = vector.extract_strided_slice %9 {offsets = [0, 1], sizes = [64, 1], strides = [1, 1]} : vector<128x2xf32> to vector<64x1xf32>
    %c0_14 = arith.constant 0 : index
    %c0_15 = arith.constant 0 : index
    %c0_16 = arith.constant 0 : index
    %24 = vector.load %arg13[%c0_14, %c0_15, %c0_16] : memref<4x64x128xf32, #tpu.memory_space<vmem>>, vector<4x64x128xf32>
    %25 = vector.extract_strided_slice %6 {offsets = [0, 0], sizes = [1, 128], strides = [1, 1]} : vector<8x256xf32> to vector<1x128xf32>
    %26 = vector.shape_cast %25 : vector<1x128xf32> to vector<128xf32>
    %27 = vector.extract_strided_slice %6 {offsets = [1, 0], sizes = [1, 128], strides = [1, 1]} : vector<8x256xf32> to vector<1x128xf32>
    %28 = vector.shape_cast %27 : vector<1x128xf32> to vector<128xf32>
    %cst = arith.constant dense<0.000000e+00> : vector<4x64xf32>
    %29 = vector.multi_reduction <add>, %24, %cst [2] : vector<4x64x128xf32> to vector<4x64xf32>
    %30 = vector.shape_cast %29 : vector<4x64xf32> to vector<4x64x1xf32>
    %cst_17 = arith.constant 1.280000e+02 : f32
    %31 = vector.broadcast %cst_17 : f32 to vector<4x64x1xf32>
    %32 = arith.divf %30, %31 : vector<4x64x1xf32>
    %33 = vector.broadcast %32 : vector<4x64x1xf32> to vector<4x64x128xf32>
    %34 = arith.subf %24, %33 : vector<4x64x128xf32>
    %35 = arith.mulf %34, %34 : vector<4x64x128xf32>
    %cst_18 = arith.constant dense<0.000000e+00> : vector<4x64xf32>
    %36 = vector.multi_reduction <add>, %35, %cst_18 [2] : vector<4x64x128xf32> to vector<4x64xf32>
    %37 = vector.shape_cast %36 : vector<4x64xf32> to vector<4x64x1xf32>
    %cst_19 = arith.constant 1.280000e+02 : f32
    %38 = vector.broadcast %cst_19 : f32 to vector<4x64x1xf32>
    %39 = arith.divf %37, %38 : vector<4x64x1xf32>
    %40 = vector.broadcast %32 : vector<4x64x1xf32> to vector<4x64x128xf32>
    %41 = arith.subf %24, %40 : vector<4x64x128xf32>
    %cst_20 = arith.constant 9.99999974E-6 : f32
    %42 = vector.broadcast %cst_20 : f32 to vector<4x64x1xf32>
    %43 = arith.addf %39, %42 : vector<4x64x1xf32>
    %44 = math.rsqrt %43 : vector<4x64x1xf32>
    %45 = vector.broadcast %44 : vector<4x64x1xf32> to vector<4x64x128xf32>
    %46 = arith.mulf %41, %45 : vector<4x64x128xf32>
    %47 = vector.shape_cast %26 : vector<128xf32> to vector<1x1x128xf32>
    %48 = vector.broadcast %47 : vector<1x1x128xf32> to vector<4x64x128xf32>
    %49 = arith.mulf %46, %48 : vector<4x64x128xf32>
    %50 = vector.shape_cast %28 : vector<128xf32> to vector<1x1x128xf32>
    %51 = vector.broadcast %50 : vector<1x1x128xf32> to vector<4x64x128xf32>
    %52 = arith.addf %49, %51 : vector<4x64x128xf32>
    %53 = arith.truncf %52 : vector<4x64x128xf32> to vector<4x64x128xbf16>
    %54 = vector.extract_strided_slice %53 {offsets = [0, 0, 0], sizes = [1, 64, 128], strides = [1, 1, 1]} : vector<4x64x128xbf16> to vector<1x64x128xbf16>
    %55 = vector.shape_cast %54 : vector<1x64x128xbf16> to vector<64x128xbf16>
    %cst_21 = arith.constant dense<0.000000e+00> : vector<128x128xf32>
    %56 = tpu.matmul %12, %55, %cst_21 {dimension_numbers = #tpu.dot_dimension_numbers<[1], [0], [0], [1], [0, 0, 1, 1], [], []>} : vector<128x64xbf16>, vector<64x128xbf16>, vector<128x128xf32> -> vector<128x128xf32>
    %57 = vector.broadcast %22 : vector<128x1xf32> to vector<128x128xf32>
    %58 = arith.addf %56, %57 : vector<128x128xf32>
    %59 = arith.negf %58 : vector<128x128xf32>
    %60 = math.exp %59 : vector<128x128xf32>
    %cst_22 = arith.constant 1.000000e+00 : f32
    %61 = vector.broadcast %cst_22 : f32 to vector<128x128xf32>
    %62 = arith.addf %61, %60 : vector<128x128xf32>
    %63 = arith.divf %61, %62 : vector<128x128xf32>
    %64 = arith.mulf %58, %63 : vector<128x128xf32>
    %65 = arith.truncf %64 : vector<128x128xf32> to vector<128x128xbf16>
    %cst_23 = arith.constant dense<0.000000e+00> : vector<64x128xf32>
    %66 = tpu.matmul %15, %65, %cst_23 {dimension_numbers = #tpu.dot_dimension_numbers<[1], [0], [0], [1], [0, 0, 1, 1], [], []>} : vector<64x128xbf16>, vector<128x128xbf16>, vector<64x128xf32> -> vector<64x128xf32>
    %67 = vector.broadcast %23 : vector<64x1xf32> to vector<64x128xf32>
    %68 = arith.addf %66, %67 : vector<64x128xf32>
    %69 = vector.extract_strided_slice %53 {offsets = [1, 0, 0], sizes = [1, 64, 128], strides = [1, 1, 1]} : vector<4x64x128xbf16> to vector<1x64x128xbf16>
    %70 = vector.shape_cast %69 : vector<1x64x128xbf16> to vector<64x128xbf16>
    %cst_24 = arith.constant dense<0.000000e+00> : vector<128x128xf32>
    %71 = tpu.matmul %12, %70, %cst_24 {dimension_numbers = #tpu.dot_dimension_numbers<[1], [0], [0], [1], [0, 0, 1, 1], [], []>} : vector<128x64xbf16>, vector<64x128xbf16>, vector<128x128xf32> -> vector<128x128xf32>
    %72 = vector.broadcast %22 : vector<128x1xf32> to vector<128x128xf32>
    %73 = arith.addf %71, %72 : vector<128x128xf32>
    %74 = arith.negf %73 : vector<128x128xf32>
    %75 = math.exp %74 : vector<128x128xf32>
    %cst_25 = arith.constant 1.000000e+00 : f32
    %76 = vector.broadcast %cst_25 : f32 to vector<128x128xf32>
    %77 = arith.addf %76, %75 : vector<128x128xf32>
    %78 = arith.divf %76, %77 : vector<128x128xf32>
    %79 = arith.mulf %73, %78 : vector<128x128xf32>
    %80 = arith.truncf %79 : vector<128x128xf32> to vector<128x128xbf16>
    %cst_26 = arith.constant dense<0.000000e+00> : vector<64x128xf32>
    %81 = tpu.matmul %15, %80, %cst_26 {dimension_numbers = #tpu.dot_dimension_numbers<[1], [0], [0], [1], [0, 0, 1, 1], [], []>} : vector<64x128xbf16>, vector<128x128xbf16>, vector<64x128xf32> -> vector<64x128xf32>
    %82 = vector.broadcast %23 : vector<64x1xf32> to vector<64x128xf32>
    %83 = arith.addf %81, %82 : vector<64x128xf32>
    %84 = vector.extract_strided_slice %53 {offsets = [2, 0, 0], sizes = [1, 64, 128], strides = [1, 1, 1]} : vector<4x64x128xbf16> to vector<1x64x128xbf16>
    %85 = vector.shape_cast %84 : vector<1x64x128xbf16> to vector<64x128xbf16>
    %cst_27 = arith.constant dense<0.000000e+00> : vector<128x128xf32>
    %86 = tpu.matmul %12, %85, %cst_27 {dimension_numbers = #tpu.dot_dimension_numbers<[1], [0], [0], [1], [0, 0, 1, 1], [], []>} : vector<128x64xbf16>, vector<64x128xbf16>, vector<128x128xf32> -> vector<128x128xf32>
    %87 = vector.broadcast %22 : vector<128x1xf32> to vector<128x128xf32>
    %88 = arith.addf %86, %87 : vector<128x128xf32>
    %89 = arith.negf %88 : vector<128x128xf32>
    %90 = math.exp %89 : vector<128x128xf32>
    %cst_28 = arith.constant 1.000000e+00 : f32
    %91 = vector.broadcast %cst_28 : f32 to vector<128x128xf32>
    %92 = arith.addf %91, %90 : vector<128x128xf32>
    %93 = arith.divf %91, %92 : vector<128x128xf32>
    %94 = arith.mulf %88, %93 : vector<128x128xf32>
    %95 = arith.truncf %94 : vector<128x128xf32> to vector<128x128xbf16>
    %cst_29 = arith.constant dense<0.000000e+00> : vector<64x128xf32>
    %96 = tpu.matmul %15, %95, %cst_29 {dimension_numbers = #tpu.dot_dimension_numbers<[1], [0], [0], [1], [0, 0, 1, 1], [], []>} : vector<64x128xbf16>, vector<128x128xbf16>, vector<64x128xf32> -> vector<64x128xf32>
    %97 = vector.broadcast %23 : vector<64x1xf32> to vector<64x128xf32>
    %98 = arith.addf %96, %97 : vector<64x128xf32>
    %99 = vector.extract_strided_slice %53 {offsets = [3, 0, 0], sizes = [1, 64, 128], strides = [1, 1, 1]} : vector<4x64x128xbf16> to vector<1x64x128xbf16>
    %100 = vector.shape_cast %99 : vector<1x64x128xbf16> to vector<64x128xbf16>
    %cst_30 = arith.constant dense<0.000000e+00> : vector<128x128xf32>
    %101 = tpu.matmul %12, %100, %cst_30 {dimension_numbers = #tpu.dot_dimension_numbers<[1], [0], [0], [1], [0, 0, 1, 1], [], []>} : vector<128x64xbf16>, vector<64x128xbf16>, vector<128x128xf32> -> vector<128x128xf32>
    %102 = vector.broadcast %22 : vector<128x1xf32> to vector<128x128xf32>
    %103 = arith.addf %101, %102 : vector<128x128xf32>
    %104 = arith.negf %103 : vector<128x128xf32>
    %105 = math.exp %104 : vector<128x128xf32>
    %cst_31 = arith.constant 1.000000e+00 : f32
    %106 = vector.broadcast %cst_31 : f32 to vector<128x128xf32>
    %107 = arith.addf %106, %105 : vector<128x128xf32>
    %108 = arith.divf %106, %107 : vector<128x128xf32>
    %109 = arith.mulf %103, %108 : vector<128x128xf32>
    %110 = arith.truncf %109 : vector<128x128xf32> to vector<128x128xbf16>
    %cst_32 = arith.constant dense<0.000000e+00> : vector<64x128xf32>
    %111 = tpu.matmul %15, %110, %cst_32 {dimension_numbers = #tpu.dot_dimension_numbers<[1], [0], [0], [1], [0, 0, 1, 1], [], []>} : vector<64x128xbf16>, vector<128x128xbf16>, vector<64x128xf32> -> vector<64x128xf32>
    %112 = vector.broadcast %23 : vector<64x1xf32> to vector<64x128xf32>
    %113 = arith.addf %111, %112 : vector<64x128xf32>
    %114 = vector.shape_cast %68 : vector<64x128xf32> to vector<1x64x128xf32>
    %115 = vector.shape_cast %83 : vector<64x128xf32> to vector<1x64x128xf32>
    %116 = vector.shape_cast %98 : vector<64x128xf32> to vector<1x64x128xf32>
    %117 = vector.shape_cast %113 : vector<64x128xf32> to vector<1x64x128xf32>
    %118 = tpu.concatenate %114, %115, %116, %117 in 0 : vector<1x64x128xf32>, vector<1x64x128xf32>, vector<1x64x128xf32>, vector<1x64x128xf32> -> vector<4x64x128xf32>
    %119 = arith.addf %24, %118 : vector<4x64x128xf32>
    %120 = vector.extract_strided_slice %6 {offsets = [2, 0], sizes = [1, 128], strides = [1, 1]} : vector<8x256xf32> to vector<1x128xf32>
    %121 = vector.shape_cast %120 : vector<1x128xf32> to vector<128xf32>
    %122 = vector.extract_strided_slice %6 {offsets = [3, 0], sizes = [1, 128], strides = [1, 1]} : vector<8x256xf32> to vector<1x128xf32>
    %123 = vector.shape_cast %122 : vector<1x128xf32> to vector<128xf32>
    %cst_33 = arith.constant dense<0.000000e+00> : vector<4x64xf32>
    %124 = vector.multi_reduction <add>, %119, %cst_33 [2] : vector<4x64x128xf32> to vector<4x64xf32>
    %125 = vector.shape_cast %124 : vector<4x64xf32> to vector<4x64x1xf32>
    %cst_34 = arith.constant 1.280000e+02 : f32
    %126 = vector.broadcast %cst_34 : f32 to vector<4x64x1xf32>
    %127 = arith.divf %125, %126 : vector<4x64x1xf32>
    %128 = vector.broadcast %127 : vector<4x64x1xf32> to vector<4x64x128xf32>
    %129 = arith.subf %119, %128 : vector<4x64x128xf32>
    %130 = arith.mulf %129, %129 : vector<4x64x128xf32>
    %cst_35 = arith.constant dense<0.000000e+00> : vector<4x64xf32>
    %131 = vector.multi_reduction <add>, %130, %cst_35 [2] : vector<4x64x128xf32> to vector<4x64xf32>
    %132 = vector.shape_cast %131 : vector<4x64xf32> to vector<4x64x1xf32>
    %cst_36 = arith.constant 1.280000e+02 : f32
    %133 = vector.broadcast %cst_36 : f32 to vector<4x64x1xf32>
    %134 = arith.divf %132, %133 : vector<4x64x1xf32>
    %135 = vector.broadcast %127 : vector<4x64x1xf32> to vector<4x64x128xf32>
    %136 = arith.subf %119, %135 : vector<4x64x128xf32>
    %cst_37 = arith.constant 9.99999974E-6 : f32
    %137 = vector.broadcast %cst_37 : f32 to vector<4x64x1xf32>
    %138 = arith.addf %134, %137 : vector<4x64x1xf32>
    %139 = math.rsqrt %138 : vector<4x64x1xf32>
    %140 = vector.broadcast %139 : vector<4x64x1xf32> to vector<4x64x128xf32>
    %141 = arith.mulf %136, %140 : vector<4x64x128xf32>
    %142 = vector.shape_cast %121 : vector<128xf32> to vector<1x1x128xf32>
    %143 = vector.broadcast %142 : vector<1x1x128xf32> to vector<4x64x128xf32>
    %144 = arith.mulf %141, %143 : vector<4x64x128xf32>
    %145 = vector.shape_cast %123 : vector<128xf32> to vector<1x1x128xf32>
    %146 = vector.broadcast %145 : vector<1x1x128xf32> to vector<4x64x128xf32>
    %147 = arith.addf %144, %146 : vector<4x64x128xf32>
    %148 = vector.shape_cast %147 : vector<4x64x128xf32> to vector<256x128xf32>
    %149 = arith.truncf %148 : vector<256x128xf32> to vector<256x128xbf16>
    %cst_38 = arith.constant dense<0.000000e+00> : vector<256x256xf32>
    %150 = tpu.matmul %149, %18, %cst_38 {dimension_numbers = #tpu.dot_dimension_numbers<[1], [0], [0], [1], [0, 0, 1, 1], [], []>} : vector<256x128xbf16>, vector<128x256xbf16>, vector<256x256xf32> -> vector<256x256xf32>
    %151 = vector.extract_strided_slice %6 {offsets = [4, 0], sizes = [1, 256], strides = [1, 1]} : vector<8x256xf32> to vector<1x256xf32>
    %152 = vector.shape_cast %151 : vector<1x256xf32> to vector<256xf32>
    %153 = vector.shape_cast %152 : vector<256xf32> to vector<1x256xf32>
    %154 = vector.broadcast %153 : vector<1x256xf32> to vector<256x256xf32>
    %155 = arith.addf %150, %154 : vector<256x256xf32>
    %156 = arith.negf %155 : vector<256x256xf32>
    %157 = math.exp %156 : vector<256x256xf32>
    %cst_39 = arith.constant 1.000000e+00 : f32
    %158 = vector.broadcast %cst_39 : f32 to vector<256x256xf32>
    %159 = arith.addf %158, %157 : vector<256x256xf32>
    %160 = arith.divf %158, %159 : vector<256x256xf32>
    %161 = arith.mulf %155, %160 : vector<256x256xf32>
    %162 = arith.truncf %161 : vector<256x256xf32> to vector<256x256xbf16>
    %cst_40 = arith.constant dense<0.000000e+00> : vector<256x128xf32>
    %163 = tpu.matmul %162, %21, %cst_40 {dimension_numbers = #tpu.dot_dimension_numbers<[1], [0], [0], [1], [0, 0, 1, 1], [], []>} : vector<256x256xbf16>, vector<256x128xbf16>, vector<256x128xf32> -> vector<256x128xf32>
    %164 = vector.extract_strided_slice %6 {offsets = [5, 0], sizes = [1, 128], strides = [1, 1]} : vector<8x256xf32> to vector<1x128xf32>
    %165 = vector.shape_cast %164 : vector<1x128xf32> to vector<128xf32>
    %166 = vector.shape_cast %165 : vector<128xf32> to vector<1x128xf32>
    %167 = vector.broadcast %166 : vector<1x128xf32> to vector<256x128xf32>
    %168 = arith.addf %163, %167 : vector<256x128xf32>
    %169 = vector.shape_cast %168 : vector<256x128xf32> to vector<4x64x128xf32>
    %170 = arith.addf %119, %169 : vector<4x64x128xf32>
    %c0_41 = arith.constant 0 : index
    %c0_42 = arith.constant 0 : index
    %c0_43 = arith.constant 0 : index
    %171 = vector.load %arg13[%c0_41, %c0_42, %c0_43] : memref<4x64x128xf32, #tpu.memory_space<vmem>>, vector<4x64x128xf32>
    tpu.vector_store %arg13[%c0_41, %c0_42, %c0_43], %170 {strides = array<i32>} : memref<4x64x128xf32, #tpu.memory_space<vmem>>, vector<4x64x128xf32>,
    %c1_i32 = arith.constant 1 : i32
    %172 = arith.cmpi eq, %arg1, %c1_i32 : i32
    %173 = arith.extui %172 : i1 to i32
    %c0_i32_44 = arith.constant 0 : i32
    %174 = arith.cmpi ne, %173, %c0_i32_44 : i32
    scf.if %174 {
      %c0_45 = arith.constant 0 : index
      %c0_46 = arith.constant 0 : index
      %c0_47 = arith.constant 0 : index
      %175 = vector.load %arg14[%c0_45, %c0_46, %c0_47] : memref<4x64x128xf32, #tpu.memory_space<vmem>>, vector<4x64x128xf32>
      %176 = arith.addf %170, %175 : vector<4x64x128xf32>
      %177 = vector.extract_strided_slice %0 {offsets = [1, 0], sizes = [1, 128], strides = [1, 1]} : vector<8x128xf32> to vector<1x128xf32>
      %178 = vector.shape_cast %177 : vector<1x128xf32> to vector<128xf32>
      %179 = vector.extract_strided_slice %0 {offsets = [2, 0], sizes = [1, 128], strides = [1, 1]} : vector<8x128xf32> to vector<1x128xf32>
      %180 = vector.shape_cast %179 : vector<1x128xf32> to vector<128xf32>
      %cst_48 = arith.constant dense<0.000000e+00> : vector<4x64xf32>
      %181 = vector.multi_reduction <add>, %176, %cst_48 [2] : vector<4x64x128xf32> to vector<4x64xf32>
      %182 = vector.shape_cast %181 : vector<4x64xf32> to vector<4x64x1xf32>
      %cst_49 = arith.constant 1.280000e+02 : f32
      %183 = vector.broadcast %cst_49 : f32 to vector<4x64x1xf32>
      %184 = arith.divf %182, %183 : vector<4x64x1xf32>
      %185 = vector.broadcast %184 : vector<4x64x1xf32> to vector<4x64x128xf32>
      %186 = arith.subf %176, %185 : vector<4x64x128xf32>
      %187 = arith.mulf %186, %186 : vector<4x64x128xf32>
      %cst_50 = arith.constant dense<0.000000e+00> : vector<4x64xf32>
      %188 = vector.multi_reduction <add>, %187, %cst_50 [2] : vector<4x64x128xf32> to vector<4x64xf32>
      %189 = vector.shape_cast %188 : vector<4x64xf32> to vector<4x64x1xf32>
      %cst_51 = arith.constant 1.280000e+02 : f32
      %190 = vector.broadcast %cst_51 : f32 to vector<4x64x1xf32>
      %191 = arith.divf %189, %190 : vector<4x64x1xf32>
      %192 = vector.broadcast %184 : vector<4x64x1xf32> to vector<4x64x128xf32>
      %193 = arith.subf %176, %192 : vector<4x64x128xf32>
      %cst_52 = arith.constant 9.99999974E-6 : f32
      %194 = vector.broadcast %cst_52 : f32 to vector<4x64x1xf32>
      %195 = arith.addf %191, %194 : vector<4x64x1xf32>
      %196 = math.rsqrt %195 : vector<4x64x1xf32>
      %197 = vector.broadcast %196 : vector<4x64x1xf32> to vector<4x64x128xf32>
      %198 = arith.mulf %193, %197 : vector<4x64x128xf32>
      %199 = vector.shape_cast %178 : vector<128xf32> to vector<1x1x128xf32>
      %200 = vector.broadcast %199 : vector<1x1x128xf32> to vector<4x64x128xf32>
      %201 = arith.mulf %198, %200 : vector<4x64x128xf32>
      %202 = vector.shape_cast %180 : vector<128xf32> to vector<1x1x128xf32>
      %203 = vector.broadcast %202 : vector<1x1x128xf32> to vector<4x64x128xf32>
      %204 = arith.addf %201, %203 : vector<4x64x128xf32>
      %cst_53 = arith.constant dense<0.000000e+00> : vector<4x128xf32>
      %205 = vector.multi_reduction <add>, %204, %cst_53 [1] : vector<4x64x128xf32> to vector<4x128xf32>
      %cst_54 = arith.constant 6.400000e+01 : f32
      %206 = vector.broadcast %cst_54 : f32 to vector<4x128xf32>
      %207 = arith.divf %205, %206 : vector<4x128xf32>
      %208 = arith.truncf %207 : vector<4x128xf32> to vector<4x128xbf16>
      %c0_55 = arith.constant 0 : index
      %c0_56 = arith.constant 0 : index
      %209 = vector.load %arg4[%c0_55, %c0_56] : memref<128x128xbf16, #tpu.memory_space<vmem>>, vector<128x128xbf16>
      %cst_57 = arith.constant dense<0.000000e+00> : vector<4x128xf32>
      %210 = tpu.matmul %208, %209, %cst_57 {dimension_numbers = #tpu.dot_dimension_numbers<[1], [0], [0], [1], [0, 0, 1, 1], [], []>} : vector<4x128xbf16>, vector<128x128xbf16>, vector<4x128xf32> -> vector<4x128xf32>
      %211 = vector.extract_strided_slice %0 {offsets = [3, 0], sizes = [1, 128], strides = [1, 1]} : vector<8x128xf32> to vector<1x128xf32>
      %212 = vector.shape_cast %211 : vector<1x128xf32> to vector<128xf32>
      %213 = vector.shape_cast %212 : vector<128xf32> to vector<1x128xf32>
      %214 = vector.broadcast %213 : vector<1x128xf32> to vector<4x128xf32>
      %215 = arith.addf %210, %214 : vector<4x128xf32>
      %c0_58 = arith.constant 0 : index
      %c0_59 = arith.constant 0 : index
      %c0_60 = arith.constant 0 : index
      %216 = vector.load %arg12[%c0_58, %c0_59, %c0_60] : memref<1x4x128xf32, #tpu.memory_space<vmem>>, vector<1x4x128xf32>
      %217 = vector.shape_cast %216 : vector<1x4x128xf32> to vector<4x128xf32>
      %218 = vector.shape_cast %215 : vector<4x128xf32> to vector<1x4x128xf32>
      tpu.vector_store %arg12[%c0_58, %c0_59, %c0_60], %218 {strides = array<i32>} : memref<1x4x128xf32, #tpu.memory_space<vmem>>, vector<1x4x128xf32>,
    } else {
    }
    return
  }
  func.func @transform_0(%arg0: i32, %arg1: i32) -> (i32, i32, i32) {
    %c0_i32 = arith.constant 0 : i32
    %c0_i32_0 = arith.constant 0 : i32
    %c0_i32_1 = arith.constant 0 : i32
    return %arg0, %c0_i32, %c0_i32_0 : i32, i32, i32
  }
  func.func @transform_1(%arg0: i32, %arg1: i32) -> (i32, i32) {
    %c0_i32 = arith.constant 0 : i32
    %c0_i32_0 = arith.constant 0 : i32
    %c0_i32_1 = arith.constant 0 : i32
    return %c0_i32, %c0_i32_0 : i32, i32
  }
  func.func @transform_2(%arg0: i32, %arg1: i32) -> (i32, i32) {
    %c0_i32 = arith.constant 0 : i32
    %c0_i32_0 = arith.constant 0 : i32
    %c0_i32_1 = arith.constant 0 : i32
    return %c0_i32, %c0_i32_0 : i32, i32
  }
  func.func @transform_3(%arg0: i32, %arg1: i32) -> (i32, i32) {
    %c0_i32 = arith.constant 0 : i32
    %c0_i32_0 = arith.constant 0 : i32
    %c0_i32_1 = arith.constant 0 : i32
    return %c0_i32, %c0_i32_0 : i32, i32
  }
  func.func @transform_4(%arg0: i32, %arg1: i32) -> (i32, i32, i32) {
    %c0_i32 = arith.constant 0 : i32
    %c0_i32_0 = arith.constant 0 : i32
    %c0_i32_1 = arith.constant 0 : i32
    %c0_i32_2 = arith.constant 0 : i32
    return %c0_i32, %c0_i32_0, %c0_i32_1 : i32, i32, i32
  }
  func.func @transform_5(%arg0: i32, %arg1: i32) -> (i32, i32, i32) {
    %c0_i32 = arith.constant 0 : i32
    %c0_i32_0 = arith.constant 0 : i32
    %c0_i32_1 = arith.constant 0 : i32
    %c0_i32_2 = arith.constant 0 : i32
    return %c0_i32, %c0_i32_0, %c0_i32_1 : i32, i32, i32
  }
  func.func @transform_6(%arg0: i32, %arg1: i32) -> (i32, i32, i32) {
    %c0_i32 = arith.constant 0 : i32
    %c0_i32_0 = arith.constant 0 : i32
    %c0_i32_1 = arith.constant 0 : i32
    %c0_i32_2 = arith.constant 0 : i32
    return %c0_i32, %c0_i32_0, %c0_i32_1 : i32, i32, i32
  }
  func.func @transform_7(%arg0: i32, %arg1: i32) -> (i32, i32, i32) {
    %c0_i32 = arith.constant 0 : i32
    %c0_i32_0 = arith.constant 0 : i32
    %c0_i32_1 = arith.constant 0 : i32
    %c0_i32_2 = arith.constant 0 : i32
    return %c0_i32, %c0_i32_0, %c0_i32_1 : i32, i32, i32
  }
  func.func @transform_8(%arg0: i32, %arg1: i32) -> (i32, i32, i32) {
    %c0_i32 = arith.constant 0 : i32
    %c0_i32_0 = arith.constant 0 : i32
    %c0_i32_1 = arith.constant 0 : i32
    %c0_i32_2 = arith.constant 0 : i32
    return %c0_i32, %c0_i32_0, %c0_i32_1 : i32, i32, i32
  }
  func.func @transform_9(%arg0: i32, %arg1: i32) -> (i32, i32, i32) {
    %c0_i32 = arith.constant 0 : i32
    %c0_i32_0 = arith.constant 0 : i32
    %c0_i32_1 = arith.constant 0 : i32
    %c0_i32_2 = arith.constant 0 : i32
    return %c0_i32, %c0_i32_0, %c0_i32_1 : i32, i32, i32
  }
  func.func @transform_10(%arg0: i32, %arg1: i32) -> (i32, i32, i32) {
    %c0_i32 = arith.constant 0 : i32
    %c0_i32_0 = arith.constant 0 : i32
    %c0_i32_1 = arith.constant 0 : i32
    return %arg0, %c0_i32, %c0_i32_0 : i32, i32, i32
  }
}

</mosaic_0001>

<llo_original>
// kernel: mlp_mixer_forward.1
$region0: #{mlp_mixer_forward.1}
  #allocation0 [shape = 'u32[]', space=smem, size = 0x4, offset = 0x4, fixed_abs, tag = 'smem constant byte address 0x4 - core index']
  #allocation1 [shape = 'u32[72,128]{1,0:T(1,128)}', space=vmem, size = 0x9000, scoped, tag = 'internal scratch']
  #allocation2 [shape = 'f32[4,64,128]{2,1,0:T(8,128)}', space=vmem, size = 0x20000, scoped, tag = 'scratch operand']
  #allocation3 [shape = 'f32[4,64,128]{2,1,0:T(8,128)}', space=vmem, size = 0x20000, scoped, tag = 'scratch operand']
  %s0 = inlined_call_operand.vmem [shape: bf16[8,64,48], index: 0, kind: input, shape index: {}]
  %s1 = inlined_call_operand.vmem [shape: bf16[48,128], index: 1, kind: input, shape index: {}]
  %s2 = inlined_call_operand.vmem [shape: bf16[128,128], index: 2, kind: input, shape index: {}]
  %s3 = inlined_call_operand.vmem [shape: f32[8,128], index: 3, kind: input, shape index: {}]
  %s4 = inlined_call_operand.vmem [shape: f32[2,8,256], index: 4, kind: input, shape index: {}]
  %s5 = inlined_call_operand.vmem [shape: f32[2,128,2], index: 5, kind: input, shape index: {}]
  %s6 = inlined_call_operand.vmem [shape: bf16[2,128,64], index: 6, kind: input, shape index: {}]
  %s7 = inlined_call_operand.vmem [shape: bf16[2,64,128], index: 7, kind: input, shape index: {}]
  %s8 = inlined_call_operand.vmem [shape: bf16[2,128,256], index: 8, kind: input, shape index: {}]
  %s9 = inlined_call_operand.vmem [shape: bf16[2,256,128], index: 9, kind: input, shape index: {}]
  %s10 = inlined_call_operand.hbm [shape: f32[2,4,128], index: 10, kind: output, shape index: {}]
  %s11 = sld [smem:[#allocation0]]
  $region81: #{mlp_mixer_forward.1} parent=0
    _
  %s13 = ssub.s32 1, %s11
  %s14 = scalar_select 0, %s13, %s11
  $region1: #{mlp_mixer_forward.1} parent=0
    #allocation4 [shape = 'u8[4096]{0}', space=vmem, size = 0x1000, scoped, tag = 'output window, operand 0']
    #allocation5 [shape = 's32[2]{0}', space=sflag, size = 0x8, scoped, tag = 'scoped memory for mlp_mixer_forward.1']
    %15 = vsyncpa [#allocation5], 0
    %s16 = scalar_lea.sflag [#allocation5], 1
    %17 = vsyncpa %s16, 0
    loop: start=0, step=1, limit=6
    $region2: #{mlp_mixer_forward.1} parent=1 // loop_pre_header
      _
    $region3: #{mlp_mixer_forward.1} parent=1 // loop_header
      %s19 = sphi 0, %s23
      %p20 = scmp.ge.s32.totalorder %s19, 6
      %s26 = sphi 0, %s38
      %s27 = sphi 0, %s34
      %s28 = sphi 0, %s26
      %s29 = sphi 0, %s27
      %s30 = sphi 0, %s28
      %s31 = sphi 0, %s29
      %s41 = sphi 0, %s43
      %s44 = sphi 0, %s41
      %s45 = sphi 0, %s44
      %s61 = sphi 0, %s45
      %s65 = sphi 0, %s65
      %s67 = sphi 0, %s65
      %s68 = sphi 0, %s67
      %s82 = sphi 0, %s68
      %s86 = sphi 0, %s86
      %s88 = sphi 0, %s86
      %s89 = sphi 0, %s88
      %s103 = sphi 0, %s89
      %s107 = sphi 0, %s107
      %s109 = sphi 0, %s107
      %s110 = sphi 0, %s109
      %s124 = sphi 0, %s110
      %s128 = sphi 0, %s128
      %s130 = sphi 0, %s128
      %s131 = sphi 0, %s130
      %s145 = sphi 0, %s131
      %s149 = sphi 0, %s149
      %s151 = sphi 0, %s149
      %s152 = sphi 0, %s151
      %s166 = sphi 0, %s152
      %s170 = sphi 0, %s170
      %s172 = sphi 0, %s170
      %s173 = sphi 0, %s172
      %s187 = sphi 0, %s173
      %s191 = sphi 0, %s191
      %s193 = sphi 0, %s191
      %s194 = sphi 0, %s193
      %s208 = sphi 0, %s194
      %s212 = sphi 0, %s212
      %s214 = sphi 0, %s212
      %s215 = sphi 0, %s214
      %s229 = sphi 0, %s215
      %s233 = sphi 0, %s233
      %s235 = sphi 0, %s233
      %s236 = sphi 0, %s235
      %s250 = sphi 0, %s236
      %s256 = sphi 0, %s258
      %s259 = sphi 0, %s256
      %s260 = sphi 0, %s259
      %s276 = sphi 0, %s260
    $region4: #{mlp_mixer_forward.1} parent=1 // loop_header_branch
      %22 = sbr.rel (%p20) target = $region8
    $region5: #{mlp_mixer_forward.1} parent=1 // loop_body
      %s24 = ssub.s32 %s19, 1
      %s25 = ssub.s32 %s19, 2
      %s32 = sadd.s32 1, %s27
      %p33 = scmp.ge.s32.totalorder %s32, 2
      %s34 = scalar_select %p33, 0, %s32
      %s35 = sadd.s32 1, %s26
      %s36 = scalar_select %p33, %s35, %s26
      %p37 = scmp.ge.s32.totalorder %s36, 2
      %s38 = scalar_select %p37, 0, %s36
      %s39 = ssub.s32 %s26, %s38
      %p40 = scmp.eq.s32.totalorder %s39, 0
      %s42 = sadd.s32 %s41, 1
      %s43 = scalar_select %p40, %s41, %s42
      %p46 = pneg %p40
      %p47 = scmp.eq.s32.totalorder %s19, 3
      %p48 = por %p46, %p47
      %p49 = scmp.ne.s32.totalorder %s41, %s44
      %p50 = scmp.eq.s32.totalorder %s19, 0
      %p51 = por %p49, %p50
      %p52 = scmp.ne.s32.totalorder %s41, %s44
      %p53 = scmp.eq.s32.totalorder %s24, 3
      %p54 = por %p52, %p53
      %p55 = scmp.ne.s32.totalorder %s44, %s45
      %p56 = scmp.eq.s32.totalorder %s24, 0
      %p57 = por %p55, %p56
      %p58 = scmp.ne.s32.totalorder %s44, %s45
      %p59 = scmp.eq.s32.totalorder %s25, 3
      %p60 = por %p58, %p59
      %p62 = scmp.ne.s32.totalorder %s45, %s61
      %p63 = scmp.eq.s32.totalorder %s25, 0
      %p64 = por %p62, %p63
      %s66 = sadd.s32 %s65, 1
      %p69 = scmp.eq.s32.totalorder %s19, 3
      %p70 = scmp.ne.s32.totalorder %s65, %s67
      %p71 = scmp.eq.s32.totalorder %s19, 0
      %p72 = por %p70, %p71
      %p73 = scmp.ne.s32.totalorder %s65, %s67
      %p74 = scmp.eq.s32.totalorder %s24, 3
      %p75 = por %p73, %p74
      %p76 = scmp.ne.s32.totalorder %s67, %s68
      %p77 = scmp.eq.s32.totalorder %s24, 0
      %p78 = por %p76, %p77
      %p79 = scmp.ne.s32.totalorder %s67, %s68
      %p80 = scmp.eq.s32.totalorder %s25, 3
      %p81 = por %p79, %p80
      %p83 = scmp.ne.s32.totalorder %s68, %s82
      %p84 = scmp.eq.s32.totalorder %s25, 0
      %p85 = por %p83, %p84
      %s87 = sadd.s32 %s86, 1
      %p90 = scmp.eq.s32.totalorder %s19, 3
      %p91 = scmp.ne.s32.totalorder %s86, %s88
      %p92 = scmp.eq.s32.totalorder %s19, 0
      %p93 = por %p91, %p92
      %p94 = scmp.ne.s32.totalorder %s86, %s88
      %p95 = scmp.eq.s32.totalorder %s24, 3
      %p96 = por %p94, %p95
      %p97 = scmp.ne.s32.totalorder %s88, %s89
      %p98 = scmp.eq.s32.totalorder %s24, 0
      %p99 = por %p97, %p98
      %p100 = scmp.ne.s32.totalorder %s88, %s89
      %p101 = scmp.eq.s32.totalorder %s25, 3
      %p102 = por %p100, %p101
      %p104 = scmp.ne.s32.totalorder %s89, %s103
      %p105 = scmp.eq.s32.totalorder %s25, 0
      %p106 = por %p104, %p105
      %s108 = sadd.s32 %s107, 1
      %p111 = scmp.eq.s32.totalorder %s19, 3
      %p112 = scmp.ne.s32.totalorder %s107, %s109
      %p113 = scmp.eq.s32.totalorder %s19, 0
      %p114 = por %p112, %p113
      %p115 = scmp.ne.s32.totalorder %s107, %s109
      %p116 = scmp.eq.s32.totalorder %s24, 3
      %p117 = por %p115, %p116
      %p118 = scmp.ne.s32.totalorder %s109, %s110
      %p119 = scmp.eq.s32.totalorder %s24, 0
      %p120 = por %p118, %p119
      %p121 = scmp.ne.s32.totalorder %s109, %s110
      %p122 = scmp.eq.s32.totalorder %s25, 3
      %p123 = por %p121, %p122
      %p125 = scmp.ne.s32.totalorder %s110, %s124
      %p126 = scmp.eq.s32.totalorder %s25, 0
      %p127 = por %p125, %p126
      %s129 = sadd.s32 %s128, 1
      %p132 = scmp.eq.s32.totalorder %s19, 3
      %p133 = scmp.ne.s32.totalorder %s128, %s130
      %p134 = scmp.eq.s32.totalorder %s19, 0
      %p135 = por %p133, %p134
      %p136 = scmp.ne.s32.totalorder %s128, %s130
      %p137 = scmp.eq.s32.totalorder %s24, 3
      %p138 = por %p136, %p137
      %p139 = scmp.ne.s32.totalorder %s130, %s131
      %p140 = scmp.eq.s32.totalorder %s24, 0
      %p141 = por %p139, %p140
      %p142 = scmp.ne.s32.totalorder %s130, %s131
      %p143 = scmp.eq.s32.totalorder %s25, 3
      %p144 = por %p142, %p143
      %p146 = scmp.ne.s32.totalorder %s131, %s145
      %p147 = scmp.eq.s32.totalorder %s25, 0
      %p148 = por %p146, %p147
      %s150 = sadd.s32 %s149, 1
      %p153 = scmp.eq.s32.totalorder %s19, 3
      %p154 = scmp.ne.s32.totalorder %s149, %s151
      %p155 = scmp.eq.s32.totalorder %s19, 0
      %p156 = por %p154, %p155
      %p157 = scmp.ne.s32.totalorder %s149, %s151
      %p158 = scmp.eq.s32.totalorder %s24, 3
      %p159 = por %p157, %p158
      %p160 = scmp.ne.s32.totalorder %s151, %s152
      %p161 = scmp.eq.s32.totalorder %s24, 0
      %p162 = por %p160, %p161
      %p163 = scmp.ne.s32.totalorder %s151, %s152
      %p164 = scmp.eq.s32.totalorder %s25, 3
      %p165 = por %p163, %p164
      %p167 = scmp.ne.s32.totalorder %s152, %s166
      %p168 = scmp.eq.s32.totalorder %s25, 0
      %p169 = por %p167, %p168
      %s171 = sadd.s32 %s170, 1
      %p174 = scmp.eq.s32.totalorder %s19, 3
      %p175 = scmp.ne.s32.totalorder %s170, %s172
      %p176 = scmp.eq.s32.totalorder %s19, 0
      %p177 = por %p175, %p176
      %p178 = scmp.ne.s32.totalorder %s170, %s172
      %p179 = scmp.eq.s32.totalorder %s24, 3
      %p180 = por %p178, %p179
      %p181 = scmp.ne.s32.totalorder %s172, %s173
      %p182 = scmp.eq.s32.totalorder %s24, 0
      %p183 = por %p181, %p182
      %p184 = scmp.ne.s32.totalorder %s172, %s173
      %p185 = scmp.eq.s32.totalorder %s25, 3
      %p186 = por %p184, %p185
      %p188 = scmp.ne.s32.totalorder %s173, %s187
      %p189 = scmp.eq.s32.totalorder %s25, 0
      %p190 = por %p188, %p189
      %s192 = sadd.s32 %s191, 1
      %p195 = scmp.eq.s32.totalorder %s19, 3
      %p196 = scmp.ne.s32.totalorder %s191, %s193
      %p197 = scmp.eq.s32.totalorder %s19, 0
      %p198 = por %p196, %p197
      %p199 = scmp.ne.s32.totalorder %s191, %s193
      %p200 = scmp.eq.s32.totalorder %s24, 3
      %p201 = por %p199, %p200
      %p202 = scmp.ne.s32.totalorder %s193, %s194
      %p203 = scmp.eq.s32.totalorder %s24, 0
      %p204 = por %p202, %p203
      %p205 = scmp.ne.s32.totalorder %s193, %s194
      %p206 = scmp.eq.s32.totalorder %s25, 3
      %p207 = por %p205, %p206
      %p209 = scmp.ne.s32.totalorder %s194, %s208
      %p210 = scmp.eq.s32.totalorder %s25, 0
      %p211 = por %p209, %p210
      %s213 = sadd.s32 %s212, 1
      %p216 = scmp.eq.s32.totalorder %s19, 3
      %p217 = scmp.ne.s32.totalorder %s212, %s214
      %p218 = scmp.eq.s32.totalorder %s19, 0
      %p219 = por %p217, %p218
      %p220 = scmp.ne.s32.totalorder %s212, %s214
      %p221 = scmp.eq.s32.totalorder %s24, 3
      %p222 = por %p220, %p221
      %p223 = scmp.ne.s32.totalorder %s214, %s215
      %p224 = scmp.eq.s32.totalorder %s24, 0
      %p225 = por %p223, %p224
      %p226 = scmp.ne.s32.totalorder %s214, %s215
      %p227 = scmp.eq.s32.totalorder %s25, 3
      %p228 = por %p226, %p227
      %p230 = scmp.ne.s32.totalorder %s215, %s229
      %p231 = scmp.eq.s32.totalorder %s25, 0
      %p232 = por %p230, %p231
      %s234 = sadd.s32 %s233, 1
      %p237 = scmp.eq.s32.totalorder %s19, 3
      %p238 = scmp.ne.s32.totalorder %s233, %s235
      %p239 = scmp.eq.s32.totalorder %s19, 0
      %p240 = por %p238, %p239
      %p241 = scmp.ne.s32.totalorder %s233, %s235
      %p242 = scmp.eq.s32.totalorder %s24, 3
      %p243 = por %p241, %p242
      %p244 = scmp.ne.s32.totalorder %s235, %s236
      %p245 = scmp.eq.s32.totalorder %s24, 0
      %p246 = por %p244, %p245
      %p247 = scmp.ne.s32.totalorder %s235, %s236
      %p248 = scmp.eq.s32.totalorder %s25, 3
      %p249 = por %p247, %p248
      %p251 = scmp.ne.s32.totalorder %s236, %s250
      %p252 = scmp.eq.s32.totalorder %s25, 0
      %p253 = por %p251, %p252
      %s254 = ssub.s32 %s26, %s38
      %p255 = scmp.eq.s32.totalorder %s254, 0
      %s257 = sadd.s32 %s256, 1
      %s258 = scalar_select %p255, %s256, %s257
      %p261 = pneg %p255
      %p262 = scmp.eq.s32.totalorder %s19, 3
      %p263 = por %p261, %p262
      %p264 = scmp.ne.s32.totalorder %s256, %s259
      %p265 = scmp.eq.s32.totalorder %s19, 0
      %p266 = por %p264, %p265
      %p267 = scmp.ne.s32.totalorder %s256, %s259
      %p268 = scmp.eq.s32.totalorder %s24, 3
      %p269 = por %p267, %p268
      %p270 = scmp.ne.s32.totalorder %s259, %s260
      %p271 = scmp.eq.s32.totalorder %s24, 0
      %p272 = por %p270, %p271
      %p273 = scmp.ne.s32.totalorder %s259, %s260
      %p274 = scmp.eq.s32.totalorder %s25, 3
      %p275 = por %p273, %p274
      %p277 = scmp.ne.s32.totalorder %s260, %s276
      %p278 = scmp.eq.s32.totalorder %s25, 0
      %p279 = por %p277, %p278
      %p280 = scmp.le.s32.totalorder 1, %s19
      %p281 = scmp.lt.s32.totalorder %s19, 5
      %p282 = pnand %p280, %p281
      %p283 = pneg %p282
      // Predicated region
      $region9: #{mlp_mixer_forward.1} parent=5 // pred_check
        _
      $region10: #{mlp_mixer_forward.1} parent=5 // pred_check_branch
        %285 = sbr.rel (%p282) target = $region12
      $region11: #{mlp_mixer_forward.1} parent=5 // pred_region
        %s286 = ssub.s32 %s19, 1
        // Predicated region
        $region13: #{mlp_mixer_forward.1} parent=11 // pred_check
          %p287 = pneg %p78
        $region14: #{mlp_mixer_forward.1} parent=11 // pred_check_branch
          %289 = sbr.rel (%p287) target = $region16
        $region15: #{mlp_mixer_forward.1} parent=11 // pred_region
          _
        $region16: #{mlp_mixer_forward.1} parent=11 // pred_fallthru
          _
        // Predicated region
        $region17: #{mlp_mixer_forward.1} parent=11 // pred_check
          %p290 = pneg %p99
        $region18: #{mlp_mixer_forward.1} parent=11 // pred_check_branch
          %292 = sbr.rel (%p290) target = $region20
        $region19: #{mlp_mixer_forward.1} parent=11 // pred_region
          _
        $region20: #{mlp_mixer_forward.1} parent=11 // pred_fallthru
          _
        // Predicated region
        $region21: #{mlp_mixer_forward.1} parent=11 // pred_check
          %p293 = pneg %p120
        $region22: #{mlp_mixer_forward.1} parent=11 // pred_check_branch
          %295 = sbr.rel (%p293) target = $region24
        $region23: #{mlp_mixer_forward.1} parent=11 // pred_region
          _
        $region24: #{mlp_mixer_forward.1} parent=11 // pred_fallthru
          _
        // Predicated region
        $region25: #{mlp_mixer_forward.1} parent=11 // pred_check
          %p296 = pneg %p141
        $region26: #{mlp_mixer_forward.1} parent=11 // pred_check_branch
          %298 = sbr.rel (%p296) target = $region28
        $region27: #{mlp_mixer_forward.1} parent=11 // pred_region
          _
        $region28: #{mlp_mixer_forward.1} parent=11 // pred_fallthru
          _
        // Predicated region
        $region29: #{mlp_mixer_forward.1} parent=11 // pred_check
          %p299 = pneg %p162
        $region30: #{mlp_mixer_forward.1} parent=11 // pred_check_branch
          %301 = sbr.rel (%p299) target = $region32
        $region31: #{mlp_mixer_forward.1} parent=11 // pred_region
          _
        $region32: #{mlp_mixer_forward.1} parent=11 // pred_fallthru
          _
        // Predicated region
        $region33: #{mlp_mixer_forward.1} parent=11 // pred_check
          %p302 = pneg %p183
        $region34: #{mlp_mixer_forward.1} parent=11 // pred_check_branch
          %304 = sbr.rel (%p302) target = $region36
        $region35: #{mlp_mixer_forward.1} parent=11 // pred_region
          _
        $region36: #{mlp_mixer_forward.1} parent=11 // pred_fallthru
          _
        // Predicated region
        $region37: #{mlp_mixer_forward.1} parent=11 // pred_check
          %p305 = pneg %p204
        $region38: #{mlp_mixer_forward.1} parent=11 // pred_check_branch
          %307 = sbr.rel (%p305) target = $region40
        $region39: #{mlp_mixer_forward.1} parent=11 // pred_region
          _
        $region40: #{mlp_mixer_forward.1} parent=11 // pred_fallthru
          _
        // Predicated region
        $region41: #{mlp_mixer_forward.1} parent=11 // pred_check
          %p308 = pneg %p225
        $region42: #{mlp_mixer_forward.1} parent=11 // pred_check_branch
          %310 = sbr.rel (%p308) target = $region44
        $region43: #{mlp_mixer_forward.1} parent=11 // pred_region
          _
        $region44: #{mlp_mixer_forward.1} parent=11 // pred_fallthru
          _
        // Predicated region
        $region45: #{mlp_mixer_forward.1} parent=11 // pred_check
          %p311 = pneg %p246
        $region46: #{mlp_mixer_forward.1} parent=11 // pred_check_branch
          %313 = sbr.rel (%p311) target = $region48
        $region47: #{mlp_mixer_forward.1} parent=11 // pred_region
          _
        $region48: #{mlp_mixer_forward.1} parent=11 // pred_fallthru
          _
      $region12: #{mlp_mixer_forward.1} parent=5 // pred_fallthru
        _
      %p314 = scmp.lt.s32.totalorder %s19, 4
      // Predicated region
      $region49: #{mlp_mixer_forward.1} parent=5 // pred_check
        %p315 = pneg %p314
      $region50: #{mlp_mixer_forward.1} parent=5 // pred_check_branch
        %317 = sbr.rel (%p315) target = $region52
      $region51: #{mlp_mixer_forward.1} parent=5 // pred_region
        // Predicated region
        $region53: #{mlp_mixer_forward.1} parent=51 // pred_check
          %p318 = pneg %p51
        $region54: #{mlp_mixer_forward.1} parent=51 // pred_check_branch
          %320 = sbr.rel (%p318) target = $region56
        $region55: #{mlp_mixer_forward.1} parent=51 // pred_region
          %s321 = smul.u32 4, %s26
          %p322 = scmp.lt.s32.totalorder %s321, 7
          %s323 = scalar_select %p322, %s321, 7
          %s324 = smul.addr %s323, 8
          %s325 = smul.addr %s324, 4
          %s326 = scalar_lea.vmem %s0, %s325
          %s327 = smul.u32 4, %s26
        $region56: #{mlp_mixer_forward.1} parent=51 // pred_fallthru
          _
      $region52: #{mlp_mixer_forward.1} parent=5 // pred_fallthru
        _
      %p328 = scmp.le.s32.totalorder 1, %s19
      %p329 = scmp.lt.s32.totalorder %s19, 5
      %p330 = pnand %p328, %p329
      %p331 = pneg %p330
      // Predicated region
      $region57: #{mlp_mixer_forward.1} parent=5 // pred_check
        _
      $region58: #{mlp_mixer_forward.1} parent=5 // pred_check_branch
        %333 = sbr.rel (%p330) target = $region60
      $region59: #{mlp_mixer_forward.1} parent=5 // pred_region
        %s334 = ssub.s32 %s19, 1
        %s335 = smul.u32 4, %s28
        %p336 = scmp.lt.s32.totalorder %s335, 7
        %s337 = scalar_select %p336, %s335, 7
        %s338 = smul.addr %s337, 8
        %s339 = smul.addr %s338, 4
        %s340 = scalar_lea.vmem %s0, %s339
        %p341 = pneg %p57
        %p342 = pneg %p54
        %p343 = pneg %p78
        %p344 = pneg %p75
        %p345 = pneg %p99
        %p346 = pneg %p96
        %p347 = pneg %p120
        %p348 = pneg %p117
        %p349 = pneg %p141
        %p350 = pneg %p138
        %p351 = pneg %p162
        %p352 = pneg %p159
        %p353 = pneg %p183
        %p354 = pneg %p180
        %p355 = pneg %p204
        %p356 = pneg %p201
        %p357 = pneg %p225
        %p358 = pneg %p222
        %p359 = pneg %p246
        %p360 = pneg %p243
        %p361 = pneg %p272
        %p362 = pneg %p269
        %s363 = sand.u32 %s259, 1
        %s364 = scalar_lea.sflag [#allocation5], %s363
        %s365 = sand.u32 %s259, 1
        %s366 = smul.addr %s365, 4
        %s367 = scalar_lea.vmem [#allocation4], %s366
        %s368 = smul.u32 4, %s28
        %p369 = scmp.lt.s32.totalorder %s368, 7
        %s370 = scalar_select %p369, %s368, 7
        %s371 = smul.addr %s370, 8
        %s372 = smul.addr %s371, 4
        %s373 = scalar_lea.vmem %s0, %s372
        %s374 = smul.u32 4, %s28
        %v376 = vld [vmem:[%s3] sm:$0xff]
        %p377 = scmp.eq.s32.totalorder %s29, 0
        // Predicated region
        $region61: #{mlp_mixer_forward.1} parent=59 // pred_check
          %p378 = pneg %p377
        $region62: #{mlp_mixer_forward.1} parent=59 // pred_check_branch
          %380 = sbr.rel (%p378) target = $region64
        $region63: #{mlp_mixer_forward.1} parent=59 // pred_region
          %v381 = vld [vmem:[%s373] sm:$0xf]
          %v382 = vld [vmem:[%s373 + $0x4] sm:$0xf]
          %v383 = vld [vmem:[%s373 + $0x8] sm:$0xf]
          %v384 = vld [vmem:[%s373 + $0xc] sm:$0xf]
          %v385 = vld [vmem:[%s373 + $0x10] sm:$0xf]
          %v386 = vld [vmem:[%s373 + $0x14] sm:$0xf]
          %v387 = vld [vmem:[%s373 + $0x18] sm:$0xf]
          %v388 = vld [vmem:[%s373 + $0x1c] sm:$0xf]
          %v389 = vld [vmem:[%s373 + $0x20] sm:$0xf]
          %v390 = vld [vmem:[%s373 + $0x24] sm:$0xf]
          %v391 = vld [vmem:[%s373 + $0x28] sm:$0xf]
          %v392 = vld [vmem:[%s373 + $0x2c] sm:$0xf]
          %v393 = vld [vmem:[%s373 + $0x30] sm:$0xf]
          %v394 = vld [vmem:[%s373 + $0x34] sm:$0xf]
          %v395 = vld [vmem:[%s373 + $0x38] sm:$0xf]
          %v396 = vld [vmem:[%s373 + $0x3c] sm:$0xf]
          %v397 = vld [vmem:[%s373 + $0x40] sm:$0xf]
          %v398 = vld [vmem:[%s373 + $0x44] sm:$0xf]
          %v399 = vld [vmem:[%s373 + $0x48] sm:$0xf]
          %v400 = vld [vmem:[%s373 + $0x4c] sm:$0xf]
          %v401 = vld [vmem:[%s373 + $0x50] sm:$0xf]
          %v402 = vld [vmem:[%s373 + $0x54] sm:$0xf]
          %v403 = vld [vmem:[%s373 + $0x58] sm:$0xf]
          %v404 = vld [vmem:[%s373 + $0x5c] sm:$0xf]
          %v405 = vld [vmem:[%s373 + $0x60] sm:$0xf]
          %v406 = vld [vmem:[%s373 + $0x64] sm:$0xf]
          %v407 = vld [vmem:[%s373 + $0x68] sm:$0xf]
          %v408 = vld [vmem:[%s373 + $0x6c] sm:$0xf]
          %v409 = vld [vmem:[%s373 + $0x70] sm:$0xf]
          %v410 = vld [vmem:[%s373 + $0x74] sm:$0xf]
          %v411 = vld [vmem:[%s373 + $0x78] sm:$0xf]
          %v412 = vld [vmem:[%s373 + $0x7c] sm:$0xf]
          %v413 = vld [vmem:[%s1] sm:$0xf]
          %v414 = vld [vmem:[%s1 + $0x4] sm:$0xf]
          %v415 = vld [vmem:[%s1 + $0x8] sm:$0xf]
          %v416 = vld [vmem:[%s1 + $0xc] sm:$0xf]
          %v417 = vld [vmem:[%s1 + $0x10] sm:$0xf]
          %v418 = vld [vmem:[%s1 + $0x14] sm:$0xf]
          %v419 = vperm.slane %v376, 0
          %v452 = vunpack.c.l.b16 %v381
          %v453 = vunpack.c.l.b16 %v382
          %v454 = vunpack.c.l.b16 %v383
          %v455 = vunpack.c.l.b16 %v384
          %v456 = vunpack.c.l.b16 %v385
          %v457 = vunpack.c.l.b16 %v386
          %v458 = vunpack.c.l.b16 %v387
          %v459 = vunpack.c.l.b16 %v388
          %v460 = vunpack.c.l.b16 %v389
          %v461 = vunpack.c.l.b16 %v390
          %v462 = vunpack.c.l.b16 %v391
          %v463 = vunpack.c.l.b16 %v392
          %v464 = vunpack.c.l.b16 %v393
          %v465 = vunpack.c.l.b16 %v394
          %v466 = vunpack.c.l.b16 %v395
          %v467 = vunpack.c.l.b16 %v396
          %v468 = vunpack.c.l.b16 %v397
          %v469 = vunpack.c.l.b16 %v398
          %v470 = vunpack.c.l.b16 %v399
          %v471 = vunpack.c.l.b16 %v400
          %v472 = vunpack.c.l.b16 %v401
          %v473 = vunpack.c.l.b16 %v402
          %v474 = vunpack.c.l.b16 %v403
          %v475 = vunpack.c.l.b16 %v404
          %v476 = vunpack.c.l.b16 %v405
          %v477 = vunpack.c.l.b16 %v406
          %v478 = vunpack.c.l.b16 %v407
          %v479 = vunpack.c.l.b16 %v408
          %v480 = vunpack.c.l.b16 %v409
          %v481 = vunpack.c.l.b16 %v410
          %v482 = vunpack.c.l.b16 %v411
          %v483 = vunpack.c.l.b16 %v412
          %v484 = vpack.c.b16 %v453, %v452
          %v485 = vpack.c.b16 %v455, %v454
          %v486 = vpack.c.b16 %v457, %v456
          %v487 = vpack.c.b16 %v459, %v458
          %v488 = vpack.c.b16 %v461, %v460
          %v489 = vpack.c.b16 %v463, %v462
          %v490 = vpack.c.b16 %v465, %v464
          %v491 = vpack.c.b16 %v467, %v466
          %v492 = vpack.c.b16 %v469, %v468
          %v493 = vpack.c.b16 %v471, %v470
          %v494 = vpack.c.b16 %v473, %v472
          %v495 = vpack.c.b16 %v475, %v474
          %v496 = vpack.c.b16 %v477, %v476
          %v497 = vpack.c.b16 %v479, %v478
          %v498 = vpack.c.b16 %v481, %v480
          %v499 = vpack.c.b16 %v483, %v482
          %v506 = vunpack.c.l.b16 %v413
          %v507 = vunpack.c.l.b16 %v414
          %v508 = vunpack.c.l.b16 %v415
          %v509 = vunpack.c.l.b16 %v416
          %v510 = vunpack.c.l.b16 %v417
          %v511 = vunpack.c.l.b16 %v418
          %v512 = vpack.c.b16 %v507, %v506
          %v513 = vpack.c.b16 %v509, %v508
          %v514 = vpack.c.b16 %v511, %v510
          %vm518 = vcmask 392192
          %v520 = vsel %vm518, %v484, 0
          %v523 = vsel %vm518, %v485, 0
          %v526 = vsel %vm518, %v486, 0
          %v529 = vsel %vm518, %v487, 0
          %v532 = vsel %vm518, %v488, 0
          %v535 = vsel %vm518, %v489, 0
          %v538 = vsel %vm518, %v490, 0
          %v541 = vsel %vm518, %v491, 0
          %v544 = vsel %vm518, %v492, 0
          %v547 = vsel %vm518, %v493, 0
          %v550 = vsel %vm518, %v494, 0
          %v553 = vsel %vm518, %v495, 0
          %v556 = vsel %vm518, %v496, 0
          %v559 = vsel %vm518, %v497, 0
          %v562 = vsel %vm518, %v498, 0
          %v565 = vsel %vm518, %v499, 0
          %567 = vmatpush.bf16.msra.mxu0 0
          %568 = vmatpush.bf16.msra.mxu0 0
          %569 = vmatpush.bf16.msra.mxu0 0
          %570 = vmatpush.bf16.msra.mxu0 0
          %571 = vmatpush.bf16.msra.mxu0 0
          %572 = vmatpush.bf16.msra.mxu0 %v514
          %573 = vmatpush.bf16.msra.mxu0 %v513
          %574 = vmatpush.bf16.msra.mxu0 %v512
          %575 = vmatmul.bf16.gmra.mxu0 %v520
          %v576 = vpop.f32.mrf.mxu0
          %v577 = vadd.f32 %v419, %v576
          %v578 = vpop.f32.mrf.mxu0
          %v579 = vadd.f32 %v419, %v578
          %580 = vmatmul.bf16.gmra.mxu0 %v523
          %v581 = vpop.f32.mrf.mxu0
          %v582 = vadd.f32 %v419, %v581
          %v583 = vpop.f32.mrf.mxu0
          %v584 = vadd.f32 %v419, %v583
          %585 = vmatmul.bf16.gmra.mxu0 %v526
          %v586 = vpop.f32.mrf.mxu0
          %v587 = vadd.f32 %v419, %v586
          %v588 = vpop.f32.mrf.mxu0
          %v589 = vadd.f32 %v419, %v588
          %590 = vmatmul.bf16.gmra.mxu0 %v529
          %v591 = vpop.f32.mrf.mxu0
          %v592 = vadd.f32 %v419, %v591
          %v593 = vpop.f32.mrf.mxu0
          %v594 = vadd.f32 %v419, %v593
          %595 = vmatmul.bf16.gmra.mxu0 %v532
          %v596 = vpop.f32.mrf.mxu0
          %v597 = vadd.f32 %v419, %v596
          %v598 = vpop.f32.mrf.mxu0
          %v599 = vadd.f32 %v419, %v598
          %600 = vmatmul.bf16.gmra.mxu0 %v535
          %v601 = vpop.f32.mrf.mxu0
          %v602 = vadd.f32 %v419, %v601
          %v603 = vpop.f32.mrf.mxu0
          %v604 = vadd.f32 %v419, %v603
          %605 = vmatmul.bf16.gmra.mxu0 %v538
          %v606 = vpop.f32.mrf.mxu0
          %v607 = vadd.f32 %v419, %v606
          %v608 = vpop.f32.mrf.mxu0
          %v609 = vadd.f32 %v419, %v608
          %610 = vmatmul.bf16.gmra.mxu0 %v541
          %v611 = vpop.f32.mrf.mxu0
          %v612 = vadd.f32 %v419, %v611
          %v613 = vpop.f32.mrf.mxu0
          %v614 = vadd.f32 %v419, %v613
          %615 = vmatmul.bf16.gmra.mxu0 %v544
          %v616 = vpop.f32.mrf.mxu0
          %v617 = vadd.f32 %v419, %v616
          %v618 = vpop.f32.mrf.mxu0
          %v619 = vadd.f32 %v419, %v618
          %620 = vmatmul.bf16.gmra.mxu0 %v547
          %v621 = vpop.f32.mrf.mxu0
          %v622 = vadd.f32 %v419, %v621
          %v623 = vpop.f32.mrf.mxu0
          %v624 = vadd.f32 %v419, %v623
          %625 = vmatmul.bf16.gmra.mxu0 %v550
          %v626 = vpop.f32.mrf.mxu0
          %v627 = vadd.f32 %v419, %v626
          %v628 = vpop.f32.mrf.mxu0
          %v629 = vadd.f32 %v419, %v628
          %630 = vmatmul.bf16.gmra.mxu0 %v553
          %v631 = vpop.f32.mrf.mxu0
          %v632 = vadd.f32 %v419, %v631
          %v633 = vpop.f32.mrf.mxu0
          %v634 = vadd.f32 %v419, %v633
          %635 = vmatmul.bf16.gmra.mxu0 %v556
          %v636 = vpop.f32.mrf.mxu0
          %v637 = vadd.f32 %v419, %v636
          %v638 = vpop.f32.mrf.mxu0
          %v639 = vadd.f32 %v419, %v638
          %640 = vmatmul.bf16.gmra.mxu0 %v559
          %v641 = vpop.f32.mrf.mxu0
          %v642 = vadd.f32 %v419, %v641
          %v643 = vpop.f32.mrf.mxu0
          %v644 = vadd.f32 %v419, %v643
          %645 = vmatmul.bf16.gmra.mxu0 %v562
          %v646 = vpop.f32.mrf.mxu0
          %v647 = vadd.f32 %v419, %v646
          %v648 = vpop.f32.mrf.mxu0
          %v649 = vadd.f32 %v419, %v648
          %650 = vmatmul.bf16.gmra.mxu0 %v565
          %v651 = vpop.f32.mrf.mxu0
          %v652 = vadd.f32 %v419, %v651
          %v653 = vpop.f32.mrf.mxu0
          %v654 = vadd.f32 %v419, %v653
          %655 = vdwg.mxu0
          %656 = vst [vmem:[#allocation3] sm:$0xff] %v577
          %657 = vst [vmem:[#allocation3 + $0x8] sm:$0xff] %v579
          %658 = vst [vmem:[#allocation3 + $0x10] sm:$0xff] %v582
          %659 = vst [vmem:[#allocation3 + $0x18] sm:$0xff] %v584
          %660 = vst [vmem:[#allocation3 + $0x20] sm:$0xff] %v587
          %661 = vst [vmem:[#allocation3 + $0x28] sm:$0xff] %v589
          %662 = vst [vmem:[#allocation3 + $0x30] sm:$0xff] %v592
          %663 = vst [vmem:[#allocation3 + $0x38] sm:$0xff] %v594
          %664 = vst [vmem:[#allocation3 + $0x40] sm:$0xff] %v597
          %665 = vst [vmem:[#allocation3 + $0x48] sm:$0xff] %v599
          %666 = vst [vmem:[#allocation3 + $0x50] sm:$0xff] %v602
          %667 = vst [vmem:[#allocation3 + $0x58] sm:$0xff] %v604
          %668 = vst [vmem:[#allocation3 + $0x60] sm:$0xff] %v607
          %669 = vst [vmem:[#allocation3 + $0x68] sm:$0xff] %v609
          %670 = vst [vmem:[#allocation3 + $0x70] sm:$0xff] %v612
          %671 = vst [vmem:[#allocation3 + $0x78] sm:$0xff] %v614
          %672 = vst [vmem:[#allocation3 + $0x80] sm:$0xff] %v617
          %673 = vst [vmem:[#allocation3 + $0x88] sm:$0xff] %v619
          %674 = vst [vmem:[#allocation3 + $0x90] sm:$0xff] %v622
          %675 = vst [vmem:[#allocation3 + $0x98] sm:$0xff] %v624
          %676 = vst [vmem:[#allocation3 + $0xa0] sm:$0xff] %v627
          %677 = vst [vmem:[#allocation3 + $0xa8] sm:$0xff] %v629
          %678 = vst [vmem:[#allocation3 + $0xb0] sm:$0xff] %v632
          %679 = vst [vmem:[#allocation3 + $0xb8] sm:$0xff] %v634
          %680 = vst [vmem:[#allocation3 + $0xc0] sm:$0xff] %v637
          %681 = vst [vmem:[#allocation3 + $0xc8] sm:$0xff] %v639
          %682 = vst [vmem:[#allocation3 + $0xd0] sm:$0xff] %v642
          %683 = vst [vmem:[#allocation3 + $0xd8] sm:$0xff] %v644
          %684 = vst [vmem:[#allocation3 + $0xe0] sm:$0xff] %v647
          %685 = vst [vmem:[#allocation3 + $0xe8] sm:$0xff] %v649
          %686 = vst [vmem:[#allocation3 + $0xf0] sm:$0xff] %v652
          %687 = vst [vmem:[#allocation3 + $0xf8] sm:$0xff] %v654
          %688 = vst [vmem:[#allocation2] sm:$0xff] %v577
          %689 = vst [vmem:[#allocation2 + $0x8] sm:$0xff] %v579
          %690 = vst [vmem:[#allocation2 + $0x10] sm:$0xff] %v582
          %691 = vst [vmem:[#allocation2 + $0x18] sm:$0xff] %v584
          %692 = vst [vmem:[#allocation2 + $0x20] sm:$0xff] %v587
          %693 = vst [vmem:[#allocation2 + $0x28] sm:$0xff] %v589
          %694 = vst [vmem:[#allocation2 + $0x30] sm:$0xff] %v592
          %695 = vst [vmem:[#allocation2 + $0x38] sm:$0xff] %v594
          %696 = vst [vmem:[#allocation2 + $0x40] sm:$0xff] %v597
          %697 = vst [vmem:[#allocation2 + $0x48] sm:$0xff] %v599
          %698 = vst [vmem:[#allocation2 + $0x50] sm:$0xff] %v602
          %699 = vst [vmem:[#allocation2 + $0x58] sm:$0xff] %v604
          %700 = vst [vmem:[#allocation2 + $0x60] sm:$0xff] %v607
          %701 = vst [vmem:[#allocation2 + $0x68] sm:$0xff] %v609
          %702 = vst [vmem:[#allocation2 + $0x70] sm:$0xff] %v612
          %703 = vst [vmem:[#allocation2 + $0x78] sm:$0xff] %v614
          %704 = vst [vmem:[#allocation2 + $0x80] sm:$0xff] %v617
          %705 = vst [vmem:[#allocation2 + $0x88] sm:$0xff] %v619
          %706 = vst [vmem:[#allocation2 + $0x90] sm:$0xff] %v622
          %707 = vst [vmem:[#allocation2 + $0x98] sm:$0xff] %v624
          %708 = vst [vmem:[#allocation2 + $0xa0] sm:$0xff] %v627
          %709 = vst [vmem:[#allocation2 + $0xa8] sm:$0xff] %v629
          %710 = vst [vmem:[#allocation2 + $0xb0] sm:$0xff] %v632
          %711 = vst [vmem:[#allocation2 + $0xb8] sm:$0xff] %v634
          %712 = vst [vmem:[#allocation2 + $0xc0] sm:$0xff] %v637
          %713 = vst [vmem:[#allocation2 + $0xc8] sm:$0xff] %v639
          %714 = vst [vmem:[#allocation2 + $0xd0] sm:$0xff] %v642
          %715 = vst [vmem:[#allocation2 + $0xd8] sm:$0xff] %v644
          %716 = vst [vmem:[#allocation2 + $0xe0] sm:$0xff] %v647
          %717 = vst [vmem:[#allocation2 + $0xe8] sm:$0xff] %v649
          %718 = vst [vmem:[#allocation2 + $0xf0] sm:$0xff] %v652
          %719 = vst [vmem:[#allocation2 + $0xf8] sm:$0xff] %v654
        $region64: #{mlp_mixer_forward.1} parent=59 // pred_fallthru
          _
        %s720 = smul.u32 %s29, 2
        %s721 = smul.addr %s720, 8
        %s722 = scalar_lea.vmem %s4, %s721
        %v723 = vld [vmem:[%s722] sm:$0xff]
        %v724 = vld [vmem:[%s722 + $0x8] sm:$0xff]
        %s725 = smul.u32 %s29, 128
        %s726 = scalar_lea.vmem %s5, %s725
        %v727 = vld [vmem:[%s726] sm:$0xff]
        %v728 = vld [vmem:[%s726 + $0x8] sm:$0xff]
        %v729 = vld [vmem:[%s726 + $0x10] sm:$0xff]
        %v730 = vld [vmem:[%s726 + $0x18] sm:$0xff]
        %v731 = vld [vmem:[%s726 + $0x20] sm:$0xff]
        %v732 = vld [vmem:[%s726 + $0x28] sm:$0xff]
        %v733 = vld [vmem:[%s726 + $0x30] sm:$0xff]
        %v734 = vld [vmem:[%s726 + $0x38] sm:$0xff]
        %v735 = vld [vmem:[%s726 + $0x40] sm:$0xff]
        %v736 = vld [vmem:[%s726 + $0x48] sm:$0xff]
        %v737 = vld [vmem:[%s726 + $0x50] sm:$0xff]
        %v738 = vld [vmem:[%s726 + $0x58] sm:$0xff]
        %v739 = vld [vmem:[%s726 + $0x60] sm:$0xff]
        %v740 = vld [vmem:[%s726 + $0x68] sm:$0xff]
        %v741 = vld [vmem:[%s726 + $0x70] sm:$0xff]
        %v742 = vld [vmem:[%s726 + $0x78] sm:$0xff]
        %s743 = smul.u32 %s29, 16
        %s744 = smul.addr %s743, 4
        %s745 = scalar_lea.vmem %s6, %s744
        %v746 = vld [vmem:[%s745] sm:$0xf]
        %v747 = vld [vmem:[%s745 + $0x4] sm:$0xf]
        %v748 = vld [vmem:[%s745 + $0x8] sm:$0xf]
        %v749 = vld [vmem:[%s745 + $0xc] sm:$0xf]
        %v750 = vld [vmem:[%s745 + $0x10] sm:$0xf]
        %v751 = vld [vmem:[%s745 + $0x14] sm:$0xf]
        %v752 = vld [vmem:[%s745 + $0x18] sm:$0xf]
        %v753 = vld [vmem:[%s745 + $0x1c] sm:$0xf]
        %v754 = vld [vmem:[%s745 + $0x20] sm:$0xf]
        %v755 = vld [vmem:[%s745 + $0x24] sm:$0xf]
        %v756 = vld [vmem:[%s745 + $0x28] sm:$0xf]
        %v757 = vld [vmem:[%s745 + $0x2c] sm:$0xf]
        %v758 = vld [vmem:[%s745 + $0x30] sm:$0xf]
        %v759 = vld [vmem:[%s745 + $0x34] sm:$0xf]
        %v760 = vld [vmem:[%s745 + $0x38] sm:$0xf]
        %v761 = vld [vmem:[%s745 + $0x3c] sm:$0xf]
        %s762 = smul.u32 %s29, 8
        %s763 = smul.addr %s762, 4
        %s764 = scalar_lea.vmem %s7, %s763
        %v765 = vld [vmem:[%s764] sm:$0xf]
        %v766 = vld [vmem:[%s764 + $0x4] sm:$0xf]
        %v767 = vld [vmem:[%s764 + $0x8] sm:$0xf]
        %v768 = vld [vmem:[%s764 + $0xc] sm:$0xf]
        %v769 = vld [vmem:[%s764 + $0x10] sm:$0xf]
        %v770 = vld [vmem:[%s764 + $0x14] sm:$0xf]
        %v771 = vld [vmem:[%s764 + $0x18] sm:$0xf]
        %v772 = vld [vmem:[%s764 + $0x1c] sm:$0xf]
        %s773 = smul.u32 %s29, 32
        %s774 = smul.addr %s773, 4
        %s775 = scalar_lea.vmem %s8, %s774
        %v776 = vld [vmem:[%s775] sm:$0xff]
        %v777 = vld [vmem:[%s775 + $0x8] sm:$0xff]
        %v778 = vld [vmem:[%s775 + $0x10] sm:$0xff]
        %v779 = vld [vmem:[%s775 + $0x18] sm:$0xff]
        %v780 = vld [vmem:[%s775 + $0x20] sm:$0xff]
        %v781 = vld [vmem:[%s775 + $0x28] sm:$0xff]
        %v782 = vld [vmem:[%s775 + $0x30] sm:$0xff]
        %v783 = vld [vmem:[%s775 + $0x38] sm:$0xff]
        %v784 = vld [vmem:[%s775 + $0x40] sm:$0xff]
        %v785 = vld [vmem:[%s775 + $0x48] sm:$0xff]
        %v786 = vld [vmem:[%s775 + $0x50] sm:$0xff]
        %v787 = vld [vmem:[%s775 + $0x58] sm:$0xff]
        %v788 = vld [vmem:[%s775 + $0x60] sm:$0xff]
        %v789 = vld [vmem:[%s775 + $0x68] sm:$0xff]
        %v790 = vld [vmem:[%s775 + $0x70] sm:$0xff]
        %v791 = vld [vmem:[%s775 + $0x78] sm:$0xff]
        %s792 = smul.addr %s773, 4
        %s793 = scalar_lea.vmem %s9, %s792
        %v794 = vld [vmem:[%s793] sm:$0xf]
        %v795 = vld [vmem:[%s793 + $0x4] sm:$0xf]
        %v796 = vld [vmem:[%s793 + $0x8] sm:$0xf]
        %v797 = vld [vmem:[%s793 + $0xc] sm:$0xf]
        %v798 = vld [vmem:[%s793 + $0x10] sm:$0xf]
        %v799 = vld [vmem:[%s793 + $0x14] sm:$0xf]
        %v800 = vld [vmem:[%s793 + $0x18] sm:$0xf]
        %v801 = vld [vmem:[%s793 + $0x1c] sm:$0xf]
        %v802 = vld [vmem:[%s793 + $0x20] sm:$0xf]
        %v803 = vld [vmem:[%s793 + $0x24] sm:$0xf]
        %v804 = vld [vmem:[%s793 + $0x28] sm:$0xf]
        %v805 = vld [vmem:[%s793 + $0x2c] sm:$0xf]
        %v806 = vld [vmem:[%s793 + $0x30] sm:$0xf]
        %v807 = vld [vmem:[%s793 + $0x34] sm:$0xf]
        %v808 = vld [vmem:[%s793 + $0x38] sm:$0xf]
        %v809 = vld [vmem:[%s793 + $0x3c] sm:$0xf]
        %v810 = vld [vmem:[%s793 + $0x40] sm:$0xf]
        %v811 = vld [vmem:[%s793 + $0x44] sm:$0xf]
        %v812 = vld [vmem:[%s793 + $0x48] sm:$0xf]
        %v813 = vld [vmem:[%s793 + $0x4c] sm:$0xf]
        %v814 = vld [vmem:[%s793 + $0x50] sm:$0xf]
        %v815 = vld [vmem:[%s793 + $0x54] sm:$0xf]
        %v816 = vld [vmem:[%s793 + $0x58] sm:$0xf]
        %v817 = vld [vmem:[%s793 + $0x5c] sm:$0xf]
        %v818 = vld [vmem:[%s793 + $0x60] sm:$0xf]
        %v819 = vld [vmem:[%s793 + $0x64] sm:$0xf]
        %v820 = vld [vmem:[%s793 + $0x68] sm:$0xf]
        %v821 = vld [vmem:[%s793 + $0x6c] sm:$0xf]
        %v822 = vld [vmem:[%s793 + $0x70] sm:$0xf]
        %v823 = vld [vmem:[%s793 + $0x74] sm:$0xf]
        %v824 = vld [vmem:[%s793 + $0x78] sm:$0xf]
        %v825 = vld [vmem:[%s793 + $0x7c] sm:$0xf]
        %v826 = vld [vmem:[#allocation2] sm:$0xff]
        %v827 = vld [vmem:[#allocation2 + $0x8] sm:$0xff]
        %v828 = vld [vmem:[#allocation2 + $0x10] sm:$0xff]
        %v829 = vld [vmem:[#allocation2 + $0x18] sm:$0xff]
        %v830 = vld [vmem:[#allocation2 + $0x20] sm:$0xff]
        %v831 = vld [vmem:[#allocation2 + $0x28] sm:$0xff]
        %v832 = vld [vmem:[#allocation2 + $0x30] sm:$0xff]
        %v833 = vld [vmem:[#allocation2 + $0x38] sm:$0xff]
        %v834 = vld [vmem:[#allocation2 + $0x40] sm:$0xff]
        %v835 = vld [vmem:[#allocation2 + $0x48] sm:$0xff]
        %v836 = vld [vmem:[#allocation2 + $0x50] sm:$0xff]
        %v837 = vld [vmem:[#allocation2 + $0x58] sm:$0xff]
        %v838 = vld [vmem:[#allocation2 + $0x60] sm:$0xff]
        %v839 = vld [vmem:[#allocation2 + $0x68] sm:$0xff]
        %v840 = vld [vmem:[#allocation2 + $0x70] sm:$0xff]
        %v841 = vld [vmem:[#allocation2 + $0x78] sm:$0xff]
        %v842 = vld [vmem:[#allocation2 + $0x80] sm:$0xff]
        %v843 = vld [vmem:[#allocation2 + $0x88] sm:$0xff]
        %v844 = vld [vmem:[#allocation2 + $0x90] sm:$0xff]
        %v845 = vld [vmem:[#allocation2 + $0x98] sm:$0xff]
        %v846 = vld [vmem:[#allocation2 + $0xa0] sm:$0xff]
        %v847 = vld [vmem:[#allocation2 + $0xa8] sm:$0xff]
        %v848 = vld [vmem:[#allocation2 + $0xb0] sm:$0xff]
        %v849 = vld [vmem:[#allocation2 + $0xb8] sm:$0xff]
        %v850 = vld [vmem:[#allocation2 + $0xc0] sm:$0xff]
        %v851 = vld [vmem:[#allocation2 + $0xc8] sm:$0xff]
        %v852 = vld [vmem:[#allocation2 + $0xd0] sm:$0xff]
        %v853 = vld [vmem:[#allocation2 + $0xd8] sm:$0xff]
        %v854 = vld [vmem:[#allocation2 + $0xe0] sm:$0xff]
        %v855 = vld [vmem:[#allocation2 + $0xe8] sm:$0xff]
        %v856 = vld [vmem:[#allocation2 + $0xf0] sm:$0xff]
        %v857 = vld [vmem:[#allocation2 + $0xf8] sm:$0xff]
        %858 = vadd.xlane.f32.xlu0 %v826
        %v859 = vpop.xlane.xlu0 %858
        %860 = vadd.xlane.f32.xlu0 %v827
        %v861 = vpop.xlane.xlu0 %860
        %862 = vadd.xlane.f32.xlu0 %v828
        %v863 = vpop.xlane.xlu0 %862
        %864 = vadd.xlane.f32.xlu0 %v829
        %v865 = vpop.xlane.xlu0 %864
        %866 = vadd.xlane.f32.xlu0 %v830
        %v867 = vpop.xlane.xlu0 %866
        %868 = vadd.xlane.f32.xlu0 %v831
        %v869 = vpop.xlane.xlu0 %868
        %870 = vadd.xlane.f32.xlu0 %v832
        %v871 = vpop.xlane.xlu0 %870
        %872 = vadd.xlane.f32.xlu0 %v833
        %v873 = vpop.xlane.xlu0 %872
        %874 = vadd.xlane.f32.xlu0 %v834
        %v875 = vpop.xlane.xlu0 %874
        %876 = vadd.xlane.f32.xlu0 %v835
        %v877 = vpop.xlane.xlu0 %876
        %878 = vadd.xlane.f32.xlu0 %v836
        %v879 = vpop.xlane.xlu0 %878
        %880 = vadd.xlane.f32.xlu0 %v837
        %v881 = vpop.xlane.xlu0 %880
        %882 = vadd.xlane.f32.xlu0 %v838
        %v883 = vpop.xlane.xlu0 %882
        %884 = vadd.xlane.f32.xlu0 %v839
        %v885 = vpop.xlane.xlu0 %884
        %886 = vadd.xlane.f32.xlu0 %v840
        %v887 = vpop.xlane.xlu0 %886
        %888 = vadd.xlane.f32.xlu0 %v841
        %v889 = vpop.xlane.xlu0 %888
        %890 = vadd.xlane.f32.xlu0 %v842
        %v891 = vpop.xlane.xlu0 %890
        %892 = vadd.xlane.f32.xlu0 %v843
        %v893 = vpop.xlane.xlu0 %892
        %894 = vadd.xlane.f32.xlu0 %v844
        %v895 = vpop.xlane.xlu0 %894
        %896 = vadd.xlane.f32.xlu0 %v845
        %v897 = vpop.xlane.xlu0 %896
        %898 = vadd.xlane.f32.xlu0 %v846
        %v899 = vpop.xlane.xlu0 %898
        %900 = vadd.xlane.f32.xlu0 %v847
        %v901 = vpop.xlane.xlu0 %900
        %902 = vadd.xlane.f32.xlu0 %v848
        %v903 = vpop.xlane.xlu0 %902
        %904 = vadd.xlane.f32.xlu0 %v849
        %v905 = vpop.xlane.xlu0 %904
        %906 = vadd.xlane.f32.xlu0 %v850
        %v907 = vpop.xlane.xlu0 %906
        %908 = vadd.xlane.f32.xlu0 %v851
        %v909 = vpop.xlane.xlu0 %908
        %910 = vadd.xlane.f32.xlu0 %v852
        %v911 = vpop.xlane.xlu0 %910
        %912 = vadd.xlane.f32.xlu0 %v853
        %v913 = vpop.xlane.xlu0 %912
        %914 = vadd.xlane.f32.xlu0 %v854
        %v915 = vpop.xlane.xlu0 %914
        %916 = vadd.xlane.f32.xlu0 %v855
        %v917 = vpop.xlane.xlu0 %916
        %918 = vadd.xlane.f32.xlu0 %v856
        %v919 = vpop.xlane.xlu0 %918
        %920 = vadd.xlane.f32.xlu0 %v857
        %v921 = vpop.xlane.xlu0 %920
        %v922 = vrcp.pop 128.0
        %v923 = vmul.f32 128.0, %v922
        %v924 = vsub.f32 1.0, %v923
        %v925 = vmul.f32 %v922, %v924
        %v926 = vadd.f32 %v922, %v925
        %vm927 = vweird.f32 %v922
        %v928 = vsel %vm927, %v922, %v926
        %v929 = vmul.f32 %v859, %v928
        %v930 = vmul.f32 %v861, %v928
        %v931 = vmul.f32 %v863, %v928
        %v932 = vmul.f32 %v865, %v928
        %v933 = vmul.f32 %v867, %v928
        %v934 = vmul.f32 %v869, %v928
        %v935 = vmul.f32 %v871, %v928
        %v936 = vmul.f32 %v873, %v928
        %v937 = vmul.f32 %v875, %v928
        %v938 = vmul.f32 %v877, %v928
        %v939 = vmul.f32 %v879, %v928
        %v940 = vmul.f32 %v881, %v928
        %v941 = vmul.f32 %v883, %v928
        %v942 = vmul.f32 %v885, %v928
        %v943 = vmul.f32 %v887, %v928
        %v944 = vmul.f32 %v889, %v928
        %v945 = vmul.f32 %v891, %v928
        %v946 = vmul.f32 %v893, %v928
        %v947 = vmul.f32 %v895, %v928
        %v948 = vmul.f32 %v897, %v928
        %v949 = vmul.f32 %v899, %v928
        %v950 = vmul.f32 %v901, %v928
        %v951 = vmul.f32 %v903, %v928
        %v952 = vmul.f32 %v905, %v928
        %v953 = vmul.f32 %v907, %v928
        %v954 = vmul.f32 %v909, %v928
        %v955 = vmul.f32 %v911, %v928
        %v956 = vmul.f32 %v913, %v928
        %v957 = vmul.f32 %v915, %v928
        %v958 = vmul.f32 %v917, %v928
        %v959 = vmul.f32 %v919, %v928
        %v960 = vmul.f32 %v921, %v928
        %v961 = vsub.f32 %v826, %v929
        %v962 = vsub.f32 %v827, %v930
        %v963 = vsub.f32 %v828, %v931
        %v964 = vsub.f32 %v829, %v932
        %v965 = vsub.f32 %v830, %v933
        %v966 = vsub.f32 %v831, %v934
        %v967 = vsub.f32 %v832, %v935
        %v968 = vsub.f32 %v833, %v936
        %v969 = vsub.f32 %v834, %v937
        %v970 = vsub.f32 %v835, %v938
        %v971 = vsub.f32 %v836, %v939
        %v972 = vsub.f32 %v837, %v940
        %v973 = vsub.f32 %v838, %v941
        %v974 = vsub.f32 %v839, %v942
        %v975 = vsub.f32 %v840, %v943
        %v976 = vsub.f32 %v841, %v944
        %v977 = vsub.f32 %v842, %v945
        %v978 = vsub.f32 %v843, %v946
        %v979 = vsub.f32 %v844, %v947
        %v980 = vsub.f32 %v845, %v948
        %v981 = vsub.f32 %v846, %v949
        %v982 = vsub.f32 %v847, %v950
        %v983 = vsub.f32 %v848, %v951
        %v984 = vsub.f32 %v849, %v952
        %v985 = vsub.f32 %v850, %v953
        %v986 = vsub.f32 %v851, %v954
        %v987 = vsub.f32 %v852, %v955
        %v988 = vsub.f32 %v853, %v956
        %v989 = vsub.f32 %v854, %v957
        %v990 = vsub.f32 %v855, %v958
        %v991 = vsub.f32 %v856, %v959
        %v992 = vsub.f32 %v857, %v960
        %v993 = vmul.f32 %v961, %v961
        %v994 = vmul.f32 %v962, %v962
        %v995 = vmul.f32 %v963, %v963
        %v996 = vmul.f32 %v964, %v964
        %v997 = vmul.f32 %v965, %v965
        %v998 = vmul.f32 %v966, %v966
        %v999 = vmul.f32 %v967, %v967
        %v1000 = vmul.f32 %v968, %v968
        %v1001 = vmul.f32 %v969, %v969
        %v1002 = vmul.f32 %v970, %v970
        %v1003 = vmul.f32 %v971, %v971
        %v1004 = vmul.f32 %v972, %v972
        %v1005 = vmul.f32 %v973, %v973
        %v1006 = vmul.f32 %v974, %v974
        %v1007 = vmul.f32 %v975, %v975
        %v1008 = vmul.f32 %v976, %v976
        %v1009 = vmul.f32 %v977, %v977
        %v1010 = vmul.f32 %v978, %v978
        %v1011 = vmul.f32 %v979, %v979
        %v1012 = vmul.f32 %v980, %v980
        %v1013 = vmul.f32 %v981, %v981
        %v1014 = vmul.f32 %v982, %v982
        %v1015 = vmul.f32 %v983, %v983
        %v1016 = vmul.f32 %v984, %v984
        %v1017 = vmul.f32 %v985, %v985
        %v1018 = vmul.f32 %v986, %v986
        %v1019 = vmul.f32 %v987, %v987
        %v1020 = vmul.f32 %v988, %v988
        %v1021 = vmul.f32 %v989, %v989
        %v1022 = vmul.f32 %v990, %v990
        %v1023 = vmul.f32 %v991, %v991
        %v1024 = vmul.f32 %v992, %v992
        %1025 = vadd.xlane.f32.xlu0 %v993
        %v1026 = vpop.xlane.xlu0 %1025
        %1027 = vadd.xlane.f32.xlu0 %v994
        %v1028 = vpop.xlane.xlu0 %1027
        %1029 = vadd.xlane.f32.xlu0 %v995
        %v1030 = vpop.xlane.xlu0 %1029
        %1031 = vadd.xlane.f32.xlu0 %v996
        %v1032 = vpop.xlane.xlu0 %1031
        %1033 = vadd.xlane.f32.xlu0 %v997
        %v1034 = vpop.xlane.xlu0 %1033
        %1035 = vadd.xlane.f32.xlu0 %v998
        %v1036 = vpop.xlane.xlu0 %1035
        %1037 = vadd.xlane.f32.xlu0 %v999
        %v1038 = vpop.xlane.xlu0 %1037
        %1039 = vadd.xlane.f32.xlu0 %v1000
        %v1040 = vpop.xlane.xlu0 %1039
        %1041 = vadd.xlane.f32.xlu0 %v1001
        %v1042 = vpop.xlane.xlu0 %1041
        %1043 = vadd.xlane.f32.xlu0 %v1002
        %v1044 = vpop.xlane.xlu0 %1043
        %1045 = vadd.xlane.f32.xlu0 %v1003
        %v1046 = vpop.xlane.xlu0 %1045
        %1047 = vadd.xlane.f32.xlu0 %v1004
        %v1048 = vpop.xlane.xlu0 %1047
        %1049 = vadd.xlane.f32.xlu0 %v1005
        %v1050 = vpop.xlane.xlu0 %1049
        %1051 = vadd.xlane.f32.xlu0 %v1006
        %v1052 = vpop.xlane.xlu0 %1051
        %1053 = vadd.xlane.f32.xlu0 %v1007
        %v1054 = vpop.xlane.xlu0 %1053
        %1055 = vadd.xlane.f32.xlu0 %v1008
        %v1056 = vpop.xlane.xlu0 %1055
        %1057 = vadd.xlane.f32.xlu0 %v1009
        %v1058 = vpop.xlane.xlu0 %1057
        %1059 = vadd.xlane.f32.xlu0 %v1010
        %v1060 = vpop.xlane.xlu0 %1059
        %1061 = vadd.xlane.f32.xlu0 %v1011
        %v1062 = vpop.xlane.xlu0 %1061
        %1063 = vadd.xlane.f32.xlu0 %v1012
        %v1064 = vpop.xlane.xlu0 %1063
        %1065 = vadd.xlane.f32.xlu0 %v1013
        %v1066 = vpop.xlane.xlu0 %1065
        %1067 = vadd.xlane.f32.xlu0 %v1014
        %v1068 = vpop.xlane.xlu0 %1067
        %1069 = vadd.xlane.f32.xlu0 %v1015
        %v1070 = vpop.xlane.xlu0 %1069
        %1071 = vadd.xlane.f32.xlu0 %v1016
        %v1072 = vpop.xlane.xlu0 %1071
        %1073 = vadd.xlane.f32.xlu0 %v1017
        %v1074 = vpop.xlane.xlu0 %1073
        %1075 = vadd.xlane.f32.xlu0 %v1018
        %v1076 = vpop.xlane.xlu0 %1075
        %1077 = vadd.xlane.f32.xlu0 %v1019
        %v1078 = vpop.xlane.xlu0 %1077
        %1079 = vadd.xlane.f32.xlu0 %v1020
        %v1080 = vpop.xlane.xlu0 %1079
        %1081 = vadd.xlane.f32.xlu0 %v1021
        %v1082 = vpop.xlane.xlu0 %1081
        %1083 = vadd.xlane.f32.xlu0 %v1022
        %v1084 = vpop.xlane.xlu0 %1083
        %1085 = vadd.xlane.f32.xlu0 %v1023
        %v1086 = vpop.xlane.xlu0 %1085
        %1087 = vadd.xlane.f32.xlu0 %v1024
        %v1088 = vpop.xlane.xlu0 %1087
        %v1089 = vmul.f32 %v1026, %v928
        %v1090 = vmul.f32 %v1028, %v928
        %v1091 = vmul.f32 %v1030, %v928
        %v1092 = vmul.f32 %v1032, %v928
        %v1093 = vmul.f32 %v1034, %v928
        %v1094 = vmul.f32 %v1036, %v928
        %v1095 = vmul.f32 %v1038, %v928
        %v1096 = vmul.f32 %v1040, %v928
        %v1097 = vmul.f32 %v1042, %v928
        %v1098 = vmul.f32 %v1044, %v928
        %v1099 = vmul.f32 %v1046, %v928
        %v1100 = vmul.f32 %v1048, %v928
        %v1101 = vmul.f32 %v1050, %v928
        %v1102 = vmul.f32 %v1052, %v928
        %v1103 = vmul.f32 %v1054, %v928
        %v1104 = vmul.f32 %v1056, %v928
        %v1105 = vmul.f32 %v1058, %v928
        %v1106 = vmul.f32 %v1060, %v928
        %v1107 = vmul.f32 %v1062, %v928
        %v1108 = vmul.f32 %v1064, %v928
        %v1109 = vmul.f32 %v1066, %v928
        %v1110 = vmul.f32 %v1068, %v928
        %v1111 = vmul.f32 %v1070, %v928
        %v1112 = vmul.f32 %v1072, %v928
        %v1113 = vmul.f32 %v1074, %v928
        %v1114 = vmul.f32 %v1076, %v928
        %v1115 = vmul.f32 %v1078, %v928
        %v1116 = vmul.f32 %v1080, %v928
        %v1117 = vmul.f32 %v1082, %v928
        %v1118 = vmul.f32 %v1084, %v928
        %v1119 = vmul.f32 %v1086, %v928
        %v1120 = vmul.f32 %v1088, %v928
        %v1121 = vadd.f32 %v1089, 1e-05
        %v1122 = vadd.f32 %v1090, 1e-05
        %v1123 = vadd.f32 %v1091, 1e-05
        %v1124 = vadd.f32 %v1092, 1e-05
        %v1125 = vadd.f32 %v1093, 1e-05
        %v1126 = vadd.f32 %v1094, 1e-05
        %v1127 = vadd.f32 %v1095, 1e-05
        %v1128 = vadd.f32 %v1096, 1e-05
        %v1129 = vadd.f32 %v1097, 1e-05
        %v1130 = vadd.f32 %v1098, 1e-05
        %v1131 = vadd.f32 %v1099, 1e-05
        %v1132 = vadd.f32 %v1100, 1e-05
        %v1133 = vadd.f32 %v1101, 1e-05
        %v1134 = vadd.f32 %v1102, 1e-05
        %v1135 = vadd.f32 %v1103, 1e-05
        %v1136 = vadd.f32 %v1104, 1e-05
        %v1137 = vadd.f32 %v1105, 1e-05
        %v1138 = vadd.f32 %v1106, 1e-05
        %v1139 = vadd.f32 %v1107, 1e-05
        %v1140 = vadd.f32 %v1108, 1e-05
        %v1141 = vadd.f32 %v1109, 1e-05
        %v1142 = vadd.f32 %v1110, 1e-05
        %v1143 = vadd.f32 %v1111, 1e-05
        %v1144 = vadd.f32 %v1112, 1e-05
        %v1145 = vadd.f32 %v1113, 1e-05
        %v1146 = vadd.f32 %v1114, 1e-05
        %v1147 = vadd.f32 %v1115, 1e-05
        %v1148 = vadd.f32 %v1116, 1e-05
        %v1149 = vadd.f32 %v1117, 1e-05
        %v1150 = vadd.f32 %v1118, 1e-05
        %v1151 = vadd.f32 %v1119, 1e-05
        %v1152 = vadd.f32 %v1120, 1e-05
        %v1153 = vrsqrt.pop %v1121
        %v1154 = vmul.f32 %v1153, %v1121
        %v1155 = vmul.f32 %v1154, %v1153
        %v1156 = vmul.f32 0.5, %v1155
        %v1157 = vsub.f32 1.5, %v1156
        %v1158 = vmul.f32 %v1153, %v1157
        %vm1159 = vweird.f32 %v1121
        %vm1160 = vweird.f32 %v1153
        %vm1161 = vmor %vm1159, %vm1160
        %v1162 = vsel %vm1161, %v1153, %v1158
        %v1163 = vrsqrt.pop %v1122
        %v1164 = vmul.f32 %v1163, %v1122
        %v1165 = vmul.f32 %v1164, %v1163
        %v1166 = vmul.f32 0.5, %v1165
        %v1167 = vsub.f32 1.5, %v1166
        %v1168 = vmul.f32 %v1163, %v1167
        %vm1169 = vweird.f32 %v1122
        %vm1170 = vweird.f32 %v1163
        %vm1171 = vmor %vm1169, %vm1170
        %v1172 = vsel %vm1171, %v1163, %v1168
        %v1173 = vrsqrt.pop %v1123
        %v1174 = vmul.f32 %v1173, %v1123
        %v1175 = vmul.f32 %v1174, %v1173
        %v1176 = vmul.f32 0.5, %v1175
        %v1177 = vsub.f32 1.5, %v1176
        %v1178 = vmul.f32 %v1173, %v1177
        %vm1179 = vweird.f32 %v1123
        %vm1180 = vweird.f32 %v1173
        %vm1181 = vmor %vm1179, %vm1180
        %v1182 = vsel %vm1181, %v1173, %v1178
        %v1183 = vrsqrt.pop %v1124
        %v1184 = vmul.f32 %v1183, %v1124
        %v1185 = vmul.f32 %v1184, %v1183
        %v1186 = vmul.f32 0.5, %v1185
        %v1187 = vsub.f32 1.5, %v1186
        %v1188 = vmul.f32 %v1183, %v1187
        %vm1189 = vweird.f32 %v1124
        %vm1190 = vweird.f32 %v1183
        %vm1191 = vmor %vm1189, %vm1190
        %v1192 = vsel %vm1191, %v1183, %v1188
        %v1193 = vrsqrt.pop %v1125
        %v1194 = vmul.f32 %v1193, %v1125
        %v1195 = vmul.f32 %v1194, %v1193
        %v1196 = vmul.f32 0.5, %v1195
        %v1197 = vsub.f32 1.5, %v1196
        %v1198 = vmul.f32 %v1193, %v1197
        %vm1199 = vweird.f32 %v1125
        %vm1200 = vweird.f32 %v1193
        %vm1201 = vmor %vm1199, %vm1200
        %v1202 = vsel %vm1201, %v1193, %v1198
        %v1203 = vrsqrt.pop %v1126
        %v1204 = vmul.f32 %v1203, %v1126
        %v1205 = vmul.f32 %v1204, %v1203
        %v1206 = vmul.f32 0.5, %v1205
        %v1207 = vsub.f32 1.5, %v1206
        %v1208 = vmul.f32 %v1203, %v1207
        %vm1209 = vweird.f32 %v1126
        %vm1210 = vweird.f32 %v1203
        %vm1211 = vmor %vm1209, %vm1210
        %v1212 = vsel %vm1211, %v1203, %v1208
        %v1213 = vrsqrt.pop %v1127
        %v1214 = vmul.f32 %v1213, %v1127
        %v1215 = vmul.f32 %v1214, %v1213
        %v1216 = vmul.f32 0.5, %v1215
        %v1217 = vsub.f32 1.5, %v1216
        %v1218 = vmul.f32 %v1213, %v1217
        %vm1219 = vweird.f32 %v1127
        %vm1220 = vweird.f32 %v1213
        %vm1221 = vmor %vm1219, %vm1220
        %v1222 = vsel %vm1221, %v1213, %v1218
        %v1223 = vrsqrt.pop %v1128
        %v1224 = vmul.f32 %v1223, %v1128
        %v1225 = vmul.f32 %v1224, %v1223
        %v1226 = vmul.f32 0.5, %v1225
        %v1227 = vsub.f32 1.5, %v1226
        %v1228 = vmul.f32 %v1223, %v1227
        %vm1229 = vweird.f32 %v1128
        %vm1230 = vweird.f32 %v1223
        %vm1231 = vmor %vm1229, %vm1230
        %v1232 = vsel %vm1231, %v1223, %v1228
        %v1233 = vrsqrt.pop %v1129
        %v1234 = vmul.f32 %v1233, %v1129
        %v1235 = vmul.f32 %v1234, %v1233
        %v1236 = vmul.f32 0.5, %v1235
        %v1237 = vsub.f32 1.5, %v1236
        %v1238 = vmul.f32 %v1233, %v1237
        %vm1239 = vweird.f32 %v1129
        %vm1240 = vweird.f32 %v1233
        %vm1241 = vmor %vm1239, %vm1240
        %v1242 = vsel %vm1241, %v1233, %v1238
        %v1243 = vrsqrt.pop %v1130
        %v1244 = vmul.f32 %v1243, %v1130
        %v1245 = vmul.f32 %v1244, %v1243
        %v1246 = vmul.f32 0.5, %v1245
        %v1247 = vsub.f32 1.5, %v1246
        %v1248 = vmul.f32 %v1243, %v1247
        %vm1249 = vweird.f32 %v1130
        %vm1250 = vweird.f32 %v1243
        %vm1251 = vmor %vm1249, %vm1250
        %v1252 = vsel %vm1251, %v1243, %v1248
        %v1253 = vrsqrt.pop %v1131
        %v1254 = vmul.f32 %v1253, %v1131
        %v1255 = vmul.f32 %v1254, %v1253
        %v1256 = vmul.f32 0.5, %v1255
        %v1257 = vsub.f32 1.5, %v1256
        %v1258 = vmul.f32 %v1253, %v1257
        %vm1259 = vweird.f32 %v1131
        %vm1260 = vweird.f32 %v1253
        %vm1261 = vmor %vm1259, %vm1260
        %v1262 = vsel %vm1261, %v1253, %v1258
        %v1263 = vrsqrt.pop %v1132
        %v1264 = vmul.f32 %v1263, %v1132
        %v1265 = vmul.f32 %v1264, %v1263
        %v1266 = vmul.f32 0.5, %v1265
        %v1267 = vsub.f32 1.5, %v1266
        %v1268 = vmul.f32 %v1263, %v1267
        %vm1269 = vweird.f32 %v1132
        %vm1270 = vweird.f32 %v1263
        %vm1271 = vmor %vm1269, %vm1270
        %v1272 = vsel %vm1271, %v1263, %v1268
        %v1273 = vrsqrt.pop %v1133
        %v1274 = vmul.f32 %v1273, %v1133
        %v1275 = vmul.f32 %v1274, %v1273
        %v1276 = vmul.f32 0.5, %v1275
        %v1277 = vsub.f32 1.5, %v1276
        %v1278 = vmul.f32 %v1273, %v1277
        %vm1279 = vweird.f32 %v1133
        %vm1280 = vweird.f32 %v1273
        %vm1281 = vmor %vm1279, %vm1280
        %v1282 = vsel %vm1281, %v1273, %v1278
        %v1283 = vrsqrt.pop %v1134
        %v1284 = vmul.f32 %v1283, %v1134
        %v1285 = vmul.f32 %v1284, %v1283
        %v1286 = vmul.f32 0.5, %v1285
        %v1287 = vsub.f32 1.5, %v1286
        %v1288 = vmul.f32 %v1283, %v1287
        %vm1289 = vweird.f32 %v1134
        %vm1290 = vweird.f32 %v1283
        %vm1291 = vmor %vm1289, %vm1290
        %v1292 = vsel %vm1291, %v1283, %v1288
        %v1293 = vrsqrt.pop %v1135
        %v1294 = vmul.f32 %v1293, %v1135
        %v1295 = vmul.f32 %v1294, %v1293
        %v1296 = vmul.f32 0.5, %v1295
        %v1297 = vsub.f32 1.5, %v1296
        %v1298 = vmul.f32 %v1293, %v1297
        %vm1299 = vweird.f32 %v1135
        %vm1300 = vweird.f32 %v1293
        %vm1301 = vmor %vm1299, %vm1300
        %v1302 = vsel %vm1301, %v1293, %v1298
        %v1303 = vrsqrt.pop %v1136
        %v1304 = vmul.f32 %v1303, %v1136
        %v1305 = vmul.f32 %v1304, %v1303
        %v1306 = vmul.f32 0.5, %v1305
        %v1307 = vsub.f32 1.5, %v1306
        %v1308 = vmul.f32 %v1303, %v1307
        %vm1309 = vweird.f32 %v1136
        %vm1310 = vweird.f32 %v1303
        %vm1311 = vmor %vm1309, %vm1310
        %v1312 = vsel %vm1311, %v1303, %v1308
        %v1313 = vrsqrt.pop %v1137
        %v1314 = vmul.f32 %v1313, %v1137
        %v1315 = vmul.f32 %v1314, %v1313
        %v1316 = vmul.f32 0.5, %v1315
        %v1317 = vsub.f32 1.5, %v1316
        %v1318 = vmul.f32 %v1313, %v1317
        %vm1319 = vweird.f32 %v1137
        %vm1320 = vweird.f32 %v1313
        %vm1321 = vmor %vm1319, %vm1320
        %v1322 = vsel %vm1321, %v1313, %v1318
        %v1323 = vrsqrt.pop %v1138
        %v1324 = vmul.f32 %v1323, %v1138
        %v1325 = vmul.f32 %v1324, %v1323
        %v1326 = vmul.f32 0.5, %v1325
        %v1327 = vsub.f32 1.5, %v1326
        %v1328 = vmul.f32 %v1323, %v1327
        %vm1329 = vweird.f32 %v1138
        %vm1330 = vweird.f32 %v1323
        %vm1331 = vmor %vm1329, %vm1330
        %v1332 = vsel %vm1331, %v1323, %v1328
        %v1333 = vrsqrt.pop %v1139
        %v1334 = vmul.f32 %v1333, %v1139
        %v1335 = vmul.f32 %v1334, %v1333
        %v1336 = vmul.f32 0.5, %v1335
        %v1337 = vsub.f32 1.5, %v1336
        %v1338 = vmul.f32 %v1333, %v1337
        %vm1339 = vweird.f32 %v1139
        %vm1340 = vweird.f32 %v1333
        %vm1341 = vmor %vm1339, %vm1340
        %v1342 = vsel %vm1341, %v1333, %v1338
        %v1343 = vrsqrt.pop %v1140
        %v1344 = vmul.f32 %v1343, %v1140
        %v1345 = vmul.f32 %v1344, %v1343
        %v1346 = vmul.f32 0.5, %v1345
        %v1347 = vsub.f32 1.5, %v1346
        %v1348 = vmul.f32 %v1343, %v1347
        %vm1349 = vweird.f32 %v1140
        %vm1350 = vweird.f32 %v1343
        %vm1351 = vmor %vm1349, %vm1350
        %v1352 = vsel %vm1351, %v1343, %v1348
        %v1353 = vrsqrt.pop %v1141
        %v1354 = vmul.f32 %v1353, %v1141
        %v1355 = vmul.f32 %v1354, %v1353
        %v1356 = vmul.f32 0.5, %v1355
        %v1357 = vsub.f32 1.5, %v1356
        %v1358 = vmul.f32 %v1353, %v1357
        %vm1359 = vweird.f32 %v1141
        %vm1360 = vweird.f32 %v1353
        %vm1361 = vmor %vm1359, %vm1360
        %v1362 = vsel %vm1361, %v1353, %v1358
        %v1363 = vrsqrt.pop %v1142
        %v1364 = vmul.f32 %v1363, %v1142
        %v1365 = vmul.f32 %v1364, %v1363
        %v1366 = vmul.f32 0.5, %v1365
        %v1367 = vsub.f32 1.5, %v1366
        %v1368 = vmul.f32 %v1363, %v1367
        %vm1369 = vweird.f32 %v1142
        %vm1370 = vweird.f32 %v1363
        %vm1371 = vmor %vm1369, %vm1370
        %v1372 = vsel %vm1371, %v1363, %v1368
        %v1373 = vrsqrt.pop %v1143
        %v1374 = vmul.f32 %v1373, %v1143
        %v1375 = vmul.f32 %v1374, %v1373
        %v1376 = vmul.f32 0.5, %v1375
        %v1377 = vsub.f32 1.5, %v1376
        %v1378 = vmul.f32 %v1373, %v1377
        %vm1379 = vweird.f32 %v1143
        %vm1380 = vweird.f32 %v1373
        %vm1381 = vmor %vm1379, %vm1380
        %v1382 = vsel %vm1381, %v1373, %v1378
        %v1383 = vrsqrt.pop %v1144
        %v1384 = vmul.f32 %v1383, %v1144
        %v1385 = vmul.f32 %v1384, %v1383
        %v1386 = vmul.f32 0.5, %v1385
        %v1387 = vsub.f32 1.5, %v1386
        %v1388 = vmul.f32 %v1383, %v1387
        %vm1389 = vweird.f32 %v1144
        %vm1390 = vweird.f32 %v1383
        %vm1391 = vmor %vm1389, %vm1390
        %v1392 = vsel %vm1391, %v1383, %v1388
        %v1393 = vrsqrt.pop %v1145
        %v1394 = vmul.f32 %v1393, %v1145
        %v1395 = vmul.f32 %v1394, %v1393
        %v1396 = vmul.f32 0.5, %v1395
        %v1397 = vsub.f32 1.5, %v1396
        %v1398 = vmul.f32 %v1393, %v1397
        %vm1399 = vweird.f32 %v1145
        %vm1400 = vweird.f32 %v1393
        %vm1401 = vmor %vm1399, %vm1400
        %v1402 = vsel %vm1401, %v1393, %v1398
        %v1403 = vrsqrt.pop %v1146
        %v1404 = vmul.f32 %v1403, %v1146
        %v1405 = vmul.f32 %v1404, %v1403
        %v1406 = vmul.f32 0.5, %v1405
        %v1407 = vsub.f32 1.5, %v1406
        %v1408 = vmul.f32 %v1403, %v1407
        %vm1409 = vweird.f32 %v1146
        %vm1410 = vweird.f32 %v1403
        %vm1411 = vmor %vm1409, %vm1410
        %v1412 = vsel %vm1411, %v1403, %v1408
        %v1413 = vrsqrt.pop %v1147
        %v1414 = vmul.f32 %v1413, %v1147
        %v1415 = vmul.f32 %v1414, %v1413
        %v1416 = vmul.f32 0.5, %v1415
        %v1417 = vsub.f32 1.5, %v1416
        %v1418 = vmul.f32 %v1413, %v1417
        %vm1419 = vweird.f32 %v1147
        %vm1420 = vweird.f32 %v1413
        %vm1421 = vmor %vm1419, %vm1420
        %v1422 = vsel %vm1421, %v1413, %v1418
        %v1423 = vrsqrt.pop %v1148
        %v1424 = vmul.f32 %v1423, %v1148
        %v1425 = vmul.f32 %v1424, %v1423
        %v1426 = vmul.f32 0.5, %v1425
        %v1427 = vsub.f32 1.5, %v1426
        %v1428 = vmul.f32 %v1423, %v1427
        %vm1429 = vweird.f32 %v1148
        %vm1430 = vweird.f32 %v1423
        %vm1431 = vmor %vm1429, %vm1430
        %v1432 = vsel %vm1431, %v1423, %v1428
        %v1433 = vrsqrt.pop %v1149
        %v1434 = vmul.f32 %v1433, %v1149
        %v1435 = vmul.f32 %v1434, %v1433
        %v1436 = vmul.f32 0.5, %v1435
        %v1437 = vsub.f32 1.5, %v1436
        %v1438 = vmul.f32 %v1433, %v1437
        %vm1439 = vweird.f32 %v1149
        %vm1440 = vweird.f32 %v1433
        %vm1441 = vmor %vm1439, %vm1440
        %v1442 = vsel %vm1441, %v1433, %v1438
        %v1443 = vrsqrt.pop %v1150
        %v1444 = vmul.f32 %v1443, %v1150
        %v1445 = vmul.f32 %v1444, %v1443
        %v1446 = vmul.f32 0.5, %v1445
        %v1447 = vsub.f32 1.5, %v1446
        %v1448 = vmul.f32 %v1443, %v1447
        %vm1449 = vweird.f32 %v1150
        %vm1450 = vweird.f32 %v1443
        %vm1451 = vmor %vm1449, %vm1450
        %v1452 = vsel %vm1451, %v1443, %v1448
        %v1453 = vrsqrt.pop %v1151
        %v1454 = vmul.f32 %v1453, %v1151
        %v1455 = vmul.f32 %v1454, %v1453
        %v1456 = vmul.f32 0.5, %v1455
        %v1457 = vsub.f32 1.5, %v1456
        %v1458 = vmul.f32 %v1453, %v1457
        %vm1459 = vweird.f32 %v1151
        %vm1460 = vweird.f32 %v1453
        %vm1461 = vmor %vm1459, %vm1460
        %v1462 = vsel %vm1461, %v1453, %v1458
        %v1463 = vrsqrt.pop %v1152
        %v1464 = vmul.f32 %v1463, %v1152
        %v1465 = vmul.f32 %v1464, %v1463
        %v1466 = vmul.f32 0.5, %v1465
        %v1467 = vsub.f32 1.5, %v1466
        %v1468 = vmul.f32 %v1463, %v1467
        %vm1469 = vweird.f32 %v1152
        %vm1470 = vweird.f32 %v1463
        %vm1471 = vmor %vm1469, %vm1470
        %v1472 = vsel %vm1471, %v1463, %v1468
        %v1473 = vmul.f32 %v961, %v1162
        %v1474 = vmul.f32 %v962, %v1172
        %v1475 = vmul.f32 %v963, %v1182
        %v1476 = vmul.f32 %v964, %v1192
        %v1477 = vmul.f32 %v965, %v1202
        %v1478 = vmul.f32 %v966, %v1212
        %v1479 = vmul.f32 %v967, %v1222
        %v1480 = vmul.f32 %v968, %v1232
        %v1481 = vmul.f32 %v969, %v1242
        %v1482 = vmul.f32 %v970, %v1252
        %v1483 = vmul.f32 %v971, %v1262
        %v1484 = vmul.f32 %v972, %v1272
        %v1485 = vmul.f32 %v973, %v1282
        %v1486 = vmul.f32 %v974, %v1292
        %v1487 = vmul.f32 %v975, %v1302
        %v1488 = vmul.f32 %v976, %v1312
        %v1489 = vmul.f32 %v977, %v1322
        %v1490 = vmul.f32 %v978, %v1332
        %v1491 = vmul.f32 %v979, %v1342
        %v1492 = vmul.f32 %v980, %v1352
        %v1493 = vmul.f32 %v981, %v1362
        %v1494 = vmul.f32 %v982, %v1372
        %v1495 = vmul.f32 %v983, %v1382
        %v1496 = vmul.f32 %v984, %v1392
        %v1497 = vmul.f32 %v985, %v1402
        %v1498 = vmul.f32 %v986, %v1412
        %v1499 = vmul.f32 %v987, %v1422
        %v1500 = vmul.f32 %v988, %v1432
        %v1501 = vmul.f32 %v989, %v1442
        %v1502 = vmul.f32 %v990, %v1452
        %v1503 = vmul.f32 %v991, %v1462
        %v1504 = vmul.f32 %v992, %v1472
        %v1505 = vperm.slane %v723, 0
        %v1506 = vmul.f32 %v1473, %v1505
        %v1507 = vmul.f32 %v1474, %v1505
        %v1508 = vmul.f32 %v1475, %v1505
        %v1509 = vmul.f32 %v1476, %v1505
        %v1510 = vmul.f32 %v1477, %v1505
        %v1511 = vmul.f32 %v1478, %v1505
        %v1512 = vmul.f32 %v1479, %v1505
        %v1513 = vmul.f32 %v1480, %v1505
        %v1514 = vmul.f32 %v1481, %v1505
        %v1515 = vmul.f32 %v1482, %v1505
        %v1516 = vmul.f32 %v1483, %v1505
        %v1517 = vmul.f32 %v1484, %v1505
        %v1518 = vmul.f32 %v1485, %v1505
        %v1519 = vmul.f32 %v1486, %v1505
        %v1520 = vmul.f32 %v1487, %v1505
        %v1521 = vmul.f32 %v1488, %v1505
        %v1522 = vmul.f32 %v1489, %v1505
        %v1523 = vmul.f32 %v1490, %v1505
        %v1524 = vmul.f32 %v1491, %v1505
        %v1525 = vmul.f32 %v1492, %v1505
        %v1526 = vmul.f32 %v1493, %v1505
        %v1527 = vmul.f32 %v1494, %v1505
        %v1528 = vmul.f32 %v1495, %v1505
        %v1529 = vmul.f32 %v1496, %v1505
        %v1530 = vmul.f32 %v1497, %v1505
        %v1531 = vmul.f32 %v1498, %v1505
        %v1532 = vmul.f32 %v1499, %v1505
        %v1533 = vmul.f32 %v1500, %v1505
        %v1534 = vmul.f32 %v1501, %v1505
        %v1535 = vmul.f32 %v1502, %v1505
        %v1536 = vmul.f32 %v1503, %v1505
        %v1537 = vmul.f32 %v1504, %v1505
        %v1538 = vperm.slane %v723, 1
        %v1539 = vadd.f32 %v1506, %v1538
        %v1540 = vadd.f32 %v1507, %v1538
        %v1541 = vadd.f32 %v1508, %v1538
        %v1542 = vadd.f32 %v1509, %v1538
        %v1543 = vadd.f32 %v1510, %v1538
        %v1544 = vadd.f32 %v1511, %v1538
        %v1545 = vadd.f32 %v1512, %v1538
        %v1546 = vadd.f32 %v1513, %v1538
        %v1547 = vadd.f32 %v1514, %v1538
        %v1548 = vadd.f32 %v1515, %v1538
        %v1549 = vadd.f32 %v1516, %v1538
        %v1550 = vadd.f32 %v1517, %v1538
        %v1551 = vadd.f32 %v1518, %v1538
        %v1552 = vadd.f32 %v1519, %v1538
        %v1553 = vadd.f32 %v1520, %v1538
        %v1554 = vadd.f32 %v1521, %v1538
        %v1555 = vadd.f32 %v1522, %v1538
        %v1556 = vadd.f32 %v1523, %v1538
        %v1557 = vadd.f32 %v1524, %v1538
        %v1558 = vadd.f32 %v1525, %v1538
        %v1559 = vadd.f32 %v1526, %v1538
        %v1560 = vadd.f32 %v1527, %v1538
        %v1561 = vadd.f32 %v1528, %v1538
        %v1562 = vadd.f32 %v1529, %v1538
        %v1563 = vadd.f32 %v1530, %v1538
        %v1564 = vadd.f32 %v1531, %v1538
        %v1565 = vadd.f32 %v1532, %v1538
        %v1566 = vadd.f32 %v1533, %v1538
        %v1567 = vadd.f32 %v1534, %v1538
        %v1568 = vadd.f32 %v1535, %v1538
        %v1569 = vadd.f32 %v1536, %v1538
        %v1570 = vadd.f32 %v1537, %v1538
        %v1571 = vpack.c.bf16 %v1539, %v1539
        %v1572 = vpack.c.bf16 %v1540, %v1540
        %v1573 = vpack.c.bf16 %v1541, %v1541
        %v1574 = vpack.c.bf16 %v1542, %v1542
        %v1575 = vpack.c.bf16 %v1543, %v1543
        %v1576 = vpack.c.bf16 %v1544, %v1544
        %v1577 = vpack.c.bf16 %v1545, %v1545
        %v1578 = vpack.c.bf16 %v1546, %v1546
        %v1579 = vpack.c.bf16 %v1547, %v1547
        %v1580 = vpack.c.bf16 %v1548, %v1548
        %v1581 = vpack.c.bf16 %v1549, %v1549
        %v1582 = vpack.c.bf16 %v1550, %v1550
        %v1583 = vpack.c.bf16 %v1551, %v1551
        %v1584 = vpack.c.bf16 %v1552, %v1552
        %v1585 = vpack.c.bf16 %v1553, %v1553
        %v1586 = vpack.c.bf16 %v1554, %v1554
        %v1587 = vpack.c.bf16 %v1555, %v1555
        %v1588 = vpack.c.bf16 %v1556, %v1556
        %v1589 = vpack.c.bf16 %v1557, %v1557
        %v1590 = vpack.c.bf16 %v1558, %v1558
        %v1591 = vpack.c.bf16 %v1559, %v1559
        %v1592 = vpack.c.bf16 %v1560, %v1560
        %v1593 = vpack.c.bf16 %v1561, %v1561
        %v1594 = vpack.c.bf16 %v1562, %v1562
        %v1595 = vpack.c.bf16 %v1563, %v1563
        %v1596 = vpack.c.bf16 %v1564, %v1564
        %v1597 = vpack.c.bf16 %v1565, %v1565
        %v1598 = vpack.c.bf16 %v1566, %v1566
        %v1599 = vpack.c.bf16 %v1567, %v1567
        %v1600 = vpack.c.bf16 %v1568, %v1568
        %v1601 = vpack.c.bf16 %v1569, %v1569
        %v1602 = vpack.c.bf16 %v1570, %v1570
        %1604 = vset.pattern.permute.xlu0 0
        %1605 = vperm.xlu0 %1604, %v727
        %v1606 = vpop.permute.xlu0 %1605
        %1609 = vset.pattern.permute.xlu0 0
        %1610 = vperm.xlu0 %1609, %v728
        %v1611 = vpop.permute.xlu0 %1610
        %1614 = vset.pattern.permute.xlu0 0
        %1615 = vperm.xlu0 %1614, %v729
        %v1616 = vpop.permute.xlu0 %1615
        %1619 = vset.pattern.permute.xlu0 0
        %1620 = vperm.xlu0 %1619, %v730
        %v1621 = vpop.permute.xlu0 %1620
        %1624 = vset.pattern.permute.xlu0 0
        %1625 = vperm.xlu0 %1624, %v731
        %v1626 = vpop.permute.xlu0 %1625
        %1629 = vset.pattern.permute.xlu0 0
        %1630 = vperm.xlu0 %1629, %v732
        %v1631 = vpop.permute.xlu0 %1630
        %1634 = vset.pattern.permute.xlu0 0
        %1635 = vperm.xlu0 %1634, %v733
        %v1636 = vpop.permute.xlu0 %1635
        %1639 = vset.pattern.permute.xlu0 0
        %1640 = vperm.xlu0 %1639, %v734
        %v1641 = vpop.permute.xlu0 %1640
        %1644 = vset.pattern.permute.xlu0 0
        %1645 = vperm.xlu0 %1644, %v735
        %v1646 = vpop.permute.xlu0 %1645
        %1649 = vset.pattern.permute.xlu0 0
        %1650 = vperm.xlu0 %1649, %v736
        %v1651 = vpop.permute.xlu0 %1650
        %1654 = vset.pattern.permute.xlu0 0
        %1655 = vperm.xlu0 %1654, %v737
        %v1656 = vpop.permute.xlu0 %1655
        %1659 = vset.pattern.permute.xlu0 0
        %1660 = vperm.xlu0 %1659, %v738
        %v1661 = vpop.permute.xlu0 %1660
        %1664 = vset.pattern.permute.xlu0 0
        %1665 = vperm.xlu0 %1664, %v739
        %v1666 = vpop.permute.xlu0 %1665
        %1669 = vset.pattern.permute.xlu0 0
        %1670 = vperm.xlu0 %1669, %v740
        %v1671 = vpop.permute.xlu0 %1670
        %1674 = vset.pattern.permute.xlu0 0
        %1675 = vperm.xlu0 %1674, %v741
        %v1676 = vpop.permute.xlu0 %1675
        %1679 = vset.pattern.permute.xlu0 0
        %1680 = vperm.xlu0 %1679, %v742
        %v1681 = vpop.permute.xlu0 %1680
        %v1699 = vunpack.c.l.b16 %v746
        %v1700 = vunpack.c.l.b16 %v747
        %v1701 = vunpack.c.l.b16 %v748
        %v1702 = vunpack.c.l.b16 %v749
        %v1703 = vunpack.c.l.b16 %v750
        %v1704 = vunpack.c.l.b16 %v751
        %v1705 = vunpack.c.l.b16 %v752
        %v1706 = vunpack.c.l.b16 %v753
        %v1707 = vunpack.c.l.b16 %v754
        %v1708 = vunpack.c.l.b16 %v755
        %v1709 = vunpack.c.l.b16 %v756
        %v1710 = vunpack.c.l.b16 %v757
        %v1711 = vunpack.c.l.b16 %v758
        %v1712 = vunpack.c.l.b16 %v759
        %v1713 = vunpack.c.l.b16 %v760
        %v1714 = vunpack.c.l.b16 %v761
        %v1715 = vpack.c.b16 %v1700, %v1699
        %v1716 = vpack.c.b16 %v1702, %v1701
        %v1717 = vpack.c.b16 %v1704, %v1703
        %v1718 = vpack.c.b16 %v1706, %v1705
        %v1719 = vpack.c.b16 %v1708, %v1707
        %v1720 = vpack.c.b16 %v1710, %v1709
        %v1721 = vpack.c.b16 %v1712, %v1711
        %v1722 = vpack.c.b16 %v1714, %v1713
        %v1731 = vunpack.c.l.b16 %v1571
        %v1732 = vunpack.c.l.b16 %v1572
        %v1733 = vunpack.c.l.b16 %v1573
        %v1734 = vunpack.c.l.b16 %v1574
        %v1735 = vunpack.c.l.b16 %v1575
        %v1736 = vunpack.c.l.b16 %v1576
        %v1737 = vunpack.c.l.b16 %v1577
        %v1738 = vunpack.c.l.b16 %v1578
        %v1739 = vpack.c.b16 %v1732, %v1731
        %v1740 = vpack.c.b16 %v1734, %v1733
        %v1741 = vpack.c.b16 %v1736, %v1735
        %v1742 = vpack.c.b16 %v1738, %v1737
        %vm1747 = vcmask 523264
        %v1749 = vsel %vm1747, %v1715, 0
        %v1752 = vsel %vm1747, %v1716, 0
        %v1755 = vsel %vm1747, %v1717, 0
        %v1758 = vsel %vm1747, %v1718, 0
        %v1761 = vsel %vm1747, %v1719, 0
        %v1764 = vsel %vm1747, %v1720, 0
        %v1767 = vsel %vm1747, %v1721, 0
        %v1770 = vsel %vm1747, %v1722, 0
        %1772 = vmatpush.bf16.msra.mxu0 0
        %1773 = vmatpush.bf16.msra.mxu0 0
        %1774 = vmatpush.bf16.msra.mxu0 0
        %1775 = vmatpush.bf16.msra.mxu0 0
        %1776 = vmatpush.bf16.msra.mxu0 %v1742
        %1777 = vmatpush.bf16.msra.mxu0 %v1741
        %1778 = vmatpush.bf16.msra.mxu0 %v1740
        %1779 = vmatpush.bf16.msra.mxu0 %v1739
        %1780 = vmatmul.bf16.gmra.mxu0 %v1749
        %v1781 = vpop.f32.mrf.mxu0
        %v1782 = vadd.f32 %v1606, %v1781
        %v1783 = vpop.f32.mrf.mxu0
        %v1784 = vadd.f32 %v1611, %v1783
        %1785 = vmatmul.bf16.gmra.mxu0 %v1752
        %v1786 = vpop.f32.mrf.mxu0
        %v1787 = vadd.f32 %v1616, %v1786
        %v1788 = vpop.f32.mrf.mxu0
        %v1789 = vadd.f32 %v1621, %v1788
        %1790 = vmatmul.bf16.gmra.mxu0 %v1755
        %v1791 = vpop.f32.mrf.mxu0
        %v1792 = vadd.f32 %v1626, %v1791
        %v1793 = vpop.f32.mrf.mxu0
        %v1794 = vadd.f32 %v1631, %v1793
        %1795 = vmatmul.bf16.gmra.mxu0 %v1758
        %v1796 = vpop.f32.mrf.mxu0
        %v1797 = vadd.f32 %v1636, %v1796
        %v1798 = vpop.f32.mrf.mxu0
        %v1799 = vadd.f32 %v1641, %v1798
        %1800 = vmatmul.bf16.gmra.mxu0 %v1761
        %v1801 = vpop.f32.mrf.mxu0
        %v1802 = vadd.f32 %v1646, %v1801
        %v1803 = vpop.f32.mrf.mxu0
        %v1804 = vadd.f32 %v1651, %v1803
        %1805 = vmatmul.bf16.gmra.mxu0 %v1764
        %v1806 = vpop.f32.mrf.mxu0
        %v1807 = vadd.f32 %v1656, %v1806
        %v1808 = vpop.f32.mrf.mxu0
        %v1809 = vadd.f32 %v1661, %v1808
        %1810 = vmatmul.bf16.gmra.mxu0 %v1767
        %v1811 = vpop.f32.mrf.mxu0
        %v1812 = vadd.f32 %v1666, %v1811
        %v1813 = vpop.f32.mrf.mxu0
        %v1814 = vadd.f32 %v1671, %v1813
        %1815 = vmatmul.bf16.gmra.mxu0 %v1770
        %v1816 = vpop.f32.mrf.mxu0
        %v1817 = vadd.f32 %v1676, %v1816
        %v1818 = vpop.f32.mrf.mxu0
        %v1819 = vadd.f32 %v1681, %v1818
        %1820 = vdwg.mxu0
        %v1821 = vxor.u32 %v1782, 2147483648
        %v1822 = vxor.u32 %v1784, 2147483648
        %v1823 = vxor.u32 %v1787, 2147483648
        %v1824 = vxor.u32 %v1789, 2147483648
        %v1825 = vxor.u32 %v1792, 2147483648
        %v1826 = vxor.u32 %v1794, 2147483648
        %v1827 = vxor.u32 %v1797, 2147483648
        %v1828 = vxor.u32 %v1799, 2147483648
        %v1829 = vxor.u32 %v1802, 2147483648
        %v1830 = vxor.u32 %v1804, 2147483648
        %v1831 = vxor.u32 %v1807, 2147483648
        %v1832 = vxor.u32 %v1809, 2147483648
        %v1833 = vxor.u32 %v1812, 2147483648
        %v1834 = vxor.u32 %v1814, 2147483648
        %v1835 = vxor.u32 %v1817, 2147483648
        %v1836 = vxor.u32 %v1819, 2147483648
        %v1837 = vmul.f32 %v1821, 1.442695
        %v1838 = vpow.pop %v1837
        %v1839 = vmul.f32 %v1822, 1.442695
        %v1840 = vpow.pop %v1839
        %v1841 = vmul.f32 %v1823, 1.442695
        %v1842 = vpow.pop %v1841
        %v1843 = vmul.f32 %v1824, 1.442695
        %v1844 = vpow.pop %v1843
        %v1845 = vmul.f32 %v1825, 1.442695
        %v1846 = vpow.pop %v1845
        %v1847 = vmul.f32 %v1826, 1.442695
        %v1848 = vpow.pop %v1847
        %v1849 = vmul.f32 %v1827, 1.442695
        %v1850 = vpow.pop %v1849
        %v1851 = vmul.f32 %v1828, 1.442695
        %v1852 = vpow.pop %v1851
        %v1853 = vmul.f32 %v1829, 1.442695
        %v1854 = vpow.pop %v1853
        %v1855 = vmul.f32 %v1830, 1.442695
        %v1856 = vpow.pop %v1855
        %v1857 = vmul.f32 %v1831, 1.442695
        %v1858 = vpow.pop %v1857
        %v1859 = vmul.f32 %v1832, 1.442695
        %v1860 = vpow.pop %v1859
        %v1861 = vmul.f32 %v1833, 1.442695
        %v1862 = vpow.pop %v1861
        %v1863 = vmul.f32 %v1834, 1.442695
        %v1864 = vpow.pop %v1863
        %v1865 = vmul.f32 %v1835, 1.442695
        %v1866 = vpow.pop %v1865
        %v1867 = vmul.f32 %v1836, 1.442695
        %v1868 = vpow.pop %v1867
        %v1869 = vadd.f32 %v1838, 1.0
        %v1870 = vadd.f32 %v1840, 1.0
        %v1871 = vadd.f32 %v1842, 1.0
        %v1872 = vadd.f32 %v1844, 1.0
        %v1873 = vadd.f32 %v1846, 1.0
        %v1874 = vadd.f32 %v1848, 1.0
        %v1875 = vadd.f32 %v1850, 1.0
        %v1876 = vadd.f32 %v1852, 1.0
        %v1877 = vadd.f32 %v1854, 1.0
        %v1878 = vadd.f32 %v1856, 1.0
        %v1879 = vadd.f32 %v1858, 1.0
        %v1880 = vadd.f32 %v1860, 1.0
        %v1881 = vadd.f32 %v1862, 1.0
        %v1882 = vadd.f32 %v1864, 1.0
        %v1883 = vadd.f32 %v1866, 1.0
        %v1884 = vadd.f32 %v1868, 1.0
        %v1885 = vrcp.pop %v1869
        %v1886 = vmul.f32 %v1869, %v1885
        %v1887 = vsub.f32 1.0, %v1886
        %v1888 = vmul.f32 %v1885, %v1887
        %v1889 = vadd.f32 %v1885, %v1888
        %vm1890 = vweird.f32 %v1869
        %vm1891 = vweird.f32 %v1885
        %vm1892 = vmor %vm1890, %vm1891
        %v1893 = vsel %vm1892, %v1885, %v1889
        %v1894 = vand.u32 2147483647, %v1869
        %vm1895 = vcmp.eq.f32.partialorder %v1894, 8.507059e+37
        %v1896 = vand.u32 %v1869, 2147483648
        %v1897 = vor.u32 1.1754944e-38, %v1896
        %v1898 = vsel %vm1895, %v1897, %v1893
        %v1899 = vmul.f32 1.0, %v1898
        %v1900 = vrcp.pop %v1870
        %v1901 = vmul.f32 %v1870, %v1900
        %v1902 = vsub.f32 1.0, %v1901
        %v1903 = vmul.f32 %v1900, %v1902
        %v1904 = vadd.f32 %v1900, %v1903
        %vm1905 = vweird.f32 %v1870
        %vm1906 = vweird.f32 %v1900
        %vm1907 = vmor %vm1905, %vm1906
        %v1908 = vsel %vm1907, %v1900, %v1904
        %v1909 = vand.u32 2147483647, %v1870
        %vm1910 = vcmp.eq.f32.partialorder %v1909, 8.507059e+37
        %v1911 = vand.u32 %v1870, 2147483648
        %v1912 = vor.u32 1.1754944e-38, %v1911
        %v1913 = vsel %vm1910, %v1912, %v1908
        %v1914 = vmul.f32 1.0, %v1913
        %v1915 = vrcp.pop %v1871
        %v1916 = vmul.f32 %v1871, %v1915
        %v1917 = vsub.f32 1.0, %v1916
        %v1918 = vmul.f32 %v1915, %v1917
        %v1919 = vadd.f32 %v1915, %v1918
        %vm1920 = vweird.f32 %v1871
        %vm1921 = vweird.f32 %v1915
        %vm1922 = vmor %vm1920, %vm1921
        %v1923 = vsel %vm1922, %v1915, %v1919
        %v1924 = vand.u32 2147483647, %v1871
        %vm1925 = vcmp.eq.f32.partialorder %v1924, 8.507059e+37
        %v1926 = vand.u32 %v1871, 2147483648
        %v1927 = vor.u32 1.1754944e-38, %v1926
        %v1928 = vsel %vm1925, %v1927, %v1923
        %v1929 = vmul.f32 1.0, %v1928
        %v1930 = vrcp.pop %v1872
        %v1931 = vmul.f32 %v1872, %v1930
        %v1932 = vsub.f32 1.0, %v1931
        %v1933 = vmul.f32 %v1930, %v1932
        %v1934 = vadd.f32 %v1930, %v1933
        %vm1935 = vweird.f32 %v1872
        %vm1936 = vweird.f32 %v1930
        %vm1937 = vmor %vm1935, %vm1936
        %v1938 = vsel %vm1937, %v1930, %v1934
        %v1939 = vand.u32 2147483647, %v1872
        %vm1940 = vcmp.eq.f32.partialorder %v1939, 8.507059e+37
        %v1941 = vand.u32 %v1872, 2147483648
        %v1942 = vor.u32 1.1754944e-38, %v1941
        %v1943 = vsel %vm1940, %v1942, %v1938
        %v1944 = vmul.f32 1.0, %v1943
        %v1945 = vrcp.pop %v1873
        %v1946 = vmul.f32 %v1873, %v1945
        %v1947 = vsub.f32 1.0, %v1946
        %v1948 = vmul.f32 %v1945, %v1947
        %v1949 = vadd.f32 %v1945, %v1948
        %vm1950 = vweird.f32 %v1873
        %vm1951 = vweird.f32 %v1945
        %vm1952 = vmor %vm1950, %vm1951
        %v1953 = vsel %vm1952, %v1945, %v1949
        %v1954 = vand.u32 2147483647, %v1873
        %vm1955 = vcmp.eq.f32.partialorder %v1954, 8.507059e+37
        %v1956 = vand.u32 %v1873, 2147483648
        %v1957 = vor.u32 1.1754944e-38, %v1956
        %v1958 = vsel %vm1955, %v1957, %v1953
        %v1959 = vmul.f32 1.0, %v1958
        %v1960 = vrcp.pop %v1874
        %v1961 = vmul.f32 %v1874, %v1960
        %v1962 = vsub.f32 1.0, %v1961
        %v1963 = vmul.f32 %v1960, %v1962
        %v1964 = vadd.f32 %v1960, %v1963
        %vm1965 = vweird.f32 %v1874
        %vm1966 = vweird.f32 %v1960
        %vm1967 = vmor %vm1965, %vm1966
        %v1968 = vsel %vm1967, %v1960, %v1964
        %v1969 = vand.u32 2147483647, %v1874
        %vm1970 = vcmp.eq.f32.partialorder %v1969, 8.507059e+37
        %v1971 = vand.u32 %v1874, 2147483648
        %v1972 = vor.u32 1.1754944e-38, %v1971
        %v1973 = vsel %vm1970, %v1972, %v1968
        %v1974 = vmul.f32 1.0, %v1973
        %v1975 = vrcp.pop %v1875
        %v1976 = vmul.f32 %v1875, %v1975
        %v1977 = vsub.f32 1.0, %v1976
        %v1978 = vmul.f32 %v1975, %v1977
        %v1979 = vadd.f32 %v1975, %v1978
        %vm1980 = vweird.f32 %v1875
        %vm1981 = vweird.f32 %v1975
        %vm1982 = vmor %vm1980, %vm1981
        %v1983 = vsel %vm1982, %v1975, %v1979
        %v1984 = vand.u32 2147483647, %v1875
        %vm1985 = vcmp.eq.f32.partialorder %v1984, 8.507059e+37
        %v1986 = vand.u32 %v1875, 2147483648
        %v1987 = vor.u32 1.1754944e-38, %v1986
        %v1988 = vsel %vm1985, %v1987, %v1983
        %v1989 = vmul.f32 1.0, %v1988
        %v1990 = vrcp.pop %v1876
        %v1991 = vmul.f32 %v1876, %v1990
        %v1992 = vsub.f32 1.0, %v1991
        %v1993 = vmul.f32 %v1990, %v1992
        %v1994 = vadd.f32 %v1990, %v1993
        %vm1995 = vweird.f32 %v1876
        %vm1996 = vweird.f32 %v1990
        %vm1997 = vmor %vm1995, %vm1996
        %v1998 = vsel %vm1997, %v1990, %v1994
        %v1999 = vand.u32 2147483647, %v1876
        %vm2000 = vcmp.eq.f32.partialorder %v1999, 8.507059e+37
        %v2001 = vand.u32 %v1876, 2147483648
        %v2002 = vor.u32 1.1754944e-38, %v2001
        %v2003 = vsel %vm2000, %v2002, %v1998
        %v2004 = vmul.f32 1.0, %v2003
        %v2005 = vrcp.pop %v1877
        %v2006 = vmul.f32 %v1877, %v2005
        %v2007 = vsub.f32 1.0, %v2006
        %v2008 = vmul.f32 %v2005, %v2007
        %v2009 = vadd.f32 %v2005, %v2008
        %vm2010 = vweird.f32 %v1877
        %vm2011 = vweird.f32 %v2005
        %vm2012 = vmor %vm2010, %vm2011
        %v2013 = vsel %vm2012, %v2005, %v2009
        %v2014 = vand.u32 2147483647, %v1877
        %vm2015 = vcmp.eq.f32.partialorder %v2014, 8.507059e+37
        %v2016 = vand.u32 %v1877, 2147483648
        %v2017 = vor.u32 1.1754944e-38, %v2016
        %v2018 = vsel %vm2015, %v2017, %v2013
        %v2019 = vmul.f32 1.0, %v2018
        %v2020 = vrcp.pop %v1878
        %v2021 = vmul.f32 %v1878, %v2020
        %v2022 = vsub.f32 1.0, %v2021
        %v2023 = vmul.f32 %v2020, %v2022
        %v2024 = vadd.f32 %v2020, %v2023
        %vm2025 = vweird.f32 %v1878
        %vm2026 = vweird.f32 %v2020
        %vm2027 = vmor %vm2025, %vm2026
        %v2028 = vsel %vm2027, %v2020, %v2024
        %v2029 = vand.u32 2147483647, %v1878
        %vm2030 = vcmp.eq.f32.partialorder %v2029, 8.507059e+37
        %v2031 = vand.u32 %v1878, 2147483648
        %v2032 = vor.u32 1.1754944e-38, %v2031
        %v2033 = vsel %vm2030, %v2032, %v2028
        %v2034 = vmul.f32 1.0, %v2033
        %v2035 = vrcp.pop %v1879
        %v2036 = vmul.f32 %v1879, %v2035
        %v2037 = vsub.f32 1.0, %v2036
        %v2038 = vmul.f32 %v2035, %v2037
        %v2039 = vadd.f32 %v2035, %v2038
        %vm2040 = vweird.f32 %v1879
        %vm2041 = vweird.f32 %v2035
        %vm2042 = vmor %vm2040, %vm2041
        %v2043 = vsel %vm2042, %v2035, %v2039
        %v2044 = vand.u32 2147483647, %v1879
        %vm2045 = vcmp.eq.f32.partialorder %v2044, 8.507059e+37
        %v2046 = vand.u32 %v1879, 2147483648
        %v2047 = vor.u32 1.1754944e-38, %v2046
        %v2048 = vsel %vm2045, %v2047, %v2043
        %v2049 = vmul.f32 1.0, %v2048
        %v2050 = vrcp.pop %v1880
        %v2051 = vmul.f32 %v1880, %v2050
        %v2052 = vsub.f32 1.0, %v2051
        %v2053 = vmul.f32 %v2050, %v2052
        %v2054 = vadd.f32 %v2050, %v2053
        %vm2055 = vweird.f32 %v1880
        %vm2056 = vweird.f32 %v2050
        %vm2057 = vmor %vm2055, %vm2056
        %v2058 = vsel %vm2057, %v2050, %v2054
        %v2059 = vand.u32 2147483647, %v1880
        %vm2060 = vcmp.eq.f32.partialorder %v2059, 8.507059e+37
        %v2061 = vand.u32 %v1880, 2147483648
        %v2062 = vor.u32 1.1754944e-38, %v2061
        %v2063 = vsel %vm2060, %v2062, %v2058
        %v2064 = vmul.f32 1.0, %v2063
        %v2065 = vrcp.pop %v1881
        %v2066 = vmul.f32 %v1881, %v2065
        %v2067 = vsub.f32 1.0, %v2066
        %v2068 = vmul.f32 %v2065, %v2067
        %v2069 = vadd.f32 %v2065, %v2068
        %vm2070 = vweird.f32 %v1881
        %vm2071 = vweird.f32 %v2065
        %vm2072 = vmor %vm2070, %vm2071
        %v2073 = vsel %vm2072, %v2065, %v2069
        %v2074 = vand.u32 2147483647, %v1881
        %vm2075 = vcmp.eq.f32.partialorder %v2074, 8.507059e+37
        %v2076 = vand.u32 %v1881, 2147483648
        %v2077 = vor.u32 1.1754944e-38, %v2076
        %v2078 = vsel %vm2075, %v2077, %v2073
        %v2079 = vmul.f32 1.0, %v2078
        %v2080 = vrcp.pop %v1882
        %v2081 = vmul.f32 %v1882, %v2080
        %v2082 = vsub.f32 1.0, %v2081
        %v2083 = vmul.f32 %v2080, %v2082
        %v2084 = vadd.f32 %v2080, %v2083
        %vm2085 = vweird.f32 %v1882
        %vm2086 = vweird.f32 %v2080
        %vm2087 = vmor %vm2085, %vm2086
        %v2088 = vsel %vm2087, %v2080, %v2084
        %v2089 = vand.u32 2147483647, %v1882
        %vm2090 = vcmp.eq.f32.partialorder %v2089, 8.507059e+37
        %v2091 = vand.u32 %v1882, 2147483648
        %v2092 = vor.u32 1.1754944e-38, %v2091
        %v2093 = vsel %vm2090, %v2092, %v2088
        %v2094 = vmul.f32 1.0, %v2093
        %v2095 = vrcp.pop %v1883
        %v2096 = vmul.f32 %v1883, %v2095
        %v2097 = vsub.f32 1.0, %v2096
        %v2098 = vmul.f32 %v2095, %v2097
        %v2099 = vadd.f32 %v2095, %v2098
        %vm2100 = vweird.f32 %v1883
        %vm2101 = vweird.f32 %v2095
        %vm2102 = vmor %vm2100, %vm2101
        %v2103 = vsel %vm2102, %v2095, %v2099
        %v2104 = vand.u32 2147483647, %v1883
        %vm2105 = vcmp.eq.f32.partialorder %v2104, 8.507059e+37
        %v2106 = vand.u32 %v1883, 2147483648
        %v2107 = vor.u32 1.1754944e-38, %v2106
        %v2108 = vsel %vm2105, %v2107, %v2103
        %v2109 = vmul.f32 1.0, %v2108
        %v2110 = vrcp.pop %v1884
        %v2111 = vmul.f32 %v1884, %v2110
        %v2112 = vsub.f32 1.0, %v2111
        %v2113 = vmul.f32 %v2110, %v2112
        %v2114 = vadd.f32 %v2110, %v2113
        %vm2115 = vweird.f32 %v1884
        %vm2116 = vweird.f32 %v2110
        %vm2117 = vmor %vm2115, %vm2116
        %v2118 = vsel %vm2117, %v2110, %v2114
        %v2119 = vand.u32 2147483647, %v1884
        %vm2120 = vcmp.eq.f32.partialorder %v2119, 8.507059e+37
        %v2121 = vand.u32 %v1884, 2147483648
        %v2122 = vor.u32 1.1754944e-38, %v2121
        %v2123 = vsel %vm2120, %v2122, %v2118
        %v2124 = vmul.f32 1.0, %v2123
        %v2125 = vmul.f32 %v1782, %v1899
        %v2126 = vmul.f32 %v1784, %v1914
        %v2127 = vmul.f32 %v1787, %v1929
        %v2128 = vmul.f32 %v1789, %v1944
        %v2129 = vmul.f32 %v1792, %v1959
        %v2130 = vmul.f32 %v1794, %v1974
        %v2131 = vmul.f32 %v1797, %v1989
        %v2132 = vmul.f32 %v1799, %v2004
        %v2133 = vmul.f32 %v1802, %v2019
        %v2134 = vmul.f32 %v1804, %v2034
        %v2135 = vmul.f32 %v1807, %v2049
        %v2136 = vmul.f32 %v1809, %v2064
        %v2137 = vmul.f32 %v1812, %v2079
        %v2138 = vmul.f32 %v1814, %v2094
        %v2139 = vmul.f32 %v1817, %v2109
        %v2140 = vmul.f32 %v1819, %v2124
        %v2141 = vpack.c.bf16 %v2126, %v2125
        %v2142 = vpack.c.bf16 %v2128, %v2127
        %v2143 = vpack.c.bf16 %v2130, %v2129
        %v2144 = vpack.c.bf16 %v2132, %v2131
        %v2145 = vpack.c.bf16 %v2134, %v2133
        %v2146 = vpack.c.bf16 %v2136, %v2135
        %v2147 = vpack.c.bf16 %v2138, %v2137
        %v2148 = vpack.c.bf16 %v2140, %v2139
        %2149 = vset.pattern.permute.xlu0 1
        %2150 = vperm.xlu0 %2149, %v727
        %v2151 = vpop.permute.xlu0 %2150
        %2153 = vset.pattern.permute.xlu0 1
        %2154 = vperm.xlu0 %2153, %v728
        %v2155 = vpop.permute.xlu0 %2154
        %2157 = vset.pattern.permute.xlu0 1
        %2158 = vperm.xlu0 %2157, %v729
        %v2159 = vpop.permute.xlu0 %2158
        %2161 = vset.pattern.permute.xlu0 1
        %2162 = vperm.xlu0 %2161, %v730
        %v2163 = vpop.permute.xlu0 %2162
        %2165 = vset.pattern.permute.xlu0 1
        %2166 = vperm.xlu0 %2165, %v731
        %v2167 = vpop.permute.xlu0 %2166
        %2169 = vset.pattern.permute.xlu0 1
        %2170 = vperm.xlu0 %2169, %v732
        %v2171 = vpop.permute.xlu0 %2170
        %2173 = vset.pattern.permute.xlu0 1
        %2174 = vperm.xlu0 %2173, %v733
        %v2175 = vpop.permute.xlu0 %2174
        %2177 = vset.pattern.permute.xlu0 1
        %2178 = vperm.xlu0 %2177, %v734
        %v2179 = vpop.permute.xlu0 %2178
        %v2189 = vunpack.c.l.b16 %v765
        %v2190 = vunpack.c.l.b16 %v766
        %v2191 = vunpack.c.l.b16 %v767
        %v2192 = vunpack.c.l.b16 %v768
        %v2193 = vunpack.c.l.b16 %v769
        %v2194 = vunpack.c.l.b16 %v770
        %v2195 = vunpack.c.l.b16 %v771
        %v2196 = vunpack.c.l.b16 %v772
        %v2197 = vpack.c.b16 %v2190, %v2189
        %v2198 = vpack.c.b16 %v2192, %v2191
        %v2199 = vpack.c.b16 %v2194, %v2193
        %v2200 = vpack.c.b16 %v2196, %v2195
        %2205 = vmatpush.bf16.msra.mxu0 %v2148
        %2206 = vmatpush.bf16.msra.mxu0 %v2147
        %2207 = vmatpush.bf16.msra.mxu0 %v2146
        %2208 = vmatpush.bf16.msra.mxu0 %v2145
        %2209 = vmatpush.bf16.msra.mxu0 %v2144
        %2210 = vmatpush.bf16.msra.mxu0 %v2143
        %2211 = vmatpush.bf16.msra.mxu0 %v2142
        %2212 = vmatpush.bf16.msra.mxu0 %v2141
        %2213 = vmatmul.bf16.gmra.mxu0 %v2197
        %v2214 = vpop.f32.mrf.mxu0
        %v2215 = vadd.f32 %v2151, %v2214
        %v2216 = vpop.f32.mrf.mxu0
        %v2217 = vadd.f32 %v2155, %v2216
        %2218 = vmatmul.bf16.gmra.mxu0 %v2198
        %v2219 = vpop.f32.mrf.mxu0
        %v2220 = vadd.f32 %v2159, %v2219
        %v2221 = vpop.f32.mrf.mxu0
        %v2222 = vadd.f32 %v2163, %v2221
        %2223 = vmatmul.bf16.gmra.mxu0 %v2199
        %v2224 = vpop.f32.mrf.mxu0
        %v2225 = vadd.f32 %v2167, %v2224
        %v2226 = vpop.f32.mrf.mxu0
        %v2227 = vadd.f32 %v2171, %v2226
        %2228 = vmatmul.bf16.gmra.mxu0 %v2200
        %v2229 = vpop.f32.mrf.mxu0
        %v2230 = vadd.f32 %v2175, %v2229
        %v2231 = vpop.f32.mrf.mxu0
        %v2232 = vadd.f32 %v2179, %v2231
        %2233 = vdwg.mxu0
        %v2242 = vunpack.c.l.b16 %v1579
        %v2243 = vunpack.c.l.b16 %v1580
        %v2244 = vunpack.c.l.b16 %v1581
        %v2245 = vunpack.c.l.b16 %v1582
        %v2246 = vunpack.c.l.b16 %v1583
        %v2247 = vunpack.c.l.b16 %v1584
        %v2248 = vunpack.c.l.b16 %v1585
        %v2249 = vunpack.c.l.b16 %v1586
        %v2250 = vpack.c.b16 %v2243, %v2242
        %v2251 = vpack.c.b16 %v2245, %v2244
        %v2252 = vpack.c.b16 %v2247, %v2246
        %v2253 = vpack.c.b16 %v2249, %v2248
        %2258 = vmatpush.bf16.msra.mxu0 0
        %2259 = vmatpush.bf16.msra.mxu0 0
        %2260 = vmatpush.bf16.msra.mxu0 0
        %2261 = vmatpush.bf16.msra.mxu0 0
        %2262 = vmatpush.bf16.msra.mxu0 %v2253
        %2263 = vmatpush.bf16.msra.mxu0 %v2252
        %2264 = vmatpush.bf16.msra.mxu0 %v2251
        %2265 = vmatpush.bf16.msra.mxu0 %v2250
        %2266 = vmatmul.bf16.gmra.mxu0 %v1749
        %v2267 = vpop.f32.mrf.mxu0
        %v2268 = vadd.f32 %v1606, %v2267
        %v2269 = vpop.f32.mrf.mxu0
        %v2270 = vadd.f32 %v1611, %v2269
        %2271 = vmatmul.bf16.gmra.mxu0 %v1752
        %v2272 = vpop.f32.mrf.mxu0
        %v2273 = vadd.f32 %v1616, %v2272
        %v2274 = vpop.f32.mrf.mxu0
        %v2275 = vadd.f32 %v1621, %v2274
        %2276 = vmatmul.bf16.gmra.mxu0 %v1755
        %v2277 = vpop.f32.mrf.mxu0
        %v2278 = vadd.f32 %v1626, %v2277
        %v2279 = vpop.f32.mrf.mxu0
        %v2280 = vadd.f32 %v1631, %v2279
        %2281 = vmatmul.bf16.gmra.mxu0 %v1758
        %v2282 = vpop.f32.mrf.mxu0
        %v2283 = vadd.f32 %v1636, %v2282
        %v2284 = vpop.f32.mrf.mxu0
        %v2285 = vadd.f32 %v1641, %v2284
        %2286 = vmatmul.bf16.gmra.mxu0 %v1761
        %v2287 = vpop.f32.mrf.mxu0
        %v2288 = vadd.f32 %v1646, %v2287
        %v2289 = vpop.f32.mrf.mxu0
        %v2290 = vadd.f32 %v1651, %v2289
        %2291 = vmatmul.bf16.gmra.mxu0 %v1764
        %v2292 = vpop.f32.mrf.mxu0
        %v2293 = vadd.f32 %v1656, %v2292
        %v2294 = vpop.f32.mrf.mxu0
        %v2295 = vadd.f32 %v1661, %v2294
        %2296 = vmatmul.bf16.gmra.mxu0 %v1767
        %v2297 = vpop.f32.mrf.mxu0
        %v2298 = vadd.f32 %v1666, %v2297
        %v2299 = vpop.f32.mrf.mxu0
        %v2300 = vadd.f32 %v1671, %v2299
        %2301 = vmatmul.bf16.gmra.mxu0 %v1770
        %v2302 = vpop.f32.mrf.mxu0
        %v2303 = vadd.f32 %v1676, %v2302
        %v2304 = vpop.f32.mrf.mxu0
        %v2305 = vadd.f32 %v1681, %v2304
        %2306 = vdwg.mxu0
        %v2307 = vxor.u32 %v2268, 2147483648
        %v2308 = vxor.u32 %v2270, 2147483648
        %v2309 = vxor.u32 %v2273, 2147483648
        %v2310 = vxor.u32 %v2275, 2147483648
        %v2311 = vxor.u32 %v2278, 2147483648
        %v2312 = vxor.u32 %v2280, 2147483648
        %v2313 = vxor.u32 %v2283, 2147483648
        %v2314 = vxor.u32 %v2285, 2147483648
        %v2315 = vxor.u32 %v2288, 2147483648
        %v2316 = vxor.u32 %v2290, 2147483648
        %v2317 = vxor.u32 %v2293, 2147483648
        %v2318 = vxor.u32 %v2295, 2147483648
        %v2319 = vxor.u32 %v2298, 2147483648
        %v2320 = vxor.u32 %v2300, 2147483648
        %v2321 = vxor.u32 %v2303, 2147483648
        %v2322 = vxor.u32 %v2305, 2147483648
        %v2323 = vmul.f32 %v2307, 1.442695
        %v2324 = vpow.pop %v2323
        %v2325 = vmul.f32 %v2308, 1.442695
        %v2326 = vpow.pop %v2325
        %v2327 = vmul.f32 %v2309, 1.442695
        %v2328 = vpow.pop %v2327
        %v2329 = vmul.f32 %v2310, 1.442695
        %v2330 = vpow.pop %v2329
        %v2331 = vmul.f32 %v2311, 1.442695
        %v2332 = vpow.pop %v2331
        %v2333 = vmul.f32 %v2312, 1.442695
        %v2334 = vpow.pop %v2333
        %v2335 = vmul.f32 %v2313, 1.442695
        %v2336 = vpow.pop %v2335
        %v2337 = vmul.f32 %v2314, 1.442695
        %v2338 = vpow.pop %v2337
        %v2339 = vmul.f32 %v2315, 1.442695
        %v2340 = vpow.pop %v2339
        %v2341 = vmul.f32 %v2316, 1.442695
        %v2342 = vpow.pop %v2341
        %v2343 = vmul.f32 %v2317, 1.442695
        %v2344 = vpow.pop %v2343
        %v2345 = vmul.f32 %v2318, 1.442695
        %v2346 = vpow.pop %v2345
        %v2347 = vmul.f32 %v2319, 1.442695
        %v2348 = vpow.pop %v2347
        %v2349 = vmul.f32 %v2320, 1.442695
        %v2350 = vpow.pop %v2349
        %v2351 = vmul.f32 %v2321, 1.442695
        %v2352 = vpow.pop %v2351
        %v2353 = vmul.f32 %v2322, 1.442695
        %v2354 = vpow.pop %v2353
        %v2355 = vadd.f32 %v2324, 1.0
        %v2356 = vadd.f32 %v2326, 1.0
        %v2357 = vadd.f32 %v2328, 1.0
        %v2358 = vadd.f32 %v2330, 1.0
        %v2359 = vadd.f32 %v2332, 1.0
        %v2360 = vadd.f32 %v2334, 1.0
        %v2361 = vadd.f32 %v2336, 1.0
        %v2362 = vadd.f32 %v2338, 1.0
        %v2363 = vadd.f32 %v2340, 1.0
        %v2364 = vadd.f32 %v2342, 1.0
        %v2365 = vadd.f32 %v2344, 1.0
        %v2366 = vadd.f32 %v2346, 1.0
        %v2367 = vadd.f32 %v2348, 1.0
        %v2368 = vadd.f32 %v2350, 1.0
        %v2369 = vadd.f32 %v2352, 1.0
        %v2370 = vadd.f32 %v2354, 1.0
        %v2371 = vrcp.pop %v2355
        %v2372 = vmul.f32 %v2355, %v2371
        %v2373 = vsub.f32 1.0, %v2372
        %v2374 = vmul.f32 %v2371, %v2373
        %v2375 = vadd.f32 %v2371, %v2374
        %vm2376 = vweird.f32 %v2355
        %vm2377 = vweird.f32 %v2371
        %vm2378 = vmor %vm2376, %vm2377
        %v2379 = vsel %vm2378, %v2371, %v2375
        %v2380 = vand.u32 2147483647, %v2355
        %vm2381 = vcmp.eq.f32.partialorder %v2380, 8.507059e+37
        %v2382 = vand.u32 %v2355, 2147483648
        %v2383 = vor.u32 1.1754944e-38, %v2382
        %v2384 = vsel %vm2381, %v2383, %v2379
        %v2385 = vmul.f32 1.0, %v2384
        %v2386 = vrcp.pop %v2356
        %v2387 = vmul.f32 %v2356, %v2386
        %v2388 = vsub.f32 1.0, %v2387
        %v2389 = vmul.f32 %v2386, %v2388
        %v2390 = vadd.f32 %v2386, %v2389
        %vm2391 = vweird.f32 %v2356
        %vm2392 = vweird.f32 %v2386
        %vm2393 = vmor %vm2391, %vm2392
        %v2394 = vsel %vm2393, %v2386, %v2390
        %v2395 = vand.u32 2147483647, %v2356
        %vm2396 = vcmp.eq.f32.partialorder %v2395, 8.507059e+37
        %v2397 = vand.u32 %v2356, 2147483648
        %v2398 = vor.u32 1.1754944e-38, %v2397
        %v2399 = vsel %vm2396, %v2398, %v2394
        %v2400 = vmul.f32 1.0, %v2399
        %v2401 = vrcp.pop %v2357
        %v2402 = vmul.f32 %v2357, %v2401
        %v2403 = vsub.f32 1.0, %v2402
        %v2404 = vmul.f32 %v2401, %v2403
        %v2405 = vadd.f32 %v2401, %v2404
        %vm2406 = vweird.f32 %v2357
        %vm2407 = vweird.f32 %v2401
        %vm2408 = vmor %vm2406, %vm2407
        %v2409 = vsel %vm2408, %v2401, %v2405
        %v2410 = vand.u32 2147483647, %v2357
        %vm2411 = vcmp.eq.f32.partialorder %v2410, 8.507059e+37
        %v2412 = vand.u32 %v2357, 2147483648
        %v2413 = vor.u32 1.1754944e-38, %v2412
        %v2414 = vsel %vm2411, %v2413, %v2409
        %v2415 = vmul.f32 1.0, %v2414
        %v2416 = vrcp.pop %v2358
        %v2417 = vmul.f32 %v2358, %v2416
        %v2418 = vsub.f32 1.0, %v2417
        %v2419 = vmul.f32 %v2416, %v2418
        %v2420 = vadd.f32 %v2416, %v2419
        %vm2421 = vweird.f32 %v2358
        %vm2422 = vweird.f32 %v2416
        %vm2423 = vmor %vm2421, %vm2422
        %v2424 = vsel %vm2423, %v2416, %v2420
        %v2425 = vand.u32 2147483647, %v2358
        %vm2426 = vcmp.eq.f32.partialorder %v2425, 8.507059e+37
        %v2427 = vand.u32 %v2358, 2147483648
        %v2428 = vor.u32 1.1754944e-38, %v2427
        %v2429 = vsel %vm2426, %v2428, %v2424
        %v2430 = vmul.f32 1.0, %v2429
        %v2431 = vrcp.pop %v2359
        %v2432 = vmul.f32 %v2359, %v2431
        %v2433 = vsub.f32 1.0, %v2432
        %v2434 = vmul.f32 %v2431, %v2433
        %v2435 = vadd.f32 %v2431, %v2434
        %vm2436 = vweird.f32 %v2359
        %vm2437 = vweird.f32 %v2431
        %vm2438 = vmor %vm2436, %vm2437
        %v2439 = vsel %vm2438, %v2431, %v2435
        %v2440 = vand.u32 2147483647, %v2359
        %vm2441 = vcmp.eq.f32.partialorder %v2440, 8.507059e+37
        %v2442 = vand.u32 %v2359, 2147483648
        %v2443 = vor.u32 1.1754944e-38, %v2442
        %v2444 = vsel %vm2441, %v2443, %v2439
        %v2445 = vmul.f32 1.0, %v2444
        %v2446 = vrcp.pop %v2360
        %v2447 = vmul.f32 %v2360, %v2446
        %v2448 = vsub.f32 1.0, %v2447
        %v2449 = vmul.f32 %v2446, %v2448
        %v2450 = vadd.f32 %v2446, %v2449
        %vm2451 = vweird.f32 %v2360
        %vm2452 = vweird.f32 %v2446
        %vm2453 = vmor %vm2451, %vm2452
        %v2454 = vsel %vm2453, %v2446, %v2450
        %v2455 = vand.u32 2147483647, %v2360
        %vm2456 = vcmp.eq.f32.partialorder %v2455, 8.507059e+37
        %v2457 = vand.u32 %v2360, 2147483648
        %v2458 = vor.u32 1.1754944e-38, %v2457
        %v2459 = vsel %vm2456, %v2458, %v2454
        %v2460 = vmul.f32 1.0, %v2459
        %v2461 = vrcp.pop %v2361
        %v2462 = vmul.f32 %v2361, %v2461
        %v2463 = vsub.f32 1.0, %v2462
        %v2464 = vmul.f32 %v2461, %v2463
        %v2465 = vadd.f32 %v2461, %v2464
        %vm2466 = vweird.f32 %v2361
        %vm2467 = vweird.f32 %v2461
        %vm2468 = vmor %vm2466, %vm2467
        %v2469 = vsel %vm2468, %v2461, %v2465
        %v2470 = vand.u32 2147483647, %v2361
        %vm2471 = vcmp.eq.f32.partialorder %v2470, 8.507059e+37
        %v2472 = vand.u32 %v2361, 2147483648
        %v2473 = vor.u32 1.1754944e-38, %v2472
        %v2474 = vsel %vm2471, %v2473, %v2469
        %v2475 = vmul.f32 1.0, %v2474
        %v2476 = vrcp.pop %v2362
        %v2477 = vmul.f32 %v2362, %v2476
        %v2478 = vsub.f32 1.0, %v2477
        %v2479 = vmul.f32 %v2476, %v2478
        %v2480 = vadd.f32 %v2476, %v2479
        %vm2481 = vweird.f32 %v2362
        %vm2482 = vweird.f32 %v2476
        %vm2483 = vmor %vm2481, %vm2482
        %v2484 = vsel %vm2483, %v2476, %v2480
        %v2485 = vand.u32 2147483647, %v2362
        %vm2486 = vcmp.eq.f32.partialorder %v2485, 8.507059e+37
        %v2487 = vand.u32 %v2362, 2147483648
        %v2488 = vor.u32 1.1754944e-38, %v2487
        %v2489 = vsel %vm2486, %v2488, %v2484
        %v2490 = vmul.f32 1.0, %v2489
        %v2491 = vrcp.pop %v2363
        %v2492 = vmul.f32 %v2363, %v2491
        %v2493 = vsub.f32 1.0, %v2492
        %v2494 = vmul.f32 %v2491, %v2493
        %v2495 = vadd.f32 %v2491, %v2494
        %vm2496 = vweird.f32 %v2363
        %vm2497 = vweird.f32 %v2491
        %vm2498 = vmor %vm2496, %vm2497
        %v2499 = vsel %vm2498, %v2491, %v2495
        %v2500 = vand.u32 2147483647, %v2363
        %vm2501 = vcmp.eq.f32.partialorder %v2500, 8.507059e+37
        %v2502 = vand.u32 %v2363, 2147483648
        %v2503 = vor.u32 1.1754944e-38, %v2502
        %v2504 = vsel %vm2501, %v2503, %v2499
        %v2505 = vmul.f32 1.0, %v2504
        %v2506 = vrcp.pop %v2364
        %v2507 = vmul.f32 %v2364, %v2506
        %v2508 = vsub.f32 1.0, %v2507
        %v2509 = vmul.f32 %v2506, %v2508
        %v2510 = vadd.f32 %v2506, %v2509
        %vm2511 = vweird.f32 %v2364
        %vm2512 = vweird.f32 %v2506
        %vm2513 = vmor %vm2511, %vm2512
        %v2514 = vsel %vm2513, %v2506, %v2510
        %v2515 = vand.u32 2147483647, %v2364
        %vm2516 = vcmp.eq.f32.partialorder %v2515, 8.507059e+37
        %v2517 = vand.u32 %v2364, 2147483648
        %v2518 = vor.u32 1.1754944e-38, %v2517
        %v2519 = vsel %vm2516, %v2518, %v2514
        %v2520 = vmul.f32 1.0, %v2519
        %v2521 = vrcp.pop %v2365
        %v2522 = vmul.f32 %v2365, %v2521
        %v2523 = vsub.f32 1.0, %v2522
        %v2524 = vmul.f32 %v2521, %v2523
        %v2525 = vadd.f32 %v2521, %v2524
        %vm2526 = vweird.f32 %v2365
        %vm2527 = vweird.f32 %v2521
        %vm2528 = vmor %vm2526, %vm2527
        %v2529 = vsel %vm2528, %v2521, %v2525
        %v2530 = vand.u32 2147483647, %v2365
        %vm2531 = vcmp.eq.f32.partialorder %v2530, 8.507059e+37
        %v2532 = vand.u32 %v2365, 2147483648
        %v2533 = vor.u32 1.1754944e-38, %v2532
        %v2534 = vsel %vm2531, %v2533, %v2529
        %v2535 = vmul.f32 1.0, %v2534
        %v2536 = vrcp.pop %v2366
        %v2537 = vmul.f32 %v2366, %v2536
        %v2538 = vsub.f32 1.0, %v2537
        %v2539 = vmul.f32 %v2536, %v2538
        %v2540 = vadd.f32 %v2536, %v2539
        %vm2541 = vweird.f32 %v2366
        %vm2542 = vweird.f32 %v2536
        %vm2543 = vmor %vm2541, %vm2542
        %v2544 = vsel %vm2543, %v2536, %v2540
        %v2545 = vand.u32 2147483647, %v2366
        %vm2546 = vcmp.eq.f32.partialorder %v2545, 8.507059e+37
        %v2547 = vand.u32 %v2366, 2147483648
        %v2548 = vor.u32 1.1754944e-38, %v2547
        %v2549 = vsel %vm2546, %v2548, %v2544
        %v2550 = vmul.f32 1.0, %v2549
        %v2551 = vrcp.pop %v2367
        %v2552 = vmul.f32 %v2367, %v2551
        %v2553 = vsub.f32 1.0, %v2552
        %v2554 = vmul.f32 %v2551, %v2553
        %v2555 = vadd.f32 %v2551, %v2554
        %vm2556 = vweird.f32 %v2367
        %vm2557 = vweird.f32 %v2551
        %vm2558 = vmor %vm2556, %vm2557
        %v2559 = vsel %vm2558, %v2551, %v2555
        %v2560 = vand.u32 2147483647, %v2367
        %vm2561 = vcmp.eq.f32.partialorder %v2560, 8.507059e+37
        %v2562 = vand.u32 %v2367, 2147483648
        %v2563 = vor.u32 1.1754944e-38, %v2562
        %v2564 = vsel %vm2561, %v2563, %v2559
        %v2565 = vmul.f32 1.0, %v2564
        %v2566 = vrcp.pop %v2368
        %v2567 = vmul.f32 %v2368, %v2566
        %v2568 = vsub.f32 1.0, %v2567
        %v2569 = vmul.f32 %v2566, %v2568
        %v2570 = vadd.f32 %v2566, %v2569
        %vm2571 = vweird.f32 %v2368
        %vm2572 = vweird.f32 %v2566
        %vm2573 = vmor %vm2571, %vm2572
        %v2574 = vsel %vm2573, %v2566, %v2570
        %v2575 = vand.u32 2147483647, %v2368
        %vm2576 = vcmp.eq.f32.partialorder %v2575, 8.507059e+37
        %v2577 = vand.u32 %v2368, 2147483648
        %v2578 = vor.u32 1.1754944e-38, %v2577
        %v2579 = vsel %vm2576, %v2578, %v2574
        %v2580 = vmul.f32 1.0, %v2579
        %v2581 = vrcp.pop %v2369
        %v2582 = vmul.f32 %v2369, %v2581
        %v2583 = vsub.f32 1.0, %v2582
        %v2584 = vmul.f32 %v2581, %v2583
        %v2585 = vadd.f32 %v2581, %v2584
        %vm2586 = vweird.f32 %v2369
        %vm2587 = vweird.f32 %v2581
        %vm2588 = vmor %vm2586, %vm2587
        %v2589 = vsel %vm2588, %v2581, %v2585
        %v2590 = vand.u32 2147483647, %v2369
        %vm2591 = vcmp.eq.f32.partialorder %v2590, 8.507059e+37
        %v2592 = vand.u32 %v2369, 2147483648
        %v2593 = vor.u32 1.1754944e-38, %v2592
        %v2594 = vsel %vm2591, %v2593, %v2589
        %v2595 = vmul.f32 1.0, %v2594
        %v2596 = vrcp.pop %v2370
        %v2597 = vmul.f32 %v2370, %v2596
        %v2598 = vsub.f32 1.0, %v2597
        %v2599 = vmul.f32 %v2596, %v2598
        %v2600 = vadd.f32 %v2596, %v2599
        %vm2601 = vweird.f32 %v2370
        %vm2602 = vweird.f32 %v2596
        %vm2603 = vmor %vm2601, %vm2602
        %v2604 = vsel %vm2603, %v2596, %v2600
        %v2605 = vand.u32 2147483647, %v2370
        %vm2606 = vcmp.eq.f32.partialorder %v2605, 8.507059e+37
        %v2607 = vand.u32 %v2370, 2147483648
        %v2608 = vor.u32 1.1754944e-38, %v2607
        %v2609 = vsel %vm2606, %v2608, %v2604
        %v2610 = vmul.f32 1.0, %v2609
        %v2611 = vmul.f32 %v2268, %v2385
        %v2612 = vmul.f32 %v2270, %v2400
        %v2613 = vmul.f32 %v2273, %v2415
        %v2614 = vmul.f32 %v2275, %v2430
        %v2615 = vmul.f32 %v2278, %v2445
        %v2616 = vmul.f32 %v2280, %v2460
        %v2617 = vmul.f32 %v2283, %v2475
        %v2618 = vmul.f32 %v2285, %v2490
        %v2619 = vmul.f32 %v2288, %v2505
        %v2620 = vmul.f32 %v2290, %v2520
        %v2621 = vmul.f32 %v2293, %v2535
        %v2622 = vmul.f32 %v2295, %v2550
        %v2623 = vmul.f32 %v2298, %v2565
        %v2624 = vmul.f32 %v2300, %v2580
        %v2625 = vmul.f32 %v2303, %v2595
        %v2626 = vmul.f32 %v2305, %v2610
        %v2627 = vpack.c.bf16 %v2612, %v2611
        %v2628 = vpack.c.bf16 %v2614, %v2613
        %v2629 = vpack.c.bf16 %v2616, %v2615
        %v2630 = vpack.c.bf16 %v2618, %v2617
        %v2631 = vpack.c.bf16 %v2620, %v2619
        %v2632 = vpack.c.bf16 %v2622, %v2621
        %v2633 = vpack.c.bf16 %v2624, %v2623
        %v2634 = vpack.c.bf16 %v2626, %v2625
        %2635 = vmatpush.bf16.msra.mxu0 %v2634
        %2636 = vmatpush.bf16.msra.mxu0 %v2633
        %2637 = vmatpush.bf16.msra.mxu0 %v2632
        %2638 = vmatpush.bf16.msra.mxu0 %v2631
        %2639 = vmatpush.bf16.msra.mxu0 %v2630
        %2640 = vmatpush.bf16.msra.mxu0 %v2629
        %2641 = vmatpush.bf16.msra.mxu0 %v2628
        %2642 = vmatpush.bf16.msra.mxu0 %v2627
        %2643 = vmatmul.bf16.gmra.mxu0 %v2197
        %v2644 = vpop.f32.mrf.mxu0
        %v2645 = vadd.f32 %v2151, %v2644
        %v2646 = vpop.f32.mrf.mxu0
        %v2647 = vadd.f32 %v2155, %v2646
        %2648 = vmatmul.bf16.gmra.mxu0 %v2198
        %v2649 = vpop.f32.mrf.mxu0
        %v2650 = vadd.f32 %v2159, %v2649
        %v2651 = vpop.f32.mrf.mxu0
        %v2652 = vadd.f32 %v2163, %v2651
        %2653 = vmatmul.bf16.gmra.mxu0 %v2199
        %v2654 = vpop.f32.mrf.mxu0
        %v2655 = vadd.f32 %v2167, %v2654
        %v2656 = vpop.f32.mrf.mxu0
        %v2657 = vadd.f32 %v2171, %v2656
        %2658 = vmatmul.bf16.gmra.mxu0 %v2200
        %v2659 = vpop.f32.mrf.mxu0
        %v2660 = vadd.f32 %v2175, %v2659
        %v2661 = vpop.f32.mrf.mxu0
        %v2662 = vadd.f32 %v2179, %v2661
        %2663 = vdwg.mxu0
        %v2672 = vunpack.c.l.b16 %v1587
        %v2673 = vunpack.c.l.b16 %v1588
        %v2674 = vunpack.c.l.b16 %v1589
        %v2675 = vunpack.c.l.b16 %v1590
        %v2676 = vunpack.c.l.b16 %v1591
        %v2677 = vunpack.c.l.b16 %v1592
        %v2678 = vunpack.c.l.b16 %v1593
        %v2679 = vunpack.c.l.b16 %v1594
        %v2680 = vpack.c.b16 %v2673, %v2672
        %v2681 = vpack.c.b16 %v2675, %v2674
        %v2682 = vpack.c.b16 %v2677, %v2676
        %v2683 = vpack.c.b16 %v2679, %v2678
        %2688 = vmatpush.bf16.msra.mxu0 0
        %2689 = vmatpush.bf16.msra.mxu0 0
        %2690 = vmatpush.bf16.msra.mxu0 0
        %2691 = vmatpush.bf16.msra.mxu0 0
        %2692 = vmatpush.bf16.msra.mxu0 %v2683
        %2693 = vmatpush.bf16.msra.mxu0 %v2682
        %2694 = vmatpush.bf16.msra.mxu0 %v2681
        %2695 = vmatpush.bf16.msra.mxu0 %v2680
        %2696 = vmatmul.bf16.gmra.mxu0 %v1749
        %v2697 = vpop.f32.mrf.mxu0
        %v2698 = vadd.f32 %v1606, %v2697
        %v2699 = vpop.f32.mrf.mxu0
        %v2700 = vadd.f32 %v1611, %v2699
        %2701 = vmatmul.bf16.gmra.mxu0 %v1752
        %v2702 = vpop.f32.mrf.mxu0
        %v2703 = vadd.f32 %v1616, %v2702
        %v2704 = vpop.f32.mrf.mxu0
        %v2705 = vadd.f32 %v1621, %v2704
        %2706 = vmatmul.bf16.gmra.mxu0 %v1755
        %v2707 = vpop.f32.mrf.mxu0
        %v2708 = vadd.f32 %v1626, %v2707
        %v2709 = vpop.f32.mrf.mxu0
        %v2710 = vadd.f32 %v1631, %v2709
        %2711 = vmatmul.bf16.gmra.mxu0 %v1758
        %v2712 = vpop.f32.mrf.mxu0
        %v2713 = vadd.f32 %v1636, %v2712
        %v2714 = vpop.f32.mrf.mxu0
        %v2715 = vadd.f32 %v1641, %v2714
        %2716 = vmatmul.bf16.gmra.mxu0 %v1761
        %v2717 = vpop.f32.mrf.mxu0
        %v2718 = vadd.f32 %v1646, %v2717
        %v2719 = vpop.f32.mrf.mxu0
        %v2720 = vadd.f32 %v1651, %v2719
        %2721 = vmatmul.bf16.gmra.mxu0 %v1764
        %v2722 = vpop.f32.mrf.mxu0
        %v2723 = vadd.f32 %v1656, %v2722
        %v2724 = vpop.f32.mrf.mxu0
        %v2725 = vadd.f32 %v1661, %v2724
        %2726 = vmatmul.bf16.gmra.mxu0 %v1767
        %v2727 = vpop.f32.mrf.mxu0
        %v2728 = vadd.f32 %v1666, %v2727
        %v2729 = vpop.f32.mrf.mxu0
        %v2730 = vadd.f32 %v1671, %v2729
        %2731 = vmatmul.bf16.gmra.mxu0 %v1770
        %v2732 = vpop.f32.mrf.mxu0
        %v2733 = vadd.f32 %v1676, %v2732
        %v2734 = vpop.f32.mrf.mxu0
        %v2735 = vadd.f32 %v1681, %v2734
        %2736 = vdwg.mxu0
        %v2737 = vxor.u32 %v2698, 2147483648
        %v2738 = vxor.u32 %v2700, 2147483648
        %v2739 = vxor.u32 %v2703, 2147483648
        %v2740 = vxor.u32 %v2705, 2147483648
        %v2741 = vxor.u32 %v2708, 2147483648
        %v2742 = vxor.u32 %v2710, 2147483648
        %v2743 = vxor.u32 %v2713, 2147483648
        %v2744 = vxor.u32 %v2715, 2147483648
        %v2745 = vxor.u32 %v2718, 2147483648
        %v2746 = vxor.u32 %v2720, 2147483648
        %v2747 = vxor.u32 %v2723, 2147483648
        %v2748 = vxor.u32 %v2725, 2147483648
        %v2749 = vxor.u32 %v2728, 2147483648
        %v2750 = vxor.u32 %v2730, 2147483648
        %v2751 = vxor.u32 %v2733, 2147483648
        %v2752 = vxor.u32 %v2735, 2147483648
        %v2753 = vmul.f32 %v2737, 1.442695
        %v2754 = vpow.pop %v2753
        %v2755 = vmul.f32 %v2738, 1.442695
        %v2756 = vpow.pop %v2755
        %v2757 = vmul.f32 %v2739, 1.442695
        %v2758 = vpow.pop %v2757
        %v2759 = vmul.f32 %v2740, 1.442695
        %v2760 = vpow.pop %v2759
        %v2761 = vmul.f32 %v2741, 1.442695
        %v2762 = vpow.pop %v2761
        %v2763 = vmul.f32 %v2742, 1.442695
        %v2764 = vpow.pop %v2763
        %v2765 = vmul.f32 %v2743, 1.442695
        %v2766 = vpow.pop %v2765
        %v2767 = vmul.f32 %v2744, 1.442695
        %v2768 = vpow.pop %v2767
        %v2769 = vmul.f32 %v2745, 1.442695
        %v2770 = vpow.pop %v2769
        %v2771 = vmul.f32 %v2746, 1.442695
        %v2772 = vpow.pop %v2771
        %v2773 = vmul.f32 %v2747, 1.442695
        %v2774 = vpow.pop %v2773
        %v2775 = vmul.f32 %v2748, 1.442695
        %v2776 = vpow.pop %v2775
        %v2777 = vmul.f32 %v2749, 1.442695
        %v2778 = vpow.pop %v2777
        %v2779 = vmul.f32 %v2750, 1.442695
        %v2780 = vpow.pop %v2779
        %v2781 = vmul.f32 %v2751, 1.442695
        %v2782 = vpow.pop %v2781
        %v2783 = vmul.f32 %v2752, 1.442695
        %v2784 = vpow.pop %v2783
        %v2785 = vadd.f32 %v2754, 1.0
        %v2786 = vadd.f32 %v2756, 1.0
        %v2787 = vadd.f32 %v2758, 1.0
        %v2788 = vadd.f32 %v2760, 1.0
        %v2789 = vadd.f32 %v2762, 1.0
        %v2790 = vadd.f32 %v2764, 1.0
        %v2791 = vadd.f32 %v2766, 1.0
        %v2792 = vadd.f32 %v2768, 1.0
        %v2793 = vadd.f32 %v2770, 1.0
        %v2794 = vadd.f32 %v2772, 1.0
        %v2795 = vadd.f32 %v2774, 1.0
        %v2796 = vadd.f32 %v2776, 1.0
        %v2797 = vadd.f32 %v2778, 1.0
        %v2798 = vadd.f32 %v2780, 1.0
        %v2799 = vadd.f32 %v2782, 1.0
        %v2800 = vadd.f32 %v2784, 1.0
        %v2801 = vrcp.pop %v2785
        %v2802 = vmul.f32 %v2785, %v2801
        %v2803 = vsub.f32 1.0, %v2802
        %v2804 = vmul.f32 %v2801, %v2803
        %v2805 = vadd.f32 %v2801, %v2804
        %vm2806 = vweird.f32 %v2785
        %vm2807 = vweird.f32 %v2801
        %vm2808 = vmor %vm2806, %vm2807
        %v2809 = vsel %vm2808, %v2801, %v2805
        %v2810 = vand.u32 2147483647, %v2785
        %vm2811 = vcmp.eq.f32.partialorder %v2810, 8.507059e+37
        %v2812 = vand.u32 %v2785, 2147483648
        %v2813 = vor.u32 1.1754944e-38, %v2812
        %v2814 = vsel %vm2811, %v2813, %v2809
        %v2815 = vmul.f32 1.0, %v2814
        %v2816 = vrcp.pop %v2786
        %v2817 = vmul.f32 %v2786, %v2816
        %v2818 = vsub.f32 1.0, %v2817
        %v2819 = vmul.f32 %v2816, %v2818
        %v2820 = vadd.f32 %v2816, %v2819
        %vm2821 = vweird.f32 %v2786
        %vm2822 = vweird.f32 %v2816
        %vm2823 = vmor %vm2821, %vm2822
        %v2824 = vsel %vm2823, %v2816, %v2820
        %v2825 = vand.u32 2147483647, %v2786
        %vm2826 = vcmp.eq.f32.partialorder %v2825, 8.507059e+37
        %v2827 = vand.u32 %v2786, 2147483648
        %v2828 = vor.u32 1.1754944e-38, %v2827
        %v2829 = vsel %vm2826, %v2828, %v2824
        %v2830 = vmul.f32 1.0, %v2829
        %v2831 = vrcp.pop %v2787
        %v2832 = vmul.f32 %v2787, %v2831
        %v2833 = vsub.f32 1.0, %v2832
        %v2834 = vmul.f32 %v2831, %v2833
        %v2835 = vadd.f32 %v2831, %v2834
        %vm2836 = vweird.f32 %v2787
        %vm2837 = vweird.f32 %v2831
        %vm2838 = vmor %vm2836, %vm2837
        %v2839 = vsel %vm2838, %v2831, %v2835
        %v2840 = vand.u32 2147483647, %v2787
        %vm2841 = vcmp.eq.f32.partialorder %v2840, 8.507059e+37
        %v2842 = vand.u32 %v2787, 2147483648
        %v2843 = vor.u32 1.1754944e-38, %v2842
        %v2844 = vsel %vm2841, %v2843, %v2839
        %v2845 = vmul.f32 1.0, %v2844
        %v2846 = vrcp.pop %v2788
        %v2847 = vmul.f32 %v2788, %v2846
        %v2848 = vsub.f32 1.0, %v2847
        %v2849 = vmul.f32 %v2846, %v2848
        %v2850 = vadd.f32 %v2846, %v2849
        %vm2851 = vweird.f32 %v2788
        %vm2852 = vweird.f32 %v2846
        %vm2853 = vmor %vm2851, %vm2852
        %v2854 = vsel %vm2853, %v2846, %v2850
        %v2855 = vand.u32 2147483647, %v2788
        %vm2856 = vcmp.eq.f32.partialorder %v2855, 8.507059e+37
        %v2857 = vand.u32 %v2788, 2147483648
        %v2858 = vor.u32 1.1754944e-38, %v2857
        %v2859 = vsel %vm2856, %v2858, %v2854
        %v2860 = vmul.f32 1.0, %v2859
        %v2861 = vrcp.pop %v2789
        %v2862 = vmul.f32 %v2789, %v2861
        %v2863 = vsub.f32 1.0, %v2862
        %v2864 = vmul.f32 %v2861, %v2863
        %v2865 = vadd.f32 %v2861, %v2864
        %vm2866 = vweird.f32 %v2789
        %vm2867 = vweird.f32 %v2861
        %vm2868 = vmor %vm2866, %vm2867
        %v2869 = vsel %vm2868, %v2861, %v2865
        %v2870 = vand.u32 2147483647, %v2789
        %vm2871 = vcmp.eq.f32.partialorder %v2870, 8.507059e+37
        %v2872 = vand.u32 %v2789, 2147483648
        %v2873 = vor.u32 1.1754944e-38, %v2872
        %v2874 = vsel %vm2871, %v2873, %v2869
        %v2875 = vmul.f32 1.0, %v2874
        %v2876 = vrcp.pop %v2790
        %v2877 = vmul.f32 %v2790, %v2876
        %v2878 = vsub.f32 1.0, %v2877
        %v2879 = vmul.f32 %v2876, %v2878
        %v2880 = vadd.f32 %v2876, %v2879
        %vm2881 = vweird.f32 %v2790
        %vm2882 = vweird.f32 %v2876
        %vm2883 = vmor %vm2881, %vm2882
        %v2884 = vsel %vm2883, %v2876, %v2880
        %v2885 = vand.u32 2147483647, %v2790
        %vm2886 = vcmp.eq.f32.partialorder %v2885, 8.507059e+37
        %v2887 = vand.u32 %v2790, 2147483648
        %v2888 = vor.u32 1.1754944e-38, %v2887
        %v2889 = vsel %vm2886, %v2888, %v2884
        %v2890 = vmul.f32 1.0, %v2889
        %v2891 = vrcp.pop %v2791
        %v2892 = vmul.f32 %v2791, %v2891
        %v2893 = vsub.f32 1.0, %v2892
        %v2894 = vmul.f32 %v2891, %v2893
        %v2895 = vadd.f32 %v2891, %v2894
        %vm2896 = vweird.f32 %v2791
        %vm2897 = vweird.f32 %v2891
        %vm2898 = vmor %vm2896, %vm2897
        %v2899 = vsel %vm2898, %v2891, %v2895
        %v2900 = vand.u32 2147483647, %v2791
        %vm2901 = vcmp.eq.f32.partialorder %v2900, 8.507059e+37
        %v2902 = vand.u32 %v2791, 2147483648
        %v2903 = vor.u32 1.1754944e-38, %v2902
        %v2904 = vsel %vm2901, %v2903, %v2899
        %v2905 = vmul.f32 1.0, %v2904
        %v2906 = vrcp.pop %v2792
        %v2907 = vmul.f32 %v2792, %v2906
        %v2908 = vsub.f32 1.0, %v2907
        %v2909 = vmul.f32 %v2906, %v2908
        %v2910 = vadd.f32 %v2906, %v2909
        %vm2911 = vweird.f32 %v2792
        %vm2912 = vweird.f32 %v2906
        %vm2913 = vmor %vm2911, %vm2912
        %v2914 = vsel %vm2913, %v2906, %v2910
        %v2915 = vand.u32 2147483647, %v2792
        %vm2916 = vcmp.eq.f32.partialorder %v2915, 8.507059e+37
        %v2917 = vand.u32 %v2792, 2147483648
        %v2918 = vor.u32 1.1754944e-38, %v2917
        %v2919 = vsel %vm2916, %v2918, %v2914
        %v2920 = vmul.f32 1.0, %v2919
        %v2921 = vrcp.pop %v2793
        %v2922 = vmul.f32 %v2793, %v2921
        %v2923 = vsub.f32 1.0, %v2922
        %v2924 = vmul.f32 %v2921, %v2923
        %v2925 = vadd.f32 %v2921, %v2924
        %vm2926 = vweird.f32 %v2793
        %vm2927 = vweird.f32 %v2921
        %vm2928 = vmor %vm2926, %vm2927
        %v2929 = vsel %vm2928, %v2921, %v2925
        %v2930 = vand.u32 2147483647, %v2793
        %vm2931 = vcmp.eq.f32.partialorder %v2930, 8.507059e+37
        %v2932 = vand.u32 %v2793, 2147483648
        %v2933 = vor.u32 1.1754944e-38, %v2932
        %v2934 = vsel %vm2931, %v2933, %v2929
        %v2935 = vmul.f32 1.0, %v2934
        %v2936 = vrcp.pop %v2794
        %v2937 = vmul.f32 %v2794, %v2936
        %v2938 = vsub.f32 1.0, %v2937
        %v2939 = vmul.f32 %v2936, %v2938
        %v2940 = vadd.f32 %v2936, %v2939
        %vm2941 = vweird.f32 %v2794
        %vm2942 = vweird.f32 %v2936
        %vm2943 = vmor %vm2941, %vm2942
        %v2944 = vsel %vm2943, %v2936, %v2940
        %v2945 = vand.u32 2147483647, %v2794
        %vm2946 = vcmp.eq.f32.partialorder %v2945, 8.507059e+37
        %v2947 = vand.u32 %v2794, 2147483648
        %v2948 = vor.u32 1.1754944e-38, %v2947
        %v2949 = vsel %vm2946, %v2948, %v2944
        %v2950 = vmul.f32 1.0, %v2949
        %v2951 = vrcp.pop %v2795
        %v2952 = vmul.f32 %v2795, %v2951
        %v2953 = vsub.f32 1.0, %v2952
        %v2954 = vmul.f32 %v2951, %v2953
        %v2955 = vadd.f32 %v2951, %v2954
        %vm2956 = vweird.f32 %v2795
        %vm2957 = vweird.f32 %v2951
        %vm2958 = vmor %vm2956, %vm2957
        %v2959 = vsel %vm2958, %v2951, %v2955
        %v2960 = vand.u32 2147483647, %v2795
        %vm2961 = vcmp.eq.f32.partialorder %v2960, 8.507059e+37
        %v2962 = vand.u32 %v2795, 2147483648
        %v2963 = vor.u32 1.1754944e-38, %v2962
        %v2964 = vsel %vm2961, %v2963, %v2959
        %v2965 = vmul.f32 1.0, %v2964
        %v2966 = vrcp.pop %v2796
        %v2967 = vmul.f32 %v2796, %v2966
        %v2968 = vsub.f32 1.0, %v2967
        %v2969 = vmul.f32 %v2966, %v2968
        %v2970 = vadd.f32 %v2966, %v2969
        %vm2971 = vweird.f32 %v2796
        %vm2972 = vweird.f32 %v2966
        %vm2973 = vmor %vm2971, %vm2972
        %v2974 = vsel %vm2973, %v2966, %v2970
        %v2975 = vand.u32 2147483647, %v2796
        %vm2976 = vcmp.eq.f32.partialorder %v2975, 8.507059e+37
        %v2977 = vand.u32 %v2796, 2147483648
        %v2978 = vor.u32 1.1754944e-38, %v2977
        %v2979 = vsel %vm2976, %v2978, %v2974
        %v2980 = vmul.f32 1.0, %v2979
        %v2981 = vrcp.pop %v2797
        %v2982 = vmul.f32 %v2797, %v2981
        %v2983 = vsub.f32 1.0, %v2982
        %v2984 = vmul.f32 %v2981, %v2983
        %v2985 = vadd.f32 %v2981, %v2984
        %vm2986 = vweird.f32 %v2797
        %vm2987 = vweird.f32 %v2981
        %vm2988 = vmor %vm2986, %vm2987
        %v2989 = vsel %vm2988, %v2981, %v2985
        %v2990 = vand.u32 2147483647, %v2797
        %vm2991 = vcmp.eq.f32.partialorder %v2990, 8.507059e+37
        %v2992 = vand.u32 %v2797, 2147483648
        %v2993 = vor.u32 1.1754944e-38, %v2992
        %v2994 = vsel %vm2991, %v2993, %v2989
        %v2995 = vmul.f32 1.0, %v2994
        %v2996 = vrcp.pop %v2798
        %v2997 = vmul.f32 %v2798, %v2996
        %v2998 = vsub.f32 1.0, %v2997
        %v2999 = vmul.f32 %v2996, %v2998
        %v3000 = vadd.f32 %v2996, %v2999
        %vm3001 = vweird.f32 %v2798
        %vm3002 = vweird.f32 %v2996
        %vm3003 = vmor %vm3001, %vm3002
        %v3004 = vsel %vm3003, %v2996, %v3000
        %v3005 = vand.u32 2147483647, %v2798
        %vm3006 = vcmp.eq.f32.partialorder %v3005, 8.507059e+37
        %v3007 = vand.u32 %v2798, 2147483648
        %v3008 = vor.u32 1.1754944e-38, %v3007
        %v3009 = vsel %vm3006, %v3008, %v3004
        %v3010 = vmul.f32 1.0, %v3009
        %v3011 = vrcp.pop %v2799
        %v3012 = vmul.f32 %v2799, %v3011
        %v3013 = vsub.f32 1.0, %v3012
        %v3014 = vmul.f32 %v3011, %v3013
        %v3015 = vadd.f32 %v3011, %v3014
        %vm3016 = vweird.f32 %v2799
        %vm3017 = vweird.f32 %v3011
        %vm3018 = vmor %vm3016, %vm3017
        %v3019 = vsel %vm3018, %v3011, %v3015
        %v3020 = vand.u32 2147483647, %v2799
        %vm3021 = vcmp.eq.f32.partialorder %v3020, 8.507059e+37
        %v3022 = vand.u32 %v2799, 2147483648
        %v3023 = vor.u32 1.1754944e-38, %v3022
        %v3024 = vsel %vm3021, %v3023, %v3019
        %v3025 = vmul.f32 1.0, %v3024
        %v3026 = vrcp.pop %v2800
        %v3027 = vmul.f32 %v2800, %v3026
        %v3028 = vsub.f32 1.0, %v3027
        %v3029 = vmul.f32 %v3026, %v3028
        %v3030 = vadd.f32 %v3026, %v3029
        %vm3031 = vweird.f32 %v2800
        %vm3032 = vweird.f32 %v3026
        %vm3033 = vmor %vm3031, %vm3032
        %v3034 = vsel %vm3033, %v3026, %v3030
        %v3035 = vand.u32 2147483647, %v2800
        %vm3036 = vcmp.eq.f32.partialorder %v3035, 8.507059e+37
        %v3037 = vand.u32 %v2800, 2147483648
        %v3038 = vor.u32 1.1754944e-38, %v3037
        %v3039 = vsel %vm3036, %v3038, %v3034
        %v3040 = vmul.f32 1.0, %v3039
        %v3041 = vmul.f32 %v2698, %v2815
        %v3042 = vmul.f32 %v2700, %v2830
        %v3043 = vmul.f32 %v2703, %v2845
        %v3044 = vmul.f32 %v2705, %v2860
        %v3045 = vmul.f32 %v2708, %v2875
        %v3046 = vmul.f32 %v2710, %v2890
        %v3047 = vmul.f32 %v2713, %v2905
        %v3048 = vmul.f32 %v2715, %v2920
        %v3049 = vmul.f32 %v2718, %v2935
        %v3050 = vmul.f32 %v2720, %v2950
        %v3051 = vmul.f32 %v2723, %v2965
        %v3052 = vmul.f32 %v2725, %v2980
        %v3053 = vmul.f32 %v2728, %v2995
        %v3054 = vmul.f32 %v2730, %v3010
        %v3055 = vmul.f32 %v2733, %v3025
        %v3056 = vmul.f32 %v2735, %v3040
        %v3057 = vpack.c.bf16 %v3042, %v3041
        %v3058 = vpack.c.bf16 %v3044, %v3043
        %v3059 = vpack.c.bf16 %v3046, %v3045
        %v3060 = vpack.c.bf16 %v3048, %v3047
        %v3061 = vpack.c.bf16 %v3050, %v3049
        %v3062 = vpack.c.bf16 %v3052, %v3051
        %v3063 = vpack.c.bf16 %v3054, %v3053
        %v3064 = vpack.c.bf16 %v3056, %v3055
        %3065 = vmatpush.bf16.msra.mxu0 %v3064
        %3066 = vmatpush.bf16.msra.mxu0 %v3063
        %3067 = vmatpush.bf16.msra.mxu0 %v3062
        %3068 = vmatpush.bf16.msra.mxu0 %v3061
        %3069 = vmatpush.bf16.msra.mxu0 %v3060
        %3070 = vmatpush.bf16.msra.mxu0 %v3059
        %3071 = vmatpush.bf16.msra.mxu0 %v3058
        %3072 = vmatpush.bf16.msra.mxu0 %v3057
        %3073 = vmatmul.bf16.gmra.mxu0 %v2197
        %v3074 = vpop.f32.mrf.mxu0
        %v3075 = vadd.f32 %v2151, %v3074
        %v3076 = vpop.f32.mrf.mxu0
        %v3077 = vadd.f32 %v2155, %v3076
        %3078 = vmatmul.bf16.gmra.mxu0 %v2198
        %v3079 = vpop.f32.mrf.mxu0
        %v3080 = vadd.f32 %v2159, %v3079
        %v3081 = vpop.f32.mrf.mxu0
        %v3082 = vadd.f32 %v2163, %v3081
        %3083 = vmatmul.bf16.gmra.mxu0 %v2199
        %v3084 = vpop.f32.mrf.mxu0
        %v3085 = vadd.f32 %v2167, %v3084
        %v3086 = vpop.f32.mrf.mxu0
        %v3087 = vadd.f32 %v2171, %v3086
        %3088 = vmatmul.bf16.gmra.mxu0 %v2200
        %v3089 = vpop.f32.mrf.mxu0
        %v3090 = vadd.f32 %v2175, %v3089
        %v3091 = vpop.f32.mrf.mxu0
        %v3092 = vadd.f32 %v2179, %v3091
        %3093 = vdwg.mxu0
        %v3102 = vunpack.c.l.b16 %v1595
        %v3103 = vunpack.c.l.b16 %v1596
        %v3104 = vunpack.c.l.b16 %v1597
        %v3105 = vunpack.c.l.b16 %v1598
        %v3106 = vunpack.c.l.b16 %v1599
        %v3107 = vunpack.c.l.b16 %v1600
        %v3108 = vunpack.c.l.b16 %v1601
        %v3109 = vunpack.c.l.b16 %v1602
        %v3110 = vpack.c.b16 %v3103, %v3102
        %v3111 = vpack.c.b16 %v3105, %v3104
        %v3112 = vpack.c.b16 %v3107, %v3106
        %v3113 = vpack.c.b16 %v3109, %v3108
        %3118 = vmatpush.bf16.msra.mxu0 0
        %3119 = vmatpush.bf16.msra.mxu0 0
        %3120 = vmatpush.bf16.msra.mxu0 0
        %3121 = vmatpush.bf16.msra.mxu0 0
        %3122 = vmatpush.bf16.msra.mxu0 %v3113
        %3123 = vmatpush.bf16.msra.mxu0 %v3112
        %3124 = vmatpush.bf16.msra.mxu0 %v3111
        %3125 = vmatpush.bf16.msra.mxu0 %v3110
        %3126 = vmatmul.bf16.gmra.mxu0 %v1749
        %v3127 = vpop.f32.mrf.mxu0
        %v3128 = vadd.f32 %v1606, %v3127
        %v3129 = vpop.f32.mrf.mxu0
        %v3130 = vadd.f32 %v1611, %v3129
        %3131 = vmatmul.bf16.gmra.mxu0 %v1752
        %v3132 = vpop.f32.mrf.mxu0
        %v3133 = vadd.f32 %v1616, %v3132
        %v3134 = vpop.f32.mrf.mxu0
        %v3135 = vadd.f32 %v1621, %v3134
        %3136 = vmatmul.bf16.gmra.mxu0 %v1755
        %v3137 = vpop.f32.mrf.mxu0
        %v3138 = vadd.f32 %v1626, %v3137
        %v3139 = vpop.f32.mrf.mxu0
        %v3140 = vadd.f32 %v1631, %v3139
        %3141 = vmatmul.bf16.gmra.mxu0 %v1758
        %v3142 = vpop.f32.mrf.mxu0
        %v3143 = vadd.f32 %v1636, %v3142
        %v3144 = vpop.f32.mrf.mxu0
        %v3145 = vadd.f32 %v1641, %v3144
        %3146 = vmatmul.bf16.gmra.mxu0 %v1761
        %v3147 = vpop.f32.mrf.mxu0
        %v3148 = vadd.f32 %v1646, %v3147
        %v3149 = vpop.f32.mrf.mxu0
        %v3150 = vadd.f32 %v1651, %v3149
        %3151 = vmatmul.bf16.gmra.mxu0 %v1764
        %v3152 = vpop.f32.mrf.mxu0
        %v3153 = vadd.f32 %v1656, %v3152
        %v3154 = vpop.f32.mrf.mxu0
        %v3155 = vadd.f32 %v1661, %v3154
        %3156 = vmatmul.bf16.gmra.mxu0 %v1767
        %v3157 = vpop.f32.mrf.mxu0
        %v3158 = vadd.f32 %v1666, %v3157
        %v3159 = vpop.f32.mrf.mxu0
        %v3160 = vadd.f32 %v1671, %v3159
        %3161 = vmatmul.bf16.gmra.mxu0 %v1770
        %v3162 = vpop.f32.mrf.mxu0
        %v3163 = vadd.f32 %v1676, %v3162
        %v3164 = vpop.f32.mrf.mxu0
        %v3165 = vadd.f32 %v1681, %v3164
        %3166 = vdwg.mxu0
        %v3167 = vxor.u32 %v3128, 2147483648
        %v3168 = vxor.u32 %v3130, 2147483648
        %v3169 = vxor.u32 %v3133, 2147483648
        %v3170 = vxor.u32 %v3135, 2147483648
        %v3171 = vxor.u32 %v3138, 2147483648
        %v3172 = vxor.u32 %v3140, 2147483648
        %v3173 = vxor.u32 %v3143, 2147483648
        %v3174 = vxor.u32 %v3145, 2147483648
        %v3175 = vxor.u32 %v3148, 2147483648
        %v3176 = vxor.u32 %v3150, 2147483648
        %v3177 = vxor.u32 %v3153, 2147483648
        %v3178 = vxor.u32 %v3155, 2147483648
        %v3179 = vxor.u32 %v3158, 2147483648
        %v3180 = vxor.u32 %v3160, 2147483648
        %v3181 = vxor.u32 %v3163, 2147483648
        %v3182 = vxor.u32 %v3165, 2147483648
        %v3183 = vmul.f32 %v3167, 1.442695
        %v3184 = vpow.pop %v3183
        %v3185 = vmul.f32 %v3168, 1.442695
        %v3186 = vpow.pop %v3185
        %v3187 = vmul.f32 %v3169, 1.442695
        %v3188 = vpow.pop %v3187
        %v3189 = vmul.f32 %v3170, 1.442695
        %v3190 = vpow.pop %v3189
        %v3191 = vmul.f32 %v3171, 1.442695
        %v3192 = vpow.pop %v3191
        %v3193 = vmul.f32 %v3172, 1.442695
        %v3194 = vpow.pop %v3193
        %v3195 = vmul.f32 %v3173, 1.442695
        %v3196 = vpow.pop %v3195
        %v3197 = vmul.f32 %v3174, 1.442695
        %v3198 = vpow.pop %v3197
        %v3199 = vmul.f32 %v3175, 1.442695
        %v3200 = vpow.pop %v3199
        %v3201 = vmul.f32 %v3176, 1.442695
        %v3202 = vpow.pop %v3201
        %v3203 = vmul.f32 %v3177, 1.442695
        %v3204 = vpow.pop %v3203
        %v3205 = vmul.f32 %v3178, 1.442695
        %v3206 = vpow.pop %v3205
        %v3207 = vmul.f32 %v3179, 1.442695
        %v3208 = vpow.pop %v3207
        %v3209 = vmul.f32 %v3180, 1.442695
        %v3210 = vpow.pop %v3209
        %v3211 = vmul.f32 %v3181, 1.442695
        %v3212 = vpow.pop %v3211
        %v3213 = vmul.f32 %v3182, 1.442695
        %v3214 = vpow.pop %v3213
        %v3215 = vadd.f32 %v3184, 1.0
        %v3216 = vadd.f32 %v3186, 1.0
        %v3217 = vadd.f32 %v3188, 1.0
        %v3218 = vadd.f32 %v3190, 1.0
        %v3219 = vadd.f32 %v3192, 1.0
        %v3220 = vadd.f32 %v3194, 1.0
        %v3221 = vadd.f32 %v3196, 1.0
        %v3222 = vadd.f32 %v3198, 1.0
        %v3223 = vadd.f32 %v3200, 1.0
        %v3224 = vadd.f32 %v3202, 1.0
        %v3225 = vadd.f32 %v3204, 1.0
        %v3226 = vadd.f32 %v3206, 1.0
        %v3227 = vadd.f32 %v3208, 1.0
        %v3228 = vadd.f32 %v3210, 1.0
        %v3229 = vadd.f32 %v3212, 1.0
        %v3230 = vadd.f32 %v3214, 1.0
        %v3231 = vrcp.pop %v3215
        %v3232 = vmul.f32 %v3215, %v3231
        %v3233 = vsub.f32 1.0, %v3232
        %v3234 = vmul.f32 %v3231, %v3233
        %v3235 = vadd.f32 %v3231, %v3234
        %vm3236 = vweird.f32 %v3215
        %vm3237 = vweird.f32 %v3231
        %vm3238 = vmor %vm3236, %vm3237
        %v3239 = vsel %vm3238, %v3231, %v3235
        %v3240 = vand.u32 2147483647, %v3215
        %vm3241 = vcmp.eq.f32.partialorder %v3240, 8.507059e+37
        %v3242 = vand.u32 %v3215, 2147483648
        %v3243 = vor.u32 1.1754944e-38, %v3242
        %v3244 = vsel %vm3241, %v3243, %v3239
        %v3245 = vmul.f32 1.0, %v3244
        %v3246 = vrcp.pop %v3216
        %v3247 = vmul.f32 %v3216, %v3246
        %v3248 = vsub.f32 1.0, %v3247
        %v3249 = vmul.f32 %v3246, %v3248
        %v3250 = vadd.f32 %v3246, %v3249
        %vm3251 = vweird.f32 %v3216
        %vm3252 = vweird.f32 %v3246
        %vm3253 = vmor %vm3251, %vm3252
        %v3254 = vsel %vm3253, %v3246, %v3250
        %v3255 = vand.u32 2147483647, %v3216
        %vm3256 = vcmp.eq.f32.partialorder %v3255, 8.507059e+37
        %v3257 = vand.u32 %v3216, 2147483648
        %v3258 = vor.u32 1.1754944e-38, %v3257
        %v3259 = vsel %vm3256, %v3258, %v3254
        %v3260 = vmul.f32 1.0, %v3259
        %v3261 = vrcp.pop %v3217
        %v3262 = vmul.f32 %v3217, %v3261
        %v3263 = vsub.f32 1.0, %v3262
        %v3264 = vmul.f32 %v3261, %v3263
        %v3265 = vadd.f32 %v3261, %v3264
        %vm3266 = vweird.f32 %v3217
        %vm3267 = vweird.f32 %v3261
        %vm3268 = vmor %vm3266, %vm3267
        %v3269 = vsel %vm3268, %v3261, %v3265
        %v3270 = vand.u32 2147483647, %v3217
        %vm3271 = vcmp.eq.f32.partialorder %v3270, 8.507059e+37
        %v3272 = vand.u32 %v3217, 2147483648
        %v3273 = vor.u32 1.1754944e-38, %v3272
        %v3274 = vsel %vm3271, %v3273, %v3269
        %v3275 = vmul.f32 1.0, %v3274
        %v3276 = vrcp.pop %v3218
        %v3277 = vmul.f32 %v3218, %v3276
        %v3278 = vsub.f32 1.0, %v3277
        %v3279 = vmul.f32 %v3276, %v3278
        %v3280 = vadd.f32 %v3276, %v3279
        %vm3281 = vweird.f32 %v3218
        %vm3282 = vweird.f32 %v3276
        %vm3283 = vmor %vm3281, %vm3282
        %v3284 = vsel %vm3283, %v3276, %v3280
        %v3285 = vand.u32 2147483647, %v3218
        %vm3286 = vcmp.eq.f32.partialorder %v3285, 8.507059e+37
        %v3287 = vand.u32 %v3218, 2147483648
        %v3288 = vor.u32 1.1754944e-38, %v3287
        %v3289 = vsel %vm3286, %v3288, %v3284
        %v3290 = vmul.f32 1.0, %v3289
        %v3291 = vrcp.pop %v3219
        %v3292 = vmul.f32 %v3219, %v3291
        %v3293 = vsub.f32 1.0, %v3292
        %v3294 = vmul.f32 %v3291, %v3293
        %v3295 = vadd.f32 %v3291, %v3294
        %vm3296 = vweird.f32 %v3219
        %vm3297 = vweird.f32 %v3291
        %vm3298 = vmor %vm3296, %vm3297
        %v3299 = vsel %vm3298, %v3291, %v3295
        %v3300 = vand.u32 2147483647, %v3219
        %vm3301 = vcmp.eq.f32.partialorder %v3300, 8.507059e+37
        %v3302 = vand.u32 %v3219, 2147483648
        %v3303 = vor.u32 1.1754944e-38, %v3302
        %v3304 = vsel %vm3301, %v3303, %v3299
        %v3305 = vmul.f32 1.0, %v3304
        %v3306 = vrcp.pop %v3220
        %v3307 = vmul.f32 %v3220, %v3306
        %v3308 = vsub.f32 1.0, %v3307
        %v3309 = vmul.f32 %v3306, %v3308
        %v3310 = vadd.f32 %v3306, %v3309
        %vm3311 = vweird.f32 %v3220
        %vm3312 = vweird.f32 %v3306
        %vm3313 = vmor %vm3311, %vm3312
        %v3314 = vsel %vm3313, %v3306, %v3310
        %v3315 = vand.u32 2147483647, %v3220
        %vm3316 = vcmp.eq.f32.partialorder %v3315, 8.507059e+37
        %v3317 = vand.u32 %v3220, 2147483648
        %v3318 = vor.u32 1.1754944e-38, %v3317
        %v3319 = vsel %vm3316, %v3318, %v3314
        %v3320 = vmul.f32 1.0, %v3319
        %v3321 = vrcp.pop %v3221
        %v3322 = vmul.f32 %v3221, %v3321
        %v3323 = vsub.f32 1.0, %v3322
        %v3324 = vmul.f32 %v3321, %v3323
        %v3325 = vadd.f32 %v3321, %v3324
        %vm3326 = vweird.f32 %v3221
        %vm3327 = vweird.f32 %v3321
        %vm3328 = vmor %vm3326, %vm3327
        %v3329 = vsel %vm3328, %v3321, %v3325
        %v3330 = vand.u32 2147483647, %v3221
        %vm3331 = vcmp.eq.f32.partialorder %v3330, 8.507059e+37
        %v3332 = vand.u32 %v3221, 2147483648
        %v3333 = vor.u32 1.1754944e-38, %v3332
        %v3334 = vsel %vm3331, %v3333, %v3329
        %v3335 = vmul.f32 1.0, %v3334
        %v3336 = vrcp.pop %v3222
        %v3337 = vmul.f32 %v3222, %v3336
        %v3338 = vsub.f32 1.0, %v3337
        %v3339 = vmul.f32 %v3336, %v3338
        %v3340 = vadd.f32 %v3336, %v3339
        %vm3341 = vweird.f32 %v3222
        %vm3342 = vweird.f32 %v3336
        %vm3343 = vmor %vm3341, %vm3342
        %v3344 = vsel %vm3343, %v3336, %v3340
        %v3345 = vand.u32 2147483647, %v3222
        %vm3346 = vcmp.eq.f32.partialorder %v3345, 8.507059e+37
        %v3347 = vand.u32 %v3222, 2147483648
        %v3348 = vor.u32 1.1754944e-38, %v3347
        %v3349 = vsel %vm3346, %v3348, %v3344
        %v3350 = vmul.f32 1.0, %v3349
        %v3351 = vrcp.pop %v3223
        %v3352 = vmul.f32 %v3223, %v3351
        %v3353 = vsub.f32 1.0, %v3352
        %v3354 = vmul.f32 %v3351, %v3353
        %v3355 = vadd.f32 %v3351, %v3354
        %vm3356 = vweird.f32 %v3223
        %vm3357 = vweird.f32 %v3351
        %vm3358 = vmor %vm3356, %vm3357
        %v3359 = vsel %vm3358, %v3351, %v3355
        %v3360 = vand.u32 2147483647, %v3223
        %vm3361 = vcmp.eq.f32.partialorder %v3360, 8.507059e+37
        %v3362 = vand.u32 %v3223, 2147483648
        %v3363 = vor.u32 1.1754944e-38, %v3362
        %v3364 = vsel %vm3361, %v3363, %v3359
        %v3365 = vmul.f32 1.0, %v3364
        %v3366 = vrcp.pop %v3224
        %v3367 = vmul.f32 %v3224, %v3366
        %v3368 = vsub.f32 1.0, %v3367
        %v3369 = vmul.f32 %v3366, %v3368
        %v3370 = vadd.f32 %v3366, %v3369
        %vm3371 = vweird.f32 %v3224
        %vm3372 = vweird.f32 %v3366
        %vm3373 = vmor %vm3371, %vm3372
        %v3374 = vsel %vm3373, %v3366, %v3370
        %v3375 = vand.u32 2147483647, %v3224
        %vm3376 = vcmp.eq.f32.partialorder %v3375, 8.507059e+37
        %v3377 = vand.u32 %v3224, 2147483648
        %v3378 = vor.u32 1.1754944e-38, %v3377
        %v3379 = vsel %vm3376, %v3378, %v3374
        %v3380 = vmul.f32 1.0, %v3379
        %v3381 = vrcp.pop %v3225
        %v3382 = vmul.f32 %v3225, %v3381
        %v3383 = vsub.f32 1.0, %v3382
        %v3384 = vmul.f32 %v3381, %v3383
        %v3385 = vadd.f32 %v3381, %v3384
        %vm3386 = vweird.f32 %v3225
        %vm3387 = vweird.f32 %v3381
        %vm3388 = vmor %vm3386, %vm3387
        %v3389 = vsel %vm3388, %v3381, %v3385
        %v3390 = vand.u32 2147483647, %v3225
        %vm3391 = vcmp.eq.f32.partialorder %v3390, 8.507059e+37
        %v3392 = vand.u32 %v3225, 2147483648
        %v3393 = vor.u32 1.1754944e-38, %v3392
        %v3394 = vsel %vm3391, %v3393, %v3389
        %v3395 = vmul.f32 1.0, %v3394
        %v3396 = vrcp.pop %v3226
        %v3397 = vmul.f32 %v3226, %v3396
        %v3398 = vsub.f32 1.0, %v3397
        %v3399 = vmul.f32 %v3396, %v3398
        %v3400 = vadd.f32 %v3396, %v3399
        %vm3401 = vweird.f32 %v3226
        %vm3402 = vweird.f32 %v3396
        %vm3403 = vmor %vm3401, %vm3402
        %v3404 = vsel %vm3403, %v3396, %v3400
        %v3405 = vand.u32 2147483647, %v3226
        %vm3406 = vcmp.eq.f32.partialorder %v3405, 8.507059e+37
        %v3407 = vand.u32 %v3226, 2147483648
        %v3408 = vor.u32 1.1754944e-38, %v3407
        %v3409 = vsel %vm3406, %v3408, %v3404
        %v3410 = vmul.f32 1.0, %v3409
        %v3411 = vrcp.pop %v3227
        %v3412 = vmul.f32 %v3227, %v3411
        %v3413 = vsub.f32 1.0, %v3412
        %v3414 = vmul.f32 %v3411, %v3413
        %v3415 = vadd.f32 %v3411, %v3414
        %vm3416 = vweird.f32 %v3227
        %vm3417 = vweird.f32 %v3411
        %vm3418 = vmor %vm3416, %vm3417
        %v3419 = vsel %vm3418, %v3411, %v3415
        %v3420 = vand.u32 2147483647, %v3227
        %vm3421 = vcmp.eq.f32.partialorder %v3420, 8.507059e+37
        %v3422 = vand.u32 %v3227, 2147483648
        %v3423 = vor.u32 1.1754944e-38, %v3422
        %v3424 = vsel %vm3421, %v3423, %v3419
        %v3425 = vmul.f32 1.0, %v3424
        %v3426 = vrcp.pop %v3228
        %v3427 = vmul.f32 %v3228, %v3426
        %v3428 = vsub.f32 1.0, %v3427
        %v3429 = vmul.f32 %v3426, %v3428
        %v3430 = vadd.f32 %v3426, %v3429
        %vm3431 = vweird.f32 %v3228
        %vm3432 = vweird.f32 %v3426
        %vm3433 = vmor %vm3431, %vm3432
        %v3434 = vsel %vm3433, %v3426, %v3430
        %v3435 = vand.u32 2147483647, %v3228
        %vm3436 = vcmp.eq.f32.partialorder %v3435, 8.507059e+37
        %v3437 = vand.u32 %v3228, 2147483648
        %v3438 = vor.u32 1.1754944e-38, %v3437
        %v3439 = vsel %vm3436, %v3438, %v3434
        %v3440 = vmul.f32 1.0, %v3439
        %v3441 = vrcp.pop %v3229
        %v3442 = vmul.f32 %v3229, %v3441
        %v3443 = vsub.f32 1.0, %v3442
        %v3444 = vmul.f32 %v3441, %v3443
        %v3445 = vadd.f32 %v3441, %v3444
        %vm3446 = vweird.f32 %v3229
        %vm3447 = vweird.f32 %v3441
        %vm3448 = vmor %vm3446, %vm3447
        %v3449 = vsel %vm3448, %v3441, %v3445
        %v3450 = vand.u32 2147483647, %v3229
        %vm3451 = vcmp.eq.f32.partialorder %v3450, 8.507059e+37
        %v3452 = vand.u32 %v3229, 2147483648
        %v3453 = vor.u32 1.1754944e-38, %v3452
        %v3454 = vsel %vm3451, %v3453, %v3449
        %v3455 = vmul.f32 1.0, %v3454
        %v3456 = vrcp.pop %v3230
        %v3457 = vmul.f32 %v3230, %v3456
        %v3458 = vsub.f32 1.0, %v3457
        %v3459 = vmul.f32 %v3456, %v3458
        %v3460 = vadd.f32 %v3456, %v3459
        %vm3461 = vweird.f32 %v3230
        %vm3462 = vweird.f32 %v3456
        %vm3463 = vmor %vm3461, %vm3462
        %v3464 = vsel %vm3463, %v3456, %v3460
        %v3465 = vand.u32 2147483647, %v3230
        %vm3466 = vcmp.eq.f32.partialorder %v3465, 8.507059e+37
        %v3467 = vand.u32 %v3230, 2147483648
        %v3468 = vor.u32 1.1754944e-38, %v3467
        %v3469 = vsel %vm3466, %v3468, %v3464
        %v3470 = vmul.f32 1.0, %v3469
        %v3471 = vmul.f32 %v3128, %v3245
        %v3472 = vmul.f32 %v3130, %v3260
        %v3473 = vmul.f32 %v3133, %v3275
        %v3474 = vmul.f32 %v3135, %v3290
        %v3475 = vmul.f32 %v3138, %v3305
        %v3476 = vmul.f32 %v3140, %v3320
        %v3477 = vmul.f32 %v3143, %v3335
        %v3478 = vmul.f32 %v3145, %v3350
        %v3479 = vmul.f32 %v3148, %v3365
        %v3480 = vmul.f32 %v3150, %v3380
        %v3481 = vmul.f32 %v3153, %v3395
        %v3482 = vmul.f32 %v3155, %v3410
        %v3483 = vmul.f32 %v3158, %v3425
        %v3484 = vmul.f32 %v3160, %v3440
        %v3485 = vmul.f32 %v3163, %v3455
        %v3486 = vmul.f32 %v3165, %v3470
        %v3487 = vpack.c.bf16 %v3472, %v3471
        %v3488 = vpack.c.bf16 %v3474, %v3473
        %v3489 = vpack.c.bf16 %v3476, %v3475
        %v3490 = vpack.c.bf16 %v3478, %v3477
        %v3491 = vpack.c.bf16 %v3480, %v3479
        %v3492 = vpack.c.bf16 %v3482, %v3481
        %v3493 = vpack.c.bf16 %v3484, %v3483
        %v3494 = vpack.c.bf16 %v3486, %v3485
        %3495 = vmatpush.bf16.msra.mxu0 %v3494
        %3496 = vmatpush.bf16.msra.mxu0 %v3493
        %3497 = vmatpush.bf16.msra.mxu0 %v3492
        %3498 = vmatpush.bf16.msra.mxu0 %v3491
        %3499 = vmatpush.bf16.msra.mxu0 %v3490
        %3500 = vmatpush.bf16.msra.mxu0 %v3489
        %3501 = vmatpush.bf16.msra.mxu0 %v3488
        %3502 = vmatpush.bf16.msra.mxu0 %v3487
        %3503 = vmatmul.bf16.gmra.mxu0 %v2197
        %v3504 = vpop.f32.mrf.mxu0
        %v3505 = vadd.f32 %v2151, %v3504
        %v3506 = vpop.f32.mrf.mxu0
        %v3507 = vadd.f32 %v2155, %v3506
        %3508 = vmatmul.bf16.gmra.mxu0 %v2198
        %v3509 = vpop.f32.mrf.mxu0
        %v3510 = vadd.f32 %v2159, %v3509
        %v3511 = vpop.f32.mrf.mxu0
        %v3512 = vadd.f32 %v2163, %v3511
        %3513 = vmatmul.bf16.gmra.mxu0 %v2199
        %v3514 = vpop.f32.mrf.mxu0
        %v3515 = vadd.f32 %v2167, %v3514
        %v3516 = vpop.f32.mrf.mxu0
        %v3517 = vadd.f32 %v2171, %v3516
        %3518 = vmatmul.bf16.gmra.mxu0 %v2200
        %v3519 = vpop.f32.mrf.mxu0
        %v3520 = vadd.f32 %v2175, %v3519
        %v3521 = vpop.f32.mrf.mxu0
        %v3522 = vadd.f32 %v2179, %v3521
        %3523 = vdwg.mxu0
        %v3524 = vadd.f32 %v826, %v2215
        %v3525 = vadd.f32 %v827, %v2217
        %v3526 = vadd.f32 %v828, %v2220
        %v3527 = vadd.f32 %v829, %v2222
        %v3528 = vadd.f32 %v830, %v2225
        %v3529 = vadd.f32 %v831, %v2227
        %v3530 = vadd.f32 %v832, %v2230
        %v3531 = vadd.f32 %v833, %v2232
        %v3532 = vadd.f32 %v834, %v2645
        %v3533 = vadd.f32 %v835, %v2647
        %v3534 = vadd.f32 %v836, %v2650
        %v3535 = vadd.f32 %v837, %v2652
        %v3536 = vadd.f32 %v838, %v2655
        %v3537 = vadd.f32 %v839, %v2657
        %v3538 = vadd.f32 %v840, %v2660
        %v3539 = vadd.f32 %v841, %v2662
        %v3540 = vadd.f32 %v842, %v3075
        %v3541 = vadd.f32 %v843, %v3077
        %v3542 = vadd.f32 %v844, %v3080
        %v3543 = vadd.f32 %v845, %v3082
        %v3544 = vadd.f32 %v846, %v3085
        %v3545 = vadd.f32 %v847, %v3087
        %v3546 = vadd.f32 %v848, %v3090
        %v3547 = vadd.f32 %v849, %v3092
        %v3548 = vadd.f32 %v850, %v3505
        %v3549 = vadd.f32 %v851, %v3507
        %v3550 = vadd.f32 %v852, %v3510
        %v3551 = vadd.f32 %v853, %v3512
        %v3552 = vadd.f32 %v854, %v3515
        %v3553 = vadd.f32 %v855, %v3517
        %v3554 = vadd.f32 %v856, %v3520
        %v3555 = vadd.f32 %v857, %v3522
        %3556 = vadd.xlane.f32.xlu0 %v3524
        %v3557 = vpop.xlane.xlu0 %3556
        %3558 = vadd.xlane.f32.xlu0 %v3525
        %v3559 = vpop.xlane.xlu0 %3558
        %3560 = vadd.xlane.f32.xlu0 %v3526
        %v3561 = vpop.xlane.xlu0 %3560
        %3562 = vadd.xlane.f32.xlu0 %v3527
        %v3563 = vpop.xlane.xlu0 %3562
        %3564 = vadd.xlane.f32.xlu0 %v3528
        %v3565 = vpop.xlane.xlu0 %3564
        %3566 = vadd.xlane.f32.xlu0 %v3529
        %v3567 = vpop.xlane.xlu0 %3566
        %3568 = vadd.xlane.f32.xlu0 %v3530
        %v3569 = vpop.xlane.xlu0 %3568
        %3570 = vadd.xlane.f32.xlu0 %v3531
        %v3571 = vpop.xlane.xlu0 %3570
        %3572 = vadd.xlane.f32.xlu0 %v3532
        %v3573 = vpop.xlane.xlu0 %3572
        %3574 = vadd.xlane.f32.xlu0 %v3533
        %v3575 = vpop.xlane.xlu0 %3574
        %3576 = vadd.xlane.f32.xlu0 %v3534
        %v3577 = vpop.xlane.xlu0 %3576
        %3578 = vadd.xlane.f32.xlu0 %v3535
        %v3579 = vpop.xlane.xlu0 %3578
        %3580 = vadd.xlane.f32.xlu0 %v3536
        %v3581 = vpop.xlane.xlu0 %3580
        %3582 = vadd.xlane.f32.xlu0 %v3537
        %v3583 = vpop.xlane.xlu0 %3582
        %3584 = vadd.xlane.f32.xlu0 %v3538
        %v3585 = vpop.xlane.xlu0 %3584
        %3586 = vadd.xlane.f32.xlu0 %v3539
        %v3587 = vpop.xlane.xlu0 %3586
        %3588 = vadd.xlane.f32.xlu0 %v3540
        %v3589 = vpop.xlane.xlu0 %3588
        %3590 = vadd.xlane.f32.xlu0 %v3541
        %v3591 = vpop.xlane.xlu0 %3590
        %3592 = vadd.xlane.f32.xlu0 %v3542
        %v3593 = vpop.xlane.xlu0 %3592
        %3594 = vadd.xlane.f32.xlu0 %v3543
        %v3595 = vpop.xlane.xlu0 %3594
        %3596 = vadd.xlane.f32.xlu0 %v3544
        %v3597 = vpop.xlane.xlu0 %3596
        %3598 = vadd.xlane.f32.xlu0 %v3545
        %v3599 = vpop.xlane.xlu0 %3598
        %3600 = vadd.xlane.f32.xlu0 %v3546
        %v3601 = vpop.xlane.xlu0 %3600
        %3602 = vadd.xlane.f32.xlu0 %v3547
        %v3603 = vpop.xlane.xlu0 %3602
        %3604 = vadd.xlane.f32.xlu0 %v3548
        %v3605 = vpop.xlane.xlu0 %3604
        %3606 = vadd.xlane.f32.xlu0 %v3549
        %v3607 = vpop.xlane.xlu0 %3606
        %3608 = vadd.xlane.f32.xlu0 %v3550
        %v3609 = vpop.xlane.xlu0 %3608
        %3610 = vadd.xlane.f32.xlu0 %v3551
        %v3611 = vpop.xlane.xlu0 %3610
        %3612 = vadd.xlane.f32.xlu0 %v3552
        %v3613 = vpop.xlane.xlu0 %3612
        %3614 = vadd.xlane.f32.xlu0 %v3553
        %v3615 = vpop.xlane.xlu0 %3614
        %3616 = vadd.xlane.f32.xlu0 %v3554
        %v3617 = vpop.xlane.xlu0 %3616
        %3618 = vadd.xlane.f32.xlu0 %v3555
        %v3619 = vpop.xlane.xlu0 %3618
        %v3620 = vmul.f32 %v3557, %v928
        %v3621 = vmul.f32 %v3559, %v928
        %v3622 = vmul.f32 %v3561, %v928
        %v3623 = vmul.f32 %v3563, %v928
        %v3624 = vmul.f32 %v3565, %v928
        %v3625 = vmul.f32 %v3567, %v928
        %v3626 = vmul.f32 %v3569, %v928
        %v3627 = vmul.f32 %v3571, %v928
        %v3628 = vmul.f32 %v3573, %v928
        %v3629 = vmul.f32 %v3575, %v928
        %v3630 = vmul.f32 %v3577, %v928
        %v3631 = vmul.f32 %v3579, %v928
        %v3632 = vmul.f32 %v3581, %v928
        %v3633 = vmul.f32 %v3583, %v928
        %v3634 = vmul.f32 %v3585, %v928
        %v3635 = vmul.f32 %v3587, %v928
        %v3636 = vmul.f32 %v3589, %v928
        %v3637 = vmul.f32 %v3591, %v928
        %v3638 = vmul.f32 %v3593, %v928
        %v3639 = vmul.f32 %v3595, %v928
        %v3640 = vmul.f32 %v3597, %v928
        %v3641 = vmul.f32 %v3599, %v928
        %v3642 = vmul.f32 %v3601, %v928
        %v3643 = vmul.f32 %v3603, %v928
        %v3644 = vmul.f32 %v3605, %v928
        %v3645 = vmul.f32 %v3607, %v928
        %v3646 = vmul.f32 %v3609, %v928
        %v3647 = vmul.f32 %v3611, %v928
        %v3648 = vmul.f32 %v3613, %v928
        %v3649 = vmul.f32 %v3615, %v928
        %v3650 = vmul.f32 %v3617, %v928
        %v3651 = vmul.f32 %v3619, %v928
        %v3652 = vsub.f32 %v3524, %v3620
        %v3653 = vsub.f32 %v3525, %v3621
        %v3654 = vsub.f32 %v3526, %v3622
        %v3655 = vsub.f32 %v3527, %v3623
        %v3656 = vsub.f32 %v3528, %v3624
        %v3657 = vsub.f32 %v3529, %v3625
        %v3658 = vsub.f32 %v3530, %v3626
        %v3659 = vsub.f32 %v3531, %v3627
        %v3660 = vsub.f32 %v3532, %v3628
        %v3661 = vsub.f32 %v3533, %v3629
        %v3662 = vsub.f32 %v3534, %v3630
        %v3663 = vsub.f32 %v3535, %v3631
        %v3664 = vsub.f32 %v3536, %v3632
        %v3665 = vsub.f32 %v3537, %v3633
        %v3666 = vsub.f32 %v3538, %v3634
        %v3667 = vsub.f32 %v3539, %v3635
        %v3668 = vsub.f32 %v3540, %v3636
        %v3669 = vsub.f32 %v3541, %v3637
        %v3670 = vsub.f32 %v3542, %v3638
        %v3671 = vsub.f32 %v3543, %v3639
        %v3672 = vsub.f32 %v3544, %v3640
        %v3673 = vsub.f32 %v3545, %v3641
        %v3674 = vsub.f32 %v3546, %v3642
        %v3675 = vsub.f32 %v3547, %v3643
        %v3676 = vsub.f32 %v3548, %v3644
        %v3677 = vsub.f32 %v3549, %v3645
        %v3678 = vsub.f32 %v3550, %v3646
        %v3679 = vsub.f32 %v3551, %v3647
        %v3680 = vsub.f32 %v3552, %v3648
        %v3681 = vsub.f32 %v3553, %v3649
        %v3682 = vsub.f32 %v3554, %v3650
        %v3683 = vsub.f32 %v3555, %v3651
        %v3684 = vmul.f32 %v3652, %v3652
        %v3685 = vmul.f32 %v3653, %v3653
        %v3686 = vmul.f32 %v3654, %v3654
        %v3687 = vmul.f32 %v3655, %v3655
        %v3688 = vmul.f32 %v3656, %v3656
        %v3689 = vmul.f32 %v3657, %v3657
        %v3690 = vmul.f32 %v3658, %v3658
        %v3691 = vmul.f32 %v3659, %v3659
        %v3692 = vmul.f32 %v3660, %v3660
        %v3693 = vmul.f32 %v3661, %v3661
        %v3694 = vmul.f32 %v3662, %v3662
        %v3695 = vmul.f32 %v3663, %v3663
        %v3696 = vmul.f32 %v3664, %v3664
        %v3697 = vmul.f32 %v3665, %v3665
        %v3698 = vmul.f32 %v3666, %v3666
        %v3699 = vmul.f32 %v3667, %v3667
        %v3700 = vmul.f32 %v3668, %v3668
        %v3701 = vmul.f32 %v3669, %v3669
        %v3702 = vmul.f32 %v3670, %v3670
        %v3703 = vmul.f32 %v3671, %v3671
        %v3704 = vmul.f32 %v3672, %v3672
        %v3705 = vmul.f32 %v3673, %v3673
        %v3706 = vmul.f32 %v3674, %v3674
        %v3707 = vmul.f32 %v3675, %v3675
        %v3708 = vmul.f32 %v3676, %v3676
        %v3709 = vmul.f32 %v3677, %v3677
        %v3710 = vmul.f32 %v3678, %v3678
        %v3711 = vmul.f32 %v3679, %v3679
        %v3712 = vmul.f32 %v3680, %v3680
        %v3713 = vmul.f32 %v3681, %v3681
        %v3714 = vmul.f32 %v3682, %v3682
        %v3715 = vmul.f32 %v3683, %v3683
        %3716 = vadd.xlane.f32.xlu0 %v3684
        %v3717 = vpop.xlane.xlu0 %3716
        %3718 = vadd.xlane.f32.xlu0 %v3685
        %v3719 = vpop.xlane.xlu0 %3718
        %3720 = vadd.xlane.f32.xlu0 %v3686
        %v3721 = vpop.xlane.xlu0 %3720
        %3722 = vadd.xlane.f32.xlu0 %v3687
        %v3723 = vpop.xlane.xlu0 %3722
        %3724 = vadd.xlane.f32.xlu0 %v3688
        %v3725 = vpop.xlane.xlu0 %3724
        %3726 = vadd.xlane.f32.xlu0 %v3689
        %v3727 = vpop.xlane.xlu0 %3726
        %3728 = vadd.xlane.f32.xlu0 %v3690
        %v3729 = vpop.xlane.xlu0 %3728
        %3730 = vadd.xlane.f32.xlu0 %v3691
        %v3731 = vpop.xlane.xlu0 %3730
        %3732 = vadd.xlane.f32.xlu0 %v3692
        %v3733 = vpop.xlane.xlu0 %3732
        %3734 = vadd.xlane.f32.xlu0 %v3693
        %v3735 = vpop.xlane.xlu0 %3734
        %3736 = vadd.xlane.f32.xlu0 %v3694
        %v3737 = vpop.xlane.xlu0 %3736
        %3738 = vadd.xlane.f32.xlu0 %v3695
        %v3739 = vpop.xlane.xlu0 %3738
        %3740 = vadd.xlane.f32.xlu0 %v3696
        %v3741 = vpop.xlane.xlu0 %3740
        %3742 = vadd.xlane.f32.xlu0 %v3697
        %v3743 = vpop.xlane.xlu0 %3742
        %3744 = vadd.xlane.f32.xlu0 %v3698
        %v3745 = vpop.xlane.xlu0 %3744
        %3746 = vadd.xlane.f32.xlu0 %v3699
        %v3747 = vpop.xlane.xlu0 %3746
        %3748 = vadd.xlane.f32.xlu0 %v3700
        %v3749 = vpop.xlane.xlu0 %3748
        %3750 = vadd.xlane.f32.xlu0 %v3701
        %v3751 = vpop.xlane.xlu0 %3750
        %3752 = vadd.xlane.f32.xlu0 %v3702
        %v3753 = vpop.xlane.xlu0 %3752
        %3754 = vadd.xlane.f32.xlu0 %v3703
        %v3755 = vpop.xlane.xlu0 %3754
        %3756 = vadd.xlane.f32.xlu0 %v3704
        %v3757 = vpop.xlane.xlu0 %3756
        %3758 = vadd.xlane.f32.xlu0 %v3705
        %v3759 = vpop.xlane.xlu0 %3758
        %3760 = vadd.xlane.f32.xlu0 %v3706
        %v3761 = vpop.xlane.xlu0 %3760
        %3762 = vadd.xlane.f32.xlu0 %v3707
        %v3763 = vpop.xlane.xlu0 %3762
        %3764 = vadd.xlane.f32.xlu0 %v3708
        %v3765 = vpop.xlane.xlu0 %3764
        %3766 = vadd.xlane.f32.xlu0 %v3709
        %v3767 = vpop.xlane.xlu0 %3766
        %3768 = vadd.xlane.f32.xlu0 %v3710
        %v3769 = vpop.xlane.xlu0 %3768
        %3770 = vadd.xlane.f32.xlu0 %v3711
        %v3771 = vpop.xlane.xlu0 %3770
        %3772 = vadd.xlane.f32.xlu0 %v3712
        %v3773 = vpop.xlane.xlu0 %3772
        %3774 = vadd.xlane.f32.xlu0 %v3713
        %v3775 = vpop.xlane.xlu0 %3774
        %3776 = vadd.xlane.f32.xlu0 %v3714
        %v3777 = vpop.xlane.xlu0 %3776
        %3778 = vadd.xlane.f32.xlu0 %v3715
        %v3779 = vpop.xlane.xlu0 %3778
        %v3780 = vmul.f32 %v3717, %v928
        %v3781 = vmul.f32 %v3719, %v928
        %v3782 = vmul.f32 %v3721, %v928
        %v3783 = vmul.f32 %v3723, %v928
        %v3784 = vmul.f32 %v3725, %v928
        %v3785 = vmul.f32 %v3727, %v928
        %v3786 = vmul.f32 %v3729, %v928
        %v3787 = vmul.f32 %v3731, %v928
        %v3788 = vmul.f32 %v3733, %v928
        %v3789 = vmul.f32 %v3735, %v928
        %v3790 = vmul.f32 %v3737, %v928
        %v3791 = vmul.f32 %v3739, %v928
        %v3792 = vmul.f32 %v3741, %v928
        %v3793 = vmul.f32 %v3743, %v928
        %v3794 = vmul.f32 %v3745, %v928
        %v3795 = vmul.f32 %v3747, %v928
        %v3796 = vmul.f32 %v3749, %v928
        %v3797 = vmul.f32 %v3751, %v928
        %v3798 = vmul.f32 %v3753, %v928
        %v3799 = vmul.f32 %v3755, %v928
        %v3800 = vmul.f32 %v3757, %v928
        %v3801 = vmul.f32 %v3759, %v928
        %v3802 = vmul.f32 %v3761, %v928
        %v3803 = vmul.f32 %v3763, %v928
        %v3804 = vmul.f32 %v3765, %v928
        %v3805 = vmul.f32 %v3767, %v928
        %v3806 = vmul.f32 %v3769, %v928
        %v3807 = vmul.f32 %v3771, %v928
        %v3808 = vmul.f32 %v3773, %v928
        %v3809 = vmul.f32 %v3775, %v928
        %v3810 = vmul.f32 %v3777, %v928
        %v3811 = vmul.f32 %v3779, %v928
        %v3812 = vadd.f32 %v3780, 1e-05
        %v3813 = vadd.f32 %v3781, 1e-05
        %v3814 = vadd.f32 %v3782, 1e-05
        %v3815 = vadd.f32 %v3783, 1e-05
        %v3816 = vadd.f32 %v3784, 1e-05
        %v3817 = vadd.f32 %v3785, 1e-05
        %v3818 = vadd.f32 %v3786, 1e-05
        %v3819 = vadd.f32 %v3787, 1e-05
        %v3820 = vadd.f32 %v3788, 1e-05
        %v3821 = vadd.f32 %v3789, 1e-05
        %v3822 = vadd.f32 %v3790, 1e-05
        %v3823 = vadd.f32 %v3791, 1e-05
        %v3824 = vadd.f32 %v3792, 1e-05
        %v3825 = vadd.f32 %v3793, 1e-05
        %v3826 = vadd.f32 %v3794, 1e-05
        %v3827 = vadd.f32 %v3795, 1e-05
        %v3828 = vadd.f32 %v3796, 1e-05
        %v3829 = vadd.f32 %v3797, 1e-05
        %v3830 = vadd.f32 %v3798, 1e-05
        %v3831 = vadd.f32 %v3799, 1e-05
        %v3832 = vadd.f32 %v3800, 1e-05
        %v3833 = vadd.f32 %v3801, 1e-05
        %v3834 = vadd.f32 %v3802, 1e-05
        %v3835 = vadd.f32 %v3803, 1e-05
        %v3836 = vadd.f32 %v3804, 1e-05
        %v3837 = vadd.f32 %v3805, 1e-05
        %v3838 = vadd.f32 %v3806, 1e-05
        %v3839 = vadd.f32 %v3807, 1e-05
        %v3840 = vadd.f32 %v3808, 1e-05
        %v3841 = vadd.f32 %v3809, 1e-05
        %v3842 = vadd.f32 %v3810, 1e-05
        %v3843 = vadd.f32 %v3811, 1e-05
        %v3844 = vrsqrt.pop %v3812
        %v3845 = vmul.f32 %v3844, %v3812
        %v3846 = vmul.f32 %v3845, %v3844
        %v3847 = vmul.f32 0.5, %v3846
        %v3848 = vsub.f32 1.5, %v3847
        %v3849 = vmul.f32 %v3844, %v3848
        %vm3850 = vweird.f32 %v3812
        %vm3851 = vweird.f32 %v3844
        %vm3852 = vmor %vm3850, %vm3851
        %v3853 = vsel %vm3852, %v3844, %v3849
        %v3854 = vrsqrt.pop %v3813
        %v3855 = vmul.f32 %v3854, %v3813
        %v3856 = vmul.f32 %v3855, %v3854
        %v3857 = vmul.f32 0.5, %v3856
        %v3858 = vsub.f32 1.5, %v3857
        %v3859 = vmul.f32 %v3854, %v3858
        %vm3860 = vweird.f32 %v3813
        %vm3861 = vweird.f32 %v3854
        %vm3862 = vmor %vm3860, %vm3861
        %v3863 = vsel %vm3862, %v3854, %v3859
        %v3864 = vrsqrt.pop %v3814
        %v3865 = vmul.f32 %v3864, %v3814
        %v3866 = vmul.f32 %v3865, %v3864
        %v3867 = vmul.f32 0.5, %v3866
        %v3868 = vsub.f32 1.5, %v3867
        %v3869 = vmul.f32 %v3864, %v3868
        %vm3870 = vweird.f32 %v3814
        %vm3871 = vweird.f32 %v3864
        %vm3872 = vmor %vm3870, %vm3871
        %v3873 = vsel %vm3872, %v3864, %v3869
        %v3874 = vrsqrt.pop %v3815
        %v3875 = vmul.f32 %v3874, %v3815
        %v3876 = vmul.f32 %v3875, %v3874
        %v3877 = vmul.f32 0.5, %v3876
        %v3878 = vsub.f32 1.5, %v3877
        %v3879 = vmul.f32 %v3874, %v3878
        %vm3880 = vweird.f32 %v3815
        %vm3881 = vweird.f32 %v3874
        %vm3882 = vmor %vm3880, %vm3881
        %v3883 = vsel %vm3882, %v3874, %v3879
        %v3884 = vrsqrt.pop %v3816
        %v3885 = vmul.f32 %v3884, %v3816
        %v3886 = vmul.f32 %v3885, %v3884
        %v3887 = vmul.f32 0.5, %v3886
        %v3888 = vsub.f32 1.5, %v3887
        %v3889 = vmul.f32 %v3884, %v3888
        %vm3890 = vweird.f32 %v3816
        %vm3891 = vweird.f32 %v3884
        %vm3892 = vmor %vm3890, %vm3891
        %v3893 = vsel %vm3892, %v3884, %v3889
        %v3894 = vrsqrt.pop %v3817
        %v3895 = vmul.f32 %v3894, %v3817
        %v3896 = vmul.f32 %v3895, %v3894
        %v3897 = vmul.f32 0.5, %v3896
        %v3898 = vsub.f32 1.5, %v3897
        %v3899 = vmul.f32 %v3894, %v3898
        %vm3900 = vweird.f32 %v3817
        %vm3901 = vweird.f32 %v3894
        %vm3902 = vmor %vm3900, %vm3901
        %v3903 = vsel %vm3902, %v3894, %v3899
        %v3904 = vrsqrt.pop %v3818
        %v3905 = vmul.f32 %v3904, %v3818
        %v3906 = vmul.f32 %v3905, %v3904
        %v3907 = vmul.f32 0.5, %v3906
        %v3908 = vsub.f32 1.5, %v3907
        %v3909 = vmul.f32 %v3904, %v3908
        %vm3910 = vweird.f32 %v3818
        %vm3911 = vweird.f32 %v3904
        %vm3912 = vmor %vm3910, %vm3911
        %v3913 = vsel %vm3912, %v3904, %v3909
        %v3914 = vrsqrt.pop %v3819
        %v3915 = vmul.f32 %v3914, %v3819
        %v3916 = vmul.f32 %v3915, %v3914
        %v3917 = vmul.f32 0.5, %v3916
        %v3918 = vsub.f32 1.5, %v3917
        %v3919 = vmul.f32 %v3914, %v3918
        %vm3920 = vweird.f32 %v3819
        %vm3921 = vweird.f32 %v3914
        %vm3922 = vmor %vm3920, %vm3921
        %v3923 = vsel %vm3922, %v3914, %v3919
        %v3924 = vrsqrt.pop %v3820
        %v3925 = vmul.f32 %v3924, %v3820
        %v3926 = vmul.f32 %v3925, %v3924
        %v3927 = vmul.f32 0.5, %v3926
        %v3928 = vsub.f32 1.5, %v3927
        %v3929 = vmul.f32 %v3924, %v3928
        %vm3930 = vweird.f32 %v3820
        %vm3931 = vweird.f32 %v3924
        %vm3932 = vmor %vm3930, %vm3931
        %v3933 = vsel %vm3932, %v3924, %v3929
        %v3934 = vrsqrt.pop %v3821
        %v3935 = vmul.f32 %v3934, %v3821
        %v3936 = vmul.f32 %v3935, %v3934
        %v3937 = vmul.f32 0.5, %v3936
        %v3938 = vsub.f32 1.5, %v3937
        %v3939 = vmul.f32 %v3934, %v3938
        %vm3940 = vweird.f32 %v3821
        %vm3941 = vweird.f32 %v3934
        %vm3942 = vmor %vm3940, %vm3941
        %v3943 = vsel %vm3942, %v3934, %v3939
        %v3944 = vrsqrt.pop %v3822
        %v3945 = vmul.f32 %v3944, %v3822
        %v3946 = vmul.f32 %v3945, %v3944
        %v3947 = vmul.f32 0.5, %v3946
        %v3948 = vsub.f32 1.5, %v3947
        %v3949 = vmul.f32 %v3944, %v3948
        %vm3950 = vweird.f32 %v3822
        %vm3951 = vweird.f32 %v3944
        %vm3952 = vmor %vm3950, %vm3951
        %v3953 = vsel %vm3952, %v3944, %v3949
        %v3954 = vrsqrt.pop %v3823
        %v3955 = vmul.f32 %v3954, %v3823
        %v3956 = vmul.f32 %v3955, %v3954
        %v3957 = vmul.f32 0.5, %v3956
        %v3958 = vsub.f32 1.5, %v3957
        %v3959 = vmul.f32 %v3954, %v3958
        %vm3960 = vweird.f32 %v3823
        %vm3961 = vweird.f32 %v3954
        %vm3962 = vmor %vm3960, %vm3961
        %v3963 = vsel %vm3962, %v3954, %v3959
        %v3964 = vrsqrt.pop %v3824
        %v3965 = vmul.f32 %v3964, %v3824
        %v3966 = vmul.f32 %v3965, %v3964
        %v3967 = vmul.f32 0.5, %v3966
        %v3968 = vsub.f32 1.5, %v3967
        %v3969 = vmul.f32 %v3964, %v3968
        %vm3970 = vweird.f32 %v3824
        %vm3971 = vweird.f32 %v3964
        %vm3972 = vmor %vm3970, %vm3971
        %v3973 = vsel %vm3972, %v3964, %v3969
        %v3974 = vrsqrt.pop %v3825
        %v3975 = vmul.f32 %v3974, %v3825
        %v3976 = vmul.f32 %v3975, %v3974
        %v3977 = vmul.f32 0.5, %v3976
        %v3978 = vsub.f32 1.5, %v3977
        %v3979 = vmul.f32 %v3974, %v3978
        %vm3980 = vweird.f32 %v3825
        %vm3981 = vweird.f32 %v3974
        %vm3982 = vmor %vm3980, %vm3981
        %v3983 = vsel %vm3982, %v3974, %v3979
        %v3984 = vrsqrt.pop %v3826
        %v3985 = vmul.f32 %v3984, %v3826
        %v3986 = vmul.f32 %v3985, %v3984
        %v3987 = vmul.f32 0.5, %v3986
        %v3988 = vsub.f32 1.5, %v3987
        %v3989 = vmul.f32 %v3984, %v3988
        %vm3990 = vweird.f32 %v3826
        %vm3991 = vweird.f32 %v3984
        %vm3992 = vmor %vm3990, %vm3991
        %v3993 = vsel %vm3992, %v3984, %v3989
        %v3994 = vrsqrt.pop %v3827
        %v3995 = vmul.f32 %v3994, %v3827
        %v3996 = vmul.f32 %v3995, %v3994
        %v3997 = vmul.f32 0.5, %v3996
        %v3998 = vsub.f32 1.5, %v3997
        %v3999 = vmul.f32 %v3994, %v3998
        %vm4000 = vweird.f32 %v3827
        %vm4001 = vweird.f32 %v3994
        %vm4002 = vmor %vm4000, %vm4001
        %v4003 = vsel %vm4002, %v3994, %v3999
        %v4004 = vrsqrt.pop %v3828
        %v4005 = vmul.f32 %v4004, %v3828
        %v4006 = vmul.f32 %v4005, %v4004
        %v4007 = vmul.f32 0.5, %v4006
        %v4008 = vsub.f32 1.5, %v4007
        %v4009 = vmul.f32 %v4004, %v4008
        %vm4010 = vweird.f32 %v3828
        %vm4011 = vweird.f32 %v4004
        %vm4012 = vmor %vm4010, %vm4011
        %v4013 = vsel %vm4012, %v4004, %v4009
        %v4014 = vrsqrt.pop %v3829
        %v4015 = vmul.f32 %v4014, %v3829
        %v4016 = vmul.f32 %v4015, %v4014
        %v4017 = vmul.f32 0.5, %v4016
        %v4018 = vsub.f32 1.5, %v4017
        %v4019 = vmul.f32 %v4014, %v4018
        %vm4020 = vweird.f32 %v3829
        %vm4021 = vweird.f32 %v4014
        %vm4022 = vmor %vm4020, %vm4021
        %v4023 = vsel %vm4022, %v4014, %v4019
        %v4024 = vrsqrt.pop %v3830
        %v4025 = vmul.f32 %v4024, %v3830
        %v4026 = vmul.f32 %v4025, %v4024
        %v4027 = vmul.f32 0.5, %v4026
        %v4028 = vsub.f32 1.5, %v4027
        %v4029 = vmul.f32 %v4024, %v4028
        %vm4030 = vweird.f32 %v3830
        %vm4031 = vweird.f32 %v4024
        %vm4032 = vmor %vm4030, %vm4031
        %v4033 = vsel %vm4032, %v4024, %v4029
        %v4034 = vrsqrt.pop %v3831
        %v4035 = vmul.f32 %v4034, %v3831
        %v4036 = vmul.f32 %v4035, %v4034
        %v4037 = vmul.f32 0.5, %v4036
        %v4038 = vsub.f32 1.5, %v4037
        %v4039 = vmul.f32 %v4034, %v4038
        %vm4040 = vweird.f32 %v3831
        %vm4041 = vweird.f32 %v4034
        %vm4042 = vmor %vm4040, %vm4041
        %v4043 = vsel %vm4042, %v4034, %v4039
        %v4044 = vrsqrt.pop %v3832
        %v4045 = vmul.f32 %v4044, %v3832
        %v4046 = vmul.f32 %v4045, %v4044
        %v4047 = vmul.f32 0.5, %v4046
        %v4048 = vsub.f32 1.5, %v4047
        %v4049 = vmul.f32 %v4044, %v4048
        %vm4050 = vweird.f32 %v3832
        %vm4051 = vweird.f32 %v4044
        %vm4052 = vmor %vm4050, %vm4051
        %v4053 = vsel %vm4052, %v4044, %v4049
        %v4054 = vrsqrt.pop %v3833
        %v4055 = vmul.f32 %v4054, %v3833
        %v4056 = vmul.f32 %v4055, %v4054
        %v4057 = vmul.f32 0.5, %v4056
        %v4058 = vsub.f32 1.5, %v4057
        %v4059 = vmul.f32 %v4054, %v4058
        %vm4060 = vweird.f32 %v3833
        %vm4061 = vweird.f32 %v4054
        %vm4062 = vmor %vm4060, %vm4061
        %v4063 = vsel %vm4062, %v4054, %v4059
        %v4064 = vrsqrt.pop %v3834
        %v4065 = vmul.f32 %v4064, %v3834
        %v4066 = vmul.f32 %v4065, %v4064
        %v4067 = vmul.f32 0.5, %v4066
        %v4068 = vsub.f32 1.5, %v4067
        %v4069 = vmul.f32 %v4064, %v4068
        %vm4070 = vweird.f32 %v3834
        %vm4071 = vweird.f32 %v4064
        %vm4072 = vmor %vm4070, %vm4071
        %v4073 = vsel %vm4072, %v4064, %v4069
        %v4074 = vrsqrt.pop %v3835
        %v4075 = vmul.f32 %v4074, %v3835
        %v4076 = vmul.f32 %v4075, %v4074
        %v4077 = vmul.f32 0.5, %v4076
        %v4078 = vsub.f32 1.5, %v4077
        %v4079 = vmul.f32 %v4074, %v4078
        %vm4080 = vweird.f32 %v3835
        %vm4081 = vweird.f32 %v4074
        %vm4082 = vmor %vm4080, %vm4081
        %v4083 = vsel %vm4082, %v4074, %v4079
        %v4084 = vrsqrt.pop %v3836
        %v4085 = vmul.f32 %v4084, %v3836
        %v4086 = vmul.f32 %v4085, %v4084
        %v4087 = vmul.f32 0.5, %v4086
        %v4088 = vsub.f32 1.5, %v4087
        %v4089 = vmul.f32 %v4084, %v4088
        %vm4090 = vweird.f32 %v3836
        %vm4091 = vweird.f32 %v4084
        %vm4092 = vmor %vm4090, %vm4091
        %v4093 = vsel %vm4092, %v4084, %v4089
        %v4094 = vrsqrt.pop %v3837
        %v4095 = vmul.f32 %v4094, %v3837
        %v4096 = vmul.f32 %v4095, %v4094
        %v4097 = vmul.f32 0.5, %v4096
        %v4098 = vsub.f32 1.5, %v4097
        %v4099 = vmul.f32 %v4094, %v4098
        %vm4100 = vweird.f32 %v3837
        %vm4101 = vweird.f32 %v4094
        %vm4102 = vmor %vm4100, %vm4101
        %v4103 = vsel %vm4102, %v4094, %v4099
        %v4104 = vrsqrt.pop %v3838
        %v4105 = vmul.f32 %v4104, %v3838
        %v4106 = vmul.f32 %v4105, %v4104
        %v4107 = vmul.f32 0.5, %v4106
        %v4108 = vsub.f32 1.5, %v4107
        %v4109 = vmul.f32 %v4104, %v4108
        %vm4110 = vweird.f32 %v3838
        %vm4111 = vweird.f32 %v4104
        %vm4112 = vmor %vm4110, %vm4111
        %v4113 = vsel %vm4112, %v4104, %v4109
        %v4114 = vrsqrt.pop %v3839
        %v4115 = vmul.f32 %v4114, %v3839
        %v4116 = vmul.f32 %v4115, %v4114
        %v4117 = vmul.f32 0.5, %v4116
        %v4118 = vsub.f32 1.5, %v4117
        %v4119 = vmul.f32 %v4114, %v4118
        %vm4120 = vweird.f32 %v3839
        %vm4121 = vweird.f32 %v4114
        %vm4122 = vmor %vm4120, %vm4121
        %v4123 = vsel %vm4122, %v4114, %v4119
        %v4124 = vrsqrt.pop %v3840
        %v4125 = vmul.f32 %v4124, %v3840
        %v4126 = vmul.f32 %v4125, %v4124
        %v4127 = vmul.f32 0.5, %v4126
        %v4128 = vsub.f32 1.5, %v4127
        %v4129 = vmul.f32 %v4124, %v4128
        %vm4130 = vweird.f32 %v3840
        %vm4131 = vweird.f32 %v4124
        %vm4132 = vmor %vm4130, %vm4131
        %v4133 = vsel %vm4132, %v4124, %v4129
        %v4134 = vrsqrt.pop %v3841
        %v4135 = vmul.f32 %v4134, %v3841
        %v4136 = vmul.f32 %v4135, %v4134
        %v4137 = vmul.f32 0.5, %v4136
        %v4138 = vsub.f32 1.5, %v4137
        %v4139 = vmul.f32 %v4134, %v4138
        %vm4140 = vweird.f32 %v3841
        %vm4141 = vweird.f32 %v4134
        %vm4142 = vmor %vm4140, %vm4141
        %v4143 = vsel %vm4142, %v4134, %v4139
        %v4144 = vrsqrt.pop %v3842
        %v4145 = vmul.f32 %v4144, %v3842
        %v4146 = vmul.f32 %v4145, %v4144
        %v4147 = vmul.f32 0.5, %v4146
        %v4148 = vsub.f32 1.5, %v4147
        %v4149 = vmul.f32 %v4144, %v4148
        %vm4150 = vweird.f32 %v3842
        %vm4151 = vweird.f32 %v4144
        %vm4152 = vmor %vm4150, %vm4151
        %v4153 = vsel %vm4152, %v4144, %v4149
        %v4154 = vrsqrt.pop %v3843
        %v4155 = vmul.f32 %v4154, %v3843
        %v4156 = vmul.f32 %v4155, %v4154
        %v4157 = vmul.f32 0.5, %v4156
        %v4158 = vsub.f32 1.5, %v4157
        %v4159 = vmul.f32 %v4154, %v4158
        %vm4160 = vweird.f32 %v3843
        %vm4161 = vweird.f32 %v4154
        %vm4162 = vmor %vm4160, %vm4161
        %v4163 = vsel %vm4162, %v4154, %v4159
        %v4164 = vmul.f32 %v3652, %v3853
        %v4165 = vmul.f32 %v3653, %v3863
        %v4166 = vmul.f32 %v3654, %v3873
        %v4167 = vmul.f32 %v3655, %v3883
        %v4168 = vmul.f32 %v3656, %v3893
        %v4169 = vmul.f32 %v3657, %v3903
        %v4170 = vmul.f32 %v3658, %v3913
        %v4171 = vmul.f32 %v3659, %v3923
        %v4172 = vmul.f32 %v3660, %v3933
        %v4173 = vmul.f32 %v3661, %v3943
        %v4174 = vmul.f32 %v3662, %v3953
        %v4175 = vmul.f32 %v3663, %v3963
        %v4176 = vmul.f32 %v3664, %v3973
        %v4177 = vmul.f32 %v3665, %v3983
        %v4178 = vmul.f32 %v3666, %v3993
        %v4179 = vmul.f32 %v3667, %v4003
        %v4180 = vmul.f32 %v3668, %v4013
        %v4181 = vmul.f32 %v3669, %v4023
        %v4182 = vmul.f32 %v3670, %v4033
        %v4183 = vmul.f32 %v3671, %v4043
        %v4184 = vmul.f32 %v3672, %v4053
        %v4185 = vmul.f32 %v3673, %v4063
        %v4186 = vmul.f32 %v3674, %v4073
        %v4187 = vmul.f32 %v3675, %v4083
        %v4188 = vmul.f32 %v3676, %v4093
        %v4189 = vmul.f32 %v3677, %v4103
        %v4190 = vmul.f32 %v3678, %v4113
        %v4191 = vmul.f32 %v3679, %v4123
        %v4192 = vmul.f32 %v3680, %v4133
        %v4193 = vmul.f32 %v3681, %v4143
        %v4194 = vmul.f32 %v3682, %v4153
        %v4195 = vmul.f32 %v3683, %v4163
        %v4196 = vperm.slane %v723, 2
        %v4197 = vmul.f32 %v4164, %v4196
        %v4198 = vmul.f32 %v4165, %v4196
        %v4199 = vmul.f32 %v4166, %v4196
        %v4200 = vmul.f32 %v4167, %v4196
        %v4201 = vmul.f32 %v4168, %v4196
        %v4202 = vmul.f32 %v4169, %v4196
        %v4203 = vmul.f32 %v4170, %v4196
        %v4204 = vmul.f32 %v4171, %v4196
        %v4205 = vmul.f32 %v4172, %v4196
        %v4206 = vmul.f32 %v4173, %v4196
        %v4207 = vmul.f32 %v4174, %v4196
        %v4208 = vmul.f32 %v4175, %v4196
        %v4209 = vmul.f32 %v4176, %v4196
        %v4210 = vmul.f32 %v4177, %v4196
        %v4211 = vmul.f32 %v4178, %v4196
        %v4212 = vmul.f32 %v4179, %v4196
        %v4213 = vmul.f32 %v4180, %v4196
        %v4214 = vmul.f32 %v4181, %v4196
        %v4215 = vmul.f32 %v4182, %v4196
        %v4216 = vmul.f32 %v4183, %v4196
        %v4217 = vmul.f32 %v4184, %v4196
        %v4218 = vmul.f32 %v4185, %v4196
        %v4219 = vmul.f32 %v4186, %v4196
        %v4220 = vmul.f32 %v4187, %v4196
        %v4221 = vmul.f32 %v4188, %v4196
        %v4222 = vmul.f32 %v4189, %v4196
        %v4223 = vmul.f32 %v4190, %v4196
        %v4224 = vmul.f32 %v4191, %v4196
        %v4225 = vmul.f32 %v4192, %v4196
        %v4226 = vmul.f32 %v4193, %v4196
        %v4227 = vmul.f32 %v4194, %v4196
        %v4228 = vmul.f32 %v4195, %v4196
        %v4229 = vperm.slane %v723, 3
        %v4230 = vadd.f32 %v4197, %v4229
        %v4231 = vadd.f32 %v4198, %v4229
        %v4232 = vadd.f32 %v4199, %v4229
        %v4233 = vadd.f32 %v4200, %v4229
        %v4234 = vadd.f32 %v4201, %v4229
        %v4235 = vadd.f32 %v4202, %v4229
        %v4236 = vadd.f32 %v4203, %v4229
        %v4237 = vadd.f32 %v4204, %v4229
        %v4238 = vadd.f32 %v4205, %v4229
        %v4239 = vadd.f32 %v4206, %v4229
        %v4240 = vadd.f32 %v4207, %v4229
        %v4241 = vadd.f32 %v4208, %v4229
        %v4242 = vadd.f32 %v4209, %v4229
        %v4243 = vadd.f32 %v4210, %v4229
        %v4244 = vadd.f32 %v4211, %v4229
        %v4245 = vadd.f32 %v4212, %v4229
        %v4246 = vadd.f32 %v4213, %v4229
        %v4247 = vadd.f32 %v4214, %v4229
        %v4248 = vadd.f32 %v4215, %v4229
        %v4249 = vadd.f32 %v4216, %v4229
        %v4250 = vadd.f32 %v4217, %v4229
        %v4251 = vadd.f32 %v4218, %v4229
        %v4252 = vadd.f32 %v4219, %v4229
        %v4253 = vadd.f32 %v4220, %v4229
        %v4254 = vadd.f32 %v4221, %v4229
        %v4255 = vadd.f32 %v4222, %v4229
        %v4256 = vadd.f32 %v4223, %v4229
        %v4257 = vadd.f32 %v4224, %v4229
        %v4258 = vadd.f32 %v4225, %v4229
        %v4259 = vadd.f32 %v4226, %v4229
        %v4260 = vadd.f32 %v4227, %v4229
        %v4261 = vadd.f32 %v4228, %v4229
        %v4262 = vpack.c.bf16 %v4231, %v4230
        %v4263 = vpack.c.bf16 %v4233, %v4232
        %v4264 = vpack.c.bf16 %v4235, %v4234
        %v4265 = vpack.c.bf16 %v4237, %v4236
        %v4266 = vpack.c.bf16 %v4239, %v4238
        %v4267 = vpack.c.bf16 %v4241, %v4240
        %v4268 = vpack.c.bf16 %v4243, %v4242
        %v4269 = vpack.c.bf16 %v4245, %v4244
        %v4270 = vpack.c.bf16 %v4247, %v4246
        %v4271 = vpack.c.bf16 %v4249, %v4248
        %v4272 = vpack.c.bf16 %v4251, %v4250
        %v4273 = vpack.c.bf16 %v4253, %v4252
        %v4274 = vpack.c.bf16 %v4255, %v4254
        %v4275 = vpack.c.bf16 %v4257, %v4256
        %v4276 = vpack.c.bf16 %v4259, %v4258
        %v4277 = vpack.c.bf16 %v4261, %v4260
        %v4278 = vperm.slane %v723, 4
        %v4279 = vperm.slane %v724, 4
        %v4296 = vunpack.c.l.b16 %v776
        %v4297 = vunpack.c.h.b16 %v776
        %v4298 = vunpack.c.l.b16 %v777
        %v4299 = vunpack.c.h.b16 %v777
        %v4300 = vunpack.c.l.b16 %v778
        %v4301 = vunpack.c.h.b16 %v778
        %v4302 = vunpack.c.l.b16 %v779
        %v4303 = vunpack.c.h.b16 %v779
        %v4304 = vunpack.c.l.b16 %v780
        %v4305 = vunpack.c.h.b16 %v780
        %v4306 = vunpack.c.l.b16 %v781
        %v4307 = vunpack.c.h.b16 %v781
        %v4308 = vunpack.c.l.b16 %v782
        %v4309 = vunpack.c.h.b16 %v782
        %v4310 = vunpack.c.l.b16 %v783
        %v4311 = vunpack.c.h.b16 %v783
        %v4312 = vunpack.c.l.b16 %v784
        %v4313 = vunpack.c.h.b16 %v784
        %v4314 = vunpack.c.l.b16 %v785
        %v4315 = vunpack.c.h.b16 %v785
        %v4316 = vunpack.c.l.b16 %v786
        %v4317 = vunpack.c.h.b16 %v786
        %v4318 = vunpack.c.l.b16 %v787
        %v4319 = vunpack.c.h.b16 %v787
        %v4320 = vunpack.c.l.b16 %v788
        %v4321 = vunpack.c.h.b16 %v788
        %v4322 = vunpack.c.l.b16 %v789
        %v4323 = vunpack.c.h.b16 %v789
        %v4324 = vunpack.c.l.b16 %v790
        %v4325 = vunpack.c.h.b16 %v790
        %v4326 = vunpack.c.l.b16 %v791
        %v4327 = vunpack.c.h.b16 %v791
        %v4328 = vpack.c.b16 %v4298, %v4296
        %v4329 = vpack.c.b16 %v4299, %v4297
        %v4330 = vpack.c.b16 %v4302, %v4300
        %v4331 = vpack.c.b16 %v4303, %v4301
        %v4332 = vpack.c.b16 %v4306, %v4304
        %v4333 = vpack.c.b16 %v4307, %v4305
        %v4334 = vpack.c.b16 %v4310, %v4308
        %v4335 = vpack.c.b16 %v4311, %v4309
        %v4336 = vpack.c.b16 %v4314, %v4312
        %v4337 = vpack.c.b16 %v4315, %v4313
        %v4338 = vpack.c.b16 %v4318, %v4316
        %v4339 = vpack.c.b16 %v4319, %v4317
        %v4340 = vpack.c.b16 %v4322, %v4320
        %v4341 = vpack.c.b16 %v4323, %v4321
        %v4342 = vpack.c.b16 %v4326, %v4324
        %v4343 = vpack.c.b16 %v4327, %v4325
        %4360 = vmatpush.bf16.msra.mxu0 %v4342
        %4361 = vmatpush.bf16.msra.mxu0 %v4340
        %4362 = vmatpush.bf16.msra.mxu0 %v4338
        %4363 = vmatpush.bf16.msra.mxu0 %v4336
        %4364 = vmatpush.bf16.msra.mxu0 %v4334
        %4365 = vmatpush.bf16.msra.mxu0 %v4332
        %4366 = vmatpush.bf16.msra.mxu0 %v4330
        %4367 = vmatpush.bf16.msra.mxu0 %v4328
        %4368 = vmatmul.bf16.gmra.mxu0 %v4262
        %v4369 = vpop.f32.mrf.mxu0
        %v4370 = vadd.f32 %v4278, %v4369
        %v4371 = vpop.f32.mrf.mxu0
        %v4372 = vadd.f32 %v4278, %v4371
        %4373 = vmatmul.bf16.gmra.mxu0 %v4263
        %v4374 = vpop.f32.mrf.mxu0
        %v4375 = vadd.f32 %v4278, %v4374
        %v4376 = vpop.f32.mrf.mxu0
        %v4377 = vadd.f32 %v4278, %v4376
        %4378 = vmatmul.bf16.gmra.mxu0 %v4264
        %v4379 = vpop.f32.mrf.mxu0
        %v4380 = vadd.f32 %v4278, %v4379
        %v4381 = vpop.f32.mrf.mxu0
        %v4382 = vadd.f32 %v4278, %v4381
        %4383 = vmatmul.bf16.gmra.mxu0 %v4265
        %v4384 = vpop.f32.mrf.mxu0
        %v4385 = vadd.f32 %v4278, %v4384
        %v4386 = vpop.f32.mrf.mxu0
        %v4387 = vadd.f32 %v4278, %v4386
        %4388 = vmatmul.bf16.gmra.mxu0 %v4266
        %v4389 = vpop.f32.mrf.mxu0
        %v4390 = vadd.f32 %v4278, %v4389
        %v4391 = vpop.f32.mrf.mxu0
        %v4392 = vadd.f32 %v4278, %v4391
        %4393 = vmatmul.bf16.gmra.mxu0 %v4267
        %v4394 = vpop.f32.mrf.mxu0
        %v4395 = vadd.f32 %v4278, %v4394
        %v4396 = vpop.f32.mrf.mxu0
        %v4397 = vadd.f32 %v4278, %v4396
        %4398 = vmatmul.bf16.gmra.mxu0 %v4268
        %v4399 = vpop.f32.mrf.mxu0
        %v4400 = vadd.f32 %v4278, %v4399
        %v4401 = vpop.f32.mrf.mxu0
        %v4402 = vadd.f32 %v4278, %v4401
        %4403 = vmatmul.bf16.gmra.mxu0 %v4269
        %v4404 = vpop.f32.mrf.mxu0
        %v4405 = vadd.f32 %v4278, %v4404
        %v4406 = vpop.f32.mrf.mxu0
        %v4407 = vadd.f32 %v4278, %v4406
        %4408 = vmatmul.bf16.gmra.mxu0 %v4270
        %v4409 = vpop.f32.mrf.mxu0
        %v4410 = vadd.f32 %v4278, %v4409
        %v4411 = vpop.f32.mrf.mxu0
        %v4412 = vadd.f32 %v4278, %v4411
        %4413 = vmatmul.bf16.gmra.mxu0 %v4271
        %v4414 = vpop.f32.mrf.mxu0
        %v4415 = vadd.f32 %v4278, %v4414
        %v4416 = vpop.f32.mrf.mxu0
        %v4417 = vadd.f32 %v4278, %v4416
        %4418 = vmatmul.bf16.gmra.mxu0 %v4272
        %v4419 = vpop.f32.mrf.mxu0
        %v4420 = vadd.f32 %v4278, %v4419
        %v4421 = vpop.f32.mrf.mxu0
        %v4422 = vadd.f32 %v4278, %v4421
        %4423 = vmatmul.bf16.gmra.mxu0 %v4273
        %v4424 = vpop.f32.mrf.mxu0
        %v4425 = vadd.f32 %v4278, %v4424
        %v4426 = vpop.f32.mrf.mxu0
        %v4427 = vadd.f32 %v4278, %v4426
        %4428 = vmatmul.bf16.gmra.mxu0 %v4274
        %v4429 = vpop.f32.mrf.mxu0
        %v4430 = vadd.f32 %v4278, %v4429
        %v4431 = vpop.f32.mrf.mxu0
        %v4432 = vadd.f32 %v4278, %v4431
        %4433 = vmatmul.bf16.gmra.mxu0 %v4275
        %v4434 = vpop.f32.mrf.mxu0
        %v4435 = vadd.f32 %v4278, %v4434
        %v4436 = vpop.f32.mrf.mxu0
        %v4437 = vadd.f32 %v4278, %v4436
        %4438 = vmatmul.bf16.gmra.mxu0 %v4276
        %v4439 = vpop.f32.mrf.mxu0
        %v4440 = vadd.f32 %v4278, %v4439
        %v4441 = vpop.f32.mrf.mxu0
        %v4442 = vadd.f32 %v4278, %v4441
        %4443 = vmatmul.bf16.gmra.mxu0 %v4277
        %v4444 = vpop.f32.mrf.mxu0
        %v4445 = vadd.f32 %v4278, %v4444
        %v4446 = vpop.f32.mrf.mxu0
        %v4447 = vadd.f32 %v4278, %v4446
        %4448 = vdwg.mxu0
        %4449 = vmatpush.bf16.msra.mxu0 %v4343
        %4450 = vmatpush.bf16.msra.mxu0 %v4341
        %4451 = vmatpush.bf16.msra.mxu0 %v4339
        %4452 = vmatpush.bf16.msra.mxu0 %v4337
        %4453 = vmatpush.bf16.msra.mxu0 %v4335
        %4454 = vmatpush.bf16.msra.mxu0 %v4333
        %4455 = vmatpush.bf16.msra.mxu0 %v4331
        %4456 = vmatpush.bf16.msra.mxu0 %v4329
        %4457 = vmatmul.bf16.gmra.mxu0 %v4262
        %v4458 = vpop.f32.mrf.mxu0
        %v4459 = vadd.f32 %v4279, %v4458
        %v4460 = vpop.f32.mrf.mxu0
        %v4461 = vadd.f32 %v4279, %v4460
        %4462 = vmatmul.bf16.gmra.mxu0 %v4263
        %v4463 = vpop.f32.mrf.mxu0
        %v4464 = vadd.f32 %v4279, %v4463
        %v4465 = vpop.f32.mrf.mxu0
        %v4466 = vadd.f32 %v4279, %v4465
        %4467 = vmatmul.bf16.gmra.mxu0 %v4264
        %v4468 = vpop.f32.mrf.mxu0
        %v4469 = vadd.f32 %v4279, %v4468
        %v4470 = vpop.f32.mrf.mxu0
        %v4471 = vadd.f32 %v4279, %v4470
        %4472 = vmatmul.bf16.gmra.mxu0 %v4265
        %v4473 = vpop.f32.mrf.mxu0
        %v4474 = vadd.f32 %v4279, %v4473
        %v4475 = vpop.f32.mrf.mxu0
        %v4476 = vadd.f32 %v4279, %v4475
        %4477 = vmatmul.bf16.gmra.mxu0 %v4266
        %v4478 = vpop.f32.mrf.mxu0
        %v4479 = vadd.f32 %v4279, %v4478
        %v4480 = vpop.f32.mrf.mxu0
        %v4481 = vadd.f32 %v4279, %v4480
        %4482 = vmatmul.bf16.gmra.mxu0 %v4267
        %v4483 = vpop.f32.mrf.mxu0
        %v4484 = vadd.f32 %v4279, %v4483
        %v4485 = vpop.f32.mrf.mxu0
        %v4486 = vadd.f32 %v4279, %v4485
        %4487 = vmatmul.bf16.gmra.mxu0 %v4268
        %v4488 = vpop.f32.mrf.mxu0
        %v4489 = vadd.f32 %v4279, %v4488
        %v4490 = vpop.f32.mrf.mxu0
        %v4491 = vadd.f32 %v4279, %v4490
        %4492 = vmatmul.bf16.gmra.mxu0 %v4269
        %v4493 = vpop.f32.mrf.mxu0
        %v4494 = vadd.f32 %v4279, %v4493
        %v4495 = vpop.f32.mrf.mxu0
        %v4496 = vadd.f32 %v4279, %v4495
        %4497 = vmatmul.bf16.gmra.mxu0 %v4270
        %v4498 = vpop.f32.mrf.mxu0
        %v4499 = vadd.f32 %v4279, %v4498
        %v4500 = vpop.f32.mrf.mxu0
        %v4501 = vadd.f32 %v4279, %v4500
        %4502 = vmatmul.bf16.gmra.mxu0 %v4271
        %v4503 = vpop.f32.mrf.mxu0
        %v4504 = vadd.f32 %v4279, %v4503
        %v4505 = vpop.f32.mrf.mxu0
        %v4506 = vadd.f32 %v4279, %v4505
        %4507 = vmatmul.bf16.gmra.mxu0 %v4272
        %v4508 = vpop.f32.mrf.mxu0
        %v4509 = vadd.f32 %v4279, %v4508
        %v4510 = vpop.f32.mrf.mxu0
        %v4511 = vadd.f32 %v4279, %v4510
        %4512 = vmatmul.bf16.gmra.mxu0 %v4273
        %v4513 = vpop.f32.mrf.mxu0
        %v4514 = vadd.f32 %v4279, %v4513
        %v4515 = vpop.f32.mrf.mxu0
        %v4516 = vadd.f32 %v4279, %v4515
        %4517 = vmatmul.bf16.gmra.mxu0 %v4274
        %v4518 = vpop.f32.mrf.mxu0
        %v4519 = vadd.f32 %v4279, %v4518
        %v4520 = vpop.f32.mrf.mxu0
        %v4521 = vadd.f32 %v4279, %v4520
        %4522 = vmatmul.bf16.gmra.mxu0 %v4275
        %v4523 = vpop.f32.mrf.mxu0
        %v4524 = vadd.f32 %v4279, %v4523
        %v4525 = vpop.f32.mrf.mxu0
        %v4526 = vadd.f32 %v4279, %v4525
        %4527 = vmatmul.bf16.gmra.mxu0 %v4276
        %v4528 = vpop.f32.mrf.mxu0
        %v4529 = vadd.f32 %v4279, %v4528
        %v4530 = vpop.f32.mrf.mxu0
        %v4531 = vadd.f32 %v4279, %v4530
        %4532 = vmatmul.bf16.gmra.mxu0 %v4277
        %v4533 = vpop.f32.mrf.mxu0
        %v4534 = vadd.f32 %v4279, %v4533
        %v4535 = vpop.f32.mrf.mxu0
        %v4536 = vadd.f32 %v4279, %v4535
        %4537 = vdwg.mxu0
        %v4538 = vxor.u32 %v4370, 2147483648
        %v4539 = vxor.u32 %v4459, 2147483648
        %v4540 = vxor.u32 %v4372, 2147483648
        %v4541 = vxor.u32 %v4461, 2147483648
        %v4542 = vxor.u32 %v4375, 2147483648
        %v4543 = vxor.u32 %v4464, 2147483648
        %v4544 = vxor.u32 %v4377, 2147483648
        %v4545 = vxor.u32 %v4466, 2147483648
        %v4546 = vxor.u32 %v4380, 2147483648
        %v4547 = vxor.u32 %v4469, 2147483648
        %v4548 = vxor.u32 %v4382, 2147483648
        %v4549 = vxor.u32 %v4471, 2147483648
        %v4550 = vxor.u32 %v4385, 2147483648
        %v4551 = vxor.u32 %v4474, 2147483648
        %v4552 = vxor.u32 %v4387, 2147483648
        %v4553 = vxor.u32 %v4476, 2147483648
        %v4554 = vxor.u32 %v4390, 2147483648
        %v4555 = vxor.u32 %v4479, 2147483648
        %v4556 = vxor.u32 %v4392, 2147483648
        %v4557 = vxor.u32 %v4481, 2147483648
        %v4558 = vxor.u32 %v4395, 2147483648
        %v4559 = vxor.u32 %v4484, 2147483648
        %v4560 = vxor.u32 %v4397, 2147483648
        %v4561 = vxor.u32 %v4486, 2147483648
        %v4562 = vxor.u32 %v4400, 2147483648
        %v4563 = vxor.u32 %v4489, 2147483648
        %v4564 = vxor.u32 %v4402, 2147483648
        %v4565 = vxor.u32 %v4491, 2147483648
        %v4566 = vxor.u32 %v4405, 2147483648
        %v4567 = vxor.u32 %v4494, 2147483648
        %v4568 = vxor.u32 %v4407, 2147483648
        %v4569 = vxor.u32 %v4496, 2147483648
        %v4570 = vxor.u32 %v4410, 2147483648
        %v4571 = vxor.u32 %v4499, 2147483648
        %v4572 = vxor.u32 %v4412, 2147483648
        %v4573 = vxor.u32 %v4501, 2147483648
        %v4574 = vxor.u32 %v4415, 2147483648
        %v4575 = vxor.u32 %v4504, 2147483648
        %v4576 = vxor.u32 %v4417, 2147483648
        %v4577 = vxor.u32 %v4506, 2147483648
        %v4578 = vxor.u32 %v4420, 2147483648
        %v4579 = vxor.u32 %v4509, 2147483648
        %v4580 = vxor.u32 %v4422, 2147483648
        %v4581 = vxor.u32 %v4511, 2147483648
        %v4582 = vxor.u32 %v4425, 2147483648
        %v4583 = vxor.u32 %v4514, 2147483648
        %v4584 = vxor.u32 %v4427, 2147483648
        %v4585 = vxor.u32 %v4516, 2147483648
        %v4586 = vxor.u32 %v4430, 2147483648
        %v4587 = vxor.u32 %v4519, 2147483648
        %v4588 = vxor.u32 %v4432, 2147483648
        %v4589 = vxor.u32 %v4521, 2147483648
        %v4590 = vxor.u32 %v4435, 2147483648
        %v4591 = vxor.u32 %v4524, 2147483648
        %v4592 = vxor.u32 %v4437, 2147483648
        %v4593 = vxor.u32 %v4526, 2147483648
        %v4594 = vxor.u32 %v4440, 2147483648
        %v4595 = vxor.u32 %v4529, 2147483648
        %v4596 = vxor.u32 %v4442, 2147483648
        %v4597 = vxor.u32 %v4531, 2147483648
        %v4598 = vxor.u32 %v4445, 2147483648
        %v4599 = vxor.u32 %v4534, 2147483648
        %v4600 = vxor.u32 %v4447, 2147483648
        %v4601 = vxor.u32 %v4536, 2147483648
        %v4602 = vmul.f32 %v4538, 1.442695
        %v4603 = vpow.pop %v4602
        %v4604 = vmul.f32 %v4539, 1.442695
        %v4605 = vpow.pop %v4604
        %v4606 = vmul.f32 %v4540, 1.442695
        %v4607 = vpow.pop %v4606
        %v4608 = vmul.f32 %v4541, 1.442695
        %v4609 = vpow.pop %v4608
        %v4610 = vmul.f32 %v4542, 1.442695
        %v4611 = vpow.pop %v4610
        %v4612 = vmul.f32 %v4543, 1.442695
        %v4613 = vpow.pop %v4612
        %v4614 = vmul.f32 %v4544, 1.442695
        %v4615 = vpow.pop %v4614
        %v4616 = vmul.f32 %v4545, 1.442695
        %v4617 = vpow.pop %v4616
        %v4618 = vmul.f32 %v4546, 1.442695
        %v4619 = vpow.pop %v4618
        %v4620 = vmul.f32 %v4547, 1.442695
        %v4621 = vpow.pop %v4620
        %v4622 = vmul.f32 %v4548, 1.442695
        %v4623 = vpow.pop %v4622
        %v4624 = vmul.f32 %v4549, 1.442695
        %v4625 = vpow.pop %v4624
        %v4626 = vmul.f32 %v4550, 1.442695
        %v4627 = vpow.pop %v4626
        %v4628 = vmul.f32 %v4551, 1.442695
        %v4629 = vpow.pop %v4628
        %v4630 = vmul.f32 %v4552, 1.442695
        %v4631 = vpow.pop %v4630
        %v4632 = vmul.f32 %v4553, 1.442695
        %v4633 = vpow.pop %v4632
        %v4634 = vmul.f32 %v4554, 1.442695
        %v4635 = vpow.pop %v4634
        %v4636 = vmul.f32 %v4555, 1.442695
        %v4637 = vpow.pop %v4636
        %v4638 = vmul.f32 %v4556, 1.442695
        %v4639 = vpow.pop %v4638
        %v4640 = vmul.f32 %v4557, 1.442695
        %v4641 = vpow.pop %v4640
        %v4642 = vmul.f32 %v4558, 1.442695
        %v4643 = vpow.pop %v4642
        %v4644 = vmul.f32 %v4559, 1.442695
        %v4645 = vpow.pop %v4644
        %v4646 = vmul.f32 %v4560, 1.442695
        %v4647 = vpow.pop %v4646
        %v4648 = vmul.f32 %v4561, 1.442695
        %v4649 = vpow.pop %v4648
        %v4650 = vmul.f32 %v4562, 1.442695
        %v4651 = vpow.pop %v4650
        %v4652 = vmul.f32 %v4563, 1.442695
        %v4653 = vpow.pop %v4652
        %v4654 = vmul.f32 %v4564, 1.442695
        %v4655 = vpow.pop %v4654
        %v4656 = vmul.f32 %v4565, 1.442695
        %v4657 = vpow.pop %v4656
        %v4658 = vmul.f32 %v4566, 1.442695
        %v4659 = vpow.pop %v4658
        %v4660 = vmul.f32 %v4567, 1.442695
        %v4661 = vpow.pop %v4660
        %v4662 = vmul.f32 %v4568, 1.442695
        %v4663 = vpow.pop %v4662
        %v4664 = vmul.f32 %v4569, 1.442695
        %v4665 = vpow.pop %v4664
        %v4666 = vmul.f32 %v4570, 1.442695
        %v4667 = vpow.pop %v4666
        %v4668 = vmul.f32 %v4571, 1.442695
        %v4669 = vpow.pop %v4668
        %v4670 = vmul.f32 %v4572, 1.442695
        %v4671 = vpow.pop %v4670
        %v4672 = vmul.f32 %v4573, 1.442695
        %v4673 = vpow.pop %v4672
        %v4674 = vmul.f32 %v4574, 1.442695
        %v4675 = vpow.pop %v4674
        %v4676 = vmul.f32 %v4575, 1.442695
        %v4677 = vpow.pop %v4676
        %v4678 = vmul.f32 %v4576, 1.442695
        %v4679 = vpow.pop %v4678
        %v4680 = vmul.f32 %v4577, 1.442695
        %v4681 = vpow.pop %v4680
        %v4682 = vmul.f32 %v4578, 1.442695
        %v4683 = vpow.pop %v4682
        %v4684 = vmul.f32 %v4579, 1.442695
        %v4685 = vpow.pop %v4684
        %v4686 = vmul.f32 %v4580, 1.442695
        %v4687 = vpow.pop %v4686
        %v4688 = vmul.f32 %v4581, 1.442695
        %v4689 = vpow.pop %v4688
        %v4690 = vmul.f32 %v4582, 1.442695
        %v4691 = vpow.pop %v4690
        %v4692 = vmul.f32 %v4583, 1.442695
        %v4693 = vpow.pop %v4692
        %v4694 = vmul.f32 %v4584, 1.442695
        %v4695 = vpow.pop %v4694
        %v4696 = vmul.f32 %v4585, 1.442695
        %v4697 = vpow.pop %v4696
        %v4698 = vmul.f32 %v4586, 1.442695
        %v4699 = vpow.pop %v4698
        %v4700 = vmul.f32 %v4587, 1.442695
        %v4701 = vpow.pop %v4700
        %v4702 = vmul.f32 %v4588, 1.442695
        %v4703 = vpow.pop %v4702
        %v4704 = vmul.f32 %v4589, 1.442695
        %v4705 = vpow.pop %v4704
        %v4706 = vmul.f32 %v4590, 1.442695
        %v4707 = vpow.pop %v4706
        %v4708 = vmul.f32 %v4591, 1.442695
        %v4709 = vpow.pop %v4708
        %v4710 = vmul.f32 %v4592, 1.442695
        %v4711 = vpow.pop %v4710
        %v4712 = vmul.f32 %v4593, 1.442695
        %v4713 = vpow.pop %v4712
        %v4714 = vmul.f32 %v4594, 1.442695
        %v4715 = vpow.pop %v4714
        %v4716 = vmul.f32 %v4595, 1.442695
        %v4717 = vpow.pop %v4716
        %v4718 = vmul.f32 %v4596, 1.442695
        %v4719 = vpow.pop %v4718
        %v4720 = vmul.f32 %v4597, 1.442695
        %v4721 = vpow.pop %v4720
        %v4722 = vmul.f32 %v4598, 1.442695
        %v4723 = vpow.pop %v4722
        %v4724 = vmul.f32 %v4599, 1.442695
        %v4725 = vpow.pop %v4724
        %v4726 = vmul.f32 %v4600, 1.442695
        %v4727 = vpow.pop %v4726
        %v4728 = vmul.f32 %v4601, 1.442695
        %v4729 = vpow.pop %v4728
        %v4730 = vadd.f32 %v4603, 1.0
        %v4731 = vadd.f32 %v4605, 1.0
        %v4732 = vadd.f32 %v4607, 1.0
        %v4733 = vadd.f32 %v4609, 1.0
        %v4734 = vadd.f32 %v4611, 1.0
        %v4735 = vadd.f32 %v4613, 1.0
        %v4736 = vadd.f32 %v4615, 1.0
        %v4737 = vadd.f32 %v4617, 1.0
        %v4738 = vadd.f32 %v4619, 1.0
        %v4739 = vadd.f32 %v4621, 1.0
        %v4740 = vadd.f32 %v4623, 1.0
        %v4741 = vadd.f32 %v4625, 1.0
        %v4742 = vadd.f32 %v4627, 1.0
        %v4743 = vadd.f32 %v4629, 1.0
        %v4744 = vadd.f32 %v4631, 1.0
        %v4745 = vadd.f32 %v4633, 1.0
        %v4746 = vadd.f32 %v4635, 1.0
        %v4747 = vadd.f32 %v4637, 1.0
        %v4748 = vadd.f32 %v4639, 1.0
        %v4749 = vadd.f32 %v4641, 1.0
        %v4750 = vadd.f32 %v4643, 1.0
        %v4751 = vadd.f32 %v4645, 1.0
        %v4752 = vadd.f32 %v4647, 1.0
        %v4753 = vadd.f32 %v4649, 1.0
        %v4754 = vadd.f32 %v4651, 1.0
        %v4755 = vadd.f32 %v4653, 1.0
        %v4756 = vadd.f32 %v4655, 1.0
        %v4757 = vadd.f32 %v4657, 1.0
        %v4758 = vadd.f32 %v4659, 1.0
        %v4759 = vadd.f32 %v4661, 1.0
        %v4760 = vadd.f32 %v4663, 1.0
        %v4761 = vadd.f32 %v4665, 1.0
        %v4762 = vadd.f32 %v4667, 1.0
        %v4763 = vadd.f32 %v4669, 1.0
        %v4764 = vadd.f32 %v4671, 1.0
        %v4765 = vadd.f32 %v4673, 1.0
        %v4766 = vadd.f32 %v4675, 1.0
        %v4767 = vadd.f32 %v4677, 1.0
        %v4768 = vadd.f32 %v4679, 1.0
        %v4769 = vadd.f32 %v4681, 1.0
        %v4770 = vadd.f32 %v4683, 1.0
        %v4771 = vadd.f32 %v4685, 1.0
        %v4772 = vadd.f32 %v4687, 1.0
        %v4773 = vadd.f32 %v4689, 1.0
        %v4774 = vadd.f32 %v4691, 1.0
        %v4775 = vadd.f32 %v4693, 1.0
        %v4776 = vadd.f32 %v4695, 1.0
        %v4777 = vadd.f32 %v4697, 1.0
        %v4778 = vadd.f32 %v4699, 1.0
        %v4779 = vadd.f32 %v4701, 1.0
        %v4780 = vadd.f32 %v4703, 1.0
        %v4781 = vadd.f32 %v4705, 1.0
        %v4782 = vadd.f32 %v4707, 1.0
        %v4783 = vadd.f32 %v4709, 1.0
        %v4784 = vadd.f32 %v4711, 1.0
        %v4785 = vadd.f32 %v4713, 1.0
        %v4786 = vadd.f32 %v4715, 1.0
        %v4787 = vadd.f32 %v4717, 1.0
        %v4788 = vadd.f32 %v4719, 1.0
        %v4789 = vadd.f32 %v4721, 1.0
        %v4790 = vadd.f32 %v4723, 1.0
        %v4791 = vadd.f32 %v4725, 1.0
        %v4792 = vadd.f32 %v4727, 1.0
        %v4793 = vadd.f32 %v4729, 1.0
        %v4794 = vrcp.pop %v4730
        %v4795 = vmul.f32 %v4730, %v4794
        %v4796 = vsub.f32 1.0, %v4795
        %v4797 = vmul.f32 %v4794, %v4796
        %v4798 = vadd.f32 %v4794, %v4797
        %vm4799 = vweird.f32 %v4730
        %vm4800 = vweird.f32 %v4794
        %vm4801 = vmor %vm4799, %vm4800
        %v4802 = vsel %vm4801, %v4794, %v4798
        %v4803 = vand.u32 2147483647, %v4730
        %vm4804 = vcmp.eq.f32.partialorder %v4803, 8.507059e+37
        %v4805 = vand.u32 %v4730, 2147483648
        %v4806 = vor.u32 1.1754944e-38, %v4805
        %v4807 = vsel %vm4804, %v4806, %v4802
        %v4808 = vmul.f32 1.0, %v4807
        %v4809 = vrcp.pop %v4731
        %v4810 = vmul.f32 %v4731, %v4809
        %v4811 = vsub.f32 1.0, %v4810
        %v4812 = vmul.f32 %v4809, %v4811
        %v4813 = vadd.f32 %v4809, %v4812
        %vm4814 = vweird.f32 %v4731
        %vm4815 = vweird.f32 %v4809
        %vm4816 = vmor %vm4814, %vm4815
        %v4817 = vsel %vm4816, %v4809, %v4813
        %v4818 = vand.u32 2147483647, %v4731
        %vm4819 = vcmp.eq.f32.partialorder %v4818, 8.507059e+37
        %v4820 = vand.u32 %v4731, 2147483648
        %v4821 = vor.u32 1.1754944e-38, %v4820
        %v4822 = vsel %vm4819, %v4821, %v4817
        %v4823 = vmul.f32 1.0, %v4822
        %v4824 = vrcp.pop %v4732
        %v4825 = vmul.f32 %v4732, %v4824
        %v4826 = vsub.f32 1.0, %v4825
        %v4827 = vmul.f32 %v4824, %v4826
        %v4828 = vadd.f32 %v4824, %v4827
        %vm4829 = vweird.f32 %v4732
        %vm4830 = vweird.f32 %v4824
        %vm4831 = vmor %vm4829, %vm4830
        %v4832 = vsel %vm4831, %v4824, %v4828
        %v4833 = vand.u32 2147483647, %v4732
        %vm4834 = vcmp.eq.f32.partialorder %v4833, 8.507059e+37
        %v4835 = vand.u32 %v4732, 2147483648
        %v4836 = vor.u32 1.1754944e-38, %v4835
        %v4837 = vsel %vm4834, %v4836, %v4832
        %v4838 = vmul.f32 1.0, %v4837
        %v4839 = vrcp.pop %v4733
        %v4840 = vmul.f32 %v4733, %v4839
        %v4841 = vsub.f32 1.0, %v4840
        %v4842 = vmul.f32 %v4839, %v4841
        %v4843 = vadd.f32 %v4839, %v4842
        %vm4844 = vweird.f32 %v4733
        %vm4845 = vweird.f32 %v4839
        %vm4846 = vmor %vm4844, %vm4845
        %v4847 = vsel %vm4846, %v4839, %v4843
        %v4848 = vand.u32 2147483647, %v4733
        %vm4849 = vcmp.eq.f32.partialorder %v4848, 8.507059e+37
        %v4850 = vand.u32 %v4733, 2147483648
        %v4851 = vor.u32 1.1754944e-38, %v4850
        %v4852 = vsel %vm4849, %v4851, %v4847
        %v4853 = vmul.f32 1.0, %v4852
        %v4854 = vrcp.pop %v4734
        %v4855 = vmul.f32 %v4734, %v4854
        %v4856 = vsub.f32 1.0, %v4855
        %v4857 = vmul.f32 %v4854, %v4856
        %v4858 = vadd.f32 %v4854, %v4857
        %vm4859 = vweird.f32 %v4734
        %vm4860 = vweird.f32 %v4854
        %vm4861 = vmor %vm4859, %vm4860
        %v4862 = vsel %vm4861, %v4854, %v4858
        %v4863 = vand.u32 2147483647, %v4734
        %vm4864 = vcmp.eq.f32.partialorder %v4863, 8.507059e+37
        %v4865 = vand.u32 %v4734, 2147483648
        %v4866 = vor.u32 1.1754944e-38, %v4865
        %v4867 = vsel %vm4864, %v4866, %v4862
        %v4868 = vmul.f32 1.0, %v4867
        %v4869 = vrcp.pop %v4735
        %v4870 = vmul.f32 %v4735, %v4869
        %v4871 = vsub.f32 1.0, %v4870
        %v4872 = vmul.f32 %v4869, %v4871
        %v4873 = vadd.f32 %v4869, %v4872
        %vm4874 = vweird.f32 %v4735
        %vm4875 = vweird.f32 %v4869
        %vm4876 = vmor %vm4874, %vm4875
        %v4877 = vsel %vm4876, %v4869, %v4873
        %v4878 = vand.u32 2147483647, %v4735
        %vm4879 = vcmp.eq.f32.partialorder %v4878, 8.507059e+37
        %v4880 = vand.u32 %v4735, 2147483648
        %v4881 = vor.u32 1.1754944e-38, %v4880
        %v4882 = vsel %vm4879, %v4881, %v4877
        %v4883 = vmul.f32 1.0, %v4882
        %v4884 = vrcp.pop %v4736
        %v4885 = vmul.f32 %v4736, %v4884
        %v4886 = vsub.f32 1.0, %v4885
        %v4887 = vmul.f32 %v4884, %v4886
        %v4888 = vadd.f32 %v4884, %v4887
        %vm4889 = vweird.f32 %v4736
        %vm4890 = vweird.f32 %v4884
        %vm4891 = vmor %vm4889, %vm4890
        %v4892 = vsel %vm4891, %v4884, %v4888
        %v4893 = vand.u32 2147483647, %v4736
        %vm4894 = vcmp.eq.f32.partialorder %v4893, 8.507059e+37
        %v4895 = vand.u32 %v4736, 2147483648
        %v4896 = vor.u32 1.1754944e-38, %v4895
        %v4897 = vsel %vm4894, %v4896, %v4892
        %v4898 = vmul.f32 1.0, %v4897
        %v4899 = vrcp.pop %v4737
        %v4900 = vmul.f32 %v4737, %v4899
        %v4901 = vsub.f32 1.0, %v4900
        %v4902 = vmul.f32 %v4899, %v4901
        %v4903 = vadd.f32 %v4899, %v4902
        %vm4904 = vweird.f32 %v4737
        %vm4905 = vweird.f32 %v4899
        %vm4906 = vmor %vm4904, %vm4905
        %v4907 = vsel %vm4906, %v4899, %v4903
        %v4908 = vand.u32 2147483647, %v4737
        %vm4909 = vcmp.eq.f32.partialorder %v4908, 8.507059e+37
        %v4910 = vand.u32 %v4737, 2147483648
        %v4911 = vor.u32 1.1754944e-38, %v4910
        %v4912 = vsel %vm4909, %v4911, %v4907
        %v4913 = vmul.f32 1.0, %v4912
        %v4914 = vrcp.pop %v4738
        %v4915 = vmul.f32 %v4738, %v4914
        %v4916 = vsub.f32 1.0, %v4915
        %v4917 = vmul.f32 %v4914, %v4916
        %v4918 = vadd.f32 %v4914, %v4917
        %vm4919 = vweird.f32 %v4738
        %vm4920 = vweird.f32 %v4914
        %vm4921 = vmor %vm4919, %vm4920
        %v4922 = vsel %vm4921, %v4914, %v4918
        %v4923 = vand.u32 2147483647, %v4738
        %vm4924 = vcmp.eq.f32.partialorder %v4923, 8.507059e+37
        %v4925 = vand.u32 %v4738, 2147483648
        %v4926 = vor.u32 1.1754944e-38, %v4925
        %v4927 = vsel %vm4924, %v4926, %v4922
        %v4928 = vmul.f32 1.0, %v4927
        %v4929 = vrcp.pop %v4739
        %v4930 = vmul.f32 %v4739, %v4929
        %v4931 = vsub.f32 1.0, %v4930
        %v4932 = vmul.f32 %v4929, %v4931
        %v4933 = vadd.f32 %v4929, %v4932
        %vm4934 = vweird.f32 %v4739
        %vm4935 = vweird.f32 %v4929
        %vm4936 = vmor %vm4934, %vm4935
        %v4937 = vsel %vm4936, %v4929, %v4933
        %v4938 = vand.u32 2147483647, %v4739
        %vm4939 = vcmp.eq.f32.partialorder %v4938, 8.507059e+37
        %v4940 = vand.u32 %v4739, 2147483648
        %v4941 = vor.u32 1.1754944e-38, %v4940
        %v4942 = vsel %vm4939, %v4941, %v4937
        %v4943 = vmul.f32 1.0, %v4942
        %v4944 = vrcp.pop %v4740
        %v4945 = vmul.f32 %v4740, %v4944
        %v4946 = vsub.f32 1.0, %v4945
        %v4947 = vmul.f32 %v4944, %v4946
        %v4948 = vadd.f32 %v4944, %v4947
        %vm4949 = vweird.f32 %v4740
        %vm4950 = vweird.f32 %v4944
        %vm4951 = vmor %vm4949, %vm4950
        %v4952 = vsel %vm4951, %v4944, %v4948
        %v4953 = vand.u32 2147483647, %v4740
        %vm4954 = vcmp.eq.f32.partialorder %v4953, 8.507059e+37
        %v4955 = vand.u32 %v4740, 2147483648
        %v4956 = vor.u32 1.1754944e-38, %v4955
        %v4957 = vsel %vm4954, %v4956, %v4952
        %v4958 = vmul.f32 1.0, %v4957
        %v4959 = vrcp.pop %v4741
        %v4960 = vmul.f32 %v4741, %v4959
        %v4961 = vsub.f32 1.0, %v4960
        %v4962 = vmul.f32 %v4959, %v4961
        %v4963 = vadd.f32 %v4959, %v4962
        %vm4964 = vweird.f32 %v4741
        %vm4965 = vweird.f32 %v4959
        %vm4966 = vmor %vm4964, %vm4965
        %v4967 = vsel %vm4966, %v4959, %v4963
        %v4968 = vand.u32 2147483647, %v4741
        %vm4969 = vcmp.eq.f32.partialorder %v4968, 8.507059e+37
        %v4970 = vand.u32 %v4741, 2147483648
        %v4971 = vor.u32 1.1754944e-38, %v4970
        %v4972 = vsel %vm4969, %v4971, %v4967
        %v4973 = vmul.f32 1.0, %v4972
        %v4974 = vrcp.pop %v4742
        %v4975 = vmul.f32 %v4742, %v4974
        %v4976 = vsub.f32 1.0, %v4975
        %v4977 = vmul.f32 %v4974, %v4976
        %v4978 = vadd.f32 %v4974, %v4977
        %vm4979 = vweird.f32 %v4742
        %vm4980 = vweird.f32 %v4974
        %vm4981 = vmor %vm4979, %vm4980
        %v4982 = vsel %vm4981, %v4974, %v4978
        %v4983 = vand.u32 2147483647, %v4742
        %vm4984 = vcmp.eq.f32.partialorder %v4983, 8.507059e+37
        %v4985 = vand.u32 %v4742, 2147483648
        %v4986 = vor.u32 1.1754944e-38, %v4985
        %v4987 = vsel %vm4984, %v4986, %v4982
        %v4988 = vmul.f32 1.0, %v4987
        %v4989 = vrcp.pop %v4743
        %v4990 = vmul.f32 %v4743, %v4989
        %v4991 = vsub.f32 1.0, %v4990
        %v4992 = vmul.f32 %v4989, %v4991
        %v4993 = vadd.f32 %v4989, %v4992
        %vm4994 = vweird.f32 %v4743
        %vm4995 = vweird.f32 %v4989
        %vm4996 = vmor %vm4994, %vm4995
        %v4997 = vsel %vm4996, %v4989, %v4993
        %v4998 = vand.u32 2147483647, %v4743
        %vm4999 = vcmp.eq.f32.partialorder %v4998, 8.507059e+37
        %v5000 = vand.u32 %v4743, 2147483648
        %v5001 = vor.u32 1.1754944e-38, %v5000
        %v5002 = vsel %vm4999, %v5001, %v4997
        %v5003 = vmul.f32 1.0, %v5002
        %v5004 = vrcp.pop %v4744
        %v5005 = vmul.f32 %v4744, %v5004
        %v5006 = vsub.f32 1.0, %v5005
        %v5007 = vmul.f32 %v5004, %v5006
        %v5008 = vadd.f32 %v5004, %v5007
        %vm5009 = vweird.f32 %v4744
        %vm5010 = vweird.f32 %v5004
        %vm5011 = vmor %vm5009, %vm5010
        %v5012 = vsel %vm5011, %v5004, %v5008
        %v5013 = vand.u32 2147483647, %v4744
        %vm5014 = vcmp.eq.f32.partialorder %v5013, 8.507059e+37
        %v5015 = vand.u32 %v4744, 2147483648
        %v5016 = vor.u32 1.1754944e-38, %v5015
        %v5017 = vsel %vm5014, %v5016, %v5012
        %v5018 = vmul.f32 1.0, %v5017
        %v5019 = vrcp.pop %v4745
        %v5020 = vmul.f32 %v4745, %v5019
        %v5021 = vsub.f32 1.0, %v5020
        %v5022 = vmul.f32 %v5019, %v5021
        %v5023 = vadd.f32 %v5019, %v5022
        %vm5024 = vweird.f32 %v4745
        %vm5025 = vweird.f32 %v5019
        %vm5026 = vmor %vm5024, %vm5025
        %v5027 = vsel %vm5026, %v5019, %v5023
        %v5028 = vand.u32 2147483647, %v4745
        %vm5029 = vcmp.eq.f32.partialorder %v5028, 8.507059e+37
        %v5030 = vand.u32 %v4745, 2147483648
        %v5031 = vor.u32 1.1754944e-38, %v5030
        %v5032 = vsel %vm5029, %v5031, %v5027
        %v5033 = vmul.f32 1.0, %v5032
        %v5034 = vrcp.pop %v4746
        %v5035 = vmul.f32 %v4746, %v5034
        %v5036 = vsub.f32 1.0, %v5035
        %v5037 = vmul.f32 %v5034, %v5036
        %v5038 = vadd.f32 %v5034, %v5037
        %vm5039 = vweird.f32 %v4746
        %vm5040 = vweird.f32 %v5034
        %vm5041 = vmor %vm5039, %vm5040
        %v5042 = vsel %vm5041, %v5034, %v5038
        %v5043 = vand.u32 2147483647, %v4746
        %vm5044 = vcmp.eq.f32.partialorder %v5043, 8.507059e+37
        %v5045 = vand.u32 %v4746, 2147483648
        %v5046 = vor.u32 1.1754944e-38, %v5045
        %v5047 = vsel %vm5044, %v5046, %v5042
        %v5048 = vmul.f32 1.0, %v5047
        %v5049 = vrcp.pop %v4747
        %v5050 = vmul.f32 %v4747, %v5049
        %v5051 = vsub.f32 1.0, %v5050
        %v5052 = vmul.f32 %v5049, %v5051
        %v5053 = vadd.f32 %v5049, %v5052
        %vm5054 = vweird.f32 %v4747
        %vm5055 = vweird.f32 %v5049
        %vm5056 = vmor %vm5054, %vm5055
        %v5057 = vsel %vm5056, %v5049, %v5053
        %v5058 = vand.u32 2147483647, %v4747
        %vm5059 = vcmp.eq.f32.partialorder %v5058, 8.507059e+37
        %v5060 = vand.u32 %v4747, 2147483648
        %v5061 = vor.u32 1.1754944e-38, %v5060
        %v5062 = vsel %vm5059, %v5061, %v5057
        %v5063 = vmul.f32 1.0, %v5062
        %v5064 = vrcp.pop %v4748
        %v5065 = vmul.f32 %v4748, %v5064
        %v5066 = vsub.f32 1.0, %v5065
        %v5067 = vmul.f32 %v5064, %v5066
        %v5068 = vadd.f32 %v5064, %v5067
        %vm5069 = vweird.f32 %v4748
        %vm5070 = vweird.f32 %v5064
        %vm5071 = vmor %vm5069, %vm5070
        %v5072 = vsel %vm5071, %v5064, %v5068
        %v5073 = vand.u32 2147483647, %v4748
        %vm5074 = vcmp.eq.f32.partialorder %v5073, 8.507059e+37
        %v5075 = vand.u32 %v4748, 2147483648
        %v5076 = vor.u32 1.1754944e-38, %v5075
        %v5077 = vsel %vm5074, %v5076, %v5072
        %v5078 = vmul.f32 1.0, %v5077
        %v5079 = vrcp.pop %v4749
        %v5080 = vmul.f32 %v4749, %v5079
        %v5081 = vsub.f32 1.0, %v5080
        %v5082 = vmul.f32 %v5079, %v5081
        %v5083 = vadd.f32 %v5079, %v5082
        %vm5084 = vweird.f32 %v4749
        %vm5085 = vweird.f32 %v5079
        %vm5086 = vmor %vm5084, %vm5085
        %v5087 = vsel %vm5086, %v5079, %v5083
        %v5088 = vand.u32 2147483647, %v4749
        %vm5089 = vcmp.eq.f32.partialorder %v5088, 8.507059e+37
        %v5090 = vand.u32 %v4749, 2147483648
        %v5091 = vor.u32 1.1754944e-38, %v5090
        %v5092 = vsel %vm5089, %v5091, %v5087
        %v5093 = vmul.f32 1.0, %v5092
        %v5094 = vrcp.pop %v4750
        %v5095 = vmul.f32 %v4750, %v5094
        %v5096 = vsub.f32 1.0, %v5095
        %v5097 = vmul.f32 %v5094, %v5096
        %v5098 = vadd.f32 %v5094, %v5097
        %vm5099 = vweird.f32 %v4750
        %vm5100 = vweird.f32 %v5094
        %vm5101 = vmor %vm5099, %vm5100
        %v5102 = vsel %vm5101, %v5094, %v5098
        %v5103 = vand.u32 2147483647, %v4750
        %vm5104 = vcmp.eq.f32.partialorder %v5103, 8.507059e+37
        %v5105 = vand.u32 %v4750, 2147483648
        %v5106 = vor.u32 1.1754944e-38, %v5105
        %v5107 = vsel %vm5104, %v5106, %v5102
        %v5108 = vmul.f32 1.0, %v5107
        %v5109 = vrcp.pop %v4751
        %v5110 = vmul.f32 %v4751, %v5109
        %v5111 = vsub.f32 1.0, %v5110
        %v5112 = vmul.f32 %v5109, %v5111
        %v5113 = vadd.f32 %v5109, %v5112
        %vm5114 = vweird.f32 %v4751
        %vm5115 = vweird.f32 %v5109
        %vm5116 = vmor %vm5114, %vm5115
        %v5117 = vsel %vm5116, %v5109, %v5113
        %v5118 = vand.u32 2147483647, %v4751
        %vm5119 = vcmp.eq.f32.partialorder %v5118, 8.507059e+37
        %v5120 = vand.u32 %v4751, 2147483648
        %v5121 = vor.u32 1.1754944e-38, %v5120
        %v5122 = vsel %vm5119, %v5121, %v5117
        %v5123 = vmul.f32 1.0, %v5122
        %v5124 = vrcp.pop %v4752
        %v5125 = vmul.f32 %v4752, %v5124
        %v5126 = vsub.f32 1.0, %v5125
        %v5127 = vmul.f32 %v5124, %v5126
        %v5128 = vadd.f32 %v5124, %v5127
        %vm5129 = vweird.f32 %v4752
        %vm5130 = vweird.f32 %v5124
        %vm5131 = vmor %vm5129, %vm5130
        %v5132 = vsel %vm5131, %v5124, %v5128
        %v5133 = vand.u32 2147483647, %v4752
        %vm5134 = vcmp.eq.f32.partialorder %v5133, 8.507059e+37
        %v5135 = vand.u32 %v4752, 2147483648
        %v5136 = vor.u32 1.1754944e-38, %v5135
        %v5137 = vsel %vm5134, %v5136, %v5132
        %v5138 = vmul.f32 1.0, %v5137
        %v5139 = vrcp.pop %v4753
        %v5140 = vmul.f32 %v4753, %v5139
        %v5141 = vsub.f32 1.0, %v5140
        %v5142 = vmul.f32 %v5139, %v5141
        %v5143 = vadd.f32 %v5139, %v5142
        %vm5144 = vweird.f32 %v4753
        %vm5145 = vweird.f32 %v5139
        %vm5146 = vmor %vm5144, %vm5145
        %v5147 = vsel %vm5146, %v5139, %v5143
        %v5148 = vand.u32 2147483647, %v4753
        %vm5149 = vcmp.eq.f32.partialorder %v5148, 8.507059e+37
        %v5150 = vand.u32 %v4753, 2147483648
        %v5151 = vor.u32 1.1754944e-38, %v5150
        %v5152 = vsel %vm5149, %v5151, %v5147
        %v5153 = vmul.f32 1.0, %v5152
        %v5154 = vrcp.pop %v4754
        %v5155 = vmul.f32 %v4754, %v5154
        %v5156 = vsub.f32 1.0, %v5155
        %v5157 = vmul.f32 %v5154, %v5156
        %v5158 = vadd.f32 %v5154, %v5157
        %vm5159 = vweird.f32 %v4754
        %vm5160 = vweird.f32 %v5154
        %vm5161 = vmor %vm5159, %vm5160
        %v5162 = vsel %vm5161, %v5154, %v5158
        %v5163 = vand.u32 2147483647, %v4754
        %vm5164 = vcmp.eq.f32.partialorder %v5163, 8.507059e+37
        %v5165 = vand.u32 %v4754, 2147483648
        %v5166 = vor.u32 1.1754944e-38, %v5165
        %v5167 = vsel %vm5164, %v5166, %v5162
        %v5168 = vmul.f32 1.0, %v5167
        %v5169 = vrcp.pop %v4755
        %v5170 = vmul.f32 %v4755, %v5169
        %v5171 = vsub.f32 1.0, %v5170
        %v5172 = vmul.f32 %v5169, %v5171
        %v5173 = vadd.f32 %v5169, %v5172
        %vm5174 = vweird.f32 %v4755
        %vm5175 = vweird.f32 %v5169
        %vm5176 = vmor %vm5174, %vm5175
        %v5177 = vsel %vm5176, %v5169, %v5173
        %v5178 = vand.u32 2147483647, %v4755
        %vm5179 = vcmp.eq.f32.partialorder %v5178, 8.507059e+37
        %v5180 = vand.u32 %v4755, 2147483648
        %v5181 = vor.u32 1.1754944e-38, %v5180
        %v5182 = vsel %vm5179, %v5181, %v5177
        %v5183 = vmul.f32 1.0, %v5182
        %v5184 = vrcp.pop %v4756
        %v5185 = vmul.f32 %v4756, %v5184
        %v5186 = vsub.f32 1.0, %v5185
        %v5187 = vmul.f32 %v5184, %v5186
        %v5188 = vadd.f32 %v5184, %v5187
        %vm5189 = vweird.f32 %v4756
        %vm5190 = vweird.f32 %v5184
        %vm5191 = vmor %vm5189, %vm5190
        %v5192 = vsel %vm5191, %v5184, %v5188
        %v5193 = vand.u32 2147483647, %v4756
        %vm5194 = vcmp.eq.f32.partialorder %v5193, 8.507059e+37
        %v5195 = vand.u32 %v4756, 2147483648
        %v5196 = vor.u32 1.1754944e-38, %v5195
        %v5197 = vsel %vm5194, %v5196, %v5192
        %v5198 = vmul.f32 1.0, %v5197
        %v5199 = vrcp.pop %v4757
        %v5200 = vmul.f32 %v4757, %v5199
        %v5201 = vsub.f32 1.0, %v5200
        %v5202 = vmul.f32 %v5199, %v5201
        %v5203 = vadd.f32 %v5199, %v5202
        %vm5204 = vweird.f32 %v4757
        %vm5205 = vweird.f32 %v5199
        %vm5206 = vmor %vm5204, %vm5205
        %v5207 = vsel %vm5206, %v5199, %v5203
        %v5208 = vand.u32 2147483647, %v4757
        %vm5209 = vcmp.eq.f32.partialorder %v5208, 8.507059e+37
        %v5210 = vand.u32 %v4757, 2147483648
        %v5211 = vor.u32 1.1754944e-38, %v5210
        %v5212 = vsel %vm5209, %v5211, %v5207
        %v5213 = vmul.f32 1.0, %v5212
        %v5214 = vrcp.pop %v4758
        %v5215 = vmul.f32 %v4758, %v5214
        %v5216 = vsub.f32 1.0, %v5215
        %v5217 = vmul.f32 %v5214, %v5216
        %v5218 = vadd.f32 %v5214, %v5217
        %vm5219 = vweird.f32 %v4758
        %vm5220 = vweird.f32 %v5214
        %vm5221 = vmor %vm5219, %vm5220
        %v5222 = vsel %vm5221, %v5214, %v5218
        %v5223 = vand.u32 2147483647, %v4758
        %vm5224 = vcmp.eq.f32.partialorder %v5223, 8.507059e+37
        %v5225 = vand.u32 %v4758, 2147483648
        %v5226 = vor.u32 1.1754944e-38, %v5225
        %v5227 = vsel %vm5224, %v5226, %v5222
        %v5228 = vmul.f32 1.0, %v5227
        %v5229 = vrcp.pop %v4759
        %v5230 = vmul.f32 %v4759, %v5229
        %v5231 = vsub.f32 1.0, %v5230
        %v5232 = vmul.f32 %v5229, %v5231
        %v5233 = vadd.f32 %v5229, %v5232
        %vm5234 = vweird.f32 %v4759
        %vm5235 = vweird.f32 %v5229
        %vm5236 = vmor %vm5234, %vm5235
        %v5237 = vsel %vm5236, %v5229, %v5233
        %v5238 = vand.u32 2147483647, %v4759
        %vm5239 = vcmp.eq.f32.partialorder %v5238, 8.507059e+37
        %v5240 = vand.u32 %v4759, 2147483648
        %v5241 = vor.u32 1.1754944e-38, %v5240
        %v5242 = vsel %vm5239, %v5241, %v5237
        %v5243 = vmul.f32 1.0, %v5242
        %v5244 = vrcp.pop %v4760
        %v5245 = vmul.f32 %v4760, %v5244
        %v5246 = vsub.f32 1.0, %v5245
        %v5247 = vmul.f32 %v5244, %v5246
        %v5248 = vadd.f32 %v5244, %v5247
        %vm5249 = vweird.f32 %v4760
        %vm5250 = vweird.f32 %v5244
        %vm5251 = vmor %vm5249, %vm5250
        %v5252 = vsel %vm5251, %v5244, %v5248
        %v5253 = vand.u32 2147483647, %v4760
        %vm5254 = vcmp.eq.f32.partialorder %v5253, 8.507059e+37
        %v5255 = vand.u32 %v4760, 2147483648
        %v5256 = vor.u32 1.1754944e-38, %v5255
        %v5257 = vsel %vm5254, %v5256, %v5252
        %v5258 = vmul.f32 1.0, %v5257
        %v5259 = vrcp.pop %v4761
        %v5260 = vmul.f32 %v4761, %v5259
        %v5261 = vsub.f32 1.0, %v5260
        %v5262 = vmul.f32 %v5259, %v5261
        %v5263 = vadd.f32 %v5259, %v5262
        %vm5264 = vweird.f32 %v4761
        %vm5265 = vweird.f32 %v5259
        %vm5266 = vmor %vm5264, %vm5265
        %v5267 = vsel %vm5266, %v5259, %v5263
        %v5268 = vand.u32 2147483647, %v4761
        %vm5269 = vcmp.eq.f32.partialorder %v5268, 8.507059e+37
        %v5270 = vand.u32 %v4761, 2147483648
        %v5271 = vor.u32 1.1754944e-38, %v5270
        %v5272 = vsel %vm5269, %v5271, %v5267
        %v5273 = vmul.f32 1.0, %v5272
        %v5274 = vrcp.pop %v4762
        %v5275 = vmul.f32 %v4762, %v5274
        %v5276 = vsub.f32 1.0, %v5275
        %v5277 = vmul.f32 %v5274, %v5276
        %v5278 = vadd.f32 %v5274, %v5277
        %vm5279 = vweird.f32 %v4762
        %vm5280 = vweird.f32 %v5274
        %vm5281 = vmor %vm5279, %vm5280
        %v5282 = vsel %vm5281, %v5274, %v5278
        %v5283 = vand.u32 2147483647, %v4762
        %vm5284 = vcmp.eq.f32.partialorder %v5283, 8.507059e+37
        %v5285 = vand.u32 %v4762, 2147483648
        %v5286 = vor.u32 1.1754944e-38, %v5285
        %v5287 = vsel %vm5284, %v5286, %v5282
        %v5288 = vmul.f32 1.0, %v5287
        %v5289 = vrcp.pop %v4763
        %v5290 = vmul.f32 %v4763, %v5289
        %v5291 = vsub.f32 1.0, %v5290
        %v5292 = vmul.f32 %v5289, %v5291
        %v5293 = vadd.f32 %v5289, %v5292
        %vm5294 = vweird.f32 %v4763
        %vm5295 = vweird.f32 %v5289
        %vm5296 = vmor %vm5294, %vm5295
        %v5297 = vsel %vm5296, %v5289, %v5293
        %v5298 = vand.u32 2147483647, %v4763
        %vm5299 = vcmp.eq.f32.partialorder %v5298, 8.507059e+37
        %v5300 = vand.u32 %v4763, 2147483648
        %v5301 = vor.u32 1.1754944e-38, %v5300
        %v5302 = vsel %vm5299, %v5301, %v5297
        %v5303 = vmul.f32 1.0, %v5302
        %v5304 = vrcp.pop %v4764
        %v5305 = vmul.f32 %v4764, %v5304
        %v5306 = vsub.f32 1.0, %v5305
        %v5307 = vmul.f32 %v5304, %v5306
        %v5308 = vadd.f32 %v5304, %v5307
        %vm5309 = vweird.f32 %v4764
        %vm5310 = vweird.f32 %v5304
        %vm5311 = vmor %vm5309, %vm5310
        %v5312 = vsel %vm5311, %v5304, %v5308
        %v5313 = vand.u32 2147483647, %v4764
        %vm5314 = vcmp.eq.f32.partialorder %v5313, 8.507059e+37
        %v5315 = vand.u32 %v4764, 2147483648
        %v5316 = vor.u32 1.1754944e-38, %v5315
        %v5317 = vsel %vm5314, %v5316, %v5312
        %v5318 = vmul.f32 1.0, %v5317
        %v5319 = vrcp.pop %v4765
        %v5320 = vmul.f32 %v4765, %v5319
        %v5321 = vsub.f32 1.0, %v5320
        %v5322 = vmul.f32 %v5319, %v5321
        %v5323 = vadd.f32 %v5319, %v5322
        %vm5324 = vweird.f32 %v4765
        %vm5325 = vweird.f32 %v5319
        %vm5326 = vmor %vm5324, %vm5325
        %v5327 = vsel %vm5326, %v5319, %v5323
        %v5328 = vand.u32 2147483647, %v4765
        %vm5329 = vcmp.eq.f32.partialorder %v5328, 8.507059e+37
        %v5330 = vand.u32 %v4765, 2147483648
        %v5331 = vor.u32 1.1754944e-38, %v5330
        %v5332 = vsel %vm5329, %v5331, %v5327
        %v5333 = vmul.f32 1.0, %v5332
        %v5334 = vrcp.pop %v4766
        %v5335 = vmul.f32 %v4766, %v5334
        %v5336 = vsub.f32 1.0, %v5335
        %v5337 = vmul.f32 %v5334, %v5336
        %v5338 = vadd.f32 %v5334, %v5337
        %vm5339 = vweird.f32 %v4766
        %vm5340 = vweird.f32 %v5334
        %vm5341 = vmor %vm5339, %vm5340
        %v5342 = vsel %vm5341, %v5334, %v5338
        %v5343 = vand.u32 2147483647, %v4766
        %vm5344 = vcmp.eq.f32.partialorder %v5343, 8.507059e+37
        %v5345 = vand.u32 %v4766, 2147483648
        %v5346 = vor.u32 1.1754944e-38, %v5345
        %v5347 = vsel %vm5344, %v5346, %v5342
        %v5348 = vmul.f32 1.0, %v5347
        %v5349 = vrcp.pop %v4767
        %v5350 = vmul.f32 %v4767, %v5349
        %v5351 = vsub.f32 1.0, %v5350
        %v5352 = vmul.f32 %v5349, %v5351
        %v5353 = vadd.f32 %v5349, %v5352
        %vm5354 = vweird.f32 %v4767
        %vm5355 = vweird.f32 %v5349
        %vm5356 = vmor %vm5354, %vm5355
        %v5357 = vsel %vm5356, %v5349, %v5353
        %v5358 = vand.u32 2147483647, %v4767
        %vm5359 = vcmp.eq.f32.partialorder %v5358, 8.507059e+37
        %v5360 = vand.u32 %v4767, 2147483648
        %v5361 = vor.u32 1.1754944e-38, %v5360
        %v5362 = vsel %vm5359, %v5361, %v5357
        %v5363 = vmul.f32 1.0, %v5362
        %v5364 = vrcp.pop %v4768
        %v5365 = vmul.f32 %v4768, %v5364
        %v5366 = vsub.f32 1.0, %v5365
        %v5367 = vmul.f32 %v5364, %v5366
        %v5368 = vadd.f32 %v5364, %v5367
        %vm5369 = vweird.f32 %v4768
        %vm5370 = vweird.f32 %v5364
        %vm5371 = vmor %vm5369, %vm5370
        %v5372 = vsel %vm5371, %v5364, %v5368
        %v5373 = vand.u32 2147483647, %v4768
        %vm5374 = vcmp.eq.f32.partialorder %v5373, 8.507059e+37
        %v5375 = vand.u32 %v4768, 2147483648
        %v5376 = vor.u32 1.1754944e-38, %v5375
        %v5377 = vsel %vm5374, %v5376, %v5372
        %v5378 = vmul.f32 1.0, %v5377
        %v5379 = vrcp.pop %v4769
        %v5380 = vmul.f32 %v4769, %v5379
        %v5381 = vsub.f32 1.0, %v5380
        %v5382 = vmul.f32 %v5379, %v5381
        %v5383 = vadd.f32 %v5379, %v5382
        %vm5384 = vweird.f32 %v4769
        %vm5385 = vweird.f32 %v5379
        %vm5386 = vmor %vm5384, %vm5385
        %v5387 = vsel %vm5386, %v5379, %v5383
        %v5388 = vand.u32 2147483647, %v4769
        %vm5389 = vcmp.eq.f32.partialorder %v5388, 8.507059e+37
        %v5390 = vand.u32 %v4769, 2147483648
        %v5391 = vor.u32 1.1754944e-38, %v5390
        %v5392 = vsel %vm5389, %v5391, %v5387
        %v5393 = vmul.f32 1.0, %v5392
        %v5394 = vrcp.pop %v4770
        %v5395 = vmul.f32 %v4770, %v5394
        %v5396 = vsub.f32 1.0, %v5395
        %v5397 = vmul.f32 %v5394, %v5396
        %v5398 = vadd.f32 %v5394, %v5397
        %vm5399 = vweird.f32 %v4770
        %vm5400 = vweird.f32 %v5394
        %vm5401 = vmor %vm5399, %vm5400
        %v5402 = vsel %vm5401, %v5394, %v5398
        %v5403 = vand.u32 2147483647, %v4770
        %vm5404 = vcmp.eq.f32.partialorder %v5403, 8.507059e+37
        %v5405 = vand.u32 %v4770, 2147483648
        %v5406 = vor.u32 1.1754944e-38, %v5405
        %v5407 = vsel %vm5404, %v5406, %v5402
        %v5408 = vmul.f32 1.0, %v5407
        %v5409 = vrcp.pop %v4771
        %v5410 = vmul.f32 %v4771, %v5409
        %v5411 = vsub.f32 1.0, %v5410
        %v5412 = vmul.f32 %v5409, %v5411
        %v5413 = vadd.f32 %v5409, %v5412
        %vm5414 = vweird.f32 %v4771
        %vm5415 = vweird.f32 %v5409
        %vm5416 = vmor %vm5414, %vm5415
        %v5417 = vsel %vm5416, %v5409, %v5413
        %v5418 = vand.u32 2147483647, %v4771
        %vm5419 = vcmp.eq.f32.partialorder %v5418, 8.507059e+37
        %v5420 = vand.u32 %v4771, 2147483648
        %v5421 = vor.u32 1.1754944e-38, %v5420
        %v5422 = vsel %vm5419, %v5421, %v5417
        %v5423 = vmul.f32 1.0, %v5422
        %v5424 = vrcp.pop %v4772
        %v5425 = vmul.f32 %v4772, %v5424
        %v5426 = vsub.f32 1.0, %v5425
        %v5427 = vmul.f32 %v5424, %v5426
        %v5428 = vadd.f32 %v5424, %v5427
        %vm5429 = vweird.f32 %v4772
        %vm5430 = vweird.f32 %v5424
        %vm5431 = vmor %vm5429, %vm5430
        %v5432 = vsel %vm5431, %v5424, %v5428
        %v5433 = vand.u32 2147483647, %v4772
        %vm5434 = vcmp.eq.f32.partialorder %v5433, 8.507059e+37
        %v5435 = vand.u32 %v4772, 2147483648
        %v5436 = vor.u32 1.1754944e-38, %v5435
        %v5437 = vsel %vm5434, %v5436, %v5432
        %v5438 = vmul.f32 1.0, %v5437
        %v5439 = vrcp.pop %v4773
        %v5440 = vmul.f32 %v4773, %v5439
        %v5441 = vsub.f32 1.0, %v5440
        %v5442 = vmul.f32 %v5439, %v5441
        %v5443 = vadd.f32 %v5439, %v5442
        %vm5444 = vweird.f32 %v4773
        %vm5445 = vweird.f32 %v5439
        %vm5446 = vmor %vm5444, %vm5445
        %v5447 = vsel %vm5446, %v5439, %v5443
        %v5448 = vand.u32 2147483647, %v4773
        %vm5449 = vcmp.eq.f32.partialorder %v5448, 8.507059e+37
        %v5450 = vand.u32 %v4773, 2147483648
        %v5451 = vor.u32 1.1754944e-38, %v5450
        %v5452 = vsel %vm5449, %v5451, %v5447
        %v5453 = vmul.f32 1.0, %v5452
        %v5454 = vrcp.pop %v4774
        %v5455 = vmul.f32 %v4774, %v5454
        %v5456 = vsub.f32 1.0, %v5455
        %v5457 = vmul.f32 %v5454, %v5456
        %v5458 = vadd.f32 %v5454, %v5457
        %vm5459 = vweird.f32 %v4774
        %vm5460 = vweird.f32 %v5454
        %vm5461 = vmor %vm5459, %vm5460
        %v5462 = vsel %vm5461, %v5454, %v5458
        %v5463 = vand.u32 2147483647, %v4774
        %vm5464 = vcmp.eq.f32.partialorder %v5463, 8.507059e+37
        %v5465 = vand.u32 %v4774, 2147483648
        %v5466 = vor.u32 1.1754944e-38, %v5465
        %v5467 = vsel %vm5464, %v5466, %v5462
        %v5468 = vmul.f32 1.0, %v5467
        %v5469 = vrcp.pop %v4775
        %v5470 = vmul.f32 %v4775, %v5469
        %v5471 = vsub.f32 1.0, %v5470
        %v5472 = vmul.f32 %v5469, %v5471
        %v5473 = vadd.f32 %v5469, %v5472
        %vm5474 = vweird.f32 %v4775
        %vm5475 = vweird.f32 %v5469
        %vm5476 = vmor %vm5474, %vm5475
        %v5477 = vsel %vm5476, %v5469, %v5473
        %v5478 = vand.u32 2147483647, %v4775
        %vm5479 = vcmp.eq.f32.partialorder %v5478, 8.507059e+37
        %v5480 = vand.u32 %v4775, 2147483648
        %v5481 = vor.u32 1.1754944e-38, %v5480
        %v5482 = vsel %vm5479, %v5481, %v5477
        %v5483 = vmul.f32 1.0, %v5482
        %v5484 = vrcp.pop %v4776
        %v5485 = vmul.f32 %v4776, %v5484
        %v5486 = vsub.f32 1.0, %v5485
        %v5487 = vmul.f32 %v5484, %v5486
        %v5488 = vadd.f32 %v5484, %v5487
        %vm5489 = vweird.f32 %v4776
        %vm5490 = vweird.f32 %v5484
        %vm5491 = vmor %vm5489, %vm5490
        %v5492 = vsel %vm5491, %v5484, %v5488
        %v5493 = vand.u32 2147483647, %v4776
        %vm5494 = vcmp.eq.f32.partialorder %v5493, 8.507059e+37
        %v5495 = vand.u32 %v4776, 2147483648
        %v5496 = vor.u32 1.1754944e-38, %v5495
        %v5497 = vsel %vm5494, %v5496, %v5492
        %v5498 = vmul.f32 1.0, %v5497
        %v5499 = vrcp.pop %v4777
        %v5500 = vmul.f32 %v4777, %v5499
        %v5501 = vsub.f32 1.0, %v5500
        %v5502 = vmul.f32 %v5499, %v5501
        %v5503 = vadd.f32 %v5499, %v5502
        %vm5504 = vweird.f32 %v4777
        %vm5505 = vweird.f32 %v5499
        %vm5506 = vmor %vm5504, %vm5505
        %v5507 = vsel %vm5506, %v5499, %v5503
        %v5508 = vand.u32 2147483647, %v4777
        %vm5509 = vcmp.eq.f32.partialorder %v5508, 8.507059e+37
        %v5510 = vand.u32 %v4777, 2147483648
        %v5511 = vor.u32 1.1754944e-38, %v5510
        %v5512 = vsel %vm5509, %v5511, %v5507
        %v5513 = vmul.f32 1.0, %v5512
        %v5514 = vrcp.pop %v4778
        %v5515 = vmul.f32 %v4778, %v5514
        %v5516 = vsub.f32 1.0, %v5515
        %v5517 = vmul.f32 %v5514, %v5516
        %v5518 = vadd.f32 %v5514, %v5517
        %vm5519 = vweird.f32 %v4778
        %vm5520 = vweird.f32 %v5514
        %vm5521 = vmor %vm5519, %vm5520
        %v5522 = vsel %vm5521, %v5514, %v5518
        %v5523 = vand.u32 2147483647, %v4778
        %vm5524 = vcmp.eq.f32.partialorder %v5523, 8.507059e+37
        %v5525 = vand.u32 %v4778, 2147483648
        %v5526 = vor.u32 1.1754944e-38, %v5525
        %v5527 = vsel %vm5524, %v5526, %v5522
        %v5528 = vmul.f32 1.0, %v5527
        %v5529 = vrcp.pop %v4779
        %v5530 = vmul.f32 %v4779, %v5529
        %v5531 = vsub.f32 1.0, %v5530
        %v5532 = vmul.f32 %v5529, %v5531
        %v5533 = vadd.f32 %v5529, %v5532
        %vm5534 = vweird.f32 %v4779
        %vm5535 = vweird.f32 %v5529
        %vm5536 = vmor %vm5534, %vm5535
        %v5537 = vsel %vm5536, %v5529, %v5533
        %v5538 = vand.u32 2147483647, %v4779
        %vm5539 = vcmp.eq.f32.partialorder %v5538, 8.507059e+37
        %v5540 = vand.u32 %v4779, 2147483648
        %v5541 = vor.u32 1.1754944e-38, %v5540
        %v5542 = vsel %vm5539, %v5541, %v5537
        %v5543 = vmul.f32 1.0, %v5542
        %v5544 = vrcp.pop %v4780
        %v5545 = vmul.f32 %v4780, %v5544
        %v5546 = vsub.f32 1.0, %v5545
        %v5547 = vmul.f32 %v5544, %v5546
        %v5548 = vadd.f32 %v5544, %v5547
        %vm5549 = vweird.f32 %v4780
        %vm5550 = vweird.f32 %v5544
        %vm5551 = vmor %vm5549, %vm5550
        %v5552 = vsel %vm5551, %v5544, %v5548
        %v5553 = vand.u32 2147483647, %v4780
        %vm5554 = vcmp.eq.f32.partialorder %v5553, 8.507059e+37
        %v5555 = vand.u32 %v4780, 2147483648
        %v5556 = vor.u32 1.1754944e-38, %v5555
        %v5557 = vsel %vm5554, %v5556, %v5552
        %v5558 = vmul.f32 1.0, %v5557
        %v5559 = vrcp.pop %v4781
        %v5560 = vmul.f32 %v4781, %v5559
        %v5561 = vsub.f32 1.0, %v5560
        %v5562 = vmul.f32 %v5559, %v5561
        %v5563 = vadd.f32 %v5559, %v5562
        %vm5564 = vweird.f32 %v4781
        %vm5565 = vweird.f32 %v5559
        %vm5566 = vmor %vm5564, %vm5565
        %v5567 = vsel %vm5566, %v5559, %v5563
        %v5568 = vand.u32 2147483647, %v4781
        %vm5569 = vcmp.eq.f32.partialorder %v5568, 8.507059e+37
        %v5570 = vand.u32 %v4781, 2147483648
        %v5571 = vor.u32 1.1754944e-38, %v5570
        %v5572 = vsel %vm5569, %v5571, %v5567
        %v5573 = vmul.f32 1.0, %v5572
        %v5574 = vrcp.pop %v4782
        %v5575 = vmul.f32 %v4782, %v5574
        %v5576 = vsub.f32 1.0, %v5575
        %v5577 = vmul.f32 %v5574, %v5576
        %v5578 = vadd.f32 %v5574, %v5577
        %vm5579 = vweird.f32 %v4782
        %vm5580 = vweird.f32 %v5574
        %vm5581 = vmor %vm5579, %vm5580
        %v5582 = vsel %vm5581, %v5574, %v5578
        %v5583 = vand.u32 2147483647, %v4782
        %vm5584 = vcmp.eq.f32.partialorder %v5583, 8.507059e+37
        %v5585 = vand.u32 %v4782, 2147483648
        %v5586 = vor.u32 1.1754944e-38, %v5585
        %v5587 = vsel %vm5584, %v5586, %v5582
        %v5588 = vmul.f32 1.0, %v5587
        %v5589 = vrcp.pop %v4783
        %v5590 = vmul.f32 %v4783, %v5589
        %v5591 = vsub.f32 1.0, %v5590
        %v5592 = vmul.f32 %v5589, %v5591
        %v5593 = vadd.f32 %v5589, %v5592
        %vm5594 = vweird.f32 %v4783
        %vm5595 = vweird.f32 %v5589
        %vm5596 = vmor %vm5594, %vm5595
        %v5597 = vsel %vm5596, %v5589, %v5593
        %v5598 = vand.u32 2147483647, %v4783
        %vm5599 = vcmp.eq.f32.partialorder %v5598, 8.507059e+37
        %v5600 = vand.u32 %v4783, 2147483648
        %v5601 = vor.u32 1.1754944e-38, %v5600
        %v5602 = vsel %vm5599, %v5601, %v5597
        %v5603 = vmul.f32 1.0, %v5602
        %v5604 = vrcp.pop %v4784
        %v5605 = vmul.f32 %v4784, %v5604
        %v5606 = vsub.f32 1.0, %v5605
        %v5607 = vmul.f32 %v5604, %v5606
        %v5608 = vadd.f32 %v5604, %v5607
        %vm5609 = vweird.f32 %v4784
        %vm5610 = vweird.f32 %v5604
        %vm5611 = vmor %vm5609, %vm5610
        %v5612 = vsel %vm5611, %v5604, %v5608
        %v5613 = vand.u32 2147483647, %v4784
        %vm5614 = vcmp.eq.f32.partialorder %v5613, 8.507059e+37
        %v5615 = vand.u32 %v4784, 2147483648
        %v5616 = vor.u32 1.1754944e-38, %v5615
        %v5617 = vsel %vm5614, %v5616, %v5612
        %v5618 = vmul.f32 1.0, %v5617
        %v5619 = vrcp.pop %v4785
        %v5620 = vmul.f32 %v4785, %v5619
        %v5621 = vsub.f32 1.0, %v5620
        %v5622 = vmul.f32 %v5619, %v5621
        %v5623 = vadd.f32 %v5619, %v5622
        %vm5624 = vweird.f32 %v4785
        %vm5625 = vweird.f32 %v5619
        %vm5626 = vmor %vm5624, %vm5625
        %v5627 = vsel %vm5626, %v5619, %v5623
        %v5628 = vand.u32 2147483647, %v4785
        %vm5629 = vcmp.eq.f32.partialorder %v5628, 8.507059e+37
        %v5630 = vand.u32 %v4785, 2147483648
        %v5631 = vor.u32 1.1754944e-38, %v5630
        %v5632 = vsel %vm5629, %v5631, %v5627
        %v5633 = vmul.f32 1.0, %v5632
        %v5634 = vrcp.pop %v4786
        %v5635 = vmul.f32 %v4786, %v5634
        %v5636 = vsub.f32 1.0, %v5635
        %v5637 = vmul.f32 %v5634, %v5636
        %v5638 = vadd.f32 %v5634, %v5637
        %vm5639 = vweird.f32 %v4786
        %vm5640 = vweird.f32 %v5634
        %vm5641 = vmor %vm5639, %vm5640
        %v5642 = vsel %vm5641, %v5634, %v5638
        %v5643 = vand.u32 2147483647, %v4786
        %vm5644 = vcmp.eq.f32.partialorder %v5643, 8.507059e+37
        %v5645 = vand.u32 %v4786, 2147483648
        %v5646 = vor.u32 1.1754944e-38, %v5645
        %v5647 = vsel %vm5644, %v5646, %v5642
        %v5648 = vmul.f32 1.0, %v5647
        %v5649 = vrcp.pop %v4787
        %v5650 = vmul.f32 %v4787, %v5649
        %v5651 = vsub.f32 1.0, %v5650
        %v5652 = vmul.f32 %v5649, %v5651
        %v5653 = vadd.f32 %v5649, %v5652
        %vm5654 = vweird.f32 %v4787
        %vm5655 = vweird.f32 %v5649
        %vm5656 = vmor %vm5654, %vm5655
        %v5657 = vsel %vm5656, %v5649, %v5653
        %v5658 = vand.u32 2147483647, %v4787
        %vm5659 = vcmp.eq.f32.partialorder %v5658, 8.507059e+37
        %v5660 = vand.u32 %v4787, 2147483648
        %v5661 = vor.u32 1.1754944e-38, %v5660
        %v5662 = vsel %vm5659, %v5661, %v5657
        %v5663 = vmul.f32 1.0, %v5662
        %v5664 = vrcp.pop %v4788
        %v5665 = vmul.f32 %v4788, %v5664
        %v5666 = vsub.f32 1.0, %v5665
        %v5667 = vmul.f32 %v5664, %v5666
        %v5668 = vadd.f32 %v5664, %v5667
        %vm5669 = vweird.f32 %v4788
        %vm5670 = vweird.f32 %v5664
        %vm5671 = vmor %vm5669, %vm5670
        %v5672 = vsel %vm5671, %v5664, %v5668
        %v5673 = vand.u32 2147483647, %v4788
        %vm5674 = vcmp.eq.f32.partialorder %v5673, 8.507059e+37
        %v5675 = vand.u32 %v4788, 2147483648
        %v5676 = vor.u32 1.1754944e-38, %v5675
        %v5677 = vsel %vm5674, %v5676, %v5672
        %v5678 = vmul.f32 1.0, %v5677
        %v5679 = vrcp.pop %v4789
        %v5680 = vmul.f32 %v4789, %v5679
        %v5681 = vsub.f32 1.0, %v5680
        %v5682 = vmul.f32 %v5679, %v5681
        %v5683 = vadd.f32 %v5679, %v5682
        %vm5684 = vweird.f32 %v4789
        %vm5685 = vweird.f32 %v5679
        %vm5686 = vmor %vm5684, %vm5685
        %v5687 = vsel %vm5686, %v5679, %v5683
        %v5688 = vand.u32 2147483647, %v4789
        %vm5689 = vcmp.eq.f32.partialorder %v5688, 8.507059e+37
        %v5690 = vand.u32 %v4789, 2147483648
        %v5691 = vor.u32 1.1754944e-38, %v5690
        %v5692 = vsel %vm5689, %v5691, %v5687
        %v5693 = vmul.f32 1.0, %v5692
        %v5694 = vrcp.pop %v4790
        %v5695 = vmul.f32 %v4790, %v5694
        %v5696 = vsub.f32 1.0, %v5695
        %v5697 = vmul.f32 %v5694, %v5696
        %v5698 = vadd.f32 %v5694, %v5697
        %vm5699 = vweird.f32 %v4790
        %vm5700 = vweird.f32 %v5694
        %vm5701 = vmor %vm5699, %vm5700
        %v5702 = vsel %vm5701, %v5694, %v5698
        %v5703 = vand.u32 2147483647, %v4790
        %vm5704 = vcmp.eq.f32.partialorder %v5703, 8.507059e+37
        %v5705 = vand.u32 %v4790, 2147483648
        %v5706 = vor.u32 1.1754944e-38, %v5705
        %v5707 = vsel %vm5704, %v5706, %v5702
        %v5708 = vmul.f32 1.0, %v5707
        %v5709 = vrcp.pop %v4791
        %v5710 = vmul.f32 %v4791, %v5709
        %v5711 = vsub.f32 1.0, %v5710
        %v5712 = vmul.f32 %v5709, %v5711
        %v5713 = vadd.f32 %v5709, %v5712
        %vm5714 = vweird.f32 %v4791
        %vm5715 = vweird.f32 %v5709
        %vm5716 = vmor %vm5714, %vm5715
        %v5717 = vsel %vm5716, %v5709, %v5713
        %v5718 = vand.u32 2147483647, %v4791
        %vm5719 = vcmp.eq.f32.partialorder %v5718, 8.507059e+37
        %v5720 = vand.u32 %v4791, 2147483648
        %v5721 = vor.u32 1.1754944e-38, %v5720
        %v5722 = vsel %vm5719, %v5721, %v5717
        %v5723 = vmul.f32 1.0, %v5722
        %v5724 = vrcp.pop %v4792
        %v5725 = vmul.f32 %v4792, %v5724
        %v5726 = vsub.f32 1.0, %v5725
        %v5727 = vmul.f32 %v5724, %v5726
        %v5728 = vadd.f32 %v5724, %v5727
        %vm5729 = vweird.f32 %v4792
        %vm5730 = vweird.f32 %v5724
        %vm5731 = vmor %vm5729, %vm5730
        %v5732 = vsel %vm5731, %v5724, %v5728
        %v5733 = vand.u32 2147483647, %v4792
        %vm5734 = vcmp.eq.f32.partialorder %v5733, 8.507059e+37
        %v5735 = vand.u32 %v4792, 2147483648
        %v5736 = vor.u32 1.1754944e-38, %v5735
        %v5737 = vsel %vm5734, %v5736, %v5732
        %v5738 = vmul.f32 1.0, %v5737
        %v5739 = vrcp.pop %v4793
        %v5740 = vmul.f32 %v4793, %v5739
        %v5741 = vsub.f32 1.0, %v5740
        %v5742 = vmul.f32 %v5739, %v5741
        %v5743 = vadd.f32 %v5739, %v5742
        %vm5744 = vweird.f32 %v4793
        %vm5745 = vweird.f32 %v5739
        %vm5746 = vmor %vm5744, %vm5745
        %v5747 = vsel %vm5746, %v5739, %v5743
        %v5748 = vand.u32 2147483647, %v4793
        %vm5749 = vcmp.eq.f32.partialorder %v5748, 8.507059e+37
        %v5750 = vand.u32 %v4793, 2147483648
        %v5751 = vor.u32 1.1754944e-38, %v5750
        %v5752 = vsel %vm5749, %v5751, %v5747
        %v5753 = vmul.f32 1.0, %v5752
        %v5754 = vmul.f32 %v4370, %v4808
        %v5755 = vmul.f32 %v4459, %v4823
        %v5756 = vmul.f32 %v4372, %v4838
        %v5757 = vmul.f32 %v4461, %v4853
        %v5758 = vmul.f32 %v4375, %v4868
        %v5759 = vmul.f32 %v4464, %v4883
        %v5760 = vmul.f32 %v4377, %v4898
        %v5761 = vmul.f32 %v4466, %v4913
        %v5762 = vmul.f32 %v4380, %v4928
        %v5763 = vmul.f32 %v4469, %v4943
        %v5764 = vmul.f32 %v4382, %v4958
        %v5765 = vmul.f32 %v4471, %v4973
        %v5766 = vmul.f32 %v4385, %v4988
        %v5767 = vmul.f32 %v4474, %v5003
        %v5768 = vmul.f32 %v4387, %v5018
        %v5769 = vmul.f32 %v4476, %v5033
        %v5770 = vmul.f32 %v4390, %v5048
        %v5771 = vmul.f32 %v4479, %v5063
        %v5772 = vmul.f32 %v4392, %v5078
        %v5773 = vmul.f32 %v4481, %v5093
        %v5774 = vmul.f32 %v4395, %v5108
        %v5775 = vmul.f32 %v4484, %v5123
        %v5776 = vmul.f32 %v4397, %v5138
        %v5777 = vmul.f32 %v4486, %v5153
        %v5778 = vmul.f32 %v4400, %v5168
        %v5779 = vmul.f32 %v4489, %v5183
        %v5780 = vmul.f32 %v4402, %v5198
        %v5781 = vmul.f32 %v4491, %v5213
        %v5782 = vmul.f32 %v4405, %v5228
        %v5783 = vmul.f32 %v4494, %v5243
        %v5784 = vmul.f32 %v4407, %v5258
        %v5785 = vmul.f32 %v4496, %v5273
        %v5786 = vmul.f32 %v4410, %v5288
        %v5787 = vmul.f32 %v4499, %v5303
        %v5788 = vmul.f32 %v4412, %v5318
        %v5789 = vmul.f32 %v4501, %v5333
        %v5790 = vmul.f32 %v4415, %v5348
        %v5791 = vmul.f32 %v4504, %v5363
        %v5792 = vmul.f32 %v4417, %v5378
        %v5793 = vmul.f32 %v4506, %v5393
        %v5794 = vmul.f32 %v4420, %v5408
        %v5795 = vmul.f32 %v4509, %v5423
        %v5796 = vmul.f32 %v4422, %v5438
        %v5797 = vmul.f32 %v4511, %v5453
        %v5798 = vmul.f32 %v4425, %v5468
        %v5799 = vmul.f32 %v4514, %v5483
        %v5800 = vmul.f32 %v4427, %v5498
        %v5801 = vmul.f32 %v4516, %v5513
        %v5802 = vmul.f32 %v4430, %v5528
        %v5803 = vmul.f32 %v4519, %v5543
        %v5804 = vmul.f32 %v4432, %v5558
        %v5805 = vmul.f32 %v4521, %v5573
        %v5806 = vmul.f32 %v4435, %v5588
        %v5807 = vmul.f32 %v4524, %v5603
        %v5808 = vmul.f32 %v4437, %v5618
        %v5809 = vmul.f32 %v4526, %v5633
        %v5810 = vmul.f32 %v4440, %v5648
        %v5811 = vmul.f32 %v4529, %v5663
        %v5812 = vmul.f32 %v4442, %v5678
        %v5813 = vmul.f32 %v4531, %v5693
        %v5814 = vmul.f32 %v4445, %v5708
        %v5815 = vmul.f32 %v4534, %v5723
        %v5816 = vmul.f32 %v4447, %v5738
        %v5817 = vmul.f32 %v4536, %v5753
        %v5818 = vpack.c.bf16 %v5756, %v5754
        %v5819 = vpack.c.bf16 %v5757, %v5755
        %v5820 = vpack.c.bf16 %v5760, %v5758
        %v5821 = vpack.c.bf16 %v5761, %v5759
        %v5822 = vpack.c.bf16 %v5764, %v5762
        %v5823 = vpack.c.bf16 %v5765, %v5763
        %v5824 = vpack.c.bf16 %v5768, %v5766
        %v5825 = vpack.c.bf16 %v5769, %v5767
        %v5826 = vpack.c.bf16 %v5772, %v5770
        %v5827 = vpack.c.bf16 %v5773, %v5771
        %v5828 = vpack.c.bf16 %v5776, %v5774
        %v5829 = vpack.c.bf16 %v5777, %v5775
        %v5830 = vpack.c.bf16 %v5780, %v5778
        %v5831 = vpack.c.bf16 %v5781, %v5779
        %v5832 = vpack.c.bf16 %v5784, %v5782
        %v5833 = vpack.c.bf16 %v5785, %v5783
        %v5834 = vpack.c.bf16 %v5788, %v5786
        %v5835 = vpack.c.bf16 %v5789, %v5787
        %v5836 = vpack.c.bf16 %v5792, %v5790
        %v5837 = vpack.c.bf16 %v5793, %v5791
        %v5838 = vpack.c.bf16 %v5796, %v5794
        %v5839 = vpack.c.bf16 %v5797, %v5795
        %v5840 = vpack.c.bf16 %v5800, %v5798
        %v5841 = vpack.c.bf16 %v5801, %v5799
        %v5842 = vpack.c.bf16 %v5804, %v5802
        %v5843 = vpack.c.bf16 %v5805, %v5803
        %v5844 = vpack.c.bf16 %v5808, %v5806
        %v5845 = vpack.c.bf16 %v5809, %v5807
        %v5846 = vpack.c.bf16 %v5812, %v5810
        %v5847 = vpack.c.bf16 %v5813, %v5811
        %v5848 = vpack.c.bf16 %v5816, %v5814
        %v5849 = vpack.c.bf16 %v5817, %v5815
        %v5850 = vperm.slane %v723, 5
        %v5883 = vunpack.c.l.b16 %v794
        %v5884 = vunpack.c.l.b16 %v795
        %v5885 = vunpack.c.l.b16 %v796
        %v5886 = vunpack.c.l.b16 %v797
        %v5887 = vunpack.c.l.b16 %v798
        %v5888 = vunpack.c.l.b16 %v799
        %v5889 = vunpack.c.l.b16 %v800
        %v5890 = vunpack.c.l.b16 %v801
        %v5891 = vunpack.c.l.b16 %v802
        %v5892 = vunpack.c.l.b16 %v803
        %v5893 = vunpack.c.l.b16 %v804
        %v5894 = vunpack.c.l.b16 %v805
        %v5895 = vunpack.c.l.b16 %v806
        %v5896 = vunpack.c.l.b16 %v807
        %v5897 = vunpack.c.l.b16 %v808
        %v5898 = vunpack.c.l.b16 %v809
        %v5899 = vunpack.c.l.b16 %v810
        %v5900 = vunpack.c.l.b16 %v811
        %v5901 = vunpack.c.l.b16 %v812
        %v5902 = vunpack.c.l.b16 %v813
        %v5903 = vunpack.c.l.b16 %v814
        %v5904 = vunpack.c.l.b16 %v815
        %v5905 = vunpack.c.l.b16 %v816
        %v5906 = vunpack.c.l.b16 %v817
        %v5907 = vunpack.c.l.b16 %v818
        %v5908 = vunpack.c.l.b16 %v819
        %v5909 = vunpack.c.l.b16 %v820
        %v5910 = vunpack.c.l.b16 %v821
        %v5911 = vunpack.c.l.b16 %v822
        %v5912 = vunpack.c.l.b16 %v823
        %v5913 = vunpack.c.l.b16 %v824
        %v5914 = vunpack.c.l.b16 %v825
        %v5915 = vpack.c.b16 %v5884, %v5883
        %v5916 = vpack.c.b16 %v5886, %v5885
        %v5917 = vpack.c.b16 %v5888, %v5887
        %v5918 = vpack.c.b16 %v5890, %v5889
        %v5919 = vpack.c.b16 %v5892, %v5891
        %v5920 = vpack.c.b16 %v5894, %v5893
        %v5921 = vpack.c.b16 %v5896, %v5895
        %v5922 = vpack.c.b16 %v5898, %v5897
        %v5923 = vpack.c.b16 %v5900, %v5899
        %v5924 = vpack.c.b16 %v5902, %v5901
        %v5925 = vpack.c.b16 %v5904, %v5903
        %v5926 = vpack.c.b16 %v5906, %v5905
        %v5927 = vpack.c.b16 %v5908, %v5907
        %v5928 = vpack.c.b16 %v5910, %v5909
        %v5929 = vpack.c.b16 %v5912, %v5911
        %v5930 = vpack.c.b16 %v5914, %v5913
        %5947 = vmatpush.bf16.msra.mxu0 %v5922
        %5948 = vmatpush.bf16.msra.mxu0 %v5921
        %5949 = vmatpush.bf16.msra.mxu0 %v5920
        %5950 = vmatpush.bf16.msra.mxu0 %v5919
        %5951 = vmatpush.bf16.msra.mxu0 %v5918
        %5952 = vmatpush.bf16.msra.mxu0 %v5917
        %5953 = vmatpush.bf16.msra.mxu0 %v5916
        %5954 = vmatpush.bf16.msra.mxu0 %v5915
        %5955 = vmatmul.bf16.gmra.mxu0 %v5818
        %v5956 = vpop.f32.mrf.mxu0
        %v5957 = vadd.f32 %v5850, %v5956
        %v5958 = vpop.f32.mrf.mxu0
        %v5959 = vadd.f32 %v5850, %v5958
        %5960 = vmatmul.bf16.gmra.mxu0 %v5820
        %v5961 = vpop.f32.mrf.mxu0
        %v5962 = vadd.f32 %v5850, %v5961
        %v5963 = vpop.f32.mrf.mxu0
        %v5964 = vadd.f32 %v5850, %v5963
        %5965 = vmatmul.bf16.gmra.mxu0 %v5822
        %v5966 = vpop.f32.mrf.mxu0
        %v5967 = vadd.f32 %v5850, %v5966
        %v5968 = vpop.f32.mrf.mxu0
        %v5969 = vadd.f32 %v5850, %v5968
        %5970 = vmatmul.bf16.gmra.mxu0 %v5824
        %v5971 = vpop.f32.mrf.mxu0
        %v5972 = vadd.f32 %v5850, %v5971
        %v5973 = vpop.f32.mrf.mxu0
        %v5974 = vadd.f32 %v5850, %v5973
        %5975 = vmatmul.bf16.gmra.mxu0 %v5826
        %v5976 = vpop.f32.mrf.mxu0
        %v5977 = vadd.f32 %v5850, %v5976
        %v5978 = vpop.f32.mrf.mxu0
        %v5979 = vadd.f32 %v5850, %v5978
        %5980 = vmatmul.bf16.gmra.mxu0 %v5828
        %v5981 = vpop.f32.mrf.mxu0
        %v5982 = vadd.f32 %v5850, %v5981
        %v5983 = vpop.f32.mrf.mxu0
        %v5984 = vadd.f32 %v5850, %v5983
        %5985 = vmatmul.bf16.gmra.mxu0 %v5830
        %v5986 = vpop.f32.mrf.mxu0
        %v5987 = vadd.f32 %v5850, %v5986
        %v5988 = vpop.f32.mrf.mxu0
        %v5989 = vadd.f32 %v5850, %v5988
        %5990 = vmatmul.bf16.gmra.mxu0 %v5832
        %v5991 = vpop.f32.mrf.mxu0
        %v5992 = vadd.f32 %v5850, %v5991
        %v5993 = vpop.f32.mrf.mxu0
        %v5994 = vadd.f32 %v5850, %v5993
        %5995 = vmatmul.bf16.gmra.mxu0 %v5834
        %v5996 = vpop.f32.mrf.mxu0
        %v5997 = vadd.f32 %v5850, %v5996
        %v5998 = vpop.f32.mrf.mxu0
        %v5999 = vadd.f32 %v5850, %v5998
        %6000 = vmatmul.bf16.gmra.mxu0 %v5836
        %v6001 = vpop.f32.mrf.mxu0
        %v6002 = vadd.f32 %v5850, %v6001
        %v6003 = vpop.f32.mrf.mxu0
        %v6004 = vadd.f32 %v5850, %v6003
        %6005 = vmatmul.bf16.gmra.mxu0 %v5838
        %v6006 = vpop.f32.mrf.mxu0
        %v6007 = vadd.f32 %v5850, %v6006
        %v6008 = vpop.f32.mrf.mxu0
        %v6009 = vadd.f32 %v5850, %v6008
        %6010 = vmatmul.bf16.gmra.mxu0 %v5840
        %v6011 = vpop.f32.mrf.mxu0
        %v6012 = vadd.f32 %v5850, %v6011
        %v6013 = vpop.f32.mrf.mxu0
        %v6014 = vadd.f32 %v5850, %v6013
        %6015 = vmatmul.bf16.gmra.mxu0 %v5842
        %v6016 = vpop.f32.mrf.mxu0
        %v6017 = vadd.f32 %v5850, %v6016
        %v6018 = vpop.f32.mrf.mxu0
        %v6019 = vadd.f32 %v5850, %v6018
        %6020 = vmatmul.bf16.gmra.mxu0 %v5844
        %v6021 = vpop.f32.mrf.mxu0
        %v6022 = vadd.f32 %v5850, %v6021
        %v6023 = vpop.f32.mrf.mxu0
        %v6024 = vadd.f32 %v5850, %v6023
        %6025 = vmatmul.bf16.gmra.mxu0 %v5846
        %v6026 = vpop.f32.mrf.mxu0
        %v6027 = vadd.f32 %v5850, %v6026
        %v6028 = vpop.f32.mrf.mxu0
        %v6029 = vadd.f32 %v5850, %v6028
        %6030 = vmatmul.bf16.gmra.mxu0 %v5848
        %v6031 = vpop.f32.mrf.mxu0
        %v6032 = vadd.f32 %v5850, %v6031
        %v6033 = vpop.f32.mrf.mxu0
        %v6034 = vadd.f32 %v5850, %v6033
        %6035 = vdwg.mxu0
        %6036 = vmatpush.bf16.msra.mxu0 %v5930
        %6037 = vmatpush.bf16.msra.mxu0 %v5929
        %6038 = vmatpush.bf16.msra.mxu0 %v5928
        %6039 = vmatpush.bf16.msra.mxu0 %v5927
        %6040 = vmatpush.bf16.msra.mxu0 %v5926
        %6041 = vmatpush.bf16.msra.mxu0 %v5925
        %6042 = vmatpush.bf16.msra.mxu0 %v5924
        %6043 = vmatpush.bf16.msra.mxu0 %v5923
        %6044 = vmatmul.bf16.gmra.mxu0 %v5819
        %v6045 = vpop.f32.mrf.mxu0
        %v6046 = vadd.f32 %v5957, %v6045
        %v6047 = vpop.f32.mrf.mxu0
        %v6048 = vadd.f32 %v5959, %v6047
        %6049 = vmatmul.bf16.gmra.mxu0 %v5821
        %v6050 = vpop.f32.mrf.mxu0
        %v6051 = vadd.f32 %v5962, %v6050
        %v6052 = vpop.f32.mrf.mxu0
        %v6053 = vadd.f32 %v5964, %v6052
        %6054 = vmatmul.bf16.gmra.mxu0 %v5823
        %v6055 = vpop.f32.mrf.mxu0
        %v6056 = vadd.f32 %v5967, %v6055
        %v6057 = vpop.f32.mrf.mxu0
        %v6058 = vadd.f32 %v5969, %v6057
        %6059 = vmatmul.bf16.gmra.mxu0 %v5825
        %v6060 = vpop.f32.mrf.mxu0
        %v6061 = vadd.f32 %v5972, %v6060
        %v6062 = vpop.f32.mrf.mxu0
        %v6063 = vadd.f32 %v5974, %v6062
        %6064 = vmatmul.bf16.gmra.mxu0 %v5827
        %v6065 = vpop.f32.mrf.mxu0
        %v6066 = vadd.f32 %v5977, %v6065
        %v6067 = vpop.f32.mrf.mxu0
        %v6068 = vadd.f32 %v5979, %v6067
        %6069 = vmatmul.bf16.gmra.mxu0 %v5829
        %v6070 = vpop.f32.mrf.mxu0
        %v6071 = vadd.f32 %v5982, %v6070
        %v6072 = vpop.f32.mrf.mxu0
        %v6073 = vadd.f32 %v5984, %v6072
        %6074 = vmatmul.bf16.gmra.mxu0 %v5831
        %v6075 = vpop.f32.mrf.mxu0
        %v6076 = vadd.f32 %v5987, %v6075
        %v6077 = vpop.f32.mrf.mxu0
        %v6078 = vadd.f32 %v5989, %v6077
        %6079 = vmatmul.bf16.gmra.mxu0 %v5833
        %v6080 = vpop.f32.mrf.mxu0
        %v6081 = vadd.f32 %v5992, %v6080
        %v6082 = vpop.f32.mrf.mxu0
        %v6083 = vadd.f32 %v5994, %v6082
        %6084 = vmatmul.bf16.gmra.mxu0 %v5835
        %v6085 = vpop.f32.mrf.mxu0
        %v6086 = vadd.f32 %v5997, %v6085
        %v6087 = vpop.f32.mrf.mxu0
        %v6088 = vadd.f32 %v5999, %v6087
        %6089 = vmatmul.bf16.gmra.mxu0 %v5837
        %v6090 = vpop.f32.mrf.mxu0
        %v6091 = vadd.f32 %v6002, %v6090
        %v6092 = vpop.f32.mrf.mxu0
        %v6093 = vadd.f32 %v6004, %v6092
        %6094 = vmatmul.bf16.gmra.mxu0 %v5839
        %v6095 = vpop.f32.mrf.mxu0
        %v6096 = vadd.f32 %v6007, %v6095
        %v6097 = vpop.f32.mrf.mxu0
        %v6098 = vadd.f32 %v6009, %v6097
        %6099 = vmatmul.bf16.gmra.mxu0 %v5841
        %v6100 = vpop.f32.mrf.mxu0
        %v6101 = vadd.f32 %v6012, %v6100
        %v6102 = vpop.f32.mrf.mxu0
        %v6103 = vadd.f32 %v6014, %v6102
        %6104 = vmatmul.bf16.gmra.mxu0 %v5843
        %v6105 = vpop.f32.mrf.mxu0
        %v6106 = vadd.f32 %v6017, %v6105
        %v6107 = vpop.f32.mrf.mxu0
        %v6108 = vadd.f32 %v6019, %v6107
        %6109 = vmatmul.bf16.gmra.mxu0 %v5845
        %v6110 = vpop.f32.mrf.mxu0
        %v6111 = vadd.f32 %v6022, %v6110
        %v6112 = vpop.f32.mrf.mxu0
        %v6113 = vadd.f32 %v6024, %v6112
        %6114 = vmatmul.bf16.gmra.mxu0 %v5847
        %v6115 = vpop.f32.mrf.mxu0
        %v6116 = vadd.f32 %v6027, %v6115
        %v6117 = vpop.f32.mrf.mxu0
        %v6118 = vadd.f32 %v6029, %v6117
        %6119 = vmatmul.bf16.gmra.mxu0 %v5849
        %v6120 = vpop.f32.mrf.mxu0
        %v6121 = vadd.f32 %v6032, %v6120
        %v6122 = vpop.f32.mrf.mxu0
        %v6123 = vadd.f32 %v6034, %v6122
        %6124 = vdwg.mxu0
        %v6125 = vadd.f32 %v3524, %v6046
        %v6126 = vadd.f32 %v3525, %v6048
        %v6127 = vadd.f32 %v3526, %v6051
        %v6128 = vadd.f32 %v3527, %v6053
        %v6129 = vadd.f32 %v3528, %v6056
        %v6130 = vadd.f32 %v3529, %v6058
        %v6131 = vadd.f32 %v3530, %v6061
        %v6132 = vadd.f32 %v3531, %v6063
        %v6133 = vadd.f32 %v3532, %v6066
        %v6134 = vadd.f32 %v3533, %v6068
        %v6135 = vadd.f32 %v3534, %v6071
        %v6136 = vadd.f32 %v3535, %v6073
        %v6137 = vadd.f32 %v3536, %v6076
        %v6138 = vadd.f32 %v3537, %v6078
        %v6139 = vadd.f32 %v3538, %v6081
        %v6140 = vadd.f32 %v3539, %v6083
        %v6141 = vadd.f32 %v3540, %v6086
        %v6142 = vadd.f32 %v3541, %v6088
        %v6143 = vadd.f32 %v3542, %v6091
        %v6144 = vadd.f32 %v3543, %v6093
        %v6145 = vadd.f32 %v3544, %v6096
        %v6146 = vadd.f32 %v3545, %v6098
        %v6147 = vadd.f32 %v3546, %v6101
        %v6148 = vadd.f32 %v3547, %v6103
        %v6149 = vadd.f32 %v3548, %v6106
        %v6150 = vadd.f32 %v3549, %v6108
        %v6151 = vadd.f32 %v3550, %v6111
        %v6152 = vadd.f32 %v3551, %v6113
        %v6153 = vadd.f32 %v3552, %v6116
        %v6154 = vadd.f32 %v3553, %v6118
        %v6155 = vadd.f32 %v3554, %v6121
        %v6156 = vadd.f32 %v3555, %v6123
        %6157 = vst [vmem:[#allocation2] sm:$0xff] %v6125
        %6158 = vst [vmem:[#allocation2 + $0x8] sm:$0xff] %v6126
        %6159 = vst [vmem:[#allocation2 + $0x10] sm:$0xff] %v6127
        %6160 = vst [vmem:[#allocation2 + $0x18] sm:$0xff] %v6128
        %6161 = vst [vmem:[#allocation2 + $0x20] sm:$0xff] %v6129
        %6162 = vst [vmem:[#allocation2 + $0x28] sm:$0xff] %v6130
        %6163 = vst [vmem:[#allocation2 + $0x30] sm:$0xff] %v6131
        %6164 = vst [vmem:[#allocation2 + $0x38] sm:$0xff] %v6132
        %6165 = vst [vmem:[#allocation2 + $0x40] sm:$0xff] %v6133
        %6166 = vst [vmem:[#allocation2 + $0x48] sm:$0xff] %v6134
        %6167 = vst [vmem:[#allocation2 + $0x50] sm:$0xff] %v6135
        %6168 = vst [vmem:[#allocation2 + $0x58] sm:$0xff] %v6136
        %6169 = vst [vmem:[#allocation2 + $0x60] sm:$0xff] %v6137
        %6170 = vst [vmem:[#allocation2 + $0x68] sm:$0xff] %v6138
        %6171 = vst [vmem:[#allocation2 + $0x70] sm:$0xff] %v6139
        %6172 = vst [vmem:[#allocation2 + $0x78] sm:$0xff] %v6140
        %6173 = vst [vmem:[#allocation2 + $0x80] sm:$0xff] %v6141
        %6174 = vst [vmem:[#allocation2 + $0x88] sm:$0xff] %v6142
        %6175 = vst [vmem:[#allocation2 + $0x90] sm:$0xff] %v6143
        %6176 = vst [vmem:[#allocation2 + $0x98] sm:$0xff] %v6144
        %6177 = vst [vmem:[#allocation2 + $0xa0] sm:$0xff] %v6145
        %6178 = vst [vmem:[#allocation2 + $0xa8] sm:$0xff] %v6146
        %6179 = vst [vmem:[#allocation2 + $0xb0] sm:$0xff] %v6147
        %6180 = vst [vmem:[#allocation2 + $0xb8] sm:$0xff] %v6148
        %6181 = vst [vmem:[#allocation2 + $0xc0] sm:$0xff] %v6149
        %6182 = vst [vmem:[#allocation2 + $0xc8] sm:$0xff] %v6150
        %6183 = vst [vmem:[#allocation2 + $0xd0] sm:$0xff] %v6151
        %6184 = vst [vmem:[#allocation2 + $0xd8] sm:$0xff] %v6152
        %6185 = vst [vmem:[#allocation2 + $0xe0] sm:$0xff] %v6153
        %6186 = vst [vmem:[#allocation2 + $0xe8] sm:$0xff] %v6154
        %6187 = vst [vmem:[#allocation2 + $0xf0] sm:$0xff] %v6155
        %6188 = vst [vmem:[#allocation2 + $0xf8] sm:$0xff] %v6156
        %p6189 = scmp.eq.s32.totalorder %s29, 1
        // Predicated region
        $region65: #{mlp_mixer_forward.1} parent=59 // pred_check
          %p6190 = pneg %p6189
        $region66: #{mlp_mixer_forward.1} parent=59 // pred_check_branch
          %6192 = sbr.rel (%p6190) target = $region68
        $region67: #{mlp_mixer_forward.1} parent=59 // pred_region
          %v6193 = vld [vmem:[#allocation3] sm:$0xff]
          %v6194 = vld [vmem:[#allocation3 + $0x8] sm:$0xff]
          %v6195 = vld [vmem:[#allocation3 + $0x10] sm:$0xff]
          %v6196 = vld [vmem:[#allocation3 + $0x18] sm:$0xff]
          %v6197 = vld [vmem:[#allocation3 + $0x20] sm:$0xff]
          %v6198 = vld [vmem:[#allocation3 + $0x28] sm:$0xff]
          %v6199 = vld [vmem:[#allocation3 + $0x30] sm:$0xff]
          %v6200 = vld [vmem:[#allocation3 + $0x38] sm:$0xff]
          %v6201 = vld [vmem:[#allocation3 + $0x40] sm:$0xff]
          %v6202 = vld [vmem:[#allocation3 + $0x48] sm:$0xff]
          %v6203 = vld [vmem:[#allocation3 + $0x50] sm:$0xff]
          %v6204 = vld [vmem:[#allocation3 + $0x58] sm:$0xff]
          %v6205 = vld [vmem:[#allocation3 + $0x60] sm:$0xff]
          %v6206 = vld [vmem:[#allocation3 + $0x68] sm:$0xff]
          %v6207 = vld [vmem:[#allocation3 + $0x70] sm:$0xff]
          %v6208 = vld [vmem:[#allocation3 + $0x78] sm:$0xff]
          %v6209 = vld [vmem:[#allocation3 + $0x80] sm:$0xff]
          %v6210 = vld [vmem:[#allocation3 + $0x88] sm:$0xff]
          %v6211 = vld [vmem:[#allocation3 + $0x90] sm:$0xff]
          %v6212 = vld [vmem:[#allocation3 + $0x98] sm:$0xff]
          %v6213 = vld [vmem:[#allocation3 + $0xa0] sm:$0xff]
          %v6214 = vld [vmem:[#allocation3 + $0xa8] sm:$0xff]
          %v6215 = vld [vmem:[#allocation3 + $0xb0] sm:$0xff]
          %v6216 = vld [vmem:[#allocation3 + $0xb8] sm:$0xff]
          %v6217 = vld [vmem:[#allocation3 + $0xc0] sm:$0xff]
          %v6218 = vld [vmem:[#allocation3 + $0xc8] sm:$0xff]
          %v6219 = vld [vmem:[#allocation3 + $0xd0] sm:$0xff]
          %v6220 = vld [vmem:[#allocation3 + $0xd8] sm:$0xff]
          %v6221 = vld [vmem:[#allocation3 + $0xe0] sm:$0xff]
          %v6222 = vld [vmem:[#allocation3 + $0xe8] sm:$0xff]
          %v6223 = vld [vmem:[#allocation3 + $0xf0] sm:$0xff]
          %v6224 = vld [vmem:[#allocation3 + $0xf8] sm:$0xff]
          %v6225 = vadd.f32 %v6125, %v6193
          %v6226 = vadd.f32 %v6126, %v6194
          %v6227 = vadd.f32 %v6127, %v6195
          %v6228 = vadd.f32 %v6128, %v6196
          %v6229 = vadd.f32 %v6129, %v6197
          %v6230 = vadd.f32 %v6130, %v6198
          %v6231 = vadd.f32 %v6131, %v6199
          %v6232 = vadd.f32 %v6132, %v6200
          %v6233 = vadd.f32 %v6133, %v6201
          %v6234 = vadd.f32 %v6134, %v6202
          %v6235 = vadd.f32 %v6135, %v6203
          %v6236 = vadd.f32 %v6136, %v6204
          %v6237 = vadd.f32 %v6137, %v6205
          %v6238 = vadd.f32 %v6138, %v6206
          %v6239 = vadd.f32 %v6139, %v6207
          %v6240 = vadd.f32 %v6140, %v6208
          %v6241 = vadd.f32 %v6141, %v6209
          %v6242 = vadd.f32 %v6142, %v6210
          %v6243 = vadd.f32 %v6143, %v6211
          %v6244 = vadd.f32 %v6144, %v6212
          %v6245 = vadd.f32 %v6145, %v6213
          %v6246 = vadd.f32 %v6146, %v6214
          %v6247 = vadd.f32 %v6147, %v6215
          %v6248 = vadd.f32 %v6148, %v6216
          %v6249 = vadd.f32 %v6149, %v6217
          %v6250 = vadd.f32 %v6150, %v6218
          %v6251 = vadd.f32 %v6151, %v6219
          %v6252 = vadd.f32 %v6152, %v6220
          %v6253 = vadd.f32 %v6153, %v6221
          %v6254 = vadd.f32 %v6154, %v6222
          %v6255 = vadd.f32 %v6155, %v6223
          %v6256 = vadd.f32 %v6156, %v6224
          %6257 = vadd.xlane.f32.xlu0 %v6225
          %v6258 = vpop.xlane.xlu0 %6257
          %6259 = vadd.xlane.f32.xlu0 %v6226
          %v6260 = vpop.xlane.xlu0 %6259
          %6261 = vadd.xlane.f32.xlu0 %v6227
          %v6262 = vpop.xlane.xlu0 %6261
          %6263 = vadd.xlane.f32.xlu0 %v6228
          %v6264 = vpop.xlane.xlu0 %6263
          %6265 = vadd.xlane.f32.xlu0 %v6229
          %v6266 = vpop.xlane.xlu0 %6265
          %6267 = vadd.xlane.f32.xlu0 %v6230
          %v6268 = vpop.xlane.xlu0 %6267
          %6269 = vadd.xlane.f32.xlu0 %v6231
          %v6270 = vpop.xlane.xlu0 %6269
          %6271 = vadd.xlane.f32.xlu0 %v6232
          %v6272 = vpop.xlane.xlu0 %6271
          %6273 = vadd.xlane.f32.xlu0 %v6233
          %v6274 = vpop.xlane.xlu0 %6273
          %6275 = vadd.xlane.f32.xlu0 %v6234
          %v6276 = vpop.xlane.xlu0 %6275
          %6277 = vadd.xlane.f32.xlu0 %v6235
          %v6278 = vpop.xlane.xlu0 %6277
          %6279 = vadd.xlane.f32.xlu0 %v6236
          %v6280 = vpop.xlane.xlu0 %6279
          %6281 = vadd.xlane.f32.xlu0 %v6237
          %v6282 = vpop.xlane.xlu0 %6281
          %6283 = vadd.xlane.f32.xlu0 %v6238
          %v6284 = vpop.xlane.xlu0 %6283
          %6285 = vadd.xlane.f32.xlu0 %v6239
          %v6286 = vpop.xlane.xlu0 %6285
          %6287 = vadd.xlane.f32.xlu0 %v6240
          %v6288 = vpop.xlane.xlu0 %6287
          %6289 = vadd.xlane.f32.xlu0 %v6241
          %v6290 = vpop.xlane.xlu0 %6289
          %6291 = vadd.xlane.f32.xlu0 %v6242
          %v6292 = vpop.xlane.xlu0 %6291
          %6293 = vadd.xlane.f32.xlu0 %v6243
          %v6294 = vpop.xlane.xlu0 %6293
          %6295 = vadd.xlane.f32.xlu0 %v6244
          %v6296 = vpop.xlane.xlu0 %6295
          %6297 = vadd.xlane.f32.xlu0 %v6245
          %v6298 = vpop.xlane.xlu0 %6297
          %6299 = vadd.xlane.f32.xlu0 %v6246
          %v6300 = vpop.xlane.xlu0 %6299
          %6301 = vadd.xlane.f32.xlu0 %v6247
          %v6302 = vpop.xlane.xlu0 %6301
          %6303 = vadd.xlane.f32.xlu0 %v6248
          %v6304 = vpop.xlane.xlu0 %6303
          %6305 = vadd.xlane.f32.xlu0 %v6249
          %v6306 = vpop.xlane.xlu0 %6305
          %6307 = vadd.xlane.f32.xlu0 %v6250
          %v6308 = vpop.xlane.xlu0 %6307
          %6309 = vadd.xlane.f32.xlu0 %v6251
          %v6310 = vpop.xlane.xlu0 %6309
          %6311 = vadd.xlane.f32.xlu0 %v6252
          %v6312 = vpop.xlane.xlu0 %6311
          %6313 = vadd.xlane.f32.xlu0 %v6253
          %v6314 = vpop.xlane.xlu0 %6313
          %6315 = vadd.xlane.f32.xlu0 %v6254
          %v6316 = vpop.xlane.xlu0 %6315
          %6317 = vadd.xlane.f32.xlu0 %v6255
          %v6318 = vpop.xlane.xlu0 %6317
          %6319 = vadd.xlane.f32.xlu0 %v6256
          %v6320 = vpop.xlane.xlu0 %6319
          %v6321 = vmul.f32 %v6258, %v928
          %v6322 = vmul.f32 %v6260, %v928
          %v6323 = vmul.f32 %v6262, %v928
          %v6324 = vmul.f32 %v6264, %v928
          %v6325 = vmul.f32 %v6266, %v928
          %v6326 = vmul.f32 %v6268, %v928
          %v6327 = vmul.f32 %v6270, %v928
          %v6328 = vmul.f32 %v6272, %v928
          %v6329 = vmul.f32 %v6274, %v928
          %v6330 = vmul.f32 %v6276, %v928
          %v6331 = vmul.f32 %v6278, %v928
          %v6332 = vmul.f32 %v6280, %v928
          %v6333 = vmul.f32 %v6282, %v928
          %v6334 = vmul.f32 %v6284, %v928
          %v6335 = vmul.f32 %v6286, %v928
          %v6336 = vmul.f32 %v6288, %v928
          %v6337 = vmul.f32 %v6290, %v928
          %v6338 = vmul.f32 %v6292, %v928
          %v6339 = vmul.f32 %v6294, %v928
          %v6340 = vmul.f32 %v6296, %v928
          %v6341 = vmul.f32 %v6298, %v928
          %v6342 = vmul.f32 %v6300, %v928
          %v6343 = vmul.f32 %v6302, %v928
          %v6344 = vmul.f32 %v6304, %v928
          %v6345 = vmul.f32 %v6306, %v928
          %v6346 = vmul.f32 %v6308, %v928
          %v6347 = vmul.f32 %v6310, %v928
          %v6348 = vmul.f32 %v6312, %v928
          %v6349 = vmul.f32 %v6314, %v928
          %v6350 = vmul.f32 %v6316, %v928
          %v6351 = vmul.f32 %v6318, %v928
          %v6352 = vmul.f32 %v6320, %v928
          %v6353 = vsub.f32 %v6225, %v6321
          %v6354 = vsub.f32 %v6226, %v6322
          %v6355 = vsub.f32 %v6227, %v6323
          %v6356 = vsub.f32 %v6228, %v6324
          %v6357 = vsub.f32 %v6229, %v6325
          %v6358 = vsub.f32 %v6230, %v6326
          %v6359 = vsub.f32 %v6231, %v6327
          %v6360 = vsub.f32 %v6232, %v6328
          %v6361 = vsub.f32 %v6233, %v6329
          %v6362 = vsub.f32 %v6234, %v6330
          %v6363 = vsub.f32 %v6235, %v6331
          %v6364 = vsub.f32 %v6236, %v6332
          %v6365 = vsub.f32 %v6237, %v6333
          %v6366 = vsub.f32 %v6238, %v6334
          %v6367 = vsub.f32 %v6239, %v6335
          %v6368 = vsub.f32 %v6240, %v6336
          %v6369 = vsub.f32 %v6241, %v6337
          %v6370 = vsub.f32 %v6242, %v6338
          %v6371 = vsub.f32 %v6243, %v6339
          %v6372 = vsub.f32 %v6244, %v6340
          %v6373 = vsub.f32 %v6245, %v6341
          %v6374 = vsub.f32 %v6246, %v6342
          %v6375 = vsub.f32 %v6247, %v6343
          %v6376 = vsub.f32 %v6248, %v6344
          %v6377 = vsub.f32 %v6249, %v6345
          %v6378 = vsub.f32 %v6250, %v6346
          %v6379 = vsub.f32 %v6251, %v6347
          %v6380 = vsub.f32 %v6252, %v6348
          %v6381 = vsub.f32 %v6253, %v6349
          %v6382 = vsub.f32 %v6254, %v6350
          %v6383 = vsub.f32 %v6255, %v6351
          %v6384 = vsub.f32 %v6256, %v6352
          %v6385 = vmul.f32 %v6353, %v6353
          %v6386 = vmul.f32 %v6354, %v6354
          %v6387 = vmul.f32 %v6355, %v6355
          %v6388 = vmul.f32 %v6356, %v6356
          %v6389 = vmul.f32 %v6357, %v6357
          %v6390 = vmul.f32 %v6358, %v6358
          %v6391 = vmul.f32 %v6359, %v6359
          %v6392 = vmul.f32 %v6360, %v6360
          %v6393 = vmul.f32 %v6361, %v6361
          %v6394 = vmul.f32 %v6362, %v6362
          %v6395 = vmul.f32 %v6363, %v6363
          %v6396 = vmul.f32 %v6364, %v6364
          %v6397 = vmul.f32 %v6365, %v6365
          %v6398 = vmul.f32 %v6366, %v6366
          %v6399 = vmul.f32 %v6367, %v6367
          %v6400 = vmul.f32 %v6368, %v6368
          %v6401 = vmul.f32 %v6369, %v6369
          %v6402 = vmul.f32 %v6370, %v6370
          %v6403 = vmul.f32 %v6371, %v6371
          %v6404 = vmul.f32 %v6372, %v6372
          %v6405 = vmul.f32 %v6373, %v6373
          %v6406 = vmul.f32 %v6374, %v6374
          %v6407 = vmul.f32 %v6375, %v6375
          %v6408 = vmul.f32 %v6376, %v6376
          %v6409 = vmul.f32 %v6377, %v6377
          %v6410 = vmul.f32 %v6378, %v6378
          %v6411 = vmul.f32 %v6379, %v6379
          %v6412 = vmul.f32 %v6380, %v6380
          %v6413 = vmul.f32 %v6381, %v6381
          %v6414 = vmul.f32 %v6382, %v6382
          %v6415 = vmul.f32 %v6383, %v6383
          %v6416 = vmul.f32 %v6384, %v6384
          %6417 = vadd.xlane.f32.xlu0 %v6385
          %v6418 = vpop.xlane.xlu0 %6417
          %6419 = vadd.xlane.f32.xlu0 %v6386
          %v6420 = vpop.xlane.xlu0 %6419
          %6421 = vadd.xlane.f32.xlu0 %v6387
          %v6422 = vpop.xlane.xlu0 %6421
          %6423 = vadd.xlane.f32.xlu0 %v6388
          %v6424 = vpop.xlane.xlu0 %6423
          %6425 = vadd.xlane.f32.xlu0 %v6389
          %v6426 = vpop.xlane.xlu0 %6425
          %6427 = vadd.xlane.f32.xlu0 %v6390
          %v6428 = vpop.xlane.xlu0 %6427
          %6429 = vadd.xlane.f32.xlu0 %v6391
          %v6430 = vpop.xlane.xlu0 %6429
          %6431 = vadd.xlane.f32.xlu0 %v6392
          %v6432 = vpop.xlane.xlu0 %6431
          %6433 = vadd.xlane.f32.xlu0 %v6393
          %v6434 = vpop.xlane.xlu0 %6433
          %6435 = vadd.xlane.f32.xlu0 %v6394
          %v6436 = vpop.xlane.xlu0 %6435
          %6437 = vadd.xlane.f32.xlu0 %v6395
          %v6438 = vpop.xlane.xlu0 %6437
          %6439 = vadd.xlane.f32.xlu0 %v6396
          %v6440 = vpop.xlane.xlu0 %6439
          %6441 = vadd.xlane.f32.xlu0 %v6397
          %v6442 = vpop.xlane.xlu0 %6441
          %6443 = vadd.xlane.f32.xlu0 %v6398
          %v6444 = vpop.xlane.xlu0 %6443
          %6445 = vadd.xlane.f32.xlu0 %v6399
          %v6446 = vpop.xlane.xlu0 %6445
          %6447 = vadd.xlane.f32.xlu0 %v6400
          %v6448 = vpop.xlane.xlu0 %6447
          %6449 = vadd.xlane.f32.xlu0 %v6401
          %v6450 = vpop.xlane.xlu0 %6449
          %6451 = vadd.xlane.f32.xlu0 %v6402
          %v6452 = vpop.xlane.xlu0 %6451
          %6453 = vadd.xlane.f32.xlu0 %v6403
          %v6454 = vpop.xlane.xlu0 %6453
          %6455 = vadd.xlane.f32.xlu0 %v6404
          %v6456 = vpop.xlane.xlu0 %6455
          %6457 = vadd.xlane.f32.xlu0 %v6405
          %v6458 = vpop.xlane.xlu0 %6457
          %6459 = vadd.xlane.f32.xlu0 %v6406
          %v6460 = vpop.xlane.xlu0 %6459
          %6461 = vadd.xlane.f32.xlu0 %v6407
          %v6462 = vpop.xlane.xlu0 %6461
          %6463 = vadd.xlane.f32.xlu0 %v6408
          %v6464 = vpop.xlane.xlu0 %6463
          %6465 = vadd.xlane.f32.xlu0 %v6409
          %v6466 = vpop.xlane.xlu0 %6465
          %6467 = vadd.xlane.f32.xlu0 %v6410
          %v6468 = vpop.xlane.xlu0 %6467
          %6469 = vadd.xlane.f32.xlu0 %v6411
          %v6470 = vpop.xlane.xlu0 %6469
          %6471 = vadd.xlane.f32.xlu0 %v6412
          %v6472 = vpop.xlane.xlu0 %6471
          %6473 = vadd.xlane.f32.xlu0 %v6413
          %v6474 = vpop.xlane.xlu0 %6473
          %6475 = vadd.xlane.f32.xlu0 %v6414
          %v6476 = vpop.xlane.xlu0 %6475
          %6477 = vadd.xlane.f32.xlu0 %v6415
          %v6478 = vpop.xlane.xlu0 %6477
          %6479 = vadd.xlane.f32.xlu0 %v6416
          %v6480 = vpop.xlane.xlu0 %6479
          %v6481 = vmul.f32 %v6418, %v928
          %v6482 = vmul.f32 %v6420, %v928
          %v6483 = vmul.f32 %v6422, %v928
          %v6484 = vmul.f32 %v6424, %v928
          %v6485 = vmul.f32 %v6426, %v928
          %v6486 = vmul.f32 %v6428, %v928
          %v6487 = vmul.f32 %v6430, %v928
          %v6488 = vmul.f32 %v6432, %v928
          %v6489 = vmul.f32 %v6434, %v928
          %v6490 = vmul.f32 %v6436, %v928
          %v6491 = vmul.f32 %v6438, %v928
          %v6492 = vmul.f32 %v6440, %v928
          %v6493 = vmul.f32 %v6442, %v928
          %v6494 = vmul.f32 %v6444, %v928
          %v6495 = vmul.f32 %v6446, %v928
          %v6496 = vmul.f32 %v6448, %v928
          %v6497 = vmul.f32 %v6450, %v928
          %v6498 = vmul.f32 %v6452, %v928
          %v6499 = vmul.f32 %v6454, %v928
          %v6500 = vmul.f32 %v6456, %v928
          %v6501 = vmul.f32 %v6458, %v928
          %v6502 = vmul.f32 %v6460, %v928
          %v6503 = vmul.f32 %v6462, %v928
          %v6504 = vmul.f32 %v6464, %v928
          %v6505 = vmul.f32 %v6466, %v928
          %v6506 = vmul.f32 %v6468, %v928
          %v6507 = vmul.f32 %v6470, %v928
          %v6508 = vmul.f32 %v6472, %v928
          %v6509 = vmul.f32 %v6474, %v928
          %v6510 = vmul.f32 %v6476, %v928
          %v6511 = vmul.f32 %v6478, %v928
          %v6512 = vmul.f32 %v6480, %v928
          %v6513 = vadd.f32 %v6481, 1e-05
          %v6514 = vadd.f32 %v6482, 1e-05
          %v6515 = vadd.f32 %v6483, 1e-05
          %v6516 = vadd.f32 %v6484, 1e-05
          %v6517 = vadd.f32 %v6485, 1e-05
          %v6518 = vadd.f32 %v6486, 1e-05
          %v6519 = vadd.f32 %v6487, 1e-05
          %v6520 = vadd.f32 %v6488, 1e-05
          %v6521 = vadd.f32 %v6489, 1e-05
          %v6522 = vadd.f32 %v6490, 1e-05
          %v6523 = vadd.f32 %v6491, 1e-05
          %v6524 = vadd.f32 %v6492, 1e-05
          %v6525 = vadd.f32 %v6493, 1e-05
          %v6526 = vadd.f32 %v6494, 1e-05
          %v6527 = vadd.f32 %v6495, 1e-05
          %v6528 = vadd.f32 %v6496, 1e-05
          %v6529 = vadd.f32 %v6497, 1e-05
          %v6530 = vadd.f32 %v6498, 1e-05
          %v6531 = vadd.f32 %v6499, 1e-05
          %v6532 = vadd.f32 %v6500, 1e-05
          %v6533 = vadd.f32 %v6501, 1e-05
          %v6534 = vadd.f32 %v6502, 1e-05
          %v6535 = vadd.f32 %v6503, 1e-05
          %v6536 = vadd.f32 %v6504, 1e-05
          %v6537 = vadd.f32 %v6505, 1e-05
          %v6538 = vadd.f32 %v6506, 1e-05
          %v6539 = vadd.f32 %v6507, 1e-05
          %v6540 = vadd.f32 %v6508, 1e-05
          %v6541 = vadd.f32 %v6509, 1e-05
          %v6542 = vadd.f32 %v6510, 1e-05
          %v6543 = vadd.f32 %v6511, 1e-05
          %v6544 = vadd.f32 %v6512, 1e-05
          %v6545 = vrsqrt.pop %v6513
          %v6546 = vmul.f32 %v6545, %v6513
          %v6547 = vmul.f32 %v6546, %v6545
          %v6548 = vmul.f32 0.5, %v6547
          %v6549 = vsub.f32 1.5, %v6548
          %v6550 = vmul.f32 %v6545, %v6549
          %vm6551 = vweird.f32 %v6513
          %vm6552 = vweird.f32 %v6545
          %vm6553 = vmor %vm6551, %vm6552
          %v6554 = vsel %vm6553, %v6545, %v6550
          %v6555 = vrsqrt.pop %v6514
          %v6556 = vmul.f32 %v6555, %v6514
          %v6557 = vmul.f32 %v6556, %v6555
          %v6558 = vmul.f32 0.5, %v6557
          %v6559 = vsub.f32 1.5, %v6558
          %v6560 = vmul.f32 %v6555, %v6559
          %vm6561 = vweird.f32 %v6514
          %vm6562 = vweird.f32 %v6555
          %vm6563 = vmor %vm6561, %vm6562
          %v6564 = vsel %vm6563, %v6555, %v6560
          %v6565 = vrsqrt.pop %v6515
          %v6566 = vmul.f32 %v6565, %v6515
          %v6567 = vmul.f32 %v6566, %v6565
          %v6568 = vmul.f32 0.5, %v6567
          %v6569 = vsub.f32 1.5, %v6568
          %v6570 = vmul.f32 %v6565, %v6569
          %vm6571 = vweird.f32 %v6515
          %vm6572 = vweird.f32 %v6565
          %vm6573 = vmor %vm6571, %vm6572
          %v6574 = vsel %vm6573, %v6565, %v6570
          %v6575 = vrsqrt.pop %v6516
          %v6576 = vmul.f32 %v6575, %v6516
          %v6577 = vmul.f32 %v6576, %v6575
          %v6578 = vmul.f32 0.5, %v6577
          %v6579 = vsub.f32 1.5, %v6578
          %v6580 = vmul.f32 %v6575, %v6579
          %vm6581 = vweird.f32 %v6516
          %vm6582 = vweird.f32 %v6575
          %vm6583 = vmor %vm6581, %vm6582
          %v6584 = vsel %vm6583, %v6575, %v6580
          %v6585 = vrsqrt.pop %v6517
          %v6586 = vmul.f32 %v6585, %v6517
          %v6587 = vmul.f32 %v6586, %v6585
          %v6588 = vmul.f32 0.5, %v6587
          %v6589 = vsub.f32 1.5, %v6588
          %v6590 = vmul.f32 %v6585, %v6589
          %vm6591 = vweird.f32 %v6517
          %vm6592 = vweird.f32 %v6585
          %vm6593 = vmor %vm6591, %vm6592
          %v6594 = vsel %vm6593, %v6585, %v6590
          %v6595 = vrsqrt.pop %v6518
          %v6596 = vmul.f32 %v6595, %v6518
          %v6597 = vmul.f32 %v6596, %v6595
          %v6598 = vmul.f32 0.5, %v6597
          %v6599 = vsub.f32 1.5, %v6598
          %v6600 = vmul.f32 %v6595, %v6599
          %vm6601 = vweird.f32 %v6518
          %vm6602 = vweird.f32 %v6595
          %vm6603 = vmor %vm6601, %vm6602
          %v6604 = vsel %vm6603, %v6595, %v6600
          %v6605 = vrsqrt.pop %v6519
          %v6606 = vmul.f32 %v6605, %v6519
          %v6607 = vmul.f32 %v6606, %v6605
          %v6608 = vmul.f32 0.5, %v6607
          %v6609 = vsub.f32 1.5, %v6608
          %v6610 = vmul.f32 %v6605, %v6609
          %vm6611 = vweird.f32 %v6519
          %vm6612 = vweird.f32 %v6605
          %vm6613 = vmor %vm6611, %vm6612
          %v6614 = vsel %vm6613, %v6605, %v6610
          %v6615 = vrsqrt.pop %v6520
          %v6616 = vmul.f32 %v6615, %v6520
          %v6617 = vmul.f32 %v6616, %v6615
          %v6618 = vmul.f32 0.5, %v6617
          %v6619 = vsub.f32 1.5, %v6618
          %v6620 = vmul.f32 %v6615, %v6619
          %vm6621 = vweird.f32 %v6520
          %vm6622 = vweird.f32 %v6615
          %vm6623 = vmor %vm6621, %vm6622
          %v6624 = vsel %vm6623, %v6615, %v6620
          %v6625 = vrsqrt.pop %v6521
          %v6626 = vmul.f32 %v6625, %v6521
          %v6627 = vmul.f32 %v6626, %v6625
          %v6628 = vmul.f32 0.5, %v6627
          %v6629 = vsub.f32 1.5, %v6628
          %v6630 = vmul.f32 %v6625, %v6629
          %vm6631 = vweird.f32 %v6521
          %vm6632 = vweird.f32 %v6625
          %vm6633 = vmor %vm6631, %vm6632
          %v6634 = vsel %vm6633, %v6625, %v6630
          %v6635 = vrsqrt.pop %v6522
          %v6636 = vmul.f32 %v6635, %v6522
          %v6637 = vmul.f32 %v6636, %v6635
          %v6638 = vmul.f32 0.5, %v6637
          %v6639 = vsub.f32 1.5, %v6638
          %v6640 = vmul.f32 %v6635, %v6639
          %vm6641 = vweird.f32 %v6522
          %vm6642 = vweird.f32 %v6635
          %vm6643 = vmor %vm6641, %vm6642
          %v6644 = vsel %vm6643, %v6635, %v6640
          %v6645 = vrsqrt.pop %v6523
          %v6646 = vmul.f32 %v6645, %v6523
          %v6647 = vmul.f32 %v6646, %v6645
          %v6648 = vmul.f32 0.5, %v6647
          %v6649 = vsub.f32 1.5, %v6648
          %v6650 = vmul.f32 %v6645, %v6649
          %vm6651 = vweird.f32 %v6523
          %vm6652 = vweird.f32 %v6645
          %vm6653 = vmor %vm6651, %vm6652
          %v6654 = vsel %vm6653, %v6645, %v6650
          %v6655 = vrsqrt.pop %v6524
          %v6656 = vmul.f32 %v6655, %v6524
          %v6657 = vmul.f32 %v6656, %v6655
          %v6658 = vmul.f32 0.5, %v6657
          %v6659 = vsub.f32 1.5, %v6658
          %v6660 = vmul.f32 %v6655, %v6659
          %vm6661 = vweird.f32 %v6524
          %vm6662 = vweird.f32 %v6655
          %vm6663 = vmor %vm6661, %vm6662
          %v6664 = vsel %vm6663, %v6655, %v6660
          %v6665 = vrsqrt.pop %v6525
          %v6666 = vmul.f32 %v6665, %v6525
          %v6667 = vmul.f32 %v6666, %v6665
          %v6668 = vmul.f32 0.5, %v6667
          %v6669 = vsub.f32 1.5, %v6668
          %v6670 = vmul.f32 %v6665, %v6669
          %vm6671 = vweird.f32 %v6525
          %vm6672 = vweird.f32 %v6665
          %vm6673 = vmor %vm6671, %vm6672
          %v6674 = vsel %vm6673, %v6665, %v6670
          %v6675 = vrsqrt.pop %v6526
          %v6676 = vmul.f32 %v6675, %v6526
          %v6677 = vmul.f32 %v6676, %v6675
          %v6678 = vmul.f32 0.5, %v6677
          %v6679 = vsub.f32 1.5, %v6678
          %v6680 = vmul.f32 %v6675, %v6679
          %vm6681 = vweird.f32 %v6526
          %vm6682 = vweird.f32 %v6675
          %vm6683 = vmor %vm6681, %vm6682
          %v6684 = vsel %vm6683, %v6675, %v6680
          %v6685 = vrsqrt.pop %v6527
          %v6686 = vmul.f32 %v6685, %v6527
          %v6687 = vmul.f32 %v6686, %v6685
          %v6688 = vmul.f32 0.5, %v6687
          %v6689 = vsub.f32 1.5, %v6688
          %v6690 = vmul.f32 %v6685, %v6689
          %vm6691 = vweird.f32 %v6527
          %vm6692 = vweird.f32 %v6685
          %vm6693 = vmor %vm6691, %vm6692
          %v6694 = vsel %vm6693, %v6685, %v6690
          %v6695 = vrsqrt.pop %v6528
          %v6696 = vmul.f32 %v6695, %v6528
          %v6697 = vmul.f32 %v6696, %v6695
          %v6698 = vmul.f32 0.5, %v6697
          %v6699 = vsub.f32 1.5, %v6698
          %v6700 = vmul.f32 %v6695, %v6699
          %vm6701 = vweird.f32 %v6528
          %vm6702 = vweird.f32 %v6695
          %vm6703 = vmor %vm6701, %vm6702
          %v6704 = vsel %vm6703, %v6695, %v6700
          %v6705 = vrsqrt.pop %v6529
          %v6706 = vmul.f32 %v6705, %v6529
          %v6707 = vmul.f32 %v6706, %v6705
          %v6708 = vmul.f32 0.5, %v6707
          %v6709 = vsub.f32 1.5, %v6708
          %v6710 = vmul.f32 %v6705, %v6709
          %vm6711 = vweird.f32 %v6529
          %vm6712 = vweird.f32 %v6705
          %vm6713 = vmor %vm6711, %vm6712
          %v6714 = vsel %vm6713, %v6705, %v6710
          %v6715 = vrsqrt.pop %v6530
          %v6716 = vmul.f32 %v6715, %v6530
          %v6717 = vmul.f32 %v6716, %v6715
          %v6718 = vmul.f32 0.5, %v6717
          %v6719 = vsub.f32 1.5, %v6718
          %v6720 = vmul.f32 %v6715, %v6719
          %vm6721 = vweird.f32 %v6530
          %vm6722 = vweird.f32 %v6715
          %vm6723 = vmor %vm6721, %vm6722
          %v6724 = vsel %vm6723, %v6715, %v6720
          %v6725 = vrsqrt.pop %v6531
          %v6726 = vmul.f32 %v6725, %v6531
          %v6727 = vmul.f32 %v6726, %v6725
          %v6728 = vmul.f32 0.5, %v6727
          %v6729 = vsub.f32 1.5, %v6728
          %v6730 = vmul.f32 %v6725, %v6729
          %vm6731 = vweird.f32 %v6531
          %vm6732 = vweird.f32 %v6725
          %vm6733 = vmor %vm6731, %vm6732
          %v6734 = vsel %vm6733, %v6725, %v6730
          %v6735 = vrsqrt.pop %v6532
          %v6736 = vmul.f32 %v6735, %v6532
          %v6737 = vmul.f32 %v6736, %v6735
          %v6738 = vmul.f32 0.5, %v6737
          %v6739 = vsub.f32 1.5, %v6738
          %v6740 = vmul.f32 %v6735, %v6739
          %vm6741 = vweird.f32 %v6532
          %vm6742 = vweird.f32 %v6735
          %vm6743 = vmor %vm6741, %vm6742
          %v6744 = vsel %vm6743, %v6735, %v6740
          %v6745 = vrsqrt.pop %v6533
          %v6746 = vmul.f32 %v6745, %v6533
          %v6747 = vmul.f32 %v6746, %v6745
          %v6748 = vmul.f32 0.5, %v6747
          %v6749 = vsub.f32 1.5, %v6748
          %v6750 = vmul.f32 %v6745, %v6749
          %vm6751 = vweird.f32 %v6533
          %vm6752 = vweird.f32 %v6745
          %vm6753 = vmor %vm6751, %vm6752
          %v6754 = vsel %vm6753, %v6745, %v6750
          %v6755 = vrsqrt.pop %v6534
          %v6756 = vmul.f32 %v6755, %v6534
          %v6757 = vmul.f32 %v6756, %v6755
          %v6758 = vmul.f32 0.5, %v6757
          %v6759 = vsub.f32 1.5, %v6758
          %v6760 = vmul.f32 %v6755, %v6759
          %vm6761 = vweird.f32 %v6534
          %vm6762 = vweird.f32 %v6755
          %vm6763 = vmor %vm6761, %vm6762
          %v6764 = vsel %vm6763, %v6755, %v6760
          %v6765 = vrsqrt.pop %v6535
          %v6766 = vmul.f32 %v6765, %v6535
          %v6767 = vmul.f32 %v6766, %v6765
          %v6768 = vmul.f32 0.5, %v6767
          %v6769 = vsub.f32 1.5, %v6768
          %v6770 = vmul.f32 %v6765, %v6769
          %vm6771 = vweird.f32 %v6535
          %vm6772 = vweird.f32 %v6765
          %vm6773 = vmor %vm6771, %vm6772
          %v6774 = vsel %vm6773, %v6765, %v6770
          %v6775 = vrsqrt.pop %v6536
          %v6776 = vmul.f32 %v6775, %v6536
          %v6777 = vmul.f32 %v6776, %v6775
          %v6778 = vmul.f32 0.5, %v6777
          %v6779 = vsub.f32 1.5, %v6778
          %v6780 = vmul.f32 %v6775, %v6779
          %vm6781 = vweird.f32 %v6536
          %vm6782 = vweird.f32 %v6775
          %vm6783 = vmor %vm6781, %vm6782
          %v6784 = vsel %vm6783, %v6775, %v6780
          %v6785 = vrsqrt.pop %v6537
          %v6786 = vmul.f32 %v6785, %v6537
          %v6787 = vmul.f32 %v6786, %v6785
          %v6788 = vmul.f32 0.5, %v6787
          %v6789 = vsub.f32 1.5, %v6788
          %v6790 = vmul.f32 %v6785, %v6789
          %vm6791 = vweird.f32 %v6537
          %vm6792 = vweird.f32 %v6785
          %vm6793 = vmor %vm6791, %vm6792
          %v6794 = vsel %vm6793, %v6785, %v6790
          %v6795 = vrsqrt.pop %v6538
          %v6796 = vmul.f32 %v6795, %v6538
          %v6797 = vmul.f32 %v6796, %v6795
          %v6798 = vmul.f32 0.5, %v6797
          %v6799 = vsub.f32 1.5, %v6798
          %v6800 = vmul.f32 %v6795, %v6799
          %vm6801 = vweird.f32 %v6538
          %vm6802 = vweird.f32 %v6795
          %vm6803 = vmor %vm6801, %vm6802
          %v6804 = vsel %vm6803, %v6795, %v6800
          %v6805 = vrsqrt.pop %v6539
          %v6806 = vmul.f32 %v6805, %v6539
          %v6807 = vmul.f32 %v6806, %v6805
          %v6808 = vmul.f32 0.5, %v6807
          %v6809 = vsub.f32 1.5, %v6808
          %v6810 = vmul.f32 %v6805, %v6809
          %vm6811 = vweird.f32 %v6539
          %vm6812 = vweird.f32 %v6805
          %vm6813 = vmor %vm6811, %vm6812
          %v6814 = vsel %vm6813, %v6805, %v6810
          %v6815 = vrsqrt.pop %v6540
          %v6816 = vmul.f32 %v6815, %v6540
          %v6817 = vmul.f32 %v6816, %v6815
          %v6818 = vmul.f32 0.5, %v6817
          %v6819 = vsub.f32 1.5, %v6818
          %v6820 = vmul.f32 %v6815, %v6819
          %vm6821 = vweird.f32 %v6540
          %vm6822 = vweird.f32 %v6815
          %vm6823 = vmor %vm6821, %vm6822
          %v6824 = vsel %vm6823, %v6815, %v6820
          %v6825 = vrsqrt.pop %v6541
          %v6826 = vmul.f32 %v6825, %v6541
          %v6827 = vmul.f32 %v6826, %v6825
          %v6828 = vmul.f32 0.5, %v6827
          %v6829 = vsub.f32 1.5, %v6828
          %v6830 = vmul.f32 %v6825, %v6829
          %vm6831 = vweird.f32 %v6541
          %vm6832 = vweird.f32 %v6825
          %vm6833 = vmor %vm6831, %vm6832
          %v6834 = vsel %vm6833, %v6825, %v6830
          %v6835 = vrsqrt.pop %v6542
          %v6836 = vmul.f32 %v6835, %v6542
          %v6837 = vmul.f32 %v6836, %v6835
          %v6838 = vmul.f32 0.5, %v6837
          %v6839 = vsub.f32 1.5, %v6838
          %v6840 = vmul.f32 %v6835, %v6839
          %vm6841 = vweird.f32 %v6542
          %vm6842 = vweird.f32 %v6835
          %vm6843 = vmor %vm6841, %vm6842
          %v6844 = vsel %vm6843, %v6835, %v6840
          %v6845 = vrsqrt.pop %v6543
          %v6846 = vmul.f32 %v6845, %v6543
          %v6847 = vmul.f32 %v6846, %v6845
          %v6848 = vmul.f32 0.5, %v6847
          %v6849 = vsub.f32 1.5, %v6848
          %v6850 = vmul.f32 %v6845, %v6849
          %vm6851 = vweird.f32 %v6543
          %vm6852 = vweird.f32 %v6845
          %vm6853 = vmor %vm6851, %vm6852
          %v6854 = vsel %vm6853, %v6845, %v6850
          %v6855 = vrsqrt.pop %v6544
          %v6856 = vmul.f32 %v6855, %v6544
          %v6857 = vmul.f32 %v6856, %v6855
          %v6858 = vmul.f32 0.5, %v6857
          %v6859 = vsub.f32 1.5, %v6858
          %v6860 = vmul.f32 %v6855, %v6859
          %vm6861 = vweird.f32 %v6544
          %vm6862 = vweird.f32 %v6855
          %vm6863 = vmor %vm6861, %vm6862
          %v6864 = vsel %vm6863, %v6855, %v6860
          %v6865 = vmul.f32 %v6353, %v6554
          %v6866 = vmul.f32 %v6354, %v6564
          %v6867 = vmul.f32 %v6355, %v6574
          %v6868 = vmul.f32 %v6356, %v6584
          %v6869 = vmul.f32 %v6357, %v6594
          %v6870 = vmul.f32 %v6358, %v6604
          %v6871 = vmul.f32 %v6359, %v6614
          %v6872 = vmul.f32 %v6360, %v6624
          %v6873 = vmul.f32 %v6361, %v6634
          %v6874 = vmul.f32 %v6362, %v6644
          %v6875 = vmul.f32 %v6363, %v6654
          %v6876 = vmul.f32 %v6364, %v6664
          %v6877 = vmul.f32 %v6365, %v6674
          %v6878 = vmul.f32 %v6366, %v6684
          %v6879 = vmul.f32 %v6367, %v6694
          %v6880 = vmul.f32 %v6368, %v6704
          %v6881 = vmul.f32 %v6369, %v6714
          %v6882 = vmul.f32 %v6370, %v6724
          %v6883 = vmul.f32 %v6371, %v6734
          %v6884 = vmul.f32 %v6372, %v6744
          %v6885 = vmul.f32 %v6373, %v6754
          %v6886 = vmul.f32 %v6374, %v6764
          %v6887 = vmul.f32 %v6375, %v6774
          %v6888 = vmul.f32 %v6376, %v6784
          %v6889 = vmul.f32 %v6377, %v6794
          %v6890 = vmul.f32 %v6378, %v6804
          %v6891 = vmul.f32 %v6379, %v6814
          %v6892 = vmul.f32 %v6380, %v6824
          %v6893 = vmul.f32 %v6381, %v6834
          %v6894 = vmul.f32 %v6382, %v6844
          %v6895 = vmul.f32 %v6383, %v6854
          %v6896 = vmul.f32 %v6384, %v6864
          %v6897 = vperm.slane %v376, 1
          %v6898 = vmul.f32 %v6865, %v6897
          %v6899 = vmul.f32 %v6866, %v6897
          %v6900 = vmul.f32 %v6867, %v6897
          %v6901 = vmul.f32 %v6868, %v6897
          %v6902 = vmul.f32 %v6869, %v6897
          %v6903 = vmul.f32 %v6870, %v6897
          %v6904 = vmul.f32 %v6871, %v6897
          %v6905 = vmul.f32 %v6872, %v6897
          %v6906 = vmul.f32 %v6873, %v6897
          %v6907 = vmul.f32 %v6874, %v6897
          %v6908 = vmul.f32 %v6875, %v6897
          %v6909 = vmul.f32 %v6876, %v6897
          %v6910 = vmul.f32 %v6877, %v6897
          %v6911 = vmul.f32 %v6878, %v6897
          %v6912 = vmul.f32 %v6879, %v6897
          %v6913 = vmul.f32 %v6880, %v6897
          %v6914 = vmul.f32 %v6881, %v6897
          %v6915 = vmul.f32 %v6882, %v6897
          %v6916 = vmul.f32 %v6883, %v6897
          %v6917 = vmul.f32 %v6884, %v6897
          %v6918 = vmul.f32 %v6885, %v6897
          %v6919 = vmul.f32 %v6886, %v6897
          %v6920 = vmul.f32 %v6887, %v6897
          %v6921 = vmul.f32 %v6888, %v6897
          %v6922 = vmul.f32 %v6889, %v6897
          %v6923 = vmul.f32 %v6890, %v6897
          %v6924 = vmul.f32 %v6891, %v6897
          %v6925 = vmul.f32 %v6892, %v6897
          %v6926 = vmul.f32 %v6893, %v6897
          %v6927 = vmul.f32 %v6894, %v6897
          %v6928 = vmul.f32 %v6895, %v6897
          %v6929 = vmul.f32 %v6896, %v6897
          %v6930 = vperm.slane %v376, 2
          %v6931 = vadd.f32 %v6898, %v6930
          %v6932 = vadd.f32 %v6899, %v6930
          %v6933 = vadd.f32 %v6900, %v6930
          %v6934 = vadd.f32 %v6901, %v6930
          %v6935 = vadd.f32 %v6902, %v6930
          %v6936 = vadd.f32 %v6903, %v6930
          %v6937 = vadd.f32 %v6904, %v6930
          %v6938 = vadd.f32 %v6905, %v6930
          %v6939 = vadd.f32 %v6906, %v6930
          %v6940 = vadd.f32 %v6907, %v6930
          %v6941 = vadd.f32 %v6908, %v6930
          %v6942 = vadd.f32 %v6909, %v6930
          %v6943 = vadd.f32 %v6910, %v6930
          %v6944 = vadd.f32 %v6911, %v6930
          %v6945 = vadd.f32 %v6912, %v6930
          %v6946 = vadd.f32 %v6913, %v6930
          %v6947 = vadd.f32 %v6914, %v6930
          %v6948 = vadd.f32 %v6915, %v6930
          %v6949 = vadd.f32 %v6916, %v6930
          %v6950 = vadd.f32 %v6917, %v6930
          %v6951 = vadd.f32 %v6918, %v6930
          %v6952 = vadd.f32 %v6919, %v6930
          %v6953 = vadd.f32 %v6920, %v6930
          %v6954 = vadd.f32 %v6921, %v6930
          %v6955 = vadd.f32 %v6922, %v6930
          %v6956 = vadd.f32 %v6923, %v6930
          %v6957 = vadd.f32 %v6924, %v6930
          %v6958 = vadd.f32 %v6925, %v6930
          %v6959 = vadd.f32 %v6926, %v6930
          %v6960 = vadd.f32 %v6927, %v6930
          %v6961 = vadd.f32 %v6928, %v6930
          %v6962 = vadd.f32 %v6929, %v6930
          %v6963 = vadd.f32 %v6931, %v6932
          %v6964 = vadd.f32 %v6963, %v6933
          %v6965 = vadd.f32 %v6964, %v6934
          %v6966 = vadd.f32 %v6965, %v6935
          %v6967 = vadd.f32 %v6966, %v6936
          %v6968 = vadd.f32 %v6967, %v6937
          %v6969 = vadd.f32 %v6968, %v6938
          %v6970 = vrot.slane %v6969, 4
          %v6971 = vadd.f32 %v6969, %v6970
          %v6972 = vrot.slane %v6971, 2
          %v6973 = vadd.f32 %v6971, %v6972
          %v6974 = vrot.slane %v6973, 1
          %v6975 = vadd.f32 %v6973, %v6974
          %v6976 = vadd.f32 %v6939, %v6940
          %v6977 = vadd.f32 %v6976, %v6941
          %v6978 = vadd.f32 %v6977, %v6942
          %v6979 = vadd.f32 %v6978, %v6943
          %v6980 = vadd.f32 %v6979, %v6944
          %v6981 = vadd.f32 %v6980, %v6945
          %v6982 = vadd.f32 %v6981, %v6946
          %v6983 = vrot.slane %v6982, 4
          %v6984 = vadd.f32 %v6982, %v6983
          %v6985 = vrot.slane %v6984, 2
          %v6986 = vadd.f32 %v6984, %v6985
          %v6987 = vrot.slane %v6986, 1
          %v6988 = vadd.f32 %v6986, %v6987
          %v6989 = vadd.f32 %v6947, %v6948
          %v6990 = vadd.f32 %v6989, %v6949
          %v6991 = vadd.f32 %v6990, %v6950
          %v6992 = vadd.f32 %v6991, %v6951
          %v6993 = vadd.f32 %v6992, %v6952
          %v6994 = vadd.f32 %v6993, %v6953
          %v6995 = vadd.f32 %v6994, %v6954
          %v6996 = vrot.slane %v6995, 4
          %v6997 = vadd.f32 %v6995, %v6996
          %v6998 = vrot.slane %v6997, 2
          %v6999 = vadd.f32 %v6997, %v6998
          %v7000 = vrot.slane %v6999, 1
          %v7001 = vadd.f32 %v6999, %v7000
          %v7002 = vadd.f32 %v6955, %v6956
          %v7003 = vadd.f32 %v7002, %v6957
          %v7004 = vadd.f32 %v7003, %v6958
          %v7005 = vadd.f32 %v7004, %v6959
          %v7006 = vadd.f32 %v7005, %v6960
          %v7007 = vadd.f32 %v7006, %v6961
          %v7008 = vadd.f32 %v7007, %v6962
          %v7009 = vrot.slane %v7008, 4
          %v7010 = vadd.f32 %v7008, %v7009
          %v7011 = vrot.slane %v7010, 2
          %v7012 = vadd.f32 %v7010, %v7011
          %v7013 = vrot.slane %v7012, 1
          %v7014 = vadd.f32 %v7012, %v7013
          %v7015 = vrcp.pop 64.0
          %v7016 = vmul.f32 64.0, %v7015
          %v7017 = vsub.f32 1.0, %v7016
          %v7018 = vmul.f32 %v7015, %v7017
          %v7019 = vadd.f32 %v7015, %v7018
          %vm7020 = vweird.f32 %v7015
          %v7021 = vsel %vm7020, %v7015, %v7019
          %v7022 = vmul.f32 %v6975, %v7021
          %v7023 = vmul.f32 %v6988, %v7021
          %v7024 = vmul.f32 %v7001, %v7021
          %v7025 = vmul.f32 %v7014, %v7021
          %v7026 = vpack.c.bf16 %v7022, %v7022
          %v7027 = vpack.c.bf16 %v7023, %v7023
          %v7028 = vpack.c.bf16 %v7024, %v7024
          %v7029 = vpack.c.bf16 %v7025, %v7025
          %v7030 = vld [vmem:[%s2] sm:$0xf]
          %v7031 = vld [vmem:[%s2 + $0x4] sm:$0xf]
          %v7032 = vld [vmem:[%s2 + $0x8] sm:$0xf]
          %v7033 = vld [vmem:[%s2 + $0xc] sm:$0xf]
          %v7034 = vld [vmem:[%s2 + $0x10] sm:$0xf]
          %v7035 = vld [vmem:[%s2 + $0x14] sm:$0xf]
          %v7036 = vld [vmem:[%s2 + $0x18] sm:$0xf]
          %v7037 = vld [vmem:[%s2 + $0x1c] sm:$0xf]
          %v7038 = vld [vmem:[%s2 + $0x20] sm:$0xf]
          %v7039 = vld [vmem:[%s2 + $0x24] sm:$0xf]
          %v7040 = vld [vmem:[%s2 + $0x28] sm:$0xf]
          %v7041 = vld [vmem:[%s2 + $0x2c] sm:$0xf]
          %v7042 = vld [vmem:[%s2 + $0x30] sm:$0xf]
          %v7043 = vld [vmem:[%s2 + $0x34] sm:$0xf]
          %v7044 = vld [vmem:[%s2 + $0x38] sm:$0xf]
          %v7045 = vld [vmem:[%s2 + $0x3c] sm:$0xf]
          %v7046 = vperm.slane %v376, 3
          %v7051 = vunpack.c.l.b16 %v7026
          %v7052 = vunpack.c.l.b16 %v7027
          %v7053 = vunpack.c.l.b16 %v7028
          %v7054 = vunpack.c.l.b16 %v7029
          %vm7055 = vcmask 1041409
          %v7056 = vsel %vm7055, %v7052, %v7051
          %vm7057 = vcmask 1042434
          %v7058 = vsel %vm7057, %v7053, %v7056
          %vm7059 = vcmask 1043459
          %v7060 = vsel %vm7059, %v7054, %v7058
          %v7061 = vpack.c.b16 %v7060, %v7060
          %v7079 = vunpack.c.l.b16 %v7030
          %v7080 = vunpack.c.l.b16 %v7031
          %v7081 = vunpack.c.l.b16 %v7032
          %v7082 = vunpack.c.l.b16 %v7033
          %v7083 = vunpack.c.l.b16 %v7034
          %v7084 = vunpack.c.l.b16 %v7035
          %v7085 = vunpack.c.l.b16 %v7036
          %v7086 = vunpack.c.l.b16 %v7037
          %v7087 = vunpack.c.l.b16 %v7038
          %v7088 = vunpack.c.l.b16 %v7039
          %v7089 = vunpack.c.l.b16 %v7040
          %v7090 = vunpack.c.l.b16 %v7041
          %v7091 = vunpack.c.l.b16 %v7042
          %v7092 = vunpack.c.l.b16 %v7043
          %v7093 = vunpack.c.l.b16 %v7044
          %v7094 = vunpack.c.l.b16 %v7045
          %v7095 = vpack.c.b16 %v7080, %v7079
          %v7096 = vpack.c.b16 %v7082, %v7081
          %v7097 = vpack.c.b16 %v7084, %v7083
          %v7098 = vpack.c.b16 %v7086, %v7085
          %v7099 = vpack.c.b16 %v7088, %v7087
          %v7100 = vpack.c.b16 %v7090, %v7089
          %v7101 = vpack.c.b16 %v7092, %v7091
          %v7102 = vpack.c.b16 %v7094, %v7093
          %7111 = vmatpush.bf16.msra.mxu0 %v7102
          %7112 = vmatpush.bf16.msra.mxu0 %v7101
          %7113 = vmatpush.bf16.msra.mxu0 %v7100
          %7114 = vmatpush.bf16.msra.mxu0 %v7099
          %7115 = vmatpush.bf16.msra.mxu0 %v7098
          %7116 = vmatpush.bf16.msra.mxu0 %v7097
          %7117 = vmatpush.bf16.msra.mxu0 %v7096
          %7118 = vmatpush.bf16.msra.mxu0 %v7095
          %7119 = vmatmul.bf16.gmra.mxu0 %v7061
          %v7120 = vpop.f32.mrf.mxu0
          %v7121 = vadd.f32 %v7046, %v7120
          %v7122 = vpop.f32.mrf.mxu0
          %7123 = vdwg.mxu0
          %7124 = vst [vmem:[%s367] sm:$0xf] %v7121
        $region68: #{mlp_mixer_forward.1} parent=59 // pred_fallthru
          _
        %s7125 = sand.u32 %s259, 1
        %s7126 = scalar_lea.sflag [#allocation5], %s7125
        %s7127 = sand.u32 %s259, 1
        %s7128 = smul.addr %s7127, 4
        %s7129 = scalar_lea.vmem [#allocation4], %s7128
        // Predicated region
        $region69: #{mlp_mixer_forward.1} parent=59 // pred_check
          %p7130 = pneg %p269
        $region70: #{mlp_mixer_forward.1} parent=59 // pred_check_branch
          %7132 = sbr.rel (%p7130) target = $region72
        $region71: #{mlp_mixer_forward.1} parent=59 // pred_region
          %7134 = vsyncadd %s7126, 0
          %s7135 = smul.addr %s28, 4
          %s7136 = scalar_lea.hbm %s10, %s7135
          %s7138 = sshll.u32 %s7129, 4
          %s7139 = int_to_ptr.vmem [resolvable:$true] %s7138
          %s7140 = sshll.u32 %s7136, 4
          %s7141 = int_to_ptr.hbm [resolvable:$true] %s7140
          %7143 = dma.vmem_to_hbm [thread:$0]  %s7139, 64, %s7141, %s7126
        $region72: #{mlp_mixer_forward.1} parent=59 // pred_fallthru
          _
      $region60: #{mlp_mixer_forward.1} parent=5 // pred_fallthru
        _
      %p7144 = scmp.le.s32.totalorder 2, %s19
      // Predicated region
      $region73: #{mlp_mixer_forward.1} parent=5 // pred_check
        %p7145 = pneg %p7144
      $region74: #{mlp_mixer_forward.1} parent=5 // pred_check_branch
        %7147 = sbr.rel (%p7145) target = $region76
      $region75: #{mlp_mixer_forward.1} parent=5 // pred_region
        %s7148 = ssub.s32 %s19, 2
        // Predicated region
        $region77: #{mlp_mixer_forward.1} parent=75 // pred_check
          %p7149 = pneg %p275
        $region78: #{mlp_mixer_forward.1} parent=75 // pred_check_branch
          %7151 = sbr.rel (%p7149) target = $region80
        $region79: #{mlp_mixer_forward.1} parent=75 // pred_region
          %s7152 = sand.u32 %s260, 1
          %s7153 = scalar_lea.sflag [#allocation5], %s7152
          %s7154 = sand.u32 %s260, 1
          %s7155 = smul.addr %s7154, 4
          %s7156 = scalar_lea.vmem [#allocation4], %s7155
          %7158 = dma.done %s7153, 64
        $region80: #{mlp_mixer_forward.1} parent=75 // pred_fallthru
          _
      $region76: #{mlp_mixer_forward.1} parent=5 // pred_fallthru
        _
    $region6: #{mlp_mixer_forward.1} parent=1 // loop_footer
      %s23 = sadd.s32 1, %s19
    $region7: #{mlp_mixer_forward.1} parent=1 // loop_footer_branch
      %18 = sbr.rel target = $region3
    $region8: #{mlp_mixer_forward.1} parent=1 // loop_exit
      _
    %7159 = vsyncpa [#allocation5], 1
    %s7160 = scalar_lea.sflag [#allocation5], 1
    %7161 = vsyncpa %s7160, 1

</llo_original>
